<compile_context>
chip_gen: v5e
topology: v5e:2x2
jax: 0.10.0
libtpu: 0.0.40
codegen_flags: <defaults>
</compile_context>

<pallas_src>
import functools
import itertools

import numpy as np
import jax
import jax.numpy as jnp
from jax import lax
from jax.experimental import pallas as pl
from jax.experimental.pallas import tpu as pltpu


_PRIMES = (1, 2654435761, 805459861, 3674653429, 2097192037, 1434869437, 2165219737)
# int32 two's-complement view of the uint32 primes (torch's int32 math wraps the same way)
_PRIMES_I32 = tuple(p if p < 2 ** 31 else p - 2 ** 32 for p in _PRIMES)


def _grid_scale(level, per_level_scale, base_resolution):
    return float(
        np.power(np.float32(2.0),
                 np.float32(level) * np.log2(np.float32(per_level_scale)))
        * np.float32(base_resolution) - np.float32(1.0))


def _grid_resolution(scale):
    return int(np.int32(np.ceil(np.float32(scale))) + 1)


def _round_up(x, m):
    return (x + m - 1) // m * m


def build_level_params(n_pos_dims, n_levels, log2_hashmap_size,
                       base_resolution, per_level_scale):
    """Static per-level metadata (mirrors HashEmbedderNative.__init__ / hash_it)."""
    levels = []
    offset = 0
    for lvl in range(n_levels):
        scale = _grid_scale(lvl, per_level_scale, base_resolution)
        resolution = _grid_resolution(scale)
        length = resolution ** n_pos_dims
        length = (length + 8 - 1) // 8 * 8
        length = min(length, 1 << log2_hashmap_size)
        hashmap_size = length
        # replicate hash_it's static stride / early-break logic
        stride = 1
        strides = []
        for _ in range(n_pos_dims):
            strides.append(stride)
            stride *= resolution
            if stride > hashmap_size:
                break
        use_hash = hashmap_size < stride
        levels.append(dict(scale=scale, resolution=resolution,
                           hashmap_size=hashmap_size, strides=tuple(strides),
                           use_hash=use_hash, offset=offset))
        offset += length
    return levels, offset


def _level_onehot_width(hashmap_size):
    # Masked-weight / matmul-K width per level: lane-align to 128; round bigger
    # levels to 256 so the 2x256x256 MXU slabs on v6e/v7x are fully used.
    if hashmap_size <= 128:
        return 128
    return _round_up(hashmap_size, 256)


def _pick_tile_n(n, k_max, tile_n=None):
    if tile_n is None:
        # Target >= ~8 grid steps so each v7x TensorCore still gets >= ~4
        # pipelined iterations; clamp to [128, 512] lanes.
        tile_n = min(512, max(128, _round_up(max(n, 1) // 8, 128)))
    # Keep (k_max, tile_n) masked-weight temp + iota + slack well inside the
    # 32 MiB scoped limit (and v7x's 64 MiB physical VMEM).
    while k_max * tile_n * 4 * 3 > 24 * 2 ** 20 and tile_n > 128:
        tile_n //= 2
    return tile_n


# ----------------------------- Pallas kernel ------------------------------ #

def _hash_embed_kernel(coords_ref, table_t_ref, out_ref, *,
                       level_params, level_kpad, n_pos_dims, mxu_precision):
    coords = coords_ref[...]                      # (D, TN) f32, samples on lanes
    table_full = table_t_ref[...]                 # (F_pad, K_max) f32, feature-major
    tn = coords.shape[1]
    f_pad = table_full.shape[0]
    k_max = table_full.shape[1]
    corners = list(itertools.product((0, 1), repeat=n_pos_dims))

    # One shared sublane-axis iota, hoisted once (JAX does not CSE broadcasts);
    # per-level prefixes are tile-aligned slices (k_pad is a multiple of 128).
    iota_kmax = lax.broadcasted_iota(jnp.int32, (k_max, tn), 0)

    acc = jnp.ones((f_pad, tn), dtype=jnp.float32)
    for lp, k_pad in zip(level_params, level_kpad):   # n_levels static -> unrolled
        pos = coords * jnp.float32(lp["scale"]) + jnp.float32(0.5)   # (D, TN)
        idx = jnp.floor(pos).astype(jnp.int32)                       # (D, TN)
        frac = pos - idx.astype(jnp.float32)                         # (D, TN)
        om = jnp.float32(1.0) - frac                                 # (D, TN)

        # Per-dim hash/stride contributions for both corner bits (wrapping
        # int32, so (idx+1)*p == idx*p + p exactly mod 2^32).
        terms = []
        if lp["use_hash"]:
            for d in range(n_pos_dims):
                p = jnp.int32(_PRIMES_I32[d])
                base = idx[d:d + 1, :] * p
                terms.append((base, base + p))
        else:
            for d, stride in enumerate(lp["strides"]):
                s = jnp.int32(stride)
                base = idx[d:d + 1, :] * s
                terms.append((base, base + s))

        hs = lp["hashmap_size"]
        hs_is_pow2 = (hs & (hs - 1)) == 0
        iota = iota_kmax[:k_pad, :] if k_pad < k_max else iota_kmax
        table_lvl = table_full[:, :k_pad] if k_pad < k_max else table_full

        level_emb = None
        for corner in corners:
            # --- hashed / strided table row for this corner, (1, TN) ---
            if lp["use_hash"]:
                h = terms[0][corner[0]]
                for d in range(1, n_pos_dims):
                    h = jnp.bitwise_xor(h, terms[d][corner[d]])
            else:
                h = terms[0][corner[0]]
                for d in range(1, len(terms)):
                    h = h + terms[d][corner[d]]
            if hs_is_pow2:
                h = jnp.bitwise_and(h, jnp.int32(hs - 1))   # == mod for pow2, incl. negatives
            else:
                # torch.remainder (%) semantics: non-negative result.
                # TODO(synk): confirm in the Mosaic dump that this constant-divisor
                # mod strength-reduces; hand-roll multiply-high + shift if not.
                h = jnp.mod(h, jnp.int32(hs))

            # --- bilinear / trilinear interpolation weight, (1, TN) ---
            w = frac[0:1, :] if corner[0] else om[0:1, :]
            for d in range(1, n_pos_dims):
                w = w * (frac[d:d + 1, :] if corner[d] else om[d:d + 1, :])

            # Per-corner masked-weight matrix feeds its own MXU matmul and dies
            # immediately: the F.embedding gather + weighted corner sum with NO
            # (K, TN)-wide VALU accumulation or VMEM round-trip.
            masked = jnp.where(h == iota, w, jnp.float32(0.0))        # (k_pad, TN)
            contrib = jnp.dot(table_lvl, masked,
                              preferred_element_type=jnp.float32,
                              precision=mxu_precision)                # (F_pad, TN)
            level_emb = contrib if level_emb is None else level_emb + contrib

        acc = acc * level_emb                       # prod over levels (torch .prod(-2))

    out_ref[...] = acc                              # full 8-sublane, lane-aligned store


# ------------------------------- wrappers ---------------------------------- #

def prepare_table(params, *, n_pos_dims, n_levels, n_feat, log2_hashmap_size,
                  base_resolution, per_level_scale):
    """Hoisted per-parameter work: reshape, trim, transpose, zero-pad once.

    Invariant: the torch forward never adds embedding_offsets, so hashed rows
    are always < per-level hashmap_size <= max_hs; rows >= max_hs are padding
    that can never be selected.
    """
    level_params, total_rows = build_level_params(
        n_pos_dims, n_levels, log2_hashmap_size, base_resolution, per_level_scale)
    level_kpad = [_level_onehot_width(lp["hashmap_size"]) for lp in level_params]
    k_max = max(level_kpad)
    max_hs = max(lp["hashmap_size"] for lp in level_params)
    assert max_hs <= k_max
    f_pad = max(8, _round_up(n_feat, 8))   # sublane-pad the feature axis for the MXU

    table = jnp.asarray(params, jnp.float32).reshape(total_rows, n_feat)[:max_hs, :]
    table_t = jnp.zeros((f_pad, k_max), jnp.float32)
    table_t = table_t.at[:n_feat, :max_hs].set(jnp.transpose(table))
    return table_t


def hash_embedder_forward(coords, table_t, *, n_pos_dims, n_levels, n_feat,
                          log2_hashmap_size, base_resolution, per_level_scale,
                          tile_n=None, mxu_precision=lax.Precision.HIGHEST):
    """Forward pass.  `table_t` must come from prepare_table (same config)."""
    level_params, _ = build_level_params(
        n_pos_dims, n_levels, log2_hashmap_size, base_resolution, per_level_scale)
    level_kpad = [_level_onehot_width(lp["hashmap_size"]) for lp in level_params]
    k_max = max(level_kpad)
    f_pad = max(8, _round_up(n_feat, 8))
    assert table_t.shape == (f_pad, k_max), (table_t.shape, (f_pad, k_max))

    if k_max > 4096:
        # TODO(synk): gather path for production-size tables (see header).
        raise NotImplementedError(
            "hashmap sizes > 4096 need the direct-gather path; the dense "
            "(K, tile_n) masked-weight temp would not fit VMEM.")

    n = coords.shape[0]
    assert coords.shape == (n, n_pos_dims)
    tile_n = _pick_tile_n(n, k_max, tile_n)

    # Transpose coords to (D, N) lane-dense and pad N to a tile multiple.
    n_pad = _round_up(max(n, tile_n), tile_n)
    coords_t = jnp.zeros((n_pos_dims, n_pad), jnp.float32)
    coords_t = coords_t.at[:, :n].set(jnp.transpose(coords.astype(jnp.float32)))

    kernel = functools.partial(_hash_embed_kernel,
                               level_params=level_params,
                               level_kpad=level_kpad,
                               n_pos_dims=n_pos_dims,
                               mxu_precision=mxu_precision)
    out = pl.pallas_call(
        kernel,
        out_shape=jax.ShapeDtypeStruct((f_pad, n_pad), jnp.float32),
        grid_spec=pltpu.PrefetchScalarGridSpec(
            num_scalar_prefetch=0,
            grid=(n_pad // tile_n,),
            in_specs=[
                pl.BlockSpec((n_pos_dims, tile_n), lambda i: (0, i)),
                # whole (small, trimmed) table resident in VMEM:
                # single-buffered, never re-fetched across grid steps.
                pl.BlockSpec(memory_space=pltpu.MemorySpace.VMEM),
            ],
            out_specs=pl.BlockSpec((f_pad, tile_n), lambda i: (0, i))),
        compiler_params=pltpu.CompilerParams(
            dimension_semantics=("parallel",),
            # Budget chosen to fit every generation incl. v7x's 64 MiB VMEM;
            # the trimmed table + (K, tile_n) per-corner temps are far below it.
            vmem_limit_bytes=32 * 1024 * 1024),
    )(coords_t, table_t)
    # back to torch's (N, n_features_per_level)
    return jnp.transpose(out[:n_feat, :n])


# --------------------------- plain-numpy reference ------------------------- #

def _wrap_i32(x):
    return ((np.asarray(x, dtype=np.int64) + 2 ** 31) % 2 ** 32 - 2 ** 31).astype(np.int32)


def reference_forward(coords, params, level_params, n_pos_dims, n_feat):
    coords = np.asarray(coords, dtype=np.float32)
    table = np.asarray(params, dtype=np.float32).reshape(-1, n_feat)
    n = coords.shape[0]
    corners = list(itertools.product((0, 1), repeat=n_pos_dims))
    out = np.ones((n, n_feat), dtype=np.float32)
    for lp in level_params:
        pos = coords * np.float32(lp["scale"]) + np.float32(0.5)
        idx = np.floor(pos).astype(np.int32)
        frac = (pos - idx).astype(np.float32)
        level_val = np.zeros((n, n_feat), dtype=np.float32)
        for corner in corners:
            if lp["use_hash"]:
                h = np.zeros(n, dtype=np.int32)
                for d in range(n_pos_dims):
                    cd = idx[:, d].astype(np.int64) + corner[d]
                    h = h ^ _wrap_i32(cd * _PRIMES_I32[d])
            else:
                acc = np.zeros(n, dtype=np.int64)
                for d, stride in enumerate(lp["strides"]):
                    acc += (idx[:, d].astype(np.int64) + corner[d]) * stride
                h = _wrap_i32(acc)
            h = h % np.int32(lp["hashmap_size"])
            w = np.ones(n, dtype=np.float32)
            for d, bit in enumerate(corner):
                fd = frac[:, d]
                w = w * (fd if bit else (np.float32(1.0) - fd))
            level_val += w[:, None] * table[h]
        out = out * level_val
    return out


if __name__ == "__main__":
    n_pos_dims = 2
    cfg = dict(n_levels=4, n_features_per_level=2, log2_hashmap_size=6,
               base_resolution=4, per_level_scale=1.5)
    level_params, total_rows = build_level_params(
        n_pos_dims, cfg["n_levels"], cfg["log2_hashmap_size"],
        cfg["base_resolution"], cfg["per_level_scale"])

    key = jax.random.PRNGKey(0)
    k_coords, k_params = jax.random.split(key)
    N = 1024                                  # tile_n auto-picks 128 -> 8 grid steps
    coords = jax.random.uniform(k_coords, (N, n_pos_dims), dtype=jnp.float32)
    # deterministic stand-in for nn.init.uniform_(params, -1e-4, 1e-4)
    params = jax.random.uniform(
        k_params, (total_rows * cfg["n_features_per_level"],),
        dtype=jnp.float32, minval=-1e-4, maxval=1e-4)

    # Hoisted once per parameter set (perf review: not part of the per-call path).
    table_t = prepare_table(
        params,
        n_pos_dims=n_pos_dims,
        n_levels=cfg["n_levels"],
        n_feat=cfg["n_features_per_level"],
        log2_hashmap_size=cfg["log2_hashmap_size"],
        base_resolution=cfg["base_resolution"],
        per_level_scale=cfg["per_level_scale"])

    out = hash_embedder_forward(
        coords, table_t,
        n_pos_dims=n_pos_dims,
        n_levels=cfg["n_levels"],
        n_feat=cfg["n_features_per_level"],
        log2_hashmap_size=cfg["log2_hashmap_size"],
        base_resolution=cfg["base_resolution"],
        per_level_scale=cfg["per_level_scale"])
    out = jax.block_until_ready(out)

    ref = reference_forward(np.asarray(coords), np.asarray(params),
                            level_params, n_pos_dims, cfg["n_features_per_level"])
    # Tightened vs the previous rtol=2e-2 so precision regressions (bf16/HIGH
    # experiments) are caught.  Per-level f32 factors agree to ~1e-10 absolute;
    # after the product over 4 levels the worst-case absolute error is ~1e-21
    # even when a factor cancels catastrophically (which only inflates the
    # *relative* error), hence the small atol plus a tight rtol.
    np.testing.assert_allclose(np.asarray(out), ref, rtol=1e-4, atol=5e-21)
    print("KERNEL_OK")
</pallas_src>

<mosaic_0001>
module attributes {stable_mosaic.version = 11 : i64} {
  func.func @_hash_embed_kernel(%arg0: i32, %arg1: memref<2x128xf32, #tpu.memory_space<vmem>>, %arg2: memref<8x128xf32, #tpu.memory_space<vmem>>, %arg3: memref<8x128xf32, #tpu.memory_space<vmem>>) attributes {dimension_semantics = [#tpu.dimension_semantics<parallel>], iteration_bounds = array<i64: 8>, scalar_prefetch = 0 : i64, scratch_operands = 0 : i64, tpu.core_type = #tpu.core_type<tc>, window_params = [{transform_indices = @transform_0, window_bounds = array<i64: 2, 128>}, {pipeline_mode = #tpu.pipeline_mode<synchronous>, transform_indices = @transform_1, window_bounds = array<i64: 8, 128>}, {transform_indices = @transform_2, window_bounds = array<i64: 8, 128>}]} {
    %c0 = arith.constant 0 : index
    %c0_0 = arith.constant 0 : index
    %0 = vector.load %arg1[%c0, %c0_0] : memref<2x128xf32, #tpu.memory_space<vmem>>, vector<2x128xf32>
    %c0_1 = arith.constant 0 : index
    %c0_2 = arith.constant 0 : index
    %1 = vector.load %arg2[%c0_1, %c0_2] : memref<8x128xf32, #tpu.memory_space<vmem>>, vector<8x128xf32>
    %2 = tpu.iota {dimensions = array<i32: 0>} : vector<128x128xi32>
    %cst = arith.constant 1.000000e+00 : f32
    %3 = vector.broadcast %cst : f32 to vector<8x128xf32>
    %cst_3 = arith.constant 3.000000e+00 : f32
    %4 = vector.broadcast %cst_3 : f32 to vector<2x128xf32>
    %5 = arith.mulf %0, %4 : vector<2x128xf32>
    %cst_4 = arith.constant 5.000000e-01 : f32
    %6 = vector.broadcast %cst_4 : f32 to vector<2x128xf32>
    %7 = arith.addf %5, %6 : vector<2x128xf32>
    %8 = math.floor %7 : vector<2x128xf32>
    %9 = arith.fptosi %8 : vector<2x128xf32> to vector<2x128xi32>
    %10 = arith.sitofp %9 : vector<2x128xi32> to vector<2x128xf32>
    %11 = arith.subf %7, %10 : vector<2x128xf32>
    %cst_5 = arith.constant 1.000000e+00 : f32
    %12 = vector.broadcast %cst_5 : f32 to vector<2x128xf32>
    %13 = arith.subf %12, %11 : vector<2x128xf32>
    %14 = vector.extract_strided_slice %9 {offsets = [0, 0], sizes = [1, 128], strides = [1, 1]} : vector<2x128xi32> to vector<1x128xi32>
    %c1_i32 = arith.constant 1 : i32
    %15 = vector.broadcast %c1_i32 : i32 to vector<1x128xi32>
    %16 = arith.muli %14, %15 : vector<1x128xi32>
    %c1_i32_6 = arith.constant 1 : i32
    %17 = vector.broadcast %c1_i32_6 : i32 to vector<1x128xi32>
    %18 = arith.addi %16, %17 : vector<1x128xi32>
    %19 = vector.extract_strided_slice %9 {offsets = [1, 0], sizes = [1, 128], strides = [1, 1]} : vector<2x128xi32> to vector<1x128xi32>
    %c4_i32 = arith.constant 4 : i32
    %20 = vector.broadcast %c4_i32 : i32 to vector<1x128xi32>
    %21 = arith.muli %19, %20 : vector<1x128xi32>
    %c4_i32_7 = arith.constant 4 : i32
    %22 = vector.broadcast %c4_i32_7 : i32 to vector<1x128xi32>
    %23 = arith.addi %21, %22 : vector<1x128xi32>
    %24 = arith.addi %16, %21 : vector<1x128xi32>
    %c15_i32 = arith.constant 15 : i32
    %25 = vector.broadcast %c15_i32 : i32 to vector<1x128xi32>
    %26 = arith.andi %24, %25 : vector<1x128xi32>
    %27 = vector.extract_strided_slice %13 {offsets = [0, 0], sizes = [1, 128], strides = [1, 1]} : vector<2x128xf32> to vector<1x128xf32>
    %28 = vector.extract_strided_slice %13 {offsets = [1, 0], sizes = [1, 128], strides = [1, 1]} : vector<2x128xf32> to vector<1x128xf32>
    %29 = arith.mulf %27, %28 : vector<1x128xf32>
    %30 = vector.broadcast %26 : vector<1x128xi32> to vector<128x128xi32>
    %31 = arith.cmpi eq, %30, %2 : vector<128x128xi32>
    %cst_8 = arith.constant 0.000000e+00 : f32
    %32 = vector.shape_cast %29 : vector<1x128xf32> to vector<1x128xf32>
    %33 = vector.broadcast %32 : vector<1x128xf32> to vector<128x128xf32>
    %34 = vector.broadcast %cst_8 : f32 to vector<128x128xf32>
    %35 = arith.select %31, %33, %34 : vector<128x128xi1>, vector<128x128xf32>
    %cst_9 = arith.constant dense<0.000000e+00> : vector<8x128xf32>
    %36 = tpu.matmul %1, %35, %cst_9 {dimension_numbers = #tpu.dot_dimension_numbers<[1], [0], [0], [1], [0, 0, 1, 1], [], []>, precision = #tpu.contract_precision<fp32>} : vector<8x128xf32>, vector<128x128xf32>, vector<8x128xf32> -> vector<8x128xf32>
    %37 = arith.addi %16, %23 : vector<1x128xi32>
    %c15_i32_10 = arith.constant 15 : i32
    %38 = vector.broadcast %c15_i32_10 : i32 to vector<1x128xi32>
    %39 = arith.andi %37, %38 : vector<1x128xi32>
    %40 = vector.extract_strided_slice %13 {offsets = [0, 0], sizes = [1, 128], strides = [1, 1]} : vector<2x128xf32> to vector<1x128xf32>
    %41 = vector.extract_strided_slice %11 {offsets = [1, 0], sizes = [1, 128], strides = [1, 1]} : vector<2x128xf32> to vector<1x128xf32>
    %42 = arith.mulf %40, %41 : vector<1x128xf32>
    %43 = vector.broadcast %39 : vector<1x128xi32> to vector<128x128xi32>
    %44 = arith.cmpi eq, %43, %2 : vector<128x128xi32>
    %cst_11 = arith.constant 0.000000e+00 : f32
    %45 = vector.shape_cast %42 : vector<1x128xf32> to vector<1x128xf32>
    %46 = vector.broadcast %45 : vector<1x128xf32> to vector<128x128xf32>
    %47 = vector.broadcast %cst_11 : f32 to vector<128x128xf32>
    %48 = arith.select %44, %46, %47 : vector<128x128xi1>, vector<128x128xf32>
    %cst_12 = arith.constant dense<0.000000e+00> : vector<8x128xf32>
    %49 = tpu.matmul %1, %48, %cst_12 {dimension_numbers = #tpu.dot_dimension_numbers<[1], [0], [0], [1], [0, 0, 1, 1], [], []>, precision = #tpu.contract_precision<fp32>} : vector<8x128xf32>, vector<128x128xf32>, vector<8x128xf32> -> vector<8x128xf32>
    %50 = arith.addf %36, %49 : vector<8x128xf32>
    %51 = arith.addi %18, %21 : vector<1x128xi32>
    %c15_i32_13 = arith.constant 15 : i32
    %52 = vector.broadcast %c15_i32_13 : i32 to vector<1x128xi32>
    %53 = arith.andi %51, %52 : vector<1x128xi32>
    %54 = vector.extract_strided_slice %11 {offsets = [0, 0], sizes = [1, 128], strides = [1, 1]} : vector<2x128xf32> to vector<1x128xf32>
    %55 = vector.extract_strided_slice %13 {offsets = [1, 0], sizes = [1, 128], strides = [1, 1]} : vector<2x128xf32> to vector<1x128xf32>
    %56 = arith.mulf %54, %55 : vector<1x128xf32>
    %57 = vector.broadcast %53 : vector<1x128xi32> to vector<128x128xi32>
    %58 = arith.cmpi eq, %57, %2 : vector<128x128xi32>
    %cst_14 = arith.constant 0.000000e+00 : f32
    %59 = vector.shape_cast %56 : vector<1x128xf32> to vector<1x128xf32>
    %60 = vector.broadcast %59 : vector<1x128xf32> to vector<128x128xf32>
    %61 = vector.broadcast %cst_14 : f32 to vector<128x128xf32>
    %62 = arith.select %58, %60, %61 : vector<128x128xi1>, vector<128x128xf32>
    %cst_15 = arith.constant dense<0.000000e+00> : vector<8x128xf32>
    %63 = tpu.matmul %1, %62, %cst_15 {dimension_numbers = #tpu.dot_dimension_numbers<[1], [0], [0], [1], [0, 0, 1, 1], [], []>, precision = #tpu.contract_precision<fp32>} : vector<8x128xf32>, vector<128x128xf32>, vector<8x128xf32> -> vector<8x128xf32>
    %64 = arith.addf %50, %63 : vector<8x128xf32>
    %65 = arith.addi %18, %23 : vector<1x128xi32>
    %c15_i32_16 = arith.constant 15 : i32
    %66 = vector.broadcast %c15_i32_16 : i32 to vector<1x128xi32>
    %67 = arith.andi %65, %66 : vector<1x128xi32>
    %68 = vector.extract_strided_slice %11 {offsets = [0, 0], sizes = [1, 128], strides = [1, 1]} : vector<2x128xf32> to vector<1x128xf32>
    %69 = vector.extract_strided_slice %11 {offsets = [1, 0], sizes = [1, 128], strides = [1, 1]} : vector<2x128xf32> to vector<1x128xf32>
    %70 = arith.mulf %68, %69 : vector<1x128xf32>
    %71 = vector.broadcast %67 : vector<1x128xi32> to vector<128x128xi32>
    %72 = arith.cmpi eq, %71, %2 : vector<128x128xi32>
    %cst_17 = arith.constant 0.000000e+00 : f32
    %73 = vector.shape_cast %70 : vector<1x128xf32> to vector<1x128xf32>
    %74 = vector.broadcast %73 : vector<1x128xf32> to vector<128x128xf32>
    %75 = vector.broadcast %cst_17 : f32 to vector<128x128xf32>
    %76 = arith.select %72, %74, %75 : vector<128x128xi1>, vector<128x128xf32>
    %cst_18 = arith.constant dense<0.000000e+00> : vector<8x128xf32>
    %77 = tpu.matmul %1, %76, %cst_18 {dimension_numbers = #tpu.dot_dimension_numbers<[1], [0], [0], [1], [0, 0, 1, 1], [], []>, precision = #tpu.contract_precision<fp32>} : vector<8x128xf32>, vector<128x128xf32>, vector<8x128xf32> -> vector<8x128xf32>
    %78 = arith.addf %64, %77 : vector<8x128xf32>
    %79 = arith.mulf %3, %78 : vector<8x128xf32>
    %cst_19 = arith.constant 5.000000e+00 : f32
    %80 = vector.broadcast %cst_19 : f32 to vector<2x128xf32>
    %81 = arith.mulf %0, %80 : vector<2x128xf32>
    %cst_20 = arith.constant 5.000000e-01 : f32
    %82 = vector.broadcast %cst_20 : f32 to vector<2x128xf32>
    %83 = arith.addf %81, %82 : vector<2x128xf32>
    %84 = math.floor %83 : vector<2x128xf32>
    %85 = arith.fptosi %84 : vector<2x128xf32> to vector<2x128xi32>
    %86 = arith.sitofp %85 : vector<2x128xi32> to vector<2x128xf32>
    %87 = arith.subf %83, %86 : vector<2x128xf32>
    %cst_21 = arith.constant 1.000000e+00 : f32
    %88 = vector.broadcast %cst_21 : f32 to vector<2x128xf32>
    %89 = arith.subf %88, %87 : vector<2x128xf32>
    %90 = vector.extract_strided_slice %85 {offsets = [0, 0], sizes = [1, 128], strides = [1, 1]} : vector<2x128xi32> to vector<1x128xi32>
    %c1_i32_22 = arith.constant 1 : i32
    %91 = vector.broadcast %c1_i32_22 : i32 to vector<1x128xi32>
    %92 = arith.muli %90, %91 : vector<1x128xi32>
    %c1_i32_23 = arith.constant 1 : i32
    %93 = vector.broadcast %c1_i32_23 : i32 to vector<1x128xi32>
    %94 = arith.addi %92, %93 : vector<1x128xi32>
    %95 = vector.extract_strided_slice %85 {offsets = [1, 0], sizes = [1, 128], strides = [1, 1]} : vector<2x128xi32> to vector<1x128xi32>
    %c6_i32 = arith.constant 6 : i32
    %96 = vector.broadcast %c6_i32 : i32 to vector<1x128xi32>
    %97 = arith.muli %95, %96 : vector<1x128xi32>
    %c6_i32_24 = arith.constant 6 : i32
    %98 = vector.broadcast %c6_i32_24 : i32 to vector<1x128xi32>
    %99 = arith.addi %97, %98 : vector<1x128xi32>
    %100 = arith.addi %92, %97 : vector<1x128xi32>
    %c40_i32 = arith.constant 40 : i32
    %c0_i32 = arith.constant 0 : i32
    %101 = arith.cmpi eq, %c40_i32, %c0_i32 : i32
    %c1_i32_25 = arith.constant 1 : i32
    %102 = arith.select %101, %c1_i32_25, %c40_i32 : i32
    %103 = vector.broadcast %102 : i32 to vector<1x128xi32>
    %104 = arith.remsi %100, %103 : vector<1x128xi32>
    %c0_i32_26 = arith.constant 0 : i32
    %105 = vector.broadcast %c0_i32_26 : i32 to vector<1x128xi32>
    %106 = arith.cmpi ne, %104, %105 : vector<1x128xi32>
    %c0_i32_27 = arith.constant 0 : i32
    %107 = vector.broadcast %c0_i32_27 : i32 to vector<1x128xi32>
    %108 = arith.cmpi slt, %104, %107 : vector<1x128xi32>
    %c0_i32_28 = arith.constant 0 : i32
    %109 = arith.cmpi slt, %102, %c0_i32_28 : i32
    %110 = vector.broadcast %109 : i1 to vector<1x128xi1>
    %111 = vector.broadcast %110 : vector<1x128xi1> to vector<1x128xi1>
    %112 = arith.xori %108, %111 : vector<1x128xi1>
    %113 = arith.andi %112, %106 : vector<1x128xi1>
    %114 = vector.broadcast %102 : i32 to vector<1x128xi32>
    %115 = arith.addi %104, %114 : vector<1x128xi32>
    %116 = arith.select %113, %115, %104 : vector<1x128xi1>, vector<1x128xi32>
    %117 = vector.extract_strided_slice %89 {offsets = [0, 0], sizes = [1, 128], strides = [1, 1]} : vector<2x128xf32> to vector<1x128xf32>
    %118 = vector.extract_strided_slice %89 {offsets = [1, 0], sizes = [1, 128], strides = [1, 1]} : vector<2x128xf32> to vector<1x128xf32>
    %119 = arith.mulf %117, %118 : vector<1x128xf32>
    %120 = vector.broadcast %116 : vector<1x128xi32> to vector<128x128xi32>
    %121 = arith.cmpi eq, %120, %2 : vector<128x128xi32>
    %cst_29 = arith.constant 0.000000e+00 : f32
    %122 = vector.shape_cast %119 : vector<1x128xf32> to vector<1x128xf32>
    %123 = vector.broadcast %122 : vector<1x128xf32> to vector<128x128xf32>
    %124 = vector.broadcast %cst_29 : f32 to vector<128x128xf32>
    %125 = arith.select %121, %123, %124 : vector<128x128xi1>, vector<128x128xf32>
    %cst_30 = arith.constant dense<0.000000e+00> : vector<8x128xf32>
    %126 = tpu.matmul %1, %125, %cst_30 {dimension_numbers = #tpu.dot_dimension_numbers<[1], [0], [0], [1], [0, 0, 1, 1], [], []>, precision = #tpu.contract_precision<fp32>} : vector<8x128xf32>, vector<128x128xf32>, vector<8x128xf32> -> vector<8x128xf32>
    %127 = arith.addi %92, %99 : vector<1x128xi32>
    %c40_i32_31 = arith.constant 40 : i32
    %c0_i32_32 = arith.constant 0 : i32
    %128 = arith.cmpi eq, %c40_i32_31, %c0_i32_32 : i32
    %c1_i32_33 = arith.constant 1 : i32
    %129 = arith.select %128, %c1_i32_33, %c40_i32_31 : i32
    %130 = vector.broadcast %129 : i32 to vector<1x128xi32>
    %131 = arith.remsi %127, %130 : vector<1x128xi32>
    %c0_i32_34 = arith.constant 0 : i32
    %132 = vector.broadcast %c0_i32_34 : i32 to vector<1x128xi32>
    %133 = arith.cmpi ne, %131, %132 : vector<1x128xi32>
    %c0_i32_35 = arith.constant 0 : i32
    %134 = vector.broadcast %c0_i32_35 : i32 to vector<1x128xi32>
    %135 = arith.cmpi slt, %131, %134 : vector<1x128xi32>
    %c0_i32_36 = arith.constant 0 : i32
    %136 = arith.cmpi slt, %129, %c0_i32_36 : i32
    %137 = vector.broadcast %136 : i1 to vector<1x128xi1>
    %138 = vector.broadcast %137 : vector<1x128xi1> to vector<1x128xi1>
    %139 = arith.xori %135, %138 : vector<1x128xi1>
    %140 = arith.andi %139, %133 : vector<1x128xi1>
    %141 = vector.broadcast %129 : i32 to vector<1x128xi32>
    %142 = arith.addi %131, %141 : vector<1x128xi32>
    %143 = arith.select %140, %142, %131 : vector<1x128xi1>, vector<1x128xi32>
    %144 = vector.extract_strided_slice %89 {offsets = [0, 0], sizes = [1, 128], strides = [1, 1]} : vector<2x128xf32> to vector<1x128xf32>
    %145 = vector.extract_strided_slice %87 {offsets = [1, 0], sizes = [1, 128], strides = [1, 1]} : vector<2x128xf32> to vector<1x128xf32>
    %146 = arith.mulf %144, %145 : vector<1x128xf32>
    %147 = vector.broadcast %143 : vector<1x128xi32> to vector<128x128xi32>
    %148 = arith.cmpi eq, %147, %2 : vector<128x128xi32>
    %cst_37 = arith.constant 0.000000e+00 : f32
    %149 = vector.shape_cast %146 : vector<1x128xf32> to vector<1x128xf32>
    %150 = vector.broadcast %149 : vector<1x128xf32> to vector<128x128xf32>
    %151 = vector.broadcast %cst_37 : f32 to vector<128x128xf32>
    %152 = arith.select %148, %150, %151 : vector<128x128xi1>, vector<128x128xf32>
    %cst_38 = arith.constant dense<0.000000e+00> : vector<8x128xf32>
    %153 = tpu.matmul %1, %152, %cst_38 {dimension_numbers = #tpu.dot_dimension_numbers<[1], [0], [0], [1], [0, 0, 1, 1], [], []>, precision = #tpu.contract_precision<fp32>} : vector<8x128xf32>, vector<128x128xf32>, vector<8x128xf32> -> vector<8x128xf32>
    %154 = arith.addf %126, %153 : vector<8x128xf32>
    %155 = arith.addi %94, %97 : vector<1x128xi32>
    %c40_i32_39 = arith.constant 40 : i32
    %c0_i32_40 = arith.constant 0 : i32
    %156 = arith.cmpi eq, %c40_i32_39, %c0_i32_40 : i32
    %c1_i32_41 = arith.constant 1 : i32
    %157 = arith.select %156, %c1_i32_41, %c40_i32_39 : i32
    %158 = vector.broadcast %157 : i32 to vector<1x128xi32>
    %159 = arith.remsi %155, %158 : vector<1x128xi32>
    %c0_i32_42 = arith.constant 0 : i32
    %160 = vector.broadcast %c0_i32_42 : i32 to vector<1x128xi32>
    %161 = arith.cmpi ne, %159, %160 : vector<1x128xi32>
    %c0_i32_43 = arith.constant 0 : i32
    %162 = vector.broadcast %c0_i32_43 : i32 to vector<1x128xi32>
    %163 = arith.cmpi slt, %159, %162 : vector<1x128xi32>
    %c0_i32_44 = arith.constant 0 : i32
    %164 = arith.cmpi slt, %157, %c0_i32_44 : i32
    %165 = vector.broadcast %164 : i1 to vector<1x128xi1>
    %166 = vector.broadcast %165 : vector<1x128xi1> to vector<1x128xi1>
    %167 = arith.xori %163, %166 : vector<1x128xi1>
    %168 = arith.andi %167, %161 : vector<1x128xi1>
    %169 = vector.broadcast %157 : i32 to vector<1x128xi32>
    %170 = arith.addi %159, %169 : vector<1x128xi32>
    %171 = arith.select %168, %170, %159 : vector<1x128xi1>, vector<1x128xi32>
    %172 = vector.extract_strided_slice %87 {offsets = [0, 0], sizes = [1, 128], strides = [1, 1]} : vector<2x128xf32> to vector<1x128xf32>
    %173 = vector.extract_strided_slice %89 {offsets = [1, 0], sizes = [1, 128], strides = [1, 1]} : vector<2x128xf32> to vector<1x128xf32>
    %174 = arith.mulf %172, %173 : vector<1x128xf32>
    %175 = vector.broadcast %171 : vector<1x128xi32> to vector<128x128xi32>
    %176 = arith.cmpi eq, %175, %2 : vector<128x128xi32>
    %cst_45 = arith.constant 0.000000e+00 : f32
    %177 = vector.shape_cast %174 : vector<1x128xf32> to vector<1x128xf32>
    %178 = vector.broadcast %177 : vector<1x128xf32> to vector<128x128xf32>
    %179 = vector.broadcast %cst_45 : f32 to vector<128x128xf32>
    %180 = arith.select %176, %178, %179 : vector<128x128xi1>, vector<128x128xf32>
    %cst_46 = arith.constant dense<0.000000e+00> : vector<8x128xf32>
    %181 = tpu.matmul %1, %180, %cst_46 {dimension_numbers = #tpu.dot_dimension_numbers<[1], [0], [0], [1], [0, 0, 1, 1], [], []>, precision = #tpu.contract_precision<fp32>} : vector<8x128xf32>, vector<128x128xf32>, vector<8x128xf32> -> vector<8x128xf32>
    %182 = arith.addf %154, %181 : vector<8x128xf32>
    %183 = arith.addi %94, %99 : vector<1x128xi32>
    %c40_i32_47 = arith.constant 40 : i32
    %c0_i32_48 = arith.constant 0 : i32
    %184 = arith.cmpi eq, %c40_i32_47, %c0_i32_48 : i32
    %c1_i32_49 = arith.constant 1 : i32
    %185 = arith.select %184, %c1_i32_49, %c40_i32_47 : i32
    %186 = vector.broadcast %185 : i32 to vector<1x128xi32>
    %187 = arith.remsi %183, %186 : vector<1x128xi32>
    %c0_i32_50 = arith.constant 0 : i32
    %188 = vector.broadcast %c0_i32_50 : i32 to vector<1x128xi32>
    %189 = arith.cmpi ne, %187, %188 : vector<1x128xi32>
    %c0_i32_51 = arith.constant 0 : i32
    %190 = vector.broadcast %c0_i32_51 : i32 to vector<1x128xi32>
    %191 = arith.cmpi slt, %187, %190 : vector<1x128xi32>
    %c0_i32_52 = arith.constant 0 : i32
    %192 = arith.cmpi slt, %185, %c0_i32_52 : i32
    %193 = vector.broadcast %192 : i1 to vector<1x128xi1>
    %194 = vector.broadcast %193 : vector<1x128xi1> to vector<1x128xi1>
    %195 = arith.xori %191, %194 : vector<1x128xi1>
    %196 = arith.andi %195, %189 : vector<1x128xi1>
    %197 = vector.broadcast %185 : i32 to vector<1x128xi32>
    %198 = arith.addi %187, %197 : vector<1x128xi32>
    %199 = arith.select %196, %198, %187 : vector<1x128xi1>, vector<1x128xi32>
    %200 = vector.extract_strided_slice %87 {offsets = [0, 0], sizes = [1, 128], strides = [1, 1]} : vector<2x128xf32> to vector<1x128xf32>
    %201 = vector.extract_strided_slice %87 {offsets = [1, 0], sizes = [1, 128], strides = [1, 1]} : vector<2x128xf32> to vector<1x128xf32>
    %202 = arith.mulf %200, %201 : vector<1x128xf32>
    %203 = vector.broadcast %199 : vector<1x128xi32> to vector<128x128xi32>
    %204 = arith.cmpi eq, %203, %2 : vector<128x128xi32>
    %cst_53 = arith.constant 0.000000e+00 : f32
    %205 = vector.shape_cast %202 : vector<1x128xf32> to vector<1x128xf32>
    %206 = vector.broadcast %205 : vector<1x128xf32> to vector<128x128xf32>
    %207 = vector.broadcast %cst_53 : f32 to vector<128x128xf32>
    %208 = arith.select %204, %206, %207 : vector<128x128xi1>, vector<128x128xf32>
    %cst_54 = arith.constant dense<0.000000e+00> : vector<8x128xf32>
    %209 = tpu.matmul %1, %208, %cst_54 {dimension_numbers = #tpu.dot_dimension_numbers<[1], [0], [0], [1], [0, 0, 1, 1], [], []>, precision = #tpu.contract_precision<fp32>} : vector<8x128xf32>, vector<128x128xf32>, vector<8x128xf32> -> vector<8x128xf32>
    %210 = arith.addf %182, %209 : vector<8x128xf32>
    %211 = arith.mulf %79, %210 : vector<8x128xf32>
    %cst_55 = arith.constant 8.000000e+00 : f32
    %212 = vector.broadcast %cst_55 : f32 to vector<2x128xf32>
    %213 = arith.mulf %0, %212 : vector<2x128xf32>
    %cst_56 = arith.constant 5.000000e-01 : f32
    %214 = vector.broadcast %cst_56 : f32 to vector<2x128xf32>
    %215 = arith.addf %213, %214 : vector<2x128xf32>
    %216 = math.floor %215 : vector<2x128xf32>
    %217 = arith.fptosi %216 : vector<2x128xf32> to vector<2x128xi32>
    %218 = arith.sitofp %217 : vector<2x128xi32> to vector<2x128xf32>
    %219 = arith.subf %215, %218 : vector<2x128xf32>
    %cst_57 = arith.constant 1.000000e+00 : f32
    %220 = vector.broadcast %cst_57 : f32 to vector<2x128xf32>
    %221 = arith.subf %220, %219 : vector<2x128xf32>
    %222 = vector.extract_strided_slice %217 {offsets = [0, 0], sizes = [1, 128], strides = [1, 1]} : vector<2x128xi32> to vector<1x128xi32>
    %c1_i32_58 = arith.constant 1 : i32
    %223 = vector.broadcast %c1_i32_58 : i32 to vector<1x128xi32>
    %224 = arith.muli %222, %223 : vector<1x128xi32>
    %c1_i32_59 = arith.constant 1 : i32
    %225 = vector.broadcast %c1_i32_59 : i32 to vector<1x128xi32>
    %226 = arith.addi %224, %225 : vector<1x128xi32>
    %227 = vector.extract_strided_slice %217 {offsets = [1, 0], sizes = [1, 128], strides = [1, 1]} : vector<2x128xi32> to vector<1x128xi32>
    %c-1640531535_i32 = arith.constant -1640531535 : i32
    %228 = vector.broadcast %c-1640531535_i32 : i32 to vector<1x128xi32>
    %229 = arith.muli %227, %228 : vector<1x128xi32>
    %c-1640531535_i32_60 = arith.constant -1640531535 : i32
    %230 = vector.broadcast %c-1640531535_i32_60 : i32 to vector<1x128xi32>
    %231 = arith.addi %229, %230 : vector<1x128xi32>
    %232 = arith.xori %224, %229 : vector<1x128xi32>
    %c63_i32 = arith.constant 63 : i32
    %233 = vector.broadcast %c63_i32 : i32 to vector<1x128xi32>
    %234 = arith.andi %232, %233 : vector<1x128xi32>
    %235 = vector.extract_strided_slice %221 {offsets = [0, 0], sizes = [1, 128], strides = [1, 1]} : vector<2x128xf32> to vector<1x128xf32>
    %236 = vector.extract_strided_slice %221 {offsets = [1, 0], sizes = [1, 128], strides = [1, 1]} : vector<2x128xf32> to vector<1x128xf32>
    %237 = arith.mulf %235, %236 : vector<1x128xf32>
    %238 = vector.broadcast %234 : vector<1x128xi32> to vector<128x128xi32>
    %239 = arith.cmpi eq, %238, %2 : vector<128x128xi32>
    %cst_61 = arith.constant 0.000000e+00 : f32
    %240 = vector.shape_cast %237 : vector<1x128xf32> to vector<1x128xf32>
    %241 = vector.broadcast %240 : vector<1x128xf32> to vector<128x128xf32>
    %242 = vector.broadcast %cst_61 : f32 to vector<128x128xf32>
    %243 = arith.select %239, %241, %242 : vector<128x128xi1>, vector<128x128xf32>
    %cst_62 = arith.constant dense<0.000000e+00> : vector<8x128xf32>
    %244 = tpu.matmul %1, %243, %cst_62 {dimension_numbers = #tpu.dot_dimension_numbers<[1], [0], [0], [1], [0, 0, 1, 1], [], []>, precision = #tpu.contract_precision<fp32>} : vector<8x128xf32>, vector<128x128xf32>, vector<8x128xf32> -> vector<8x128xf32>
    %245 = arith.xori %224, %231 : vector<1x128xi32>
    %c63_i32_63 = arith.constant 63 : i32
    %246 = vector.broadcast %c63_i32_63 : i32 to vector<1x128xi32>
    %247 = arith.andi %245, %246 : vector<1x128xi32>
    %248 = vector.extract_strided_slice %221 {offsets = [0, 0], sizes = [1, 128], strides = [1, 1]} : vector<2x128xf32> to vector<1x128xf32>
    %249 = vector.extract_strided_slice %219 {offsets = [1, 0], sizes = [1, 128], strides = [1, 1]} : vector<2x128xf32> to vector<1x128xf32>
    %250 = arith.mulf %248, %249 : vector<1x128xf32>
    %251 = vector.broadcast %247 : vector<1x128xi32> to vector<128x128xi32>
    %252 = arith.cmpi eq, %251, %2 : vector<128x128xi32>
    %cst_64 = arith.constant 0.000000e+00 : f32
    %253 = vector.shape_cast %250 : vector<1x128xf32> to vector<1x128xf32>
    %254 = vector.broadcast %253 : vector<1x128xf32> to vector<128x128xf32>
    %255 = vector.broadcast %cst_64 : f32 to vector<128x128xf32>
    %256 = arith.select %252, %254, %255 : vector<128x128xi1>, vector<128x128xf32>
    %cst_65 = arith.constant dense<0.000000e+00> : vector<8x128xf32>
    %257 = tpu.matmul %1, %256, %cst_65 {dimension_numbers = #tpu.dot_dimension_numbers<[1], [0], [0], [1], [0, 0, 1, 1], [], []>, precision = #tpu.contract_precision<fp32>} : vector<8x128xf32>, vector<128x128xf32>, vector<8x128xf32> -> vector<8x128xf32>
    %258 = arith.addf %244, %257 : vector<8x128xf32>
    %259 = arith.xori %226, %229 : vector<1x128xi32>
    %c63_i32_66 = arith.constant 63 : i32
    %260 = vector.broadcast %c63_i32_66 : i32 to vector<1x128xi32>
    %261 = arith.andi %259, %260 : vector<1x128xi32>
    %262 = vector.extract_strided_slice %219 {offsets = [0, 0], sizes = [1, 128], strides = [1, 1]} : vector<2x128xf32> to vector<1x128xf32>
    %263 = vector.extract_strided_slice %221 {offsets = [1, 0], sizes = [1, 128], strides = [1, 1]} : vector<2x128xf32> to vector<1x128xf32>
    %264 = arith.mulf %262, %263 : vector<1x128xf32>
    %265 = vector.broadcast %261 : vector<1x128xi32> to vector<128x128xi32>
    %266 = arith.cmpi eq, %265, %2 : vector<128x128xi32>
    %cst_67 = arith.constant 0.000000e+00 : f32
    %267 = vector.shape_cast %264 : vector<1x128xf32> to vector<1x128xf32>
    %268 = vector.broadcast %267 : vector<1x128xf32> to vector<128x128xf32>
    %269 = vector.broadcast %cst_67 : f32 to vector<128x128xf32>
    %270 = arith.select %266, %268, %269 : vector<128x128xi1>, vector<128x128xf32>
    %cst_68 = arith.constant dense<0.000000e+00> : vector<8x128xf32>
    %271 = tpu.matmul %1, %270, %cst_68 {dimension_numbers = #tpu.dot_dimension_numbers<[1], [0], [0], [1], [0, 0, 1, 1], [], []>, precision = #tpu.contract_precision<fp32>} : vector<8x128xf32>, vector<128x128xf32>, vector<8x128xf32> -> vector<8x128xf32>
    %272 = arith.addf %258, %271 : vector<8x128xf32>
    %273 = arith.xori %226, %231 : vector<1x128xi32>
    %c63_i32_69 = arith.constant 63 : i32
    %274 = vector.broadcast %c63_i32_69 : i32 to vector<1x128xi32>
    %275 = arith.andi %273, %274 : vector<1x128xi32>
    %276 = vector.extract_strided_slice %219 {offsets = [0, 0], sizes = [1, 128], strides = [1, 1]} : vector<2x128xf32> to vector<1x128xf32>
    %277 = vector.extract_strided_slice %219 {offsets = [1, 0], sizes = [1, 128], strides = [1, 1]} : vector<2x128xf32> to vector<1x128xf32>
    %278 = arith.mulf %276, %277 : vector<1x128xf32>
    %279 = vector.broadcast %275 : vector<1x128xi32> to vector<128x128xi32>
    %280 = arith.cmpi eq, %279, %2 : vector<128x128xi32>
    %cst_70 = arith.constant 0.000000e+00 : f32
    %281 = vector.shape_cast %278 : vector<1x128xf32> to vector<1x128xf32>
    %282 = vector.broadcast %281 : vector<1x128xf32> to vector<128x128xf32>
    %283 = vector.broadcast %cst_70 : f32 to vector<128x128xf32>
    %284 = arith.select %280, %282, %283 : vector<128x128xi1>, vector<128x128xf32>
    %cst_71 = arith.constant dense<0.000000e+00> : vector<8x128xf32>
    %285 = tpu.matmul %1, %284, %cst_71 {dimension_numbers = #tpu.dot_dimension_numbers<[1], [0], [0], [1], [0, 0, 1, 1], [], []>, precision = #tpu.contract_precision<fp32>} : vector<8x128xf32>, vector<128x128xf32>, vector<8x128xf32> -> vector<8x128xf32>
    %286 = arith.addf %272, %285 : vector<8x128xf32>
    %287 = arith.mulf %211, %286 : vector<8x128xf32>
    %cst_72 = arith.constant 1.250000e+01 : f32
    %288 = vector.broadcast %cst_72 : f32 to vector<2x128xf32>
    %289 = arith.mulf %0, %288 : vector<2x128xf32>
    %cst_73 = arith.constant 5.000000e-01 : f32
    %290 = vector.broadcast %cst_73 : f32 to vector<2x128xf32>
    %291 = arith.addf %289, %290 : vector<2x128xf32>
    %292 = math.floor %291 : vector<2x128xf32>
    %293 = arith.fptosi %292 : vector<2x128xf32> to vector<2x128xi32>
    %294 = arith.sitofp %293 : vector<2x128xi32> to vector<2x128xf32>
    %295 = arith.subf %291, %294 : vector<2x128xf32>
    %cst_74 = arith.constant 1.000000e+00 : f32
    %296 = vector.broadcast %cst_74 : f32 to vector<2x128xf32>
    %297 = arith.subf %296, %295 : vector<2x128xf32>
    %298 = vector.extract_strided_slice %293 {offsets = [0, 0], sizes = [1, 128], strides = [1, 1]} : vector<2x128xi32> to vector<1x128xi32>
    %c1_i32_75 = arith.constant 1 : i32
    %299 = vector.broadcast %c1_i32_75 : i32 to vector<1x128xi32>
    %300 = arith.muli %298, %299 : vector<1x128xi32>
    %c1_i32_76 = arith.constant 1 : i32
    %301 = vector.broadcast %c1_i32_76 : i32 to vector<1x128xi32>
    %302 = arith.addi %300, %301 : vector<1x128xi32>
    %303 = vector.extract_strided_slice %293 {offsets = [1, 0], sizes = [1, 128], strides = [1, 1]} : vector<2x128xi32> to vector<1x128xi32>
    %c-1640531535_i32_77 = arith.constant -1640531535 : i32
    %304 = vector.broadcast %c-1640531535_i32_77 : i32 to vector<1x128xi32>
    %305 = arith.muli %303, %304 : vector<1x128xi32>
    %c-1640531535_i32_78 = arith.constant -1640531535 : i32
    %306 = vector.broadcast %c-1640531535_i32_78 : i32 to vector<1x128xi32>
    %307 = arith.addi %305, %306 : vector<1x128xi32>
    %308 = arith.xori %300, %305 : vector<1x128xi32>
    %c63_i32_79 = arith.constant 63 : i32
    %309 = vector.broadcast %c63_i32_79 : i32 to vector<1x128xi32>
    %310 = arith.andi %308, %309 : vector<1x128xi32>
    %311 = vector.extract_strided_slice %297 {offsets = [0, 0], sizes = [1, 128], strides = [1, 1]} : vector<2x128xf32> to vector<1x128xf32>
    %312 = vector.extract_strided_slice %297 {offsets = [1, 0], sizes = [1, 128], strides = [1, 1]} : vector<2x128xf32> to vector<1x128xf32>
    %313 = arith.mulf %311, %312 : vector<1x128xf32>
    %314 = vector.broadcast %310 : vector<1x128xi32> to vector<128x128xi32>
    %315 = arith.cmpi eq, %314, %2 : vector<128x128xi32>
    %cst_80 = arith.constant 0.000000e+00 : f32
    %316 = vector.shape_cast %313 : vector<1x128xf32> to vector<1x128xf32>
    %317 = vector.broadcast %316 : vector<1x128xf32> to vector<128x128xf32>
    %318 = vector.broadcast %cst_80 : f32 to vector<128x128xf32>
    %319 = arith.select %315, %317, %318 : vector<128x128xi1>, vector<128x128xf32>
    %cst_81 = arith.constant dense<0.000000e+00> : vector<8x128xf32>
    %320 = tpu.matmul %1, %319, %cst_81 {dimension_numbers = #tpu.dot_dimension_numbers<[1], [0], [0], [1], [0, 0, 1, 1], [], []>, precision = #tpu.contract_precision<fp32>} : vector<8x128xf32>, vector<128x128xf32>, vector<8x128xf32> -> vector<8x128xf32>
    %321 = arith.xori %300, %307 : vector<1x128xi32>
    %c63_i32_82 = arith.constant 63 : i32
    %322 = vector.broadcast %c63_i32_82 : i32 to vector<1x128xi32>
    %323 = arith.andi %321, %322 : vector<1x128xi32>
    %324 = vector.extract_strided_slice %297 {offsets = [0, 0], sizes = [1, 128], strides = [1, 1]} : vector<2x128xf32> to vector<1x128xf32>
    %325 = vector.extract_strided_slice %295 {offsets = [1, 0], sizes = [1, 128], strides = [1, 1]} : vector<2x128xf32> to vector<1x128xf32>
    %326 = arith.mulf %324, %325 : vector<1x128xf32>
    %327 = vector.broadcast %323 : vector<1x128xi32> to vector<128x128xi32>
    %328 = arith.cmpi eq, %327, %2 : vector<128x128xi32>
    %cst_83 = arith.constant 0.000000e+00 : f32
    %329 = vector.shape_cast %326 : vector<1x128xf32> to vector<1x128xf32>
    %330 = vector.broadcast %329 : vector<1x128xf32> to vector<128x128xf32>
    %331 = vector.broadcast %cst_83 : f32 to vector<128x128xf32>
    %332 = arith.select %328, %330, %331 : vector<128x128xi1>, vector<128x128xf32>
    %cst_84 = arith.constant dense<0.000000e+00> : vector<8x128xf32>
    %333 = tpu.matmul %1, %332, %cst_84 {dimension_numbers = #tpu.dot_dimension_numbers<[1], [0], [0], [1], [0, 0, 1, 1], [], []>, precision = #tpu.contract_precision<fp32>} : vector<8x128xf32>, vector<128x128xf32>, vector<8x128xf32> -> vector<8x128xf32>
    %334 = arith.addf %320, %333 : vector<8x128xf32>
    %335 = arith.xori %302, %305 : vector<1x128xi32>
    %c63_i32_85 = arith.constant 63 : i32
    %336 = vector.broadcast %c63_i32_85 : i32 to vector<1x128xi32>
    %337 = arith.andi %335, %336 : vector<1x128xi32>
    %338 = vector.extract_strided_slice %295 {offsets = [0, 0], sizes = [1, 128], strides = [1, 1]} : vector<2x128xf32> to vector<1x128xf32>
    %339 = vector.extract_strided_slice %297 {offsets = [1, 0], sizes = [1, 128], strides = [1, 1]} : vector<2x128xf32> to vector<1x128xf32>
    %340 = arith.mulf %338, %339 : vector<1x128xf32>
    %341 = vector.broadcast %337 : vector<1x128xi32> to vector<128x128xi32>
    %342 = arith.cmpi eq, %341, %2 : vector<128x128xi32>
    %cst_86 = arith.constant 0.000000e+00 : f32
    %343 = vector.shape_cast %340 : vector<1x128xf32> to vector<1x128xf32>
    %344 = vector.broadcast %343 : vector<1x128xf32> to vector<128x128xf32>
    %345 = vector.broadcast %cst_86 : f32 to vector<128x128xf32>
    %346 = arith.select %342, %344, %345 : vector<128x128xi1>, vector<128x128xf32>
    %cst_87 = arith.constant dense<0.000000e+00> : vector<8x128xf32>
    %347 = tpu.matmul %1, %346, %cst_87 {dimension_numbers = #tpu.dot_dimension_numbers<[1], [0], [0], [1], [0, 0, 1, 1], [], []>, precision = #tpu.contract_precision<fp32>} : vector<8x128xf32>, vector<128x128xf32>, vector<8x128xf32> -> vector<8x128xf32>
    %348 = arith.addf %334, %347 : vector<8x128xf32>
    %349 = arith.xori %302, %307 : vector<1x128xi32>
    %c63_i32_88 = arith.constant 63 : i32
    %350 = vector.broadcast %c63_i32_88 : i32 to vector<1x128xi32>
    %351 = arith.andi %349, %350 : vector<1x128xi32>
    %352 = vector.extract_strided_slice %295 {offsets = [0, 0], sizes = [1, 128], strides = [1, 1]} : vector<2x128xf32> to vector<1x128xf32>
    %353 = vector.extract_strided_slice %295 {offsets = [1, 0], sizes = [1, 128], strides = [1, 1]} : vector<2x128xf32> to vector<1x128xf32>
    %354 = arith.mulf %352, %353 : vector<1x128xf32>
    %355 = vector.broadcast %351 : vector<1x128xi32> to vector<128x128xi32>
    %356 = arith.cmpi eq, %355, %2 : vector<128x128xi32>
    %cst_89 = arith.constant 0.000000e+00 : f32
    %357 = vector.shape_cast %354 : vector<1x128xf32> to vector<1x128xf32>
    %358 = vector.broadcast %357 : vector<1x128xf32> to vector<128x128xf32>
    %359 = vector.broadcast %cst_89 : f32 to vector<128x128xf32>
    %360 = arith.select %356, %358, %359 : vector<128x128xi1>, vector<128x128xf32>
    %cst_90 = arith.constant dense<0.000000e+00> : vector<8x128xf32>
    %361 = tpu.matmul %1, %360, %cst_90 {dimension_numbers = #tpu.dot_dimension_numbers<[1], [0], [0], [1], [0, 0, 1, 1], [], []>, precision = #tpu.contract_precision<fp32>} : vector<8x128xf32>, vector<128x128xf32>, vector<8x128xf32> -> vector<8x128xf32>
    %362 = arith.addf %348, %361 : vector<8x128xf32>
    %363 = arith.mulf %287, %362 : vector<8x128xf32>
    %c0_91 = arith.constant 0 : index
    %c0_92 = arith.constant 0 : index
    %364 = vector.load %arg3[%c0_91, %c0_92] : memref<8x128xf32, #tpu.memory_space<vmem>>, vector<8x128xf32>
    tpu.vector_store %arg3[%c0_91, %c0_92], %363 {strides = array<i32>} : memref<8x128xf32, #tpu.memory_space<vmem>>, vector<8x128xf32>,
    return
  }
  func.func @transform_0(%arg0: i32) -> (i32, i32) {
    %c0_i32 = arith.constant 0 : i32
    %c0_i32_0 = arith.constant 0 : i32
    return %c0_i32, %arg0 : i32, i32
  }
  func.func @transform_1(%arg0: i32) -> (i32, i32) {
    %c0_i32 = arith.constant 0 : i32
    %c0_i32_0 = arith.constant 0 : i32
    %c0_i32_1 = arith.constant 0 : i32
    return %c0_i32, %c0_i32_0 : i32, i32
  }
  func.func @transform_2(%arg0: i32) -> (i32, i32) {
    %c0_i32 = arith.constant 0 : i32
    %c0_i32_0 = arith.constant 0 : i32
    return %c0_i32, %arg0 : i32, i32
  }
}

</mosaic_0001>

<llo_original>
// kernel: tpu_custom_call.1
$region0: #{tpu_custom_call.1}
  #allocation0 [shape = 'u32[]', space=smem, size = 0x4, offset = 0x4, fixed_abs, tag = 'smem constant byte address 0x4 - core index']
  #allocation1 [shape = 'u32[72,128]{1,0:T(1,128)}', space=vmem, size = 0x9000, scoped, tag = 'internal scratch']
  %s0 = inlined_call_operand.hbm [shape: f32[2,1024], index: 0, kind: input, shape index: {}]
  %s1 = inlined_call_operand.hbm [shape: f32[8,128], index: 1, kind: input, shape index: {}]
  %s2 = inlined_call_operand.hbm [shape: f32[8,1024], index: 2, kind: output, shape index: {}]
  %s3 = sld [smem:[#allocation0]]
  $region49: #{tpu_custom_call.1} parent=0
    _
  %s5 = ssub.s32 1, %s3
  %s6 = scalar_select 0, %s5, %s3
  $region1: #{tpu_custom_call.1} parent=0
    #allocation2 [shape = 'u8[2048]{0}', space=vmem, size = 0x800, scoped, tag = 'input window, operand 0']
    #allocation3 [shape = 's32[2]{0}', space=sflag, size = 0x8, scoped, tag = 'scoped memory for tpu_custom_call.1']
    #allocation4 [shape = 's32[2]{0}', space=sflag, size = 0x8, scoped, tag = 'scoped memory for tpu_custom_call.1']
    #allocation5 [shape = 'u8[4096]{0}', space=vmem, size = 0x1000, scoped, tag = 'input window, operand 1, single buffered']
    #allocation6 [shape = 's32[1]{0}', space=sflag, size = 0x4, scoped, tag = 'scoped memory for tpu_custom_call.1']
    #allocation7 [shape = 'u8[8192]{0}', space=vmem, size = 0x2000, scoped, tag = 'output window, operand 0']
    %7 = vsyncpa [#allocation3], 0
    %s8 = scalar_lea.sflag [#allocation3], 1
    %9 = vsyncpa %s8, 0
    %10 = vsyncpa [#allocation6], 0
    %11 = vsyncpa [#allocation4], 0
    %s12 = scalar_lea.sflag [#allocation4], 1
    %13 = vsyncpa %s12, 0
    loop: start=0, step=1, limit=10
    $region2: #{tpu_custom_call.1} parent=1 // loop_pre_header
      _
    $region3: #{tpu_custom_call.1} parent=1 // loop_header
      %s15 = sphi 0, %s19
      %p16 = scmp.ge.s32.totalorder %s15, 10
      %s25 = sphi 0, %s27
      %s28 = sphi 0, %s25
      %s29 = sphi 0, %s28
      %s45 = sphi 0, %s29
      %s49 = sphi 0, %s49
      %s51 = sphi 0, %s49
      %s52 = sphi 0, %s51
      %s66 = sphi 0, %s52
      %s72 = sphi 0, %s74
      %s75 = sphi 0, %s72
      %s76 = sphi 0, %s75
      %s92 = sphi 0, %s76
    $region4: #{tpu_custom_call.1} parent=1 // loop_header_branch
      %18 = sbr.rel (%p16) target = $region8
    $region5: #{tpu_custom_call.1} parent=1 // loop_body
      %s20 = ssub.s32 %s15, 1
      %s21 = ssub.s32 %s15, 2
      %s22 = sadd.s32 %s15, 1
      %s23 = ssub.s32 %s15, %s22
      %p24 = scmp.eq.s32.totalorder %s23, 0
      %s26 = sadd.s32 %s25, 1
      %s27 = scalar_select %p24, %s25, %s26
      %p30 = pneg %p24
      %p31 = scmp.eq.s32.totalorder %s15, 7
      %p32 = por %p30, %p31
      %p33 = scmp.ne.s32.totalorder %s25, %s28
      %p34 = scmp.eq.s32.totalorder %s15, 0
      %p35 = por %p33, %p34
      %p36 = scmp.ne.s32.totalorder %s25, %s28
      %p37 = scmp.eq.s32.totalorder %s20, 7
      %p38 = por %p36, %p37
      %p39 = scmp.ne.s32.totalorder %s28, %s29
      %p40 = scmp.eq.s32.totalorder %s20, 0
      %p41 = por %p39, %p40
      %p42 = scmp.ne.s32.totalorder %s28, %s29
      %p43 = scmp.eq.s32.totalorder %s21, 7
      %p44 = por %p42, %p43
      %p46 = scmp.ne.s32.totalorder %s29, %s45
      %p47 = scmp.eq.s32.totalorder %s21, 0
      %p48 = por %p46, %p47
      %s50 = sadd.s32 %s49, 1
      %p53 = scmp.eq.s32.totalorder %s15, 7
      %p54 = scmp.ne.s32.totalorder %s49, %s51
      %p55 = scmp.eq.s32.totalorder %s15, 0
      %p56 = por %p54, %p55
      %p57 = scmp.ne.s32.totalorder %s49, %s51
      %p58 = scmp.eq.s32.totalorder %s20, 7
      %p59 = por %p57, %p58
      %p60 = scmp.ne.s32.totalorder %s51, %s52
      %p61 = scmp.eq.s32.totalorder %s20, 0
      %p62 = por %p60, %p61
      %p63 = scmp.ne.s32.totalorder %s51, %s52
      %p64 = scmp.eq.s32.totalorder %s21, 7
      %p65 = por %p63, %p64
      %p67 = scmp.ne.s32.totalorder %s52, %s66
      %p68 = scmp.eq.s32.totalorder %s21, 0
      %p69 = por %p67, %p68
      %s70 = ssub.s32 %s15, %s22
      %p71 = scmp.eq.s32.totalorder %s70, 0
      %s73 = sadd.s32 %s72, 1
      %s74 = scalar_select %p71, %s72, %s73
      %p77 = pneg %p71
      %p78 = scmp.eq.s32.totalorder %s15, 7
      %p79 = por %p77, %p78
      %p80 = scmp.ne.s32.totalorder %s72, %s75
      %p81 = scmp.eq.s32.totalorder %s15, 0
      %p82 = por %p80, %p81
      %p83 = scmp.ne.s32.totalorder %s72, %s75
      %p84 = scmp.eq.s32.totalorder %s20, 7
      %p85 = por %p83, %p84
      %p86 = scmp.ne.s32.totalorder %s75, %s76
      %p87 = scmp.eq.s32.totalorder %s20, 0
      %p88 = por %p86, %p87
      %p89 = scmp.ne.s32.totalorder %s75, %s76
      %p90 = scmp.eq.s32.totalorder %s21, 7
      %p91 = por %p89, %p90
      %p93 = scmp.ne.s32.totalorder %s76, %s92
      %p94 = scmp.eq.s32.totalorder %s21, 0
      %p95 = por %p93, %p94
      %p96 = scmp.le.s32.totalorder 1, %s15
      %p97 = scmp.lt.s32.totalorder %s15, 9
      %p98 = pnand %p96, %p97
      %p99 = pneg %p98
      // Predicated region
      $region9: #{tpu_custom_call.1} parent=5 // pred_check
        _
      $region10: #{tpu_custom_call.1} parent=5 // pred_check_branch
        %101 = sbr.rel (%p98) target = $region12
      $region11: #{tpu_custom_call.1} parent=5 // pred_region
        %s102 = ssub.s32 %s15, 1
        // Predicated region
        $region13: #{tpu_custom_call.1} parent=11 // pred_check
          %p103 = pneg %p62
        $region14: #{tpu_custom_call.1} parent=11 // pred_check_branch
          %105 = sbr.rel (%p103) target = $region16
        $region15: #{tpu_custom_call.1} parent=11 // pred_region
          %107 = vsyncadd [#allocation6], 0
          %s109 = sshll.u32 %s1, 4
          %s110 = int_to_ptr.hbm [resolvable:$true] %s109
          %s111 = sshll.u32 [#allocation5], 4
          %s112 = int_to_ptr.vmem [resolvable:$true] %s111
          %114 = dma.hbm_to_vmem [thread:$0]  %s110, 128, %s112, [#allocation6]
        $region16: #{tpu_custom_call.1} parent=11 // pred_fallthru
          _
      $region12: #{tpu_custom_call.1} parent=5 // pred_fallthru
        _
      %p115 = scmp.lt.s32.totalorder %s15, 8
      // Predicated region
      $region17: #{tpu_custom_call.1} parent=5 // pred_check
        %p116 = pneg %p115
      $region18: #{tpu_custom_call.1} parent=5 // pred_check_branch
        %118 = sbr.rel (%p116) target = $region20
      $region19: #{tpu_custom_call.1} parent=5 // pred_region
        // Predicated region
        $region21: #{tpu_custom_call.1} parent=19 // pred_check
          %p119 = pneg %p35
        $region22: #{tpu_custom_call.1} parent=19 // pred_check_branch
          %121 = sbr.rel (%p119) target = $region24
        $region23: #{tpu_custom_call.1} parent=19 // pred_region
          %s122 = sand.u32 %s25, 1
          %s123 = scalar_lea.sflag [#allocation3], %s122
          %s124 = sand.u32 %s25, 1
          %s125 = smul.addr %s124, 2
          %s126 = scalar_lea.vmem [#allocation2], %s125
          %128 = vsyncadd %s123, 0
          %s129 = smul.addr %s15, 2
          %s130 = scalar_lea.hbm %s0, %s129
          %s132 = sshll.u32 %s130, 4
          %s133 = int_to_ptr.hbm [resolvable:$true] %s132
          %s134 = sshll.u32 %s126, 4
          %s135 = int_to_ptr.vmem [resolvable:$true] %s134
          %137 = dma.hbm_to_vmem [thread:$0]  %s133, 32, %s135, %s123
        $region24: #{tpu_custom_call.1} parent=19 // pred_fallthru
          _
      $region20: #{tpu_custom_call.1} parent=5 // pred_fallthru
        _
      %p138 = scmp.le.s32.totalorder 1, %s15
      %p139 = scmp.lt.s32.totalorder %s15, 9
      %p140 = pnand %p138, %p139
      %p141 = pneg %p140
      // Predicated region
      $region25: #{tpu_custom_call.1} parent=5 // pred_check
        _
      $region26: #{tpu_custom_call.1} parent=5 // pred_check_branch
        %143 = sbr.rel (%p140) target = $region28
      $region27: #{tpu_custom_call.1} parent=5 // pred_region
        %s144 = ssub.s32 %s15, 1
        %s145 = sand.u32 %s28, 1
        %s146 = scalar_lea.sflag [#allocation3], %s145
        %s147 = sand.u32 %s28, 1
        %s148 = smul.addr %s147, 2
        %s149 = scalar_lea.vmem [#allocation2], %s148
        // Predicated region
        $region29: #{tpu_custom_call.1} parent=27 // pred_check
          %p150 = pneg %p41
        $region30: #{tpu_custom_call.1} parent=27 // pred_check_branch
          %152 = sbr.rel (%p150) target = $region32
        $region31: #{tpu_custom_call.1} parent=27 // pred_region
          %154 = dma.done %s146, 32
        $region32: #{tpu_custom_call.1} parent=27 // pred_fallthru
          _
        // Predicated region
        $region33: #{tpu_custom_call.1} parent=27 // pred_check
          %p155 = pneg %p62
        $region34: #{tpu_custom_call.1} parent=27 // pred_check_branch
          %157 = sbr.rel (%p155) target = $region36
        $region35: #{tpu_custom_call.1} parent=27 // pred_region
          %159 = dma.done [#allocation6], 128
        $region36: #{tpu_custom_call.1} parent=27 // pred_fallthru
          _
        %s160 = sand.u32 %s28, 1
        %s161 = scalar_lea.sflag [#allocation3], %s160
        %s162 = sand.u32 %s28, 1
        %s163 = smul.addr %s162, 2
        %s164 = scalar_lea.vmem [#allocation2], %s163
        %p165 = pneg %p41
        %p166 = pneg %p38
        %p167 = pneg %p62
        %p168 = pneg %p59
        %p169 = pneg %p88
        %p170 = pneg %p85
        %s171 = sand.u32 %s75, 1
        %s172 = scalar_lea.sflag [#allocation4], %s171
        %s173 = sand.u32 %s75, 1
        %s174 = smul.addr %s173, 8
        %s175 = scalar_lea.vmem [#allocation7], %s174
        %v176 = vld [vmem:[%s149] sm:$0x3]
        %v177 = vld [vmem:[#allocation5] sm:$0xff]
        %v178 = vlaneseq
        %v179 = vshrl.u32 %v178, 7
        %v180 = vadd.s32 %v179, 8
        %v181 = vadd.s32 %v179, 16
        %v182 = vadd.s32 %v179, 24
        %v183 = vadd.s32 %v179, 32
        %v184 = vadd.s32 %v179, 40
        %v185 = vadd.s32 %v179, 48
        %v186 = vadd.s32 %v179, 56
        %v187 = vadd.s32 %v179, 64
        %v188 = vadd.s32 %v179, 72
        %v189 = vadd.s32 %v179, 80
        %v190 = vadd.s32 %v179, 88
        %v191 = vadd.s32 %v179, 96
        %v192 = vadd.s32 %v179, 104
        %v193 = vadd.s32 %v179, 112
        %v194 = vadd.s32 %v179, 120
        %v195 = vmul.f32 %v176, 3.0
        %v196 = vadd.f32 %v195, 0.5
        %v197 = vfloor.f32 %v196
        %v198 = vcvt.f32.s32.to.zero.pseudo %v197
        %v199 = vcvt.s32.f32 %v198
        %v200 = vsub.f32 %v196, %v199
        %v201 = vsub.f32 1.0, %v200
        %v202 = vadd.s32 %v198, 1
        %v203 = vmul.u32 %v198, 4
        %v204 = vadd.s32 %v203, 4
        %v205 = vrot.slane %v203, 1
        %v206 = vadd.s32 %v198, %v205
        %v207 = vand.u32 %v206, 15
        %v209 = vrot.slane %v201, 1
        %v211 = vmul.f32 %v201, %v209
        %v212 = vperm.slane %v207, 0
        %vm213 = vcmp.eq.s32.totalorder %v212, %v179
        %vm214 = vcmp.eq.s32.totalorder %v212, %v180
        %vm215 = vcmp.eq.s32.totalorder %v212, %v181
        %vm216 = vcmp.eq.s32.totalorder %v212, %v182
        %vm217 = vcmp.eq.s32.totalorder %v212, %v183
        %vm218 = vcmp.eq.s32.totalorder %v212, %v184
        %vm219 = vcmp.eq.s32.totalorder %v212, %v185
        %vm220 = vcmp.eq.s32.totalorder %v212, %v186
        %vm221 = vcmp.eq.s32.totalorder %v212, %v187
        %vm222 = vcmp.eq.s32.totalorder %v212, %v188
        %vm223 = vcmp.eq.s32.totalorder %v212, %v189
        %vm224 = vcmp.eq.s32.totalorder %v212, %v190
        %vm225 = vcmp.eq.s32.totalorder %v212, %v191
        %vm226 = vcmp.eq.s32.totalorder %v212, %v192
        %vm227 = vcmp.eq.s32.totalorder %v212, %v193
        %vm228 = vcmp.eq.s32.totalorder %v212, %v194
        %v229 = vperm.slane %v211, 0
        %v230 = vsel %vm213, %v229, 0.0
        %v231 = vsel %vm214, %v229, 0.0
        %v232 = vsel %vm215, %v229, 0.0
        %v233 = vsel %vm216, %v229, 0.0
        %v234 = vsel %vm217, %v229, 0.0
        %v235 = vsel %vm218, %v229, 0.0
        %v236 = vsel %vm219, %v229, 0.0
        %v237 = vsel %vm220, %v229, 0.0
        %v238 = vsel %vm221, %v229, 0.0
        %v239 = vsel %vm222, %v229, 0.0
        %v240 = vsel %vm223, %v229, 0.0
        %v241 = vsel %vm224, %v229, 0.0
        %v242 = vsel %vm225, %v229, 0.0
        %v243 = vsel %vm226, %v229, 0.0
        %v244 = vsel %vm227, %v229, 0.0
        %v245 = vsel %vm228, %v229, 0.0
        %v246 = vrot.slane %v204, 1
        %v247 = vadd.s32 %v198, %v246
        %v248 = vand.u32 %v247, 15
        %v250 = vrot.slane %v200, 1
        %v252 = vmul.f32 %v201, %v250
        %v253 = vperm.slane %v248, 0
        %vm254 = vcmp.eq.s32.totalorder %v253, %v179
        %vm255 = vcmp.eq.s32.totalorder %v253, %v180
        %vm256 = vcmp.eq.s32.totalorder %v253, %v181
        %vm257 = vcmp.eq.s32.totalorder %v253, %v182
        %vm258 = vcmp.eq.s32.totalorder %v253, %v183
        %vm259 = vcmp.eq.s32.totalorder %v253, %v184
        %vm260 = vcmp.eq.s32.totalorder %v253, %v185
        %vm261 = vcmp.eq.s32.totalorder %v253, %v186
        %vm262 = vcmp.eq.s32.totalorder %v253, %v187
        %vm263 = vcmp.eq.s32.totalorder %v253, %v188
        %vm264 = vcmp.eq.s32.totalorder %v253, %v189
        %vm265 = vcmp.eq.s32.totalorder %v253, %v190
        %vm266 = vcmp.eq.s32.totalorder %v253, %v191
        %vm267 = vcmp.eq.s32.totalorder %v253, %v192
        %vm268 = vcmp.eq.s32.totalorder %v253, %v193
        %vm269 = vcmp.eq.s32.totalorder %v253, %v194
        %v270 = vperm.slane %v252, 0
        %v271 = vsel %vm254, %v270, 0.0
        %v272 = vsel %vm255, %v270, 0.0
        %v273 = vsel %vm256, %v270, 0.0
        %v274 = vsel %vm257, %v270, 0.0
        %v275 = vsel %vm258, %v270, 0.0
        %v276 = vsel %vm259, %v270, 0.0
        %v277 = vsel %vm260, %v270, 0.0
        %v278 = vsel %vm261, %v270, 0.0
        %v279 = vsel %vm262, %v270, 0.0
        %v280 = vsel %vm263, %v270, 0.0
        %v281 = vsel %vm264, %v270, 0.0
        %v282 = vsel %vm265, %v270, 0.0
        %v283 = vsel %vm266, %v270, 0.0
        %v284 = vsel %vm267, %v270, 0.0
        %v285 = vsel %vm268, %v270, 0.0
        %v286 = vsel %vm269, %v270, 0.0
        %v287 = vand.u32 %v286, 4294901760
        %288 = vmatpush.msra.mxu0 %v287
        %v289 = vand.u32 %v285, 4294901760
        %290 = vmatpush.msra.mxu0 %v289
        %v291 = vand.u32 %v284, 4294901760
        %292 = vmatpush.msra.mxu0 %v291
        %v293 = vand.u32 %v283, 4294901760
        %294 = vmatpush.msra.mxu0 %v293
        %v295 = vand.u32 %v282, 4294901760
        %296 = vmatpush.msra.mxu0 %v295
        %v297 = vand.u32 %v281, 4294901760
        %298 = vmatpush.msra.mxu0 %v297
        %v299 = vand.u32 %v280, 4294901760
        %300 = vmatpush.msra.mxu0 %v299
        %v301 = vand.u32 %v279, 4294901760
        %302 = vmatpush.msra.mxu0 %v301
        %v303 = vand.u32 %v278, 4294901760
        %304 = vmatpush.msra.mxu0 %v303
        %v305 = vand.u32 %v277, 4294901760
        %306 = vmatpush.msra.mxu0 %v305
        %v307 = vand.u32 %v276, 4294901760
        %308 = vmatpush.msra.mxu0 %v307
        %v309 = vand.u32 %v275, 4294901760
        %310 = vmatpush.msra.mxu0 %v309
        %v311 = vand.u32 %v274, 4294901760
        %312 = vmatpush.msra.mxu0 %v311
        %v313 = vand.u32 %v273, 4294901760
        %314 = vmatpush.msra.mxu0 %v313
        %v315 = vand.u32 %v272, 4294901760
        %316 = vmatpush.msra.mxu0 %v315
        %v317 = vand.u32 %v271, 4294901760
        %318 = vmatpush.msra.mxu0 %v317
        %v319 = vand.u32 %v177, 4294901760
        %v320 = vsub.f32 %v177, %v319
        %v321 = vand.u32 %v320, 4294901760
        %v322 = vsub.f32 %v320, %v321
        %v323 = vand.u32 %v322, 4294901760
        %324 = vmatmul.f32.gmra.mxu0 %v323
        %v325 = vpop.f32.mrf.mxu0
        %v326 = vadd.f32 0.0, %v325
        %327 = vdwg.mxu0
        %v328 = vand.u32 %v286, 4294901760
        %v329 = vsub.f32 %v286, %v328
        %v330 = vand.u32 %v329, 4294901760
        %v331 = vsub.f32 %v329, %v330
        %v332 = vand.u32 %v331, 4294901760
        %333 = vmatpush.msra.mxu0 %v332
        %v334 = vand.u32 %v285, 4294901760
        %v335 = vsub.f32 %v285, %v334
        %v336 = vand.u32 %v335, 4294901760
        %v337 = vsub.f32 %v335, %v336
        %v338 = vand.u32 %v337, 4294901760
        %339 = vmatpush.msra.mxu0 %v338
        %v340 = vand.u32 %v284, 4294901760
        %v341 = vsub.f32 %v284, %v340
        %v342 = vand.u32 %v341, 4294901760
        %v343 = vsub.f32 %v341, %v342
        %v344 = vand.u32 %v343, 4294901760
        %345 = vmatpush.msra.mxu0 %v344
        %v346 = vand.u32 %v283, 4294901760
        %v347 = vsub.f32 %v283, %v346
        %v348 = vand.u32 %v347, 4294901760
        %v349 = vsub.f32 %v347, %v348
        %v350 = vand.u32 %v349, 4294901760
        %351 = vmatpush.msra.mxu0 %v350
        %v352 = vand.u32 %v282, 4294901760
        %v353 = vsub.f32 %v282, %v352
        %v354 = vand.u32 %v353, 4294901760
        %v355 = vsub.f32 %v353, %v354
        %v356 = vand.u32 %v355, 4294901760
        %357 = vmatpush.msra.mxu0 %v356
        %v358 = vand.u32 %v281, 4294901760
        %v359 = vsub.f32 %v281, %v358
        %v360 = vand.u32 %v359, 4294901760
        %v361 = vsub.f32 %v359, %v360
        %v362 = vand.u32 %v361, 4294901760
        %363 = vmatpush.msra.mxu0 %v362
        %v364 = vand.u32 %v280, 4294901760
        %v365 = vsub.f32 %v280, %v364
        %v366 = vand.u32 %v365, 4294901760
        %v367 = vsub.f32 %v365, %v366
        %v368 = vand.u32 %v367, 4294901760
        %369 = vmatpush.msra.mxu0 %v368
        %v370 = vand.u32 %v279, 4294901760
        %v371 = vsub.f32 %v279, %v370
        %v372 = vand.u32 %v371, 4294901760
        %v373 = vsub.f32 %v371, %v372
        %v374 = vand.u32 %v373, 4294901760
        %375 = vmatpush.msra.mxu0 %v374
        %v376 = vand.u32 %v278, 4294901760
        %v377 = vsub.f32 %v278, %v376
        %v378 = vand.u32 %v377, 4294901760
        %v379 = vsub.f32 %v377, %v378
        %v380 = vand.u32 %v379, 4294901760
        %381 = vmatpush.msra.mxu0 %v380
        %v382 = vand.u32 %v277, 4294901760
        %v383 = vsub.f32 %v277, %v382
        %v384 = vand.u32 %v383, 4294901760
        %v385 = vsub.f32 %v383, %v384
        %v386 = vand.u32 %v385, 4294901760
        %387 = vmatpush.msra.mxu0 %v386
        %v388 = vand.u32 %v276, 4294901760
        %v389 = vsub.f32 %v276, %v388
        %v390 = vand.u32 %v389, 4294901760
        %v391 = vsub.f32 %v389, %v390
        %v392 = vand.u32 %v391, 4294901760
        %393 = vmatpush.msra.mxu0 %v392
        %v394 = vand.u32 %v275, 4294901760
        %v395 = vsub.f32 %v275, %v394
        %v396 = vand.u32 %v395, 4294901760
        %v397 = vsub.f32 %v395, %v396
        %v398 = vand.u32 %v397, 4294901760
        %399 = vmatpush.msra.mxu0 %v398
        %v400 = vand.u32 %v274, 4294901760
        %v401 = vsub.f32 %v274, %v400
        %v402 = vand.u32 %v401, 4294901760
        %v403 = vsub.f32 %v401, %v402
        %v404 = vand.u32 %v403, 4294901760
        %405 = vmatpush.msra.mxu0 %v404
        %v406 = vand.u32 %v273, 4294901760
        %v407 = vsub.f32 %v273, %v406
        %v408 = vand.u32 %v407, 4294901760
        %v409 = vsub.f32 %v407, %v408
        %v410 = vand.u32 %v409, 4294901760
        %411 = vmatpush.msra.mxu0 %v410
        %v412 = vand.u32 %v272, 4294901760
        %v413 = vsub.f32 %v272, %v412
        %v414 = vand.u32 %v413, 4294901760
        %v415 = vsub.f32 %v413, %v414
        %v416 = vand.u32 %v415, 4294901760
        %417 = vmatpush.msra.mxu0 %v416
        %v418 = vand.u32 %v271, 4294901760
        %v419 = vsub.f32 %v271, %v418
        %v420 = vand.u32 %v419, 4294901760
        %v421 = vsub.f32 %v419, %v420
        %v422 = vand.u32 %v421, 4294901760
        %423 = vmatpush.msra.mxu0 %v422
        %v424 = vand.u32 %v177, 4294901760
        %425 = vmatmul.f32.gmra.mxu0 %v424
        %v426 = vpop.f32.mrf.mxu0
        %v427 = vadd.f32 %v326, %v426
        %428 = vdwg.mxu0
        %v429 = vand.u32 %v286, 4294901760
        %v430 = vsub.f32 %v286, %v429
        %431 = vmatpush.msra.mxu0 %v430
        %v432 = vand.u32 %v285, 4294901760
        %v433 = vsub.f32 %v285, %v432
        %434 = vmatpush.msra.mxu0 %v433
        %v435 = vand.u32 %v284, 4294901760
        %v436 = vsub.f32 %v284, %v435
        %437 = vmatpush.msra.mxu0 %v436
        %v438 = vand.u32 %v283, 4294901760
        %v439 = vsub.f32 %v283, %v438
        %440 = vmatpush.msra.mxu0 %v439
        %v441 = vand.u32 %v282, 4294901760
        %v442 = vsub.f32 %v282, %v441
        %443 = vmatpush.msra.mxu0 %v442
        %v444 = vand.u32 %v281, 4294901760
        %v445 = vsub.f32 %v281, %v444
        %446 = vmatpush.msra.mxu0 %v445
        %v447 = vand.u32 %v280, 4294901760
        %v448 = vsub.f32 %v280, %v447
        %449 = vmatpush.msra.mxu0 %v448
        %v450 = vand.u32 %v279, 4294901760
        %v451 = vsub.f32 %v279, %v450
        %452 = vmatpush.msra.mxu0 %v451
        %v453 = vand.u32 %v278, 4294901760
        %v454 = vsub.f32 %v278, %v453
        %455 = vmatpush.msra.mxu0 %v454
        %v456 = vand.u32 %v277, 4294901760
        %v457 = vsub.f32 %v277, %v456
        %458 = vmatpush.msra.mxu0 %v457
        %v459 = vand.u32 %v276, 4294901760
        %v460 = vsub.f32 %v276, %v459
        %461 = vmatpush.msra.mxu0 %v460
        %v462 = vand.u32 %v275, 4294901760
        %v463 = vsub.f32 %v275, %v462
        %464 = vmatpush.msra.mxu0 %v463
        %v465 = vand.u32 %v274, 4294901760
        %v466 = vsub.f32 %v274, %v465
        %467 = vmatpush.msra.mxu0 %v466
        %v468 = vand.u32 %v273, 4294901760
        %v469 = vsub.f32 %v273, %v468
        %470 = vmatpush.msra.mxu0 %v469
        %v471 = vand.u32 %v272, 4294901760
        %v472 = vsub.f32 %v272, %v471
        %473 = vmatpush.msra.mxu0 %v472
        %v474 = vand.u32 %v271, 4294901760
        %v475 = vsub.f32 %v271, %v474
        %476 = vmatpush.msra.mxu0 %v475
        %v477 = vand.u32 %v177, 4294901760
        %v478 = vsub.f32 %v177, %v477
        %479 = vmatmul.f32.gmra.mxu0 %v478
        %v480 = vpop.f32.mrf.mxu0
        %v481 = vadd.f32 %v427, %v480
        %482 = vdwg.mxu0
        %v483 = vand.u32 %v286, 4294901760
        %484 = vmatpush.msra.mxu0 %v483
        %v485 = vand.u32 %v285, 4294901760
        %486 = vmatpush.msra.mxu0 %v485
        %v487 = vand.u32 %v284, 4294901760
        %488 = vmatpush.msra.mxu0 %v487
        %v489 = vand.u32 %v283, 4294901760
        %490 = vmatpush.msra.mxu0 %v489
        %v491 = vand.u32 %v282, 4294901760
        %492 = vmatpush.msra.mxu0 %v491
        %v493 = vand.u32 %v281, 4294901760
        %494 = vmatpush.msra.mxu0 %v493
        %v495 = vand.u32 %v280, 4294901760
        %496 = vmatpush.msra.mxu0 %v495
        %v497 = vand.u32 %v279, 4294901760
        %498 = vmatpush.msra.mxu0 %v497
        %v499 = vand.u32 %v278, 4294901760
        %500 = vmatpush.msra.mxu0 %v499
        %v501 = vand.u32 %v277, 4294901760
        %502 = vmatpush.msra.mxu0 %v501
        %v503 = vand.u32 %v276, 4294901760
        %504 = vmatpush.msra.mxu0 %v503
        %v505 = vand.u32 %v275, 4294901760
        %506 = vmatpush.msra.mxu0 %v505
        %v507 = vand.u32 %v274, 4294901760
        %508 = vmatpush.msra.mxu0 %v507
        %v509 = vand.u32 %v273, 4294901760
        %510 = vmatpush.msra.mxu0 %v509
        %v511 = vand.u32 %v272, 4294901760
        %512 = vmatpush.msra.mxu0 %v511
        %v513 = vand.u32 %v271, 4294901760
        %514 = vmatpush.msra.mxu0 %v513
        %v515 = vand.u32 %v177, 4294901760
        %v516 = vsub.f32 %v177, %v515
        %v517 = vand.u32 %v516, 4294901760
        %518 = vmatmul.f32.gmra.mxu0 %v517
        %v519 = vpop.f32.mrf.mxu0
        %v520 = vadd.f32 %v481, %v519
        %521 = vdwg.mxu0
        %v522 = vand.u32 %v286, 4294901760
        %v523 = vsub.f32 %v286, %v522
        %v524 = vand.u32 %v523, 4294901760
        %525 = vmatpush.msra.mxu0 %v524
        %v526 = vand.u32 %v285, 4294901760
        %v527 = vsub.f32 %v285, %v526
        %v528 = vand.u32 %v527, 4294901760
        %529 = vmatpush.msra.mxu0 %v528
        %v530 = vand.u32 %v284, 4294901760
        %v531 = vsub.f32 %v284, %v530
        %v532 = vand.u32 %v531, 4294901760
        %533 = vmatpush.msra.mxu0 %v532
        %v534 = vand.u32 %v283, 4294901760
        %v535 = vsub.f32 %v283, %v534
        %v536 = vand.u32 %v535, 4294901760
        %537 = vmatpush.msra.mxu0 %v536
        %v538 = vand.u32 %v282, 4294901760
        %v539 = vsub.f32 %v282, %v538
        %v540 = vand.u32 %v539, 4294901760
        %541 = vmatpush.msra.mxu0 %v540
        %v542 = vand.u32 %v281, 4294901760
        %v543 = vsub.f32 %v281, %v542
        %v544 = vand.u32 %v543, 4294901760
        %545 = vmatpush.msra.mxu0 %v544
        %v546 = vand.u32 %v280, 4294901760
        %v547 = vsub.f32 %v280, %v546
        %v548 = vand.u32 %v547, 4294901760
        %549 = vmatpush.msra.mxu0 %v548
        %v550 = vand.u32 %v279, 4294901760
        %v551 = vsub.f32 %v279, %v550
        %v552 = vand.u32 %v551, 4294901760
        %553 = vmatpush.msra.mxu0 %v552
        %v554 = vand.u32 %v278, 4294901760
        %v555 = vsub.f32 %v278, %v554
        %v556 = vand.u32 %v555, 4294901760
        %557 = vmatpush.msra.mxu0 %v556
        %v558 = vand.u32 %v277, 4294901760
        %v559 = vsub.f32 %v277, %v558
        %v560 = vand.u32 %v559, 4294901760
        %561 = vmatpush.msra.mxu0 %v560
        %v562 = vand.u32 %v276, 4294901760
        %v563 = vsub.f32 %v276, %v562
        %v564 = vand.u32 %v563, 4294901760
        %565 = vmatpush.msra.mxu0 %v564
        %v566 = vand.u32 %v275, 4294901760
        %v567 = vsub.f32 %v275, %v566
        %v568 = vand.u32 %v567, 4294901760
        %569 = vmatpush.msra.mxu0 %v568
        %v570 = vand.u32 %v274, 4294901760
        %v571 = vsub.f32 %v274, %v570
        %v572 = vand.u32 %v571, 4294901760
        %573 = vmatpush.msra.mxu0 %v572
        %v574 = vand.u32 %v273, 4294901760
        %v575 = vsub.f32 %v273, %v574
        %v576 = vand.u32 %v575, 4294901760
        %577 = vmatpush.msra.mxu0 %v576
        %v578 = vand.u32 %v272, 4294901760
        %v579 = vsub.f32 %v272, %v578
        %v580 = vand.u32 %v579, 4294901760
        %581 = vmatpush.msra.mxu0 %v580
        %v582 = vand.u32 %v271, 4294901760
        %v583 = vsub.f32 %v271, %v582
        %v584 = vand.u32 %v583, 4294901760
        %585 = vmatpush.msra.mxu0 %v584
        %v586 = vand.u32 %v177, 4294901760
        %587 = vmatmul.f32.gmra.mxu0 %v586
        %v588 = vpop.f32.mrf.mxu0
        %v589 = vadd.f32 %v520, %v588
        %590 = vdwg.mxu0
        %v591 = vand.u32 %v286, 4294901760
        %592 = vmatpush.msra.mxu0 %v591
        %v593 = vand.u32 %v285, 4294901760
        %594 = vmatpush.msra.mxu0 %v593
        %v595 = vand.u32 %v284, 4294901760
        %596 = vmatpush.msra.mxu0 %v595
        %v597 = vand.u32 %v283, 4294901760
        %598 = vmatpush.msra.mxu0 %v597
        %v599 = vand.u32 %v282, 4294901760
        %600 = vmatpush.msra.mxu0 %v599
        %v601 = vand.u32 %v281, 4294901760
        %602 = vmatpush.msra.mxu0 %v601
        %v603 = vand.u32 %v280, 4294901760
        %604 = vmatpush.msra.mxu0 %v603
        %v605 = vand.u32 %v279, 4294901760
        %606 = vmatpush.msra.mxu0 %v605
        %v607 = vand.u32 %v278, 4294901760
        %608 = vmatpush.msra.mxu0 %v607
        %v609 = vand.u32 %v277, 4294901760
        %610 = vmatpush.msra.mxu0 %v609
        %v611 = vand.u32 %v276, 4294901760
        %612 = vmatpush.msra.mxu0 %v611
        %v613 = vand.u32 %v275, 4294901760
        %614 = vmatpush.msra.mxu0 %v613
        %v615 = vand.u32 %v274, 4294901760
        %616 = vmatpush.msra.mxu0 %v615
        %v617 = vand.u32 %v273, 4294901760
        %618 = vmatpush.msra.mxu0 %v617
        %v619 = vand.u32 %v272, 4294901760
        %620 = vmatpush.msra.mxu0 %v619
        %v621 = vand.u32 %v271, 4294901760
        %622 = vmatpush.msra.mxu0 %v621
        %v623 = vand.u32 %v177, 4294901760
        %624 = vmatmul.f32.gmra.mxu0 %v623
        %v625 = vpop.f32.mrf.mxu0
        %v626 = vadd.f32 %v589, %v625
        %627 = vdwg.mxu0
        %v628 = vand.u32 %v245, 4294901760
        %629 = vmatpush.msra.mxu0 %v628
        %v630 = vand.u32 %v244, 4294901760
        %631 = vmatpush.msra.mxu0 %v630
        %v632 = vand.u32 %v243, 4294901760
        %633 = vmatpush.msra.mxu0 %v632
        %v634 = vand.u32 %v242, 4294901760
        %635 = vmatpush.msra.mxu0 %v634
        %v636 = vand.u32 %v241, 4294901760
        %637 = vmatpush.msra.mxu0 %v636
        %v638 = vand.u32 %v240, 4294901760
        %639 = vmatpush.msra.mxu0 %v638
        %v640 = vand.u32 %v239, 4294901760
        %641 = vmatpush.msra.mxu0 %v640
        %v642 = vand.u32 %v238, 4294901760
        %643 = vmatpush.msra.mxu0 %v642
        %v644 = vand.u32 %v237, 4294901760
        %645 = vmatpush.msra.mxu0 %v644
        %v646 = vand.u32 %v236, 4294901760
        %647 = vmatpush.msra.mxu0 %v646
        %v648 = vand.u32 %v235, 4294901760
        %649 = vmatpush.msra.mxu0 %v648
        %v650 = vand.u32 %v234, 4294901760
        %651 = vmatpush.msra.mxu0 %v650
        %v652 = vand.u32 %v233, 4294901760
        %653 = vmatpush.msra.mxu0 %v652
        %v654 = vand.u32 %v232, 4294901760
        %655 = vmatpush.msra.mxu0 %v654
        %v656 = vand.u32 %v231, 4294901760
        %657 = vmatpush.msra.mxu0 %v656
        %v658 = vand.u32 %v230, 4294901760
        %659 = vmatpush.msra.mxu0 %v658
        %v660 = vand.u32 %v177, 4294901760
        %v661 = vsub.f32 %v177, %v660
        %v662 = vand.u32 %v661, 4294901760
        %v663 = vsub.f32 %v661, %v662
        %v664 = vand.u32 %v663, 4294901760
        %665 = vmatmul.f32.gmra.mxu0 %v664
        %v666 = vpop.f32.mrf.mxu0
        %v667 = vadd.f32 %v626, %v666
        %668 = vdwg.mxu0
        %v669 = vand.u32 %v245, 4294901760
        %v670 = vsub.f32 %v245, %v669
        %v671 = vand.u32 %v670, 4294901760
        %v672 = vsub.f32 %v670, %v671
        %v673 = vand.u32 %v672, 4294901760
        %674 = vmatpush.msra.mxu0 %v673
        %v675 = vand.u32 %v244, 4294901760
        %v676 = vsub.f32 %v244, %v675
        %v677 = vand.u32 %v676, 4294901760
        %v678 = vsub.f32 %v676, %v677
        %v679 = vand.u32 %v678, 4294901760
        %680 = vmatpush.msra.mxu0 %v679
        %v681 = vand.u32 %v243, 4294901760
        %v682 = vsub.f32 %v243, %v681
        %v683 = vand.u32 %v682, 4294901760
        %v684 = vsub.f32 %v682, %v683
        %v685 = vand.u32 %v684, 4294901760
        %686 = vmatpush.msra.mxu0 %v685
        %v687 = vand.u32 %v242, 4294901760
        %v688 = vsub.f32 %v242, %v687
        %v689 = vand.u32 %v688, 4294901760
        %v690 = vsub.f32 %v688, %v689
        %v691 = vand.u32 %v690, 4294901760
        %692 = vmatpush.msra.mxu0 %v691
        %v693 = vand.u32 %v241, 4294901760
        %v694 = vsub.f32 %v241, %v693
        %v695 = vand.u32 %v694, 4294901760
        %v696 = vsub.f32 %v694, %v695
        %v697 = vand.u32 %v696, 4294901760
        %698 = vmatpush.msra.mxu0 %v697
        %v699 = vand.u32 %v240, 4294901760
        %v700 = vsub.f32 %v240, %v699
        %v701 = vand.u32 %v700, 4294901760
        %v702 = vsub.f32 %v700, %v701
        %v703 = vand.u32 %v702, 4294901760
        %704 = vmatpush.msra.mxu0 %v703
        %v705 = vand.u32 %v239, 4294901760
        %v706 = vsub.f32 %v239, %v705
        %v707 = vand.u32 %v706, 4294901760
        %v708 = vsub.f32 %v706, %v707
        %v709 = vand.u32 %v708, 4294901760
        %710 = vmatpush.msra.mxu0 %v709
        %v711 = vand.u32 %v238, 4294901760
        %v712 = vsub.f32 %v238, %v711
        %v713 = vand.u32 %v712, 4294901760
        %v714 = vsub.f32 %v712, %v713
        %v715 = vand.u32 %v714, 4294901760
        %716 = vmatpush.msra.mxu0 %v715
        %v717 = vand.u32 %v237, 4294901760
        %v718 = vsub.f32 %v237, %v717
        %v719 = vand.u32 %v718, 4294901760
        %v720 = vsub.f32 %v718, %v719
        %v721 = vand.u32 %v720, 4294901760
        %722 = vmatpush.msra.mxu0 %v721
        %v723 = vand.u32 %v236, 4294901760
        %v724 = vsub.f32 %v236, %v723
        %v725 = vand.u32 %v724, 4294901760
        %v726 = vsub.f32 %v724, %v725
        %v727 = vand.u32 %v726, 4294901760
        %728 = vmatpush.msra.mxu0 %v727
        %v729 = vand.u32 %v235, 4294901760
        %v730 = vsub.f32 %v235, %v729
        %v731 = vand.u32 %v730, 4294901760
        %v732 = vsub.f32 %v730, %v731
        %v733 = vand.u32 %v732, 4294901760
        %734 = vmatpush.msra.mxu0 %v733
        %v735 = vand.u32 %v234, 4294901760
        %v736 = vsub.f32 %v234, %v735
        %v737 = vand.u32 %v736, 4294901760
        %v738 = vsub.f32 %v736, %v737
        %v739 = vand.u32 %v738, 4294901760
        %740 = vmatpush.msra.mxu0 %v739
        %v741 = vand.u32 %v233, 4294901760
        %v742 = vsub.f32 %v233, %v741
        %v743 = vand.u32 %v742, 4294901760
        %v744 = vsub.f32 %v742, %v743
        %v745 = vand.u32 %v744, 4294901760
        %746 = vmatpush.msra.mxu0 %v745
        %v747 = vand.u32 %v232, 4294901760
        %v748 = vsub.f32 %v232, %v747
        %v749 = vand.u32 %v748, 4294901760
        %v750 = vsub.f32 %v748, %v749
        %v751 = vand.u32 %v750, 4294901760
        %752 = vmatpush.msra.mxu0 %v751
        %v753 = vand.u32 %v231, 4294901760
        %v754 = vsub.f32 %v231, %v753
        %v755 = vand.u32 %v754, 4294901760
        %v756 = vsub.f32 %v754, %v755
        %v757 = vand.u32 %v756, 4294901760
        %758 = vmatpush.msra.mxu0 %v757
        %v759 = vand.u32 %v230, 4294901760
        %v760 = vsub.f32 %v230, %v759
        %v761 = vand.u32 %v760, 4294901760
        %v762 = vsub.f32 %v760, %v761
        %v763 = vand.u32 %v762, 4294901760
        %764 = vmatpush.msra.mxu0 %v763
        %v765 = vand.u32 %v177, 4294901760
        %766 = vmatmul.f32.gmra.mxu0 %v765
        %v767 = vpop.f32.mrf.mxu0
        %v768 = vadd.f32 %v667, %v767
        %769 = vdwg.mxu0
        %v770 = vand.u32 %v245, 4294901760
        %v771 = vsub.f32 %v245, %v770
        %772 = vmatpush.msra.mxu0 %v771
        %v773 = vand.u32 %v244, 4294901760
        %v774 = vsub.f32 %v244, %v773
        %775 = vmatpush.msra.mxu0 %v774
        %v776 = vand.u32 %v243, 4294901760
        %v777 = vsub.f32 %v243, %v776
        %778 = vmatpush.msra.mxu0 %v777
        %v779 = vand.u32 %v242, 4294901760
        %v780 = vsub.f32 %v242, %v779
        %781 = vmatpush.msra.mxu0 %v780
        %v782 = vand.u32 %v241, 4294901760
        %v783 = vsub.f32 %v241, %v782
        %784 = vmatpush.msra.mxu0 %v783
        %v785 = vand.u32 %v240, 4294901760
        %v786 = vsub.f32 %v240, %v785
        %787 = vmatpush.msra.mxu0 %v786
        %v788 = vand.u32 %v239, 4294901760
        %v789 = vsub.f32 %v239, %v788
        %790 = vmatpush.msra.mxu0 %v789
        %v791 = vand.u32 %v238, 4294901760
        %v792 = vsub.f32 %v238, %v791
        %793 = vmatpush.msra.mxu0 %v792
        %v794 = vand.u32 %v237, 4294901760
        %v795 = vsub.f32 %v237, %v794
        %796 = vmatpush.msra.mxu0 %v795
        %v797 = vand.u32 %v236, 4294901760
        %v798 = vsub.f32 %v236, %v797
        %799 = vmatpush.msra.mxu0 %v798
        %v800 = vand.u32 %v235, 4294901760
        %v801 = vsub.f32 %v235, %v800
        %802 = vmatpush.msra.mxu0 %v801
        %v803 = vand.u32 %v234, 4294901760
        %v804 = vsub.f32 %v234, %v803
        %805 = vmatpush.msra.mxu0 %v804
        %v806 = vand.u32 %v233, 4294901760
        %v807 = vsub.f32 %v233, %v806
        %808 = vmatpush.msra.mxu0 %v807
        %v809 = vand.u32 %v232, 4294901760
        %v810 = vsub.f32 %v232, %v809
        %811 = vmatpush.msra.mxu0 %v810
        %v812 = vand.u32 %v231, 4294901760
        %v813 = vsub.f32 %v231, %v812
        %814 = vmatpush.msra.mxu0 %v813
        %v815 = vand.u32 %v230, 4294901760
        %v816 = vsub.f32 %v230, %v815
        %817 = vmatpush.msra.mxu0 %v816
        %v818 = vand.u32 %v177, 4294901760
        %v819 = vsub.f32 %v177, %v818
        %820 = vmatmul.f32.gmra.mxu0 %v819
        %v821 = vpop.f32.mrf.mxu0
        %v822 = vadd.f32 %v768, %v821
        %823 = vdwg.mxu0
        %v824 = vand.u32 %v245, 4294901760
        %825 = vmatpush.msra.mxu0 %v824
        %v826 = vand.u32 %v244, 4294901760
        %827 = vmatpush.msra.mxu0 %v826
        %v828 = vand.u32 %v243, 4294901760
        %829 = vmatpush.msra.mxu0 %v828
        %v830 = vand.u32 %v242, 4294901760
        %831 = vmatpush.msra.mxu0 %v830
        %v832 = vand.u32 %v241, 4294901760
        %833 = vmatpush.msra.mxu0 %v832
        %v834 = vand.u32 %v240, 4294901760
        %835 = vmatpush.msra.mxu0 %v834
        %v836 = vand.u32 %v239, 4294901760
        %837 = vmatpush.msra.mxu0 %v836
        %v838 = vand.u32 %v238, 4294901760
        %839 = vmatpush.msra.mxu0 %v838
        %v840 = vand.u32 %v237, 4294901760
        %841 = vmatpush.msra.mxu0 %v840
        %v842 = vand.u32 %v236, 4294901760
        %843 = vmatpush.msra.mxu0 %v842
        %v844 = vand.u32 %v235, 4294901760
        %845 = vmatpush.msra.mxu0 %v844
        %v846 = vand.u32 %v234, 4294901760
        %847 = vmatpush.msra.mxu0 %v846
        %v848 = vand.u32 %v233, 4294901760
        %849 = vmatpush.msra.mxu0 %v848
        %v850 = vand.u32 %v232, 4294901760
        %851 = vmatpush.msra.mxu0 %v850
        %v852 = vand.u32 %v231, 4294901760
        %853 = vmatpush.msra.mxu0 %v852
        %v854 = vand.u32 %v230, 4294901760
        %855 = vmatpush.msra.mxu0 %v854
        %v856 = vand.u32 %v177, 4294901760
        %v857 = vsub.f32 %v177, %v856
        %v858 = vand.u32 %v857, 4294901760
        %859 = vmatmul.f32.gmra.mxu0 %v858
        %v860 = vpop.f32.mrf.mxu0
        %v861 = vadd.f32 %v822, %v860
        %862 = vdwg.mxu0
        %v863 = vand.u32 %v245, 4294901760
        %v864 = vsub.f32 %v245, %v863
        %v865 = vand.u32 %v864, 4294901760
        %866 = vmatpush.msra.mxu0 %v865
        %v867 = vand.u32 %v244, 4294901760
        %v868 = vsub.f32 %v244, %v867
        %v869 = vand.u32 %v868, 4294901760
        %870 = vmatpush.msra.mxu0 %v869
        %v871 = vand.u32 %v243, 4294901760
        %v872 = vsub.f32 %v243, %v871
        %v873 = vand.u32 %v872, 4294901760
        %874 = vmatpush.msra.mxu0 %v873
        %v875 = vand.u32 %v242, 4294901760
        %v876 = vsub.f32 %v242, %v875
        %v877 = vand.u32 %v876, 4294901760
        %878 = vmatpush.msra.mxu0 %v877
        %v879 = vand.u32 %v241, 4294901760
        %v880 = vsub.f32 %v241, %v879
        %v881 = vand.u32 %v880, 4294901760
        %882 = vmatpush.msra.mxu0 %v881
        %v883 = vand.u32 %v240, 4294901760
        %v884 = vsub.f32 %v240, %v883
        %v885 = vand.u32 %v884, 4294901760
        %886 = vmatpush.msra.mxu0 %v885
        %v887 = vand.u32 %v239, 4294901760
        %v888 = vsub.f32 %v239, %v887
        %v889 = vand.u32 %v888, 4294901760
        %890 = vmatpush.msra.mxu0 %v889
        %v891 = vand.u32 %v238, 4294901760
        %v892 = vsub.f32 %v238, %v891
        %v893 = vand.u32 %v892, 4294901760
        %894 = vmatpush.msra.mxu0 %v893
        %v895 = vand.u32 %v237, 4294901760
        %v896 = vsub.f32 %v237, %v895
        %v897 = vand.u32 %v896, 4294901760
        %898 = vmatpush.msra.mxu0 %v897
        %v899 = vand.u32 %v236, 4294901760
        %v900 = vsub.f32 %v236, %v899
        %v901 = vand.u32 %v900, 4294901760
        %902 = vmatpush.msra.mxu0 %v901
        %v903 = vand.u32 %v235, 4294901760
        %v904 = vsub.f32 %v235, %v903
        %v905 = vand.u32 %v904, 4294901760
        %906 = vmatpush.msra.mxu0 %v905
        %v907 = vand.u32 %v234, 4294901760
        %v908 = vsub.f32 %v234, %v907
        %v909 = vand.u32 %v908, 4294901760
        %910 = vmatpush.msra.mxu0 %v909
        %v911 = vand.u32 %v233, 4294901760
        %v912 = vsub.f32 %v233, %v911
        %v913 = vand.u32 %v912, 4294901760
        %914 = vmatpush.msra.mxu0 %v913
        %v915 = vand.u32 %v232, 4294901760
        %v916 = vsub.f32 %v232, %v915
        %v917 = vand.u32 %v916, 4294901760
        %918 = vmatpush.msra.mxu0 %v917
        %v919 = vand.u32 %v231, 4294901760
        %v920 = vsub.f32 %v231, %v919
        %v921 = vand.u32 %v920, 4294901760
        %922 = vmatpush.msra.mxu0 %v921
        %v923 = vand.u32 %v230, 4294901760
        %v924 = vsub.f32 %v230, %v923
        %v925 = vand.u32 %v924, 4294901760
        %926 = vmatpush.msra.mxu0 %v925
        %v927 = vand.u32 %v177, 4294901760
        %928 = vmatmul.f32.gmra.mxu0 %v927
        %v929 = vpop.f32.mrf.mxu0
        %v930 = vadd.f32 %v861, %v929
        %931 = vdwg.mxu0
        %v932 = vand.u32 %v245, 4294901760
        %933 = vmatpush.msra.mxu0 %v932
        %v934 = vand.u32 %v244, 4294901760
        %935 = vmatpush.msra.mxu0 %v934
        %v936 = vand.u32 %v243, 4294901760
        %937 = vmatpush.msra.mxu0 %v936
        %v938 = vand.u32 %v242, 4294901760
        %939 = vmatpush.msra.mxu0 %v938
        %v940 = vand.u32 %v241, 4294901760
        %941 = vmatpush.msra.mxu0 %v940
        %v942 = vand.u32 %v240, 4294901760
        %943 = vmatpush.msra.mxu0 %v942
        %v944 = vand.u32 %v239, 4294901760
        %945 = vmatpush.msra.mxu0 %v944
        %v946 = vand.u32 %v238, 4294901760
        %947 = vmatpush.msra.mxu0 %v946
        %v948 = vand.u32 %v237, 4294901760
        %949 = vmatpush.msra.mxu0 %v948
        %v950 = vand.u32 %v236, 4294901760
        %951 = vmatpush.msra.mxu0 %v950
        %v952 = vand.u32 %v235, 4294901760
        %953 = vmatpush.msra.mxu0 %v952
        %v954 = vand.u32 %v234, 4294901760
        %955 = vmatpush.msra.mxu0 %v954
        %v956 = vand.u32 %v233, 4294901760
        %957 = vmatpush.msra.mxu0 %v956
        %v958 = vand.u32 %v232, 4294901760
        %959 = vmatpush.msra.mxu0 %v958
        %v960 = vand.u32 %v231, 4294901760
        %961 = vmatpush.msra.mxu0 %v960
        %v962 = vand.u32 %v230, 4294901760
        %963 = vmatpush.msra.mxu0 %v962
        %v964 = vand.u32 %v177, 4294901760
        %965 = vmatmul.f32.gmra.mxu0 %v964
        %v966 = vpop.f32.mrf.mxu0
        %v967 = vadd.f32 %v930, %v966
        %968 = vdwg.mxu0
        %v969 = vadd.s32 %v202, %v205
        %v970 = vand.u32 %v969, 15
        %v971 = vmul.f32 %v200, %v209
        %v972 = vperm.slane %v970, 0
        %vm973 = vcmp.eq.s32.totalorder %v972, %v179
        %vm974 = vcmp.eq.s32.totalorder %v972, %v180
        %vm975 = vcmp.eq.s32.totalorder %v972, %v181
        %vm976 = vcmp.eq.s32.totalorder %v972, %v182
        %vm977 = vcmp.eq.s32.totalorder %v972, %v183
        %vm978 = vcmp.eq.s32.totalorder %v972, %v184
        %vm979 = vcmp.eq.s32.totalorder %v972, %v185
        %vm980 = vcmp.eq.s32.totalorder %v972, %v186
        %vm981 = vcmp.eq.s32.totalorder %v972, %v187
        %vm982 = vcmp.eq.s32.totalorder %v972, %v188
        %vm983 = vcmp.eq.s32.totalorder %v972, %v189
        %vm984 = vcmp.eq.s32.totalorder %v972, %v190
        %vm985 = vcmp.eq.s32.totalorder %v972, %v191
        %vm986 = vcmp.eq.s32.totalorder %v972, %v192
        %vm987 = vcmp.eq.s32.totalorder %v972, %v193
        %vm988 = vcmp.eq.s32.totalorder %v972, %v194
        %v989 = vperm.slane %v971, 0
        %v990 = vsel %vm973, %v989, 0.0
        %v991 = vsel %vm974, %v989, 0.0
        %v992 = vsel %vm975, %v989, 0.0
        %v993 = vsel %vm976, %v989, 0.0
        %v994 = vsel %vm977, %v989, 0.0
        %v995 = vsel %vm978, %v989, 0.0
        %v996 = vsel %vm979, %v989, 0.0
        %v997 = vsel %vm980, %v989, 0.0
        %v998 = vsel %vm981, %v989, 0.0
        %v999 = vsel %vm982, %v989, 0.0
        %v1000 = vsel %vm983, %v989, 0.0
        %v1001 = vsel %vm984, %v989, 0.0
        %v1002 = vsel %vm985, %v989, 0.0
        %v1003 = vsel %vm986, %v989, 0.0
        %v1004 = vsel %vm987, %v989, 0.0
        %v1005 = vsel %vm988, %v989, 0.0
        %v1006 = vand.u32 %v1005, 4294901760
        %1007 = vmatpush.msra.mxu0 %v1006
        %v1008 = vand.u32 %v1004, 4294901760
        %1009 = vmatpush.msra.mxu0 %v1008
        %v1010 = vand.u32 %v1003, 4294901760
        %1011 = vmatpush.msra.mxu0 %v1010
        %v1012 = vand.u32 %v1002, 4294901760
        %1013 = vmatpush.msra.mxu0 %v1012
        %v1014 = vand.u32 %v1001, 4294901760
        %1015 = vmatpush.msra.mxu0 %v1014
        %v1016 = vand.u32 %v1000, 4294901760
        %1017 = vmatpush.msra.mxu0 %v1016
        %v1018 = vand.u32 %v999, 4294901760
        %1019 = vmatpush.msra.mxu0 %v1018
        %v1020 = vand.u32 %v998, 4294901760
        %1021 = vmatpush.msra.mxu0 %v1020
        %v1022 = vand.u32 %v997, 4294901760
        %1023 = vmatpush.msra.mxu0 %v1022
        %v1024 = vand.u32 %v996, 4294901760
        %1025 = vmatpush.msra.mxu0 %v1024
        %v1026 = vand.u32 %v995, 4294901760
        %1027 = vmatpush.msra.mxu0 %v1026
        %v1028 = vand.u32 %v994, 4294901760
        %1029 = vmatpush.msra.mxu0 %v1028
        %v1030 = vand.u32 %v993, 4294901760
        %1031 = vmatpush.msra.mxu0 %v1030
        %v1032 = vand.u32 %v992, 4294901760
        %1033 = vmatpush.msra.mxu0 %v1032
        %v1034 = vand.u32 %v991, 4294901760
        %1035 = vmatpush.msra.mxu0 %v1034
        %v1036 = vand.u32 %v990, 4294901760
        %1037 = vmatpush.msra.mxu0 %v1036
        %v1038 = vand.u32 %v177, 4294901760
        %v1039 = vsub.f32 %v177, %v1038
        %v1040 = vand.u32 %v1039, 4294901760
        %v1041 = vsub.f32 %v1039, %v1040
        %v1042 = vand.u32 %v1041, 4294901760
        %1043 = vmatmul.f32.gmra.mxu0 %v1042
        %v1044 = vpop.f32.mrf.mxu0
        %v1045 = vadd.f32 0.0, %v1044
        %1046 = vdwg.mxu0
        %v1047 = vand.u32 %v1005, 4294901760
        %v1048 = vsub.f32 %v1005, %v1047
        %v1049 = vand.u32 %v1048, 4294901760
        %v1050 = vsub.f32 %v1048, %v1049
        %v1051 = vand.u32 %v1050, 4294901760
        %1052 = vmatpush.msra.mxu0 %v1051
        %v1053 = vand.u32 %v1004, 4294901760
        %v1054 = vsub.f32 %v1004, %v1053
        %v1055 = vand.u32 %v1054, 4294901760
        %v1056 = vsub.f32 %v1054, %v1055
        %v1057 = vand.u32 %v1056, 4294901760
        %1058 = vmatpush.msra.mxu0 %v1057
        %v1059 = vand.u32 %v1003, 4294901760
        %v1060 = vsub.f32 %v1003, %v1059
        %v1061 = vand.u32 %v1060, 4294901760
        %v1062 = vsub.f32 %v1060, %v1061
        %v1063 = vand.u32 %v1062, 4294901760
        %1064 = vmatpush.msra.mxu0 %v1063
        %v1065 = vand.u32 %v1002, 4294901760
        %v1066 = vsub.f32 %v1002, %v1065
        %v1067 = vand.u32 %v1066, 4294901760
        %v1068 = vsub.f32 %v1066, %v1067
        %v1069 = vand.u32 %v1068, 4294901760
        %1070 = vmatpush.msra.mxu0 %v1069
        %v1071 = vand.u32 %v1001, 4294901760
        %v1072 = vsub.f32 %v1001, %v1071
        %v1073 = vand.u32 %v1072, 4294901760
        %v1074 = vsub.f32 %v1072, %v1073
        %v1075 = vand.u32 %v1074, 4294901760
        %1076 = vmatpush.msra.mxu0 %v1075
        %v1077 = vand.u32 %v1000, 4294901760
        %v1078 = vsub.f32 %v1000, %v1077
        %v1079 = vand.u32 %v1078, 4294901760
        %v1080 = vsub.f32 %v1078, %v1079
        %v1081 = vand.u32 %v1080, 4294901760
        %1082 = vmatpush.msra.mxu0 %v1081
        %v1083 = vand.u32 %v999, 4294901760
        %v1084 = vsub.f32 %v999, %v1083
        %v1085 = vand.u32 %v1084, 4294901760
        %v1086 = vsub.f32 %v1084, %v1085
        %v1087 = vand.u32 %v1086, 4294901760
        %1088 = vmatpush.msra.mxu0 %v1087
        %v1089 = vand.u32 %v998, 4294901760
        %v1090 = vsub.f32 %v998, %v1089
        %v1091 = vand.u32 %v1090, 4294901760
        %v1092 = vsub.f32 %v1090, %v1091
        %v1093 = vand.u32 %v1092, 4294901760
        %1094 = vmatpush.msra.mxu0 %v1093
        %v1095 = vand.u32 %v997, 4294901760
        %v1096 = vsub.f32 %v997, %v1095
        %v1097 = vand.u32 %v1096, 4294901760
        %v1098 = vsub.f32 %v1096, %v1097
        %v1099 = vand.u32 %v1098, 4294901760
        %1100 = vmatpush.msra.mxu0 %v1099
        %v1101 = vand.u32 %v996, 4294901760
        %v1102 = vsub.f32 %v996, %v1101
        %v1103 = vand.u32 %v1102, 4294901760
        %v1104 = vsub.f32 %v1102, %v1103
        %v1105 = vand.u32 %v1104, 4294901760
        %1106 = vmatpush.msra.mxu0 %v1105
        %v1107 = vand.u32 %v995, 4294901760
        %v1108 = vsub.f32 %v995, %v1107
        %v1109 = vand.u32 %v1108, 4294901760
        %v1110 = vsub.f32 %v1108, %v1109
        %v1111 = vand.u32 %v1110, 4294901760
        %1112 = vmatpush.msra.mxu0 %v1111
        %v1113 = vand.u32 %v994, 4294901760
        %v1114 = vsub.f32 %v994, %v1113
        %v1115 = vand.u32 %v1114, 4294901760
        %v1116 = vsub.f32 %v1114, %v1115
        %v1117 = vand.u32 %v1116, 4294901760
        %1118 = vmatpush.msra.mxu0 %v1117
        %v1119 = vand.u32 %v993, 4294901760
        %v1120 = vsub.f32 %v993, %v1119
        %v1121 = vand.u32 %v1120, 4294901760
        %v1122 = vsub.f32 %v1120, %v1121
        %v1123 = vand.u32 %v1122, 4294901760
        %1124 = vmatpush.msra.mxu0 %v1123
        %v1125 = vand.u32 %v992, 4294901760
        %v1126 = vsub.f32 %v992, %v1125
        %v1127 = vand.u32 %v1126, 4294901760
        %v1128 = vsub.f32 %v1126, %v1127
        %v1129 = vand.u32 %v1128, 4294901760
        %1130 = vmatpush.msra.mxu0 %v1129
        %v1131 = vand.u32 %v991, 4294901760
        %v1132 = vsub.f32 %v991, %v1131
        %v1133 = vand.u32 %v1132, 4294901760
        %v1134 = vsub.f32 %v1132, %v1133
        %v1135 = vand.u32 %v1134, 4294901760
        %1136 = vmatpush.msra.mxu0 %v1135
        %v1137 = vand.u32 %v990, 4294901760
        %v1138 = vsub.f32 %v990, %v1137
        %v1139 = vand.u32 %v1138, 4294901760
        %v1140 = vsub.f32 %v1138, %v1139
        %v1141 = vand.u32 %v1140, 4294901760
        %1142 = vmatpush.msra.mxu0 %v1141
        %v1143 = vand.u32 %v177, 4294901760
        %1144 = vmatmul.f32.gmra.mxu0 %v1143
        %v1145 = vpop.f32.mrf.mxu0
        %v1146 = vadd.f32 %v1045, %v1145
        %1147 = vdwg.mxu0
        %v1148 = vand.u32 %v1005, 4294901760
        %v1149 = vsub.f32 %v1005, %v1148
        %1150 = vmatpush.msra.mxu0 %v1149
        %v1151 = vand.u32 %v1004, 4294901760
        %v1152 = vsub.f32 %v1004, %v1151
        %1153 = vmatpush.msra.mxu0 %v1152
        %v1154 = vand.u32 %v1003, 4294901760
        %v1155 = vsub.f32 %v1003, %v1154
        %1156 = vmatpush.msra.mxu0 %v1155
        %v1157 = vand.u32 %v1002, 4294901760
        %v1158 = vsub.f32 %v1002, %v1157
        %1159 = vmatpush.msra.mxu0 %v1158
        %v1160 = vand.u32 %v1001, 4294901760
        %v1161 = vsub.f32 %v1001, %v1160
        %1162 = vmatpush.msra.mxu0 %v1161
        %v1163 = vand.u32 %v1000, 4294901760
        %v1164 = vsub.f32 %v1000, %v1163
        %1165 = vmatpush.msra.mxu0 %v1164
        %v1166 = vand.u32 %v999, 4294901760
        %v1167 = vsub.f32 %v999, %v1166
        %1168 = vmatpush.msra.mxu0 %v1167
        %v1169 = vand.u32 %v998, 4294901760
        %v1170 = vsub.f32 %v998, %v1169
        %1171 = vmatpush.msra.mxu0 %v1170
        %v1172 = vand.u32 %v997, 4294901760
        %v1173 = vsub.f32 %v997, %v1172
        %1174 = vmatpush.msra.mxu0 %v1173
        %v1175 = vand.u32 %v996, 4294901760
        %v1176 = vsub.f32 %v996, %v1175
        %1177 = vmatpush.msra.mxu0 %v1176
        %v1178 = vand.u32 %v995, 4294901760
        %v1179 = vsub.f32 %v995, %v1178
        %1180 = vmatpush.msra.mxu0 %v1179
        %v1181 = vand.u32 %v994, 4294901760
        %v1182 = vsub.f32 %v994, %v1181
        %1183 = vmatpush.msra.mxu0 %v1182
        %v1184 = vand.u32 %v993, 4294901760
        %v1185 = vsub.f32 %v993, %v1184
        %1186 = vmatpush.msra.mxu0 %v1185
        %v1187 = vand.u32 %v992, 4294901760
        %v1188 = vsub.f32 %v992, %v1187
        %1189 = vmatpush.msra.mxu0 %v1188
        %v1190 = vand.u32 %v991, 4294901760
        %v1191 = vsub.f32 %v991, %v1190
        %1192 = vmatpush.msra.mxu0 %v1191
        %v1193 = vand.u32 %v990, 4294901760
        %v1194 = vsub.f32 %v990, %v1193
        %1195 = vmatpush.msra.mxu0 %v1194
        %v1196 = vand.u32 %v177, 4294901760
        %v1197 = vsub.f32 %v177, %v1196
        %1198 = vmatmul.f32.gmra.mxu0 %v1197
        %v1199 = vpop.f32.mrf.mxu0
        %v1200 = vadd.f32 %v1146, %v1199
        %1201 = vdwg.mxu0
        %v1202 = vand.u32 %v1005, 4294901760
        %1203 = vmatpush.msra.mxu0 %v1202
        %v1204 = vand.u32 %v1004, 4294901760
        %1205 = vmatpush.msra.mxu0 %v1204
        %v1206 = vand.u32 %v1003, 4294901760
        %1207 = vmatpush.msra.mxu0 %v1206
        %v1208 = vand.u32 %v1002, 4294901760
        %1209 = vmatpush.msra.mxu0 %v1208
        %v1210 = vand.u32 %v1001, 4294901760
        %1211 = vmatpush.msra.mxu0 %v1210
        %v1212 = vand.u32 %v1000, 4294901760
        %1213 = vmatpush.msra.mxu0 %v1212
        %v1214 = vand.u32 %v999, 4294901760
        %1215 = vmatpush.msra.mxu0 %v1214
        %v1216 = vand.u32 %v998, 4294901760
        %1217 = vmatpush.msra.mxu0 %v1216
        %v1218 = vand.u32 %v997, 4294901760
        %1219 = vmatpush.msra.mxu0 %v1218
        %v1220 = vand.u32 %v996, 4294901760
        %1221 = vmatpush.msra.mxu0 %v1220
        %v1222 = vand.u32 %v995, 4294901760
        %1223 = vmatpush.msra.mxu0 %v1222
        %v1224 = vand.u32 %v994, 4294901760
        %1225 = vmatpush.msra.mxu0 %v1224
        %v1226 = vand.u32 %v993, 4294901760
        %1227 = vmatpush.msra.mxu0 %v1226
        %v1228 = vand.u32 %v992, 4294901760
        %1229 = vmatpush.msra.mxu0 %v1228
        %v1230 = vand.u32 %v991, 4294901760
        %1231 = vmatpush.msra.mxu0 %v1230
        %v1232 = vand.u32 %v990, 4294901760
        %1233 = vmatpush.msra.mxu0 %v1232
        %v1234 = vand.u32 %v177, 4294901760
        %v1235 = vsub.f32 %v177, %v1234
        %v1236 = vand.u32 %v1235, 4294901760
        %1237 = vmatmul.f32.gmra.mxu0 %v1236
        %v1238 = vpop.f32.mrf.mxu0
        %v1239 = vadd.f32 %v1200, %v1238
        %1240 = vdwg.mxu0
        %v1241 = vand.u32 %v1005, 4294901760
        %v1242 = vsub.f32 %v1005, %v1241
        %v1243 = vand.u32 %v1242, 4294901760
        %1244 = vmatpush.msra.mxu0 %v1243
        %v1245 = vand.u32 %v1004, 4294901760
        %v1246 = vsub.f32 %v1004, %v1245
        %v1247 = vand.u32 %v1246, 4294901760
        %1248 = vmatpush.msra.mxu0 %v1247
        %v1249 = vand.u32 %v1003, 4294901760
        %v1250 = vsub.f32 %v1003, %v1249
        %v1251 = vand.u32 %v1250, 4294901760
        %1252 = vmatpush.msra.mxu0 %v1251
        %v1253 = vand.u32 %v1002, 4294901760
        %v1254 = vsub.f32 %v1002, %v1253
        %v1255 = vand.u32 %v1254, 4294901760
        %1256 = vmatpush.msra.mxu0 %v1255
        %v1257 = vand.u32 %v1001, 4294901760
        %v1258 = vsub.f32 %v1001, %v1257
        %v1259 = vand.u32 %v1258, 4294901760
        %1260 = vmatpush.msra.mxu0 %v1259
        %v1261 = vand.u32 %v1000, 4294901760
        %v1262 = vsub.f32 %v1000, %v1261
        %v1263 = vand.u32 %v1262, 4294901760
        %1264 = vmatpush.msra.mxu0 %v1263
        %v1265 = vand.u32 %v999, 4294901760
        %v1266 = vsub.f32 %v999, %v1265
        %v1267 = vand.u32 %v1266, 4294901760
        %1268 = vmatpush.msra.mxu0 %v1267
        %v1269 = vand.u32 %v998, 4294901760
        %v1270 = vsub.f32 %v998, %v1269
        %v1271 = vand.u32 %v1270, 4294901760
        %1272 = vmatpush.msra.mxu0 %v1271
        %v1273 = vand.u32 %v997, 4294901760
        %v1274 = vsub.f32 %v997, %v1273
        %v1275 = vand.u32 %v1274, 4294901760
        %1276 = vmatpush.msra.mxu0 %v1275
        %v1277 = vand.u32 %v996, 4294901760
        %v1278 = vsub.f32 %v996, %v1277
        %v1279 = vand.u32 %v1278, 4294901760
        %1280 = vmatpush.msra.mxu0 %v1279
        %v1281 = vand.u32 %v995, 4294901760
        %v1282 = vsub.f32 %v995, %v1281
        %v1283 = vand.u32 %v1282, 4294901760
        %1284 = vmatpush.msra.mxu0 %v1283
        %v1285 = vand.u32 %v994, 4294901760
        %v1286 = vsub.f32 %v994, %v1285
        %v1287 = vand.u32 %v1286, 4294901760
        %1288 = vmatpush.msra.mxu0 %v1287
        %v1289 = vand.u32 %v993, 4294901760
        %v1290 = vsub.f32 %v993, %v1289
        %v1291 = vand.u32 %v1290, 4294901760
        %1292 = vmatpush.msra.mxu0 %v1291
        %v1293 = vand.u32 %v992, 4294901760
        %v1294 = vsub.f32 %v992, %v1293
        %v1295 = vand.u32 %v1294, 4294901760
        %1296 = vmatpush.msra.mxu0 %v1295
        %v1297 = vand.u32 %v991, 4294901760
        %v1298 = vsub.f32 %v991, %v1297
        %v1299 = vand.u32 %v1298, 4294901760
        %1300 = vmatpush.msra.mxu0 %v1299
        %v1301 = vand.u32 %v990, 4294901760
        %v1302 = vsub.f32 %v990, %v1301
        %v1303 = vand.u32 %v1302, 4294901760
        %1304 = vmatpush.msra.mxu0 %v1303
        %v1305 = vand.u32 %v177, 4294901760
        %1306 = vmatmul.f32.gmra.mxu0 %v1305
        %v1307 = vpop.f32.mrf.mxu0
        %v1308 = vadd.f32 %v1239, %v1307
        %1309 = vdwg.mxu0
        %v1310 = vand.u32 %v1005, 4294901760
        %1311 = vmatpush.msra.mxu0 %v1310
        %v1312 = vand.u32 %v1004, 4294901760
        %1313 = vmatpush.msra.mxu0 %v1312
        %v1314 = vand.u32 %v1003, 4294901760
        %1315 = vmatpush.msra.mxu0 %v1314
        %v1316 = vand.u32 %v1002, 4294901760
        %1317 = vmatpush.msra.mxu0 %v1316
        %v1318 = vand.u32 %v1001, 4294901760
        %1319 = vmatpush.msra.mxu0 %v1318
        %v1320 = vand.u32 %v1000, 4294901760
        %1321 = vmatpush.msra.mxu0 %v1320
        %v1322 = vand.u32 %v999, 4294901760
        %1323 = vmatpush.msra.mxu0 %v1322
        %v1324 = vand.u32 %v998, 4294901760
        %1325 = vmatpush.msra.mxu0 %v1324
        %v1326 = vand.u32 %v997, 4294901760
        %1327 = vmatpush.msra.mxu0 %v1326
        %v1328 = vand.u32 %v996, 4294901760
        %1329 = vmatpush.msra.mxu0 %v1328
        %v1330 = vand.u32 %v995, 4294901760
        %1331 = vmatpush.msra.mxu0 %v1330
        %v1332 = vand.u32 %v994, 4294901760
        %1333 = vmatpush.msra.mxu0 %v1332
        %v1334 = vand.u32 %v993, 4294901760
        %1335 = vmatpush.msra.mxu0 %v1334
        %v1336 = vand.u32 %v992, 4294901760
        %1337 = vmatpush.msra.mxu0 %v1336
        %v1338 = vand.u32 %v991, 4294901760
        %1339 = vmatpush.msra.mxu0 %v1338
        %v1340 = vand.u32 %v990, 4294901760
        %1341 = vmatpush.msra.mxu0 %v1340
        %v1342 = vand.u32 %v177, 4294901760
        %1343 = vmatmul.f32.gmra.mxu0 %v1342
        %v1344 = vpop.f32.mrf.mxu0
        %v1345 = vadd.f32 %v1308, %v1344
        %1346 = vdwg.mxu0
        %v1347 = vadd.f32 %v967, %v1345
        %v1348 = vadd.s32 %v202, %v246
        %v1349 = vand.u32 %v1348, 15
        %v1350 = vmul.f32 %v200, %v250
        %v1351 = vperm.slane %v1349, 0
        %vm1352 = vcmp.eq.s32.totalorder %v1351, %v179
        %vm1353 = vcmp.eq.s32.totalorder %v1351, %v180
        %vm1354 = vcmp.eq.s32.totalorder %v1351, %v181
        %vm1355 = vcmp.eq.s32.totalorder %v1351, %v182
        %vm1356 = vcmp.eq.s32.totalorder %v1351, %v183
        %vm1357 = vcmp.eq.s32.totalorder %v1351, %v184
        %vm1358 = vcmp.eq.s32.totalorder %v1351, %v185
        %vm1359 = vcmp.eq.s32.totalorder %v1351, %v186
        %vm1360 = vcmp.eq.s32.totalorder %v1351, %v187
        %vm1361 = vcmp.eq.s32.totalorder %v1351, %v188
        %vm1362 = vcmp.eq.s32.totalorder %v1351, %v189
        %vm1363 = vcmp.eq.s32.totalorder %v1351, %v190
        %vm1364 = vcmp.eq.s32.totalorder %v1351, %v191
        %vm1365 = vcmp.eq.s32.totalorder %v1351, %v192
        %vm1366 = vcmp.eq.s32.totalorder %v1351, %v193
        %vm1367 = vcmp.eq.s32.totalorder %v1351, %v194
        %v1368 = vperm.slane %v1350, 0
        %v1369 = vsel %vm1352, %v1368, 0.0
        %v1370 = vsel %vm1353, %v1368, 0.0
        %v1371 = vsel %vm1354, %v1368, 0.0
        %v1372 = vsel %vm1355, %v1368, 0.0
        %v1373 = vsel %vm1356, %v1368, 0.0
        %v1374 = vsel %vm1357, %v1368, 0.0
        %v1375 = vsel %vm1358, %v1368, 0.0
        %v1376 = vsel %vm1359, %v1368, 0.0
        %v1377 = vsel %vm1360, %v1368, 0.0
        %v1378 = vsel %vm1361, %v1368, 0.0
        %v1379 = vsel %vm1362, %v1368, 0.0
        %v1380 = vsel %vm1363, %v1368, 0.0
        %v1381 = vsel %vm1364, %v1368, 0.0
        %v1382 = vsel %vm1365, %v1368, 0.0
        %v1383 = vsel %vm1366, %v1368, 0.0
        %v1384 = vsel %vm1367, %v1368, 0.0
        %v1385 = vand.u32 %v1384, 4294901760
        %1386 = vmatpush.msra.mxu0 %v1385
        %v1387 = vand.u32 %v1383, 4294901760
        %1388 = vmatpush.msra.mxu0 %v1387
        %v1389 = vand.u32 %v1382, 4294901760
        %1390 = vmatpush.msra.mxu0 %v1389
        %v1391 = vand.u32 %v1381, 4294901760
        %1392 = vmatpush.msra.mxu0 %v1391
        %v1393 = vand.u32 %v1380, 4294901760
        %1394 = vmatpush.msra.mxu0 %v1393
        %v1395 = vand.u32 %v1379, 4294901760
        %1396 = vmatpush.msra.mxu0 %v1395
        %v1397 = vand.u32 %v1378, 4294901760
        %1398 = vmatpush.msra.mxu0 %v1397
        %v1399 = vand.u32 %v1377, 4294901760
        %1400 = vmatpush.msra.mxu0 %v1399
        %v1401 = vand.u32 %v1376, 4294901760
        %1402 = vmatpush.msra.mxu0 %v1401
        %v1403 = vand.u32 %v1375, 4294901760
        %1404 = vmatpush.msra.mxu0 %v1403
        %v1405 = vand.u32 %v1374, 4294901760
        %1406 = vmatpush.msra.mxu0 %v1405
        %v1407 = vand.u32 %v1373, 4294901760
        %1408 = vmatpush.msra.mxu0 %v1407
        %v1409 = vand.u32 %v1372, 4294901760
        %1410 = vmatpush.msra.mxu0 %v1409
        %v1411 = vand.u32 %v1371, 4294901760
        %1412 = vmatpush.msra.mxu0 %v1411
        %v1413 = vand.u32 %v1370, 4294901760
        %1414 = vmatpush.msra.mxu0 %v1413
        %v1415 = vand.u32 %v1369, 4294901760
        %1416 = vmatpush.msra.mxu0 %v1415
        %v1417 = vand.u32 %v177, 4294901760
        %v1418 = vsub.f32 %v177, %v1417
        %v1419 = vand.u32 %v1418, 4294901760
        %v1420 = vsub.f32 %v1418, %v1419
        %v1421 = vand.u32 %v1420, 4294901760
        %1422 = vmatmul.f32.gmra.mxu0 %v1421
        %v1423 = vpop.f32.mrf.mxu0
        %v1424 = vadd.f32 0.0, %v1423
        %1425 = vdwg.mxu0
        %v1426 = vand.u32 %v1384, 4294901760
        %v1427 = vsub.f32 %v1384, %v1426
        %v1428 = vand.u32 %v1427, 4294901760
        %v1429 = vsub.f32 %v1427, %v1428
        %v1430 = vand.u32 %v1429, 4294901760
        %1431 = vmatpush.msra.mxu0 %v1430
        %v1432 = vand.u32 %v1383, 4294901760
        %v1433 = vsub.f32 %v1383, %v1432
        %v1434 = vand.u32 %v1433, 4294901760
        %v1435 = vsub.f32 %v1433, %v1434
        %v1436 = vand.u32 %v1435, 4294901760
        %1437 = vmatpush.msra.mxu0 %v1436
        %v1438 = vand.u32 %v1382, 4294901760
        %v1439 = vsub.f32 %v1382, %v1438
        %v1440 = vand.u32 %v1439, 4294901760
        %v1441 = vsub.f32 %v1439, %v1440
        %v1442 = vand.u32 %v1441, 4294901760
        %1443 = vmatpush.msra.mxu0 %v1442
        %v1444 = vand.u32 %v1381, 4294901760
        %v1445 = vsub.f32 %v1381, %v1444
        %v1446 = vand.u32 %v1445, 4294901760
        %v1447 = vsub.f32 %v1445, %v1446
        %v1448 = vand.u32 %v1447, 4294901760
        %1449 = vmatpush.msra.mxu0 %v1448
        %v1450 = vand.u32 %v1380, 4294901760
        %v1451 = vsub.f32 %v1380, %v1450
        %v1452 = vand.u32 %v1451, 4294901760
        %v1453 = vsub.f32 %v1451, %v1452
        %v1454 = vand.u32 %v1453, 4294901760
        %1455 = vmatpush.msra.mxu0 %v1454
        %v1456 = vand.u32 %v1379, 4294901760
        %v1457 = vsub.f32 %v1379, %v1456
        %v1458 = vand.u32 %v1457, 4294901760
        %v1459 = vsub.f32 %v1457, %v1458
        %v1460 = vand.u32 %v1459, 4294901760
        %1461 = vmatpush.msra.mxu0 %v1460
        %v1462 = vand.u32 %v1378, 4294901760
        %v1463 = vsub.f32 %v1378, %v1462
        %v1464 = vand.u32 %v1463, 4294901760
        %v1465 = vsub.f32 %v1463, %v1464
        %v1466 = vand.u32 %v1465, 4294901760
        %1467 = vmatpush.msra.mxu0 %v1466
        %v1468 = vand.u32 %v1377, 4294901760
        %v1469 = vsub.f32 %v1377, %v1468
        %v1470 = vand.u32 %v1469, 4294901760
        %v1471 = vsub.f32 %v1469, %v1470
        %v1472 = vand.u32 %v1471, 4294901760
        %1473 = vmatpush.msra.mxu0 %v1472
        %v1474 = vand.u32 %v1376, 4294901760
        %v1475 = vsub.f32 %v1376, %v1474
        %v1476 = vand.u32 %v1475, 4294901760
        %v1477 = vsub.f32 %v1475, %v1476
        %v1478 = vand.u32 %v1477, 4294901760
        %1479 = vmatpush.msra.mxu0 %v1478
        %v1480 = vand.u32 %v1375, 4294901760
        %v1481 = vsub.f32 %v1375, %v1480
        %v1482 = vand.u32 %v1481, 4294901760
        %v1483 = vsub.f32 %v1481, %v1482
        %v1484 = vand.u32 %v1483, 4294901760
        %1485 = vmatpush.msra.mxu0 %v1484
        %v1486 = vand.u32 %v1374, 4294901760
        %v1487 = vsub.f32 %v1374, %v1486
        %v1488 = vand.u32 %v1487, 4294901760
        %v1489 = vsub.f32 %v1487, %v1488
        %v1490 = vand.u32 %v1489, 4294901760
        %1491 = vmatpush.msra.mxu0 %v1490
        %v1492 = vand.u32 %v1373, 4294901760
        %v1493 = vsub.f32 %v1373, %v1492
        %v1494 = vand.u32 %v1493, 4294901760
        %v1495 = vsub.f32 %v1493, %v1494
        %v1496 = vand.u32 %v1495, 4294901760
        %1497 = vmatpush.msra.mxu0 %v1496
        %v1498 = vand.u32 %v1372, 4294901760
        %v1499 = vsub.f32 %v1372, %v1498
        %v1500 = vand.u32 %v1499, 4294901760
        %v1501 = vsub.f32 %v1499, %v1500
        %v1502 = vand.u32 %v1501, 4294901760
        %1503 = vmatpush.msra.mxu0 %v1502
        %v1504 = vand.u32 %v1371, 4294901760
        %v1505 = vsub.f32 %v1371, %v1504
        %v1506 = vand.u32 %v1505, 4294901760
        %v1507 = vsub.f32 %v1505, %v1506
        %v1508 = vand.u32 %v1507, 4294901760
        %1509 = vmatpush.msra.mxu0 %v1508
        %v1510 = vand.u32 %v1370, 4294901760
        %v1511 = vsub.f32 %v1370, %v1510
        %v1512 = vand.u32 %v1511, 4294901760
        %v1513 = vsub.f32 %v1511, %v1512
        %v1514 = vand.u32 %v1513, 4294901760
        %1515 = vmatpush.msra.mxu0 %v1514
        %v1516 = vand.u32 %v1369, 4294901760
        %v1517 = vsub.f32 %v1369, %v1516
        %v1518 = vand.u32 %v1517, 4294901760
        %v1519 = vsub.f32 %v1517, %v1518
        %v1520 = vand.u32 %v1519, 4294901760
        %1521 = vmatpush.msra.mxu0 %v1520
        %v1522 = vand.u32 %v177, 4294901760
        %1523 = vmatmul.f32.gmra.mxu0 %v1522
        %v1524 = vpop.f32.mrf.mxu0
        %v1525 = vadd.f32 %v1424, %v1524
        %1526 = vdwg.mxu0
        %v1527 = vand.u32 %v1384, 4294901760
        %v1528 = vsub.f32 %v1384, %v1527
        %1529 = vmatpush.msra.mxu0 %v1528
        %v1530 = vand.u32 %v1383, 4294901760
        %v1531 = vsub.f32 %v1383, %v1530
        %1532 = vmatpush.msra.mxu0 %v1531
        %v1533 = vand.u32 %v1382, 4294901760
        %v1534 = vsub.f32 %v1382, %v1533
        %1535 = vmatpush.msra.mxu0 %v1534
        %v1536 = vand.u32 %v1381, 4294901760
        %v1537 = vsub.f32 %v1381, %v1536
        %1538 = vmatpush.msra.mxu0 %v1537
        %v1539 = vand.u32 %v1380, 4294901760
        %v1540 = vsub.f32 %v1380, %v1539
        %1541 = vmatpush.msra.mxu0 %v1540
        %v1542 = vand.u32 %v1379, 4294901760
        %v1543 = vsub.f32 %v1379, %v1542
        %1544 = vmatpush.msra.mxu0 %v1543
        %v1545 = vand.u32 %v1378, 4294901760
        %v1546 = vsub.f32 %v1378, %v1545
        %1547 = vmatpush.msra.mxu0 %v1546
        %v1548 = vand.u32 %v1377, 4294901760
        %v1549 = vsub.f32 %v1377, %v1548
        %1550 = vmatpush.msra.mxu0 %v1549
        %v1551 = vand.u32 %v1376, 4294901760
        %v1552 = vsub.f32 %v1376, %v1551
        %1553 = vmatpush.msra.mxu0 %v1552
        %v1554 = vand.u32 %v1375, 4294901760
        %v1555 = vsub.f32 %v1375, %v1554
        %1556 = vmatpush.msra.mxu0 %v1555
        %v1557 = vand.u32 %v1374, 4294901760
        %v1558 = vsub.f32 %v1374, %v1557
        %1559 = vmatpush.msra.mxu0 %v1558
        %v1560 = vand.u32 %v1373, 4294901760
        %v1561 = vsub.f32 %v1373, %v1560
        %1562 = vmatpush.msra.mxu0 %v1561
        %v1563 = vand.u32 %v1372, 4294901760
        %v1564 = vsub.f32 %v1372, %v1563
        %1565 = vmatpush.msra.mxu0 %v1564
        %v1566 = vand.u32 %v1371, 4294901760
        %v1567 = vsub.f32 %v1371, %v1566
        %1568 = vmatpush.msra.mxu0 %v1567
        %v1569 = vand.u32 %v1370, 4294901760
        %v1570 = vsub.f32 %v1370, %v1569
        %1571 = vmatpush.msra.mxu0 %v1570
        %v1572 = vand.u32 %v1369, 4294901760
        %v1573 = vsub.f32 %v1369, %v1572
        %1574 = vmatpush.msra.mxu0 %v1573
        %v1575 = vand.u32 %v177, 4294901760
        %v1576 = vsub.f32 %v177, %v1575
        %1577 = vmatmul.f32.gmra.mxu0 %v1576
        %v1578 = vpop.f32.mrf.mxu0
        %v1579 = vadd.f32 %v1525, %v1578
        %1580 = vdwg.mxu0
        %v1581 = vand.u32 %v1384, 4294901760
        %1582 = vmatpush.msra.mxu0 %v1581
        %v1583 = vand.u32 %v1383, 4294901760
        %1584 = vmatpush.msra.mxu0 %v1583
        %v1585 = vand.u32 %v1382, 4294901760
        %1586 = vmatpush.msra.mxu0 %v1585
        %v1587 = vand.u32 %v1381, 4294901760
        %1588 = vmatpush.msra.mxu0 %v1587
        %v1589 = vand.u32 %v1380, 4294901760
        %1590 = vmatpush.msra.mxu0 %v1589
        %v1591 = vand.u32 %v1379, 4294901760
        %1592 = vmatpush.msra.mxu0 %v1591
        %v1593 = vand.u32 %v1378, 4294901760
        %1594 = vmatpush.msra.mxu0 %v1593
        %v1595 = vand.u32 %v1377, 4294901760
        %1596 = vmatpush.msra.mxu0 %v1595
        %v1597 = vand.u32 %v1376, 4294901760
        %1598 = vmatpush.msra.mxu0 %v1597
        %v1599 = vand.u32 %v1375, 4294901760
        %1600 = vmatpush.msra.mxu0 %v1599
        %v1601 = vand.u32 %v1374, 4294901760
        %1602 = vmatpush.msra.mxu0 %v1601
        %v1603 = vand.u32 %v1373, 4294901760
        %1604 = vmatpush.msra.mxu0 %v1603
        %v1605 = vand.u32 %v1372, 4294901760
        %1606 = vmatpush.msra.mxu0 %v1605
        %v1607 = vand.u32 %v1371, 4294901760
        %1608 = vmatpush.msra.mxu0 %v1607
        %v1609 = vand.u32 %v1370, 4294901760
        %1610 = vmatpush.msra.mxu0 %v1609
        %v1611 = vand.u32 %v1369, 4294901760
        %1612 = vmatpush.msra.mxu0 %v1611
        %v1613 = vand.u32 %v177, 4294901760
        %v1614 = vsub.f32 %v177, %v1613
        %v1615 = vand.u32 %v1614, 4294901760
        %1616 = vmatmul.f32.gmra.mxu0 %v1615
        %v1617 = vpop.f32.mrf.mxu0
        %v1618 = vadd.f32 %v1579, %v1617
        %1619 = vdwg.mxu0
        %v1620 = vand.u32 %v1384, 4294901760
        %v1621 = vsub.f32 %v1384, %v1620
        %v1622 = vand.u32 %v1621, 4294901760
        %1623 = vmatpush.msra.mxu0 %v1622
        %v1624 = vand.u32 %v1383, 4294901760
        %v1625 = vsub.f32 %v1383, %v1624
        %v1626 = vand.u32 %v1625, 4294901760
        %1627 = vmatpush.msra.mxu0 %v1626
        %v1628 = vand.u32 %v1382, 4294901760
        %v1629 = vsub.f32 %v1382, %v1628
        %v1630 = vand.u32 %v1629, 4294901760
        %1631 = vmatpush.msra.mxu0 %v1630
        %v1632 = vand.u32 %v1381, 4294901760
        %v1633 = vsub.f32 %v1381, %v1632
        %v1634 = vand.u32 %v1633, 4294901760
        %1635 = vmatpush.msra.mxu0 %v1634
        %v1636 = vand.u32 %v1380, 4294901760
        %v1637 = vsub.f32 %v1380, %v1636
        %v1638 = vand.u32 %v1637, 4294901760
        %1639 = vmatpush.msra.mxu0 %v1638
        %v1640 = vand.u32 %v1379, 4294901760
        %v1641 = vsub.f32 %v1379, %v1640
        %v1642 = vand.u32 %v1641, 4294901760
        %1643 = vmatpush.msra.mxu0 %v1642
        %v1644 = vand.u32 %v1378, 4294901760
        %v1645 = vsub.f32 %v1378, %v1644
        %v1646 = vand.u32 %v1645, 4294901760
        %1647 = vmatpush.msra.mxu0 %v1646
        %v1648 = vand.u32 %v1377, 4294901760
        %v1649 = vsub.f32 %v1377, %v1648
        %v1650 = vand.u32 %v1649, 4294901760
        %1651 = vmatpush.msra.mxu0 %v1650
        %v1652 = vand.u32 %v1376, 4294901760
        %v1653 = vsub.f32 %v1376, %v1652
        %v1654 = vand.u32 %v1653, 4294901760
        %1655 = vmatpush.msra.mxu0 %v1654
        %v1656 = vand.u32 %v1375, 4294901760
        %v1657 = vsub.f32 %v1375, %v1656
        %v1658 = vand.u32 %v1657, 4294901760
        %1659 = vmatpush.msra.mxu0 %v1658
        %v1660 = vand.u32 %v1374, 4294901760
        %v1661 = vsub.f32 %v1374, %v1660
        %v1662 = vand.u32 %v1661, 4294901760
        %1663 = vmatpush.msra.mxu0 %v1662
        %v1664 = vand.u32 %v1373, 4294901760
        %v1665 = vsub.f32 %v1373, %v1664
        %v1666 = vand.u32 %v1665, 4294901760
        %1667 = vmatpush.msra.mxu0 %v1666
        %v1668 = vand.u32 %v1372, 4294901760
        %v1669 = vsub.f32 %v1372, %v1668
        %v1670 = vand.u32 %v1669, 4294901760
        %1671 = vmatpush.msra.mxu0 %v1670
        %v1672 = vand.u32 %v1371, 4294901760
        %v1673 = vsub.f32 %v1371, %v1672
        %v1674 = vand.u32 %v1673, 4294901760
        %1675 = vmatpush.msra.mxu0 %v1674
        %v1676 = vand.u32 %v1370, 4294901760
        %v1677 = vsub.f32 %v1370, %v1676
        %v1678 = vand.u32 %v1677, 4294901760
        %1679 = vmatpush.msra.mxu0 %v1678
        %v1680 = vand.u32 %v1369, 4294901760
        %v1681 = vsub.f32 %v1369, %v1680
        %v1682 = vand.u32 %v1681, 4294901760
        %1683 = vmatpush.msra.mxu0 %v1682
        %v1684 = vand.u32 %v177, 4294901760
        %1685 = vmatmul.f32.gmra.mxu0 %v1684
        %v1686 = vpop.f32.mrf.mxu0
        %v1687 = vadd.f32 %v1618, %v1686
        %1688 = vdwg.mxu0
        %v1689 = vand.u32 %v1384, 4294901760
        %1690 = vmatpush.msra.mxu0 %v1689
        %v1691 = vand.u32 %v1383, 4294901760
        %1692 = vmatpush.msra.mxu0 %v1691
        %v1693 = vand.u32 %v1382, 4294901760
        %1694 = vmatpush.msra.mxu0 %v1693
        %v1695 = vand.u32 %v1381, 4294901760
        %1696 = vmatpush.msra.mxu0 %v1695
        %v1697 = vand.u32 %v1380, 4294901760
        %1698 = vmatpush.msra.mxu0 %v1697
        %v1699 = vand.u32 %v1379, 4294901760
        %1700 = vmatpush.msra.mxu0 %v1699
        %v1701 = vand.u32 %v1378, 4294901760
        %1702 = vmatpush.msra.mxu0 %v1701
        %v1703 = vand.u32 %v1377, 4294901760
        %1704 = vmatpush.msra.mxu0 %v1703
        %v1705 = vand.u32 %v1376, 4294901760
        %1706 = vmatpush.msra.mxu0 %v1705
        %v1707 = vand.u32 %v1375, 4294901760
        %1708 = vmatpush.msra.mxu0 %v1707
        %v1709 = vand.u32 %v1374, 4294901760
        %1710 = vmatpush.msra.mxu0 %v1709
        %v1711 = vand.u32 %v1373, 4294901760
        %1712 = vmatpush.msra.mxu0 %v1711
        %v1713 = vand.u32 %v1372, 4294901760
        %1714 = vmatpush.msra.mxu0 %v1713
        %v1715 = vand.u32 %v1371, 4294901760
        %1716 = vmatpush.msra.mxu0 %v1715
        %v1717 = vand.u32 %v1370, 4294901760
        %1718 = vmatpush.msra.mxu0 %v1717
        %v1719 = vand.u32 %v1369, 4294901760
        %1720 = vmatpush.msra.mxu0 %v1719
        %v1721 = vand.u32 %v177, 4294901760
        %1722 = vmatmul.f32.gmra.mxu0 %v1721
        %v1723 = vpop.f32.mrf.mxu0
        %v1724 = vadd.f32 %v1687, %v1723
        %1725 = vdwg.mxu0
        %v1726 = vadd.f32 %v1347, %v1724
        %v1727 = vmul.f32 %v176, 5.0
        %v1728 = vadd.f32 %v1727, 0.5
        %v1729 = vfloor.f32 %v1728
        %v1730 = vcvt.f32.s32.to.zero.pseudo %v1729
        %v1731 = vcvt.s32.f32 %v1730
        %v1732 = vsub.f32 %v1728, %v1731
        %v1733 = vsub.f32 1.0, %v1732
        %v1734 = vadd.s32 %v1730, 1
        %v1735 = vmul.u32 %v1730, 6
        %v1736 = vadd.s32 %v1735, 6
        %v1737 = vrot.slane %v1735, 1
        %v1738 = vadd.s32 %v1730, %v1737
        %vm1739 = vcmp.lt.s32.totalorder %v1738, 0
        %v1740 = vsub.s32 0, %v1738
        %v1741 = vsel %vm1739, %v1740, %v1738
        %v1742 = vand.u32 %v1741, 65535
        %v1743 = vshrl.u32 %v1741, 16
        %v1745 = vmul.u32 %v1742, 52429
        %v1746 = vmul.u32 %v1742, 52428
        %v1747 = vmul.u32 %v1743, 52429
        %v1748 = vmul.u32 %v1743, 52428
        %v1749 = vshll.u32 %v1746, 16
        %v1750 = vshrl.u32 %v1746, 16
        %v1751 = vshll.u32 %v1747, 16
        %v1752 = vshrl.u32 %v1747, 16
        %vm1753 = vc.u32 %v1745, %v1749
        %v1754 = vsel %vm1753, 1, 0
        %v1755 = vadd.s32 %v1745, %v1749
        %v1756 = vadd.s32 %v1748, %v1754
        %vm1757 = vc.u32 %v1755, %v1751
        %v1758 = vsel %vm1757, 1, 0
        %v1759 = vadd.s32 %v1755, %v1751
        %v1760 = vadd.s32 %v1756, %v1758
        %v1761 = vadd.s32 %v1760, %v1750
        %v1762 = vadd.s32 %v1761, %v1752
        %v1763 = vshrl.u32 %v1762, 5
        %v1764 = vmul.u32 %v1763, 40
        %v1765 = vsub.s32 %v1741, %v1764
        %v1766 = vsub.s32 0, %v1765
        %v1767 = vsel %vm1739, %v1766, %v1765
        %vm1768 = vcmp.ne.s32.totalorder %v1767, 0
        %vm1769 = vcmp.lt.s32.totalorder %v1767, 0
        %vm1770 = vmand %vm1769, %vm1768
        %v1771 = vadd.s32 %v1767, 40
        %v1772 = vsel %vm1770, %v1771, %v1767
        %v1774 = vrot.slane %v1733, 1
        %v1776 = vmul.f32 %v1733, %v1774
        %v1777 = vperm.slane %v1772, 0
        %vm1778 = vcmp.eq.s32.totalorder %v1777, %v179
        %vm1779 = vcmp.eq.s32.totalorder %v1777, %v180
        %vm1780 = vcmp.eq.s32.totalorder %v1777, %v181
        %vm1781 = vcmp.eq.s32.totalorder %v1777, %v182
        %vm1782 = vcmp.eq.s32.totalorder %v1777, %v183
        %vm1783 = vcmp.eq.s32.totalorder %v1777, %v184
        %vm1784 = vcmp.eq.s32.totalorder %v1777, %v185
        %vm1785 = vcmp.eq.s32.totalorder %v1777, %v186
        %vm1786 = vcmp.eq.s32.totalorder %v1777, %v187
        %vm1787 = vcmp.eq.s32.totalorder %v1777, %v188
        %vm1788 = vcmp.eq.s32.totalorder %v1777, %v189
        %vm1789 = vcmp.eq.s32.totalorder %v1777, %v190
        %vm1790 = vcmp.eq.s32.totalorder %v1777, %v191
        %vm1791 = vcmp.eq.s32.totalorder %v1777, %v192
        %vm1792 = vcmp.eq.s32.totalorder %v1777, %v193
        %vm1793 = vcmp.eq.s32.totalorder %v1777, %v194
        %v1794 = vperm.slane %v1776, 0
        %v1795 = vsel %vm1778, %v1794, 0.0
        %v1796 = vsel %vm1779, %v1794, 0.0
        %v1797 = vsel %vm1780, %v1794, 0.0
        %v1798 = vsel %vm1781, %v1794, 0.0
        %v1799 = vsel %vm1782, %v1794, 0.0
        %v1800 = vsel %vm1783, %v1794, 0.0
        %v1801 = vsel %vm1784, %v1794, 0.0
        %v1802 = vsel %vm1785, %v1794, 0.0
        %v1803 = vsel %vm1786, %v1794, 0.0
        %v1804 = vsel %vm1787, %v1794, 0.0
        %v1805 = vsel %vm1788, %v1794, 0.0
        %v1806 = vsel %vm1789, %v1794, 0.0
        %v1807 = vsel %vm1790, %v1794, 0.0
        %v1808 = vsel %vm1791, %v1794, 0.0
        %v1809 = vsel %vm1792, %v1794, 0.0
        %v1810 = vsel %vm1793, %v1794, 0.0
        %v1811 = vrot.slane %v1736, 1
        %v1812 = vadd.s32 %v1730, %v1811
        %vm1813 = vcmp.lt.s32.totalorder %v1812, 0
        %v1814 = vsub.s32 0, %v1812
        %v1815 = vsel %vm1813, %v1814, %v1812
        %v1816 = vand.u32 %v1815, 65535
        %v1817 = vshrl.u32 %v1815, 16
        %v1819 = vmul.u32 %v1816, 52429
        %v1820 = vmul.u32 %v1816, 52428
        %v1821 = vmul.u32 %v1817, 52429
        %v1822 = vmul.u32 %v1817, 52428
        %v1823 = vshll.u32 %v1820, 16
        %v1824 = vshrl.u32 %v1820, 16
        %v1825 = vshll.u32 %v1821, 16
        %v1826 = vshrl.u32 %v1821, 16
        %vm1827 = vc.u32 %v1819, %v1823
        %v1828 = vsel %vm1827, 1, 0
        %v1829 = vadd.s32 %v1819, %v1823
        %v1830 = vadd.s32 %v1822, %v1828
        %vm1831 = vc.u32 %v1829, %v1825
        %v1832 = vsel %vm1831, 1, 0
        %v1833 = vadd.s32 %v1829, %v1825
        %v1834 = vadd.s32 %v1830, %v1832
        %v1835 = vadd.s32 %v1834, %v1824
        %v1836 = vadd.s32 %v1835, %v1826
        %v1837 = vshrl.u32 %v1836, 5
        %v1838 = vmul.u32 %v1837, 40
        %v1839 = vsub.s32 %v1815, %v1838
        %v1840 = vsub.s32 0, %v1839
        %v1841 = vsel %vm1813, %v1840, %v1839
        %vm1842 = vcmp.ne.s32.totalorder %v1841, 0
        %vm1843 = vcmp.lt.s32.totalorder %v1841, 0
        %vm1844 = vmand %vm1843, %vm1842
        %v1845 = vadd.s32 %v1841, 40
        %v1846 = vsel %vm1844, %v1845, %v1841
        %v1848 = vrot.slane %v1732, 1
        %v1850 = vmul.f32 %v1733, %v1848
        %v1851 = vperm.slane %v1846, 0
        %vm1852 = vcmp.eq.s32.totalorder %v1851, %v179
        %vm1853 = vcmp.eq.s32.totalorder %v1851, %v180
        %vm1854 = vcmp.eq.s32.totalorder %v1851, %v181
        %vm1855 = vcmp.eq.s32.totalorder %v1851, %v182
        %vm1856 = vcmp.eq.s32.totalorder %v1851, %v183
        %vm1857 = vcmp.eq.s32.totalorder %v1851, %v184
        %vm1858 = vcmp.eq.s32.totalorder %v1851, %v185
        %vm1859 = vcmp.eq.s32.totalorder %v1851, %v186
        %vm1860 = vcmp.eq.s32.totalorder %v1851, %v187
        %vm1861 = vcmp.eq.s32.totalorder %v1851, %v188
        %vm1862 = vcmp.eq.s32.totalorder %v1851, %v189
        %vm1863 = vcmp.eq.s32.totalorder %v1851, %v190
        %vm1864 = vcmp.eq.s32.totalorder %v1851, %v191
        %vm1865 = vcmp.eq.s32.totalorder %v1851, %v192
        %vm1866 = vcmp.eq.s32.totalorder %v1851, %v193
        %vm1867 = vcmp.eq.s32.totalorder %v1851, %v194
        %v1868 = vperm.slane %v1850, 0
        %v1869 = vsel %vm1852, %v1868, 0.0
        %v1870 = vsel %vm1853, %v1868, 0.0
        %v1871 = vsel %vm1854, %v1868, 0.0
        %v1872 = vsel %vm1855, %v1868, 0.0
        %v1873 = vsel %vm1856, %v1868, 0.0
        %v1874 = vsel %vm1857, %v1868, 0.0
        %v1875 = vsel %vm1858, %v1868, 0.0
        %v1876 = vsel %vm1859, %v1868, 0.0
        %v1877 = vsel %vm1860, %v1868, 0.0
        %v1878 = vsel %vm1861, %v1868, 0.0
        %v1879 = vsel %vm1862, %v1868, 0.0
        %v1880 = vsel %vm1863, %v1868, 0.0
        %v1881 = vsel %vm1864, %v1868, 0.0
        %v1882 = vsel %vm1865, %v1868, 0.0
        %v1883 = vsel %vm1866, %v1868, 0.0
        %v1884 = vsel %vm1867, %v1868, 0.0
        %v1885 = vand.u32 %v1884, 4294901760
        %1886 = vmatpush.msra.mxu0 %v1885
        %v1887 = vand.u32 %v1883, 4294901760
        %1888 = vmatpush.msra.mxu0 %v1887
        %v1889 = vand.u32 %v1882, 4294901760
        %1890 = vmatpush.msra.mxu0 %v1889
        %v1891 = vand.u32 %v1881, 4294901760
        %1892 = vmatpush.msra.mxu0 %v1891
        %v1893 = vand.u32 %v1880, 4294901760
        %1894 = vmatpush.msra.mxu0 %v1893
        %v1895 = vand.u32 %v1879, 4294901760
        %1896 = vmatpush.msra.mxu0 %v1895
        %v1897 = vand.u32 %v1878, 4294901760
        %1898 = vmatpush.msra.mxu0 %v1897
        %v1899 = vand.u32 %v1877, 4294901760
        %1900 = vmatpush.msra.mxu0 %v1899
        %v1901 = vand.u32 %v1876, 4294901760
        %1902 = vmatpush.msra.mxu0 %v1901
        %v1903 = vand.u32 %v1875, 4294901760
        %1904 = vmatpush.msra.mxu0 %v1903
        %v1905 = vand.u32 %v1874, 4294901760
        %1906 = vmatpush.msra.mxu0 %v1905
        %v1907 = vand.u32 %v1873, 4294901760
        %1908 = vmatpush.msra.mxu0 %v1907
        %v1909 = vand.u32 %v1872, 4294901760
        %1910 = vmatpush.msra.mxu0 %v1909
        %v1911 = vand.u32 %v1871, 4294901760
        %1912 = vmatpush.msra.mxu0 %v1911
        %v1913 = vand.u32 %v1870, 4294901760
        %1914 = vmatpush.msra.mxu0 %v1913
        %v1915 = vand.u32 %v1869, 4294901760
        %1916 = vmatpush.msra.mxu0 %v1915
        %v1917 = vand.u32 %v177, 4294901760
        %v1918 = vsub.f32 %v177, %v1917
        %v1919 = vand.u32 %v1918, 4294901760
        %v1920 = vsub.f32 %v1918, %v1919
        %v1921 = vand.u32 %v1920, 4294901760
        %1922 = vmatmul.f32.gmra.mxu0 %v1921
        %v1923 = vpop.f32.mrf.mxu0
        %v1924 = vadd.f32 0.0, %v1923
        %1925 = vdwg.mxu0
        %v1926 = vand.u32 %v1884, 4294901760
        %v1927 = vsub.f32 %v1884, %v1926
        %v1928 = vand.u32 %v1927, 4294901760
        %v1929 = vsub.f32 %v1927, %v1928
        %v1930 = vand.u32 %v1929, 4294901760
        %1931 = vmatpush.msra.mxu0 %v1930
        %v1932 = vand.u32 %v1883, 4294901760
        %v1933 = vsub.f32 %v1883, %v1932
        %v1934 = vand.u32 %v1933, 4294901760
        %v1935 = vsub.f32 %v1933, %v1934
        %v1936 = vand.u32 %v1935, 4294901760
        %1937 = vmatpush.msra.mxu0 %v1936
        %v1938 = vand.u32 %v1882, 4294901760
        %v1939 = vsub.f32 %v1882, %v1938
        %v1940 = vand.u32 %v1939, 4294901760
        %v1941 = vsub.f32 %v1939, %v1940
        %v1942 = vand.u32 %v1941, 4294901760
        %1943 = vmatpush.msra.mxu0 %v1942
        %v1944 = vand.u32 %v1881, 4294901760
        %v1945 = vsub.f32 %v1881, %v1944
        %v1946 = vand.u32 %v1945, 4294901760
        %v1947 = vsub.f32 %v1945, %v1946
        %v1948 = vand.u32 %v1947, 4294901760
        %1949 = vmatpush.msra.mxu0 %v1948
        %v1950 = vand.u32 %v1880, 4294901760
        %v1951 = vsub.f32 %v1880, %v1950
        %v1952 = vand.u32 %v1951, 4294901760
        %v1953 = vsub.f32 %v1951, %v1952
        %v1954 = vand.u32 %v1953, 4294901760
        %1955 = vmatpush.msra.mxu0 %v1954
        %v1956 = vand.u32 %v1879, 4294901760
        %v1957 = vsub.f32 %v1879, %v1956
        %v1958 = vand.u32 %v1957, 4294901760
        %v1959 = vsub.f32 %v1957, %v1958
        %v1960 = vand.u32 %v1959, 4294901760
        %1961 = vmatpush.msra.mxu0 %v1960
        %v1962 = vand.u32 %v1878, 4294901760
        %v1963 = vsub.f32 %v1878, %v1962
        %v1964 = vand.u32 %v1963, 4294901760
        %v1965 = vsub.f32 %v1963, %v1964
        %v1966 = vand.u32 %v1965, 4294901760
        %1967 = vmatpush.msra.mxu0 %v1966
        %v1968 = vand.u32 %v1877, 4294901760
        %v1969 = vsub.f32 %v1877, %v1968
        %v1970 = vand.u32 %v1969, 4294901760
        %v1971 = vsub.f32 %v1969, %v1970
        %v1972 = vand.u32 %v1971, 4294901760
        %1973 = vmatpush.msra.mxu0 %v1972
        %v1974 = vand.u32 %v1876, 4294901760
        %v1975 = vsub.f32 %v1876, %v1974
        %v1976 = vand.u32 %v1975, 4294901760
        %v1977 = vsub.f32 %v1975, %v1976
        %v1978 = vand.u32 %v1977, 4294901760
        %1979 = vmatpush.msra.mxu0 %v1978
        %v1980 = vand.u32 %v1875, 4294901760
        %v1981 = vsub.f32 %v1875, %v1980
        %v1982 = vand.u32 %v1981, 4294901760
        %v1983 = vsub.f32 %v1981, %v1982
        %v1984 = vand.u32 %v1983, 4294901760
        %1985 = vmatpush.msra.mxu0 %v1984
        %v1986 = vand.u32 %v1874, 4294901760
        %v1987 = vsub.f32 %v1874, %v1986
        %v1988 = vand.u32 %v1987, 4294901760
        %v1989 = vsub.f32 %v1987, %v1988
        %v1990 = vand.u32 %v1989, 4294901760
        %1991 = vmatpush.msra.mxu0 %v1990
        %v1992 = vand.u32 %v1873, 4294901760
        %v1993 = vsub.f32 %v1873, %v1992
        %v1994 = vand.u32 %v1993, 4294901760
        %v1995 = vsub.f32 %v1993, %v1994
        %v1996 = vand.u32 %v1995, 4294901760
        %1997 = vmatpush.msra.mxu0 %v1996
        %v1998 = vand.u32 %v1872, 4294901760
        %v1999 = vsub.f32 %v1872, %v1998
        %v2000 = vand.u32 %v1999, 4294901760
        %v2001 = vsub.f32 %v1999, %v2000
        %v2002 = vand.u32 %v2001, 4294901760
        %2003 = vmatpush.msra.mxu0 %v2002
        %v2004 = vand.u32 %v1871, 4294901760
        %v2005 = vsub.f32 %v1871, %v2004
        %v2006 = vand.u32 %v2005, 4294901760
        %v2007 = vsub.f32 %v2005, %v2006
        %v2008 = vand.u32 %v2007, 4294901760
        %2009 = vmatpush.msra.mxu0 %v2008
        %v2010 = vand.u32 %v1870, 4294901760
        %v2011 = vsub.f32 %v1870, %v2010
        %v2012 = vand.u32 %v2011, 4294901760
        %v2013 = vsub.f32 %v2011, %v2012
        %v2014 = vand.u32 %v2013, 4294901760
        %2015 = vmatpush.msra.mxu0 %v2014
        %v2016 = vand.u32 %v1869, 4294901760
        %v2017 = vsub.f32 %v1869, %v2016
        %v2018 = vand.u32 %v2017, 4294901760
        %v2019 = vsub.f32 %v2017, %v2018
        %v2020 = vand.u32 %v2019, 4294901760
        %2021 = vmatpush.msra.mxu0 %v2020
        %v2022 = vand.u32 %v177, 4294901760
        %2023 = vmatmul.f32.gmra.mxu0 %v2022
        %v2024 = vpop.f32.mrf.mxu0
        %v2025 = vadd.f32 %v1924, %v2024
        %2026 = vdwg.mxu0
        %v2027 = vand.u32 %v1884, 4294901760
        %v2028 = vsub.f32 %v1884, %v2027
        %2029 = vmatpush.msra.mxu0 %v2028
        %v2030 = vand.u32 %v1883, 4294901760
        %v2031 = vsub.f32 %v1883, %v2030
        %2032 = vmatpush.msra.mxu0 %v2031
        %v2033 = vand.u32 %v1882, 4294901760
        %v2034 = vsub.f32 %v1882, %v2033
        %2035 = vmatpush.msra.mxu0 %v2034
        %v2036 = vand.u32 %v1881, 4294901760
        %v2037 = vsub.f32 %v1881, %v2036
        %2038 = vmatpush.msra.mxu0 %v2037
        %v2039 = vand.u32 %v1880, 4294901760
        %v2040 = vsub.f32 %v1880, %v2039
        %2041 = vmatpush.msra.mxu0 %v2040
        %v2042 = vand.u32 %v1879, 4294901760
        %v2043 = vsub.f32 %v1879, %v2042
        %2044 = vmatpush.msra.mxu0 %v2043
        %v2045 = vand.u32 %v1878, 4294901760
        %v2046 = vsub.f32 %v1878, %v2045
        %2047 = vmatpush.msra.mxu0 %v2046
        %v2048 = vand.u32 %v1877, 4294901760
        %v2049 = vsub.f32 %v1877, %v2048
        %2050 = vmatpush.msra.mxu0 %v2049
        %v2051 = vand.u32 %v1876, 4294901760
        %v2052 = vsub.f32 %v1876, %v2051
        %2053 = vmatpush.msra.mxu0 %v2052
        %v2054 = vand.u32 %v1875, 4294901760
        %v2055 = vsub.f32 %v1875, %v2054
        %2056 = vmatpush.msra.mxu0 %v2055
        %v2057 = vand.u32 %v1874, 4294901760
        %v2058 = vsub.f32 %v1874, %v2057
        %2059 = vmatpush.msra.mxu0 %v2058
        %v2060 = vand.u32 %v1873, 4294901760
        %v2061 = vsub.f32 %v1873, %v2060
        %2062 = vmatpush.msra.mxu0 %v2061
        %v2063 = vand.u32 %v1872, 4294901760
        %v2064 = vsub.f32 %v1872, %v2063
        %2065 = vmatpush.msra.mxu0 %v2064
        %v2066 = vand.u32 %v1871, 4294901760
        %v2067 = vsub.f32 %v1871, %v2066
        %2068 = vmatpush.msra.mxu0 %v2067
        %v2069 = vand.u32 %v1870, 4294901760
        %v2070 = vsub.f32 %v1870, %v2069
        %2071 = vmatpush.msra.mxu0 %v2070
        %v2072 = vand.u32 %v1869, 4294901760
        %v2073 = vsub.f32 %v1869, %v2072
        %2074 = vmatpush.msra.mxu0 %v2073
        %v2075 = vand.u32 %v177, 4294901760
        %v2076 = vsub.f32 %v177, %v2075
        %2077 = vmatmul.f32.gmra.mxu0 %v2076
        %v2078 = vpop.f32.mrf.mxu0
        %v2079 = vadd.f32 %v2025, %v2078
        %2080 = vdwg.mxu0
        %v2081 = vand.u32 %v1884, 4294901760
        %2082 = vmatpush.msra.mxu0 %v2081
        %v2083 = vand.u32 %v1883, 4294901760
        %2084 = vmatpush.msra.mxu0 %v2083
        %v2085 = vand.u32 %v1882, 4294901760
        %2086 = vmatpush.msra.mxu0 %v2085
        %v2087 = vand.u32 %v1881, 4294901760
        %2088 = vmatpush.msra.mxu0 %v2087
        %v2089 = vand.u32 %v1880, 4294901760
        %2090 = vmatpush.msra.mxu0 %v2089
        %v2091 = vand.u32 %v1879, 4294901760
        %2092 = vmatpush.msra.mxu0 %v2091
        %v2093 = vand.u32 %v1878, 4294901760
        %2094 = vmatpush.msra.mxu0 %v2093
        %v2095 = vand.u32 %v1877, 4294901760
        %2096 = vmatpush.msra.mxu0 %v2095
        %v2097 = vand.u32 %v1876, 4294901760
        %2098 = vmatpush.msra.mxu0 %v2097
        %v2099 = vand.u32 %v1875, 4294901760
        %2100 = vmatpush.msra.mxu0 %v2099
        %v2101 = vand.u32 %v1874, 4294901760
        %2102 = vmatpush.msra.mxu0 %v2101
        %v2103 = vand.u32 %v1873, 4294901760
        %2104 = vmatpush.msra.mxu0 %v2103
        %v2105 = vand.u32 %v1872, 4294901760
        %2106 = vmatpush.msra.mxu0 %v2105
        %v2107 = vand.u32 %v1871, 4294901760
        %2108 = vmatpush.msra.mxu0 %v2107
        %v2109 = vand.u32 %v1870, 4294901760
        %2110 = vmatpush.msra.mxu0 %v2109
        %v2111 = vand.u32 %v1869, 4294901760
        %2112 = vmatpush.msra.mxu0 %v2111
        %v2113 = vand.u32 %v177, 4294901760
        %v2114 = vsub.f32 %v177, %v2113
        %v2115 = vand.u32 %v2114, 4294901760
        %2116 = vmatmul.f32.gmra.mxu0 %v2115
        %v2117 = vpop.f32.mrf.mxu0
        %v2118 = vadd.f32 %v2079, %v2117
        %2119 = vdwg.mxu0
        %v2120 = vand.u32 %v1884, 4294901760
        %v2121 = vsub.f32 %v1884, %v2120
        %v2122 = vand.u32 %v2121, 4294901760
        %2123 = vmatpush.msra.mxu0 %v2122
        %v2124 = vand.u32 %v1883, 4294901760
        %v2125 = vsub.f32 %v1883, %v2124
        %v2126 = vand.u32 %v2125, 4294901760
        %2127 = vmatpush.msra.mxu0 %v2126
        %v2128 = vand.u32 %v1882, 4294901760
        %v2129 = vsub.f32 %v1882, %v2128
        %v2130 = vand.u32 %v2129, 4294901760
        %2131 = vmatpush.msra.mxu0 %v2130
        %v2132 = vand.u32 %v1881, 4294901760
        %v2133 = vsub.f32 %v1881, %v2132
        %v2134 = vand.u32 %v2133, 4294901760
        %2135 = vmatpush.msra.mxu0 %v2134
        %v2136 = vand.u32 %v1880, 4294901760
        %v2137 = vsub.f32 %v1880, %v2136
        %v2138 = vand.u32 %v2137, 4294901760
        %2139 = vmatpush.msra.mxu0 %v2138
        %v2140 = vand.u32 %v1879, 4294901760
        %v2141 = vsub.f32 %v1879, %v2140
        %v2142 = vand.u32 %v2141, 4294901760
        %2143 = vmatpush.msra.mxu0 %v2142
        %v2144 = vand.u32 %v1878, 4294901760
        %v2145 = vsub.f32 %v1878, %v2144
        %v2146 = vand.u32 %v2145, 4294901760
        %2147 = vmatpush.msra.mxu0 %v2146
        %v2148 = vand.u32 %v1877, 4294901760
        %v2149 = vsub.f32 %v1877, %v2148
        %v2150 = vand.u32 %v2149, 4294901760
        %2151 = vmatpush.msra.mxu0 %v2150
        %v2152 = vand.u32 %v1876, 4294901760
        %v2153 = vsub.f32 %v1876, %v2152
        %v2154 = vand.u32 %v2153, 4294901760
        %2155 = vmatpush.msra.mxu0 %v2154
        %v2156 = vand.u32 %v1875, 4294901760
        %v2157 = vsub.f32 %v1875, %v2156
        %v2158 = vand.u32 %v2157, 4294901760
        %2159 = vmatpush.msra.mxu0 %v2158
        %v2160 = vand.u32 %v1874, 4294901760
        %v2161 = vsub.f32 %v1874, %v2160
        %v2162 = vand.u32 %v2161, 4294901760
        %2163 = vmatpush.msra.mxu0 %v2162
        %v2164 = vand.u32 %v1873, 4294901760
        %v2165 = vsub.f32 %v1873, %v2164
        %v2166 = vand.u32 %v2165, 4294901760
        %2167 = vmatpush.msra.mxu0 %v2166
        %v2168 = vand.u32 %v1872, 4294901760
        %v2169 = vsub.f32 %v1872, %v2168
        %v2170 = vand.u32 %v2169, 4294901760
        %2171 = vmatpush.msra.mxu0 %v2170
        %v2172 = vand.u32 %v1871, 4294901760
        %v2173 = vsub.f32 %v1871, %v2172
        %v2174 = vand.u32 %v2173, 4294901760
        %2175 = vmatpush.msra.mxu0 %v2174
        %v2176 = vand.u32 %v1870, 4294901760
        %v2177 = vsub.f32 %v1870, %v2176
        %v2178 = vand.u32 %v2177, 4294901760
        %2179 = vmatpush.msra.mxu0 %v2178
        %v2180 = vand.u32 %v1869, 4294901760
        %v2181 = vsub.f32 %v1869, %v2180
        %v2182 = vand.u32 %v2181, 4294901760
        %2183 = vmatpush.msra.mxu0 %v2182
        %v2184 = vand.u32 %v177, 4294901760
        %2185 = vmatmul.f32.gmra.mxu0 %v2184
        %v2186 = vpop.f32.mrf.mxu0
        %v2187 = vadd.f32 %v2118, %v2186
        %2188 = vdwg.mxu0
        %v2189 = vand.u32 %v1884, 4294901760
        %2190 = vmatpush.msra.mxu0 %v2189
        %v2191 = vand.u32 %v1883, 4294901760
        %2192 = vmatpush.msra.mxu0 %v2191
        %v2193 = vand.u32 %v1882, 4294901760
        %2194 = vmatpush.msra.mxu0 %v2193
        %v2195 = vand.u32 %v1881, 4294901760
        %2196 = vmatpush.msra.mxu0 %v2195
        %v2197 = vand.u32 %v1880, 4294901760
        %2198 = vmatpush.msra.mxu0 %v2197
        %v2199 = vand.u32 %v1879, 4294901760
        %2200 = vmatpush.msra.mxu0 %v2199
        %v2201 = vand.u32 %v1878, 4294901760
        %2202 = vmatpush.msra.mxu0 %v2201
        %v2203 = vand.u32 %v1877, 4294901760
        %2204 = vmatpush.msra.mxu0 %v2203
        %v2205 = vand.u32 %v1876, 4294901760
        %2206 = vmatpush.msra.mxu0 %v2205
        %v2207 = vand.u32 %v1875, 4294901760
        %2208 = vmatpush.msra.mxu0 %v2207
        %v2209 = vand.u32 %v1874, 4294901760
        %2210 = vmatpush.msra.mxu0 %v2209
        %v2211 = vand.u32 %v1873, 4294901760
        %2212 = vmatpush.msra.mxu0 %v2211
        %v2213 = vand.u32 %v1872, 4294901760
        %2214 = vmatpush.msra.mxu0 %v2213
        %v2215 = vand.u32 %v1871, 4294901760
        %2216 = vmatpush.msra.mxu0 %v2215
        %v2217 = vand.u32 %v1870, 4294901760
        %2218 = vmatpush.msra.mxu0 %v2217
        %v2219 = vand.u32 %v1869, 4294901760
        %2220 = vmatpush.msra.mxu0 %v2219
        %v2221 = vand.u32 %v177, 4294901760
        %2222 = vmatmul.f32.gmra.mxu0 %v2221
        %v2223 = vpop.f32.mrf.mxu0
        %v2224 = vadd.f32 %v2187, %v2223
        %2225 = vdwg.mxu0
        %v2226 = vand.u32 %v1810, 4294901760
        %2227 = vmatpush.msra.mxu0 %v2226
        %v2228 = vand.u32 %v1809, 4294901760
        %2229 = vmatpush.msra.mxu0 %v2228
        %v2230 = vand.u32 %v1808, 4294901760
        %2231 = vmatpush.msra.mxu0 %v2230
        %v2232 = vand.u32 %v1807, 4294901760
        %2233 = vmatpush.msra.mxu0 %v2232
        %v2234 = vand.u32 %v1806, 4294901760
        %2235 = vmatpush.msra.mxu0 %v2234
        %v2236 = vand.u32 %v1805, 4294901760
        %2237 = vmatpush.msra.mxu0 %v2236
        %v2238 = vand.u32 %v1804, 4294901760
        %2239 = vmatpush.msra.mxu0 %v2238
        %v2240 = vand.u32 %v1803, 4294901760
        %2241 = vmatpush.msra.mxu0 %v2240
        %v2242 = vand.u32 %v1802, 4294901760
        %2243 = vmatpush.msra.mxu0 %v2242
        %v2244 = vand.u32 %v1801, 4294901760
        %2245 = vmatpush.msra.mxu0 %v2244
        %v2246 = vand.u32 %v1800, 4294901760
        %2247 = vmatpush.msra.mxu0 %v2246
        %v2248 = vand.u32 %v1799, 4294901760
        %2249 = vmatpush.msra.mxu0 %v2248
        %v2250 = vand.u32 %v1798, 4294901760
        %2251 = vmatpush.msra.mxu0 %v2250
        %v2252 = vand.u32 %v1797, 4294901760
        %2253 = vmatpush.msra.mxu0 %v2252
        %v2254 = vand.u32 %v1796, 4294901760
        %2255 = vmatpush.msra.mxu0 %v2254
        %v2256 = vand.u32 %v1795, 4294901760
        %2257 = vmatpush.msra.mxu0 %v2256
        %v2258 = vand.u32 %v177, 4294901760
        %v2259 = vsub.f32 %v177, %v2258
        %v2260 = vand.u32 %v2259, 4294901760
        %v2261 = vsub.f32 %v2259, %v2260
        %v2262 = vand.u32 %v2261, 4294901760
        %2263 = vmatmul.f32.gmra.mxu0 %v2262
        %v2264 = vpop.f32.mrf.mxu0
        %v2265 = vadd.f32 %v2224, %v2264
        %2266 = vdwg.mxu0
        %v2267 = vand.u32 %v1810, 4294901760
        %v2268 = vsub.f32 %v1810, %v2267
        %v2269 = vand.u32 %v2268, 4294901760
        %v2270 = vsub.f32 %v2268, %v2269
        %v2271 = vand.u32 %v2270, 4294901760
        %2272 = vmatpush.msra.mxu0 %v2271
        %v2273 = vand.u32 %v1809, 4294901760
        %v2274 = vsub.f32 %v1809, %v2273
        %v2275 = vand.u32 %v2274, 4294901760
        %v2276 = vsub.f32 %v2274, %v2275
        %v2277 = vand.u32 %v2276, 4294901760
        %2278 = vmatpush.msra.mxu0 %v2277
        %v2279 = vand.u32 %v1808, 4294901760
        %v2280 = vsub.f32 %v1808, %v2279
        %v2281 = vand.u32 %v2280, 4294901760
        %v2282 = vsub.f32 %v2280, %v2281
        %v2283 = vand.u32 %v2282, 4294901760
        %2284 = vmatpush.msra.mxu0 %v2283
        %v2285 = vand.u32 %v1807, 4294901760
        %v2286 = vsub.f32 %v1807, %v2285
        %v2287 = vand.u32 %v2286, 4294901760
        %v2288 = vsub.f32 %v2286, %v2287
        %v2289 = vand.u32 %v2288, 4294901760
        %2290 = vmatpush.msra.mxu0 %v2289
        %v2291 = vand.u32 %v1806, 4294901760
        %v2292 = vsub.f32 %v1806, %v2291
        %v2293 = vand.u32 %v2292, 4294901760
        %v2294 = vsub.f32 %v2292, %v2293
        %v2295 = vand.u32 %v2294, 4294901760
        %2296 = vmatpush.msra.mxu0 %v2295
        %v2297 = vand.u32 %v1805, 4294901760
        %v2298 = vsub.f32 %v1805, %v2297
        %v2299 = vand.u32 %v2298, 4294901760
        %v2300 = vsub.f32 %v2298, %v2299
        %v2301 = vand.u32 %v2300, 4294901760
        %2302 = vmatpush.msra.mxu0 %v2301
        %v2303 = vand.u32 %v1804, 4294901760
        %v2304 = vsub.f32 %v1804, %v2303
        %v2305 = vand.u32 %v2304, 4294901760
        %v2306 = vsub.f32 %v2304, %v2305
        %v2307 = vand.u32 %v2306, 4294901760
        %2308 = vmatpush.msra.mxu0 %v2307
        %v2309 = vand.u32 %v1803, 4294901760
        %v2310 = vsub.f32 %v1803, %v2309
        %v2311 = vand.u32 %v2310, 4294901760
        %v2312 = vsub.f32 %v2310, %v2311
        %v2313 = vand.u32 %v2312, 4294901760
        %2314 = vmatpush.msra.mxu0 %v2313
        %v2315 = vand.u32 %v1802, 4294901760
        %v2316 = vsub.f32 %v1802, %v2315
        %v2317 = vand.u32 %v2316, 4294901760
        %v2318 = vsub.f32 %v2316, %v2317
        %v2319 = vand.u32 %v2318, 4294901760
        %2320 = vmatpush.msra.mxu0 %v2319
        %v2321 = vand.u32 %v1801, 4294901760
        %v2322 = vsub.f32 %v1801, %v2321
        %v2323 = vand.u32 %v2322, 4294901760
        %v2324 = vsub.f32 %v2322, %v2323
        %v2325 = vand.u32 %v2324, 4294901760
        %2326 = vmatpush.msra.mxu0 %v2325
        %v2327 = vand.u32 %v1800, 4294901760
        %v2328 = vsub.f32 %v1800, %v2327
        %v2329 = vand.u32 %v2328, 4294901760
        %v2330 = vsub.f32 %v2328, %v2329
        %v2331 = vand.u32 %v2330, 4294901760
        %2332 = vmatpush.msra.mxu0 %v2331
        %v2333 = vand.u32 %v1799, 4294901760
        %v2334 = vsub.f32 %v1799, %v2333
        %v2335 = vand.u32 %v2334, 4294901760
        %v2336 = vsub.f32 %v2334, %v2335
        %v2337 = vand.u32 %v2336, 4294901760
        %2338 = vmatpush.msra.mxu0 %v2337
        %v2339 = vand.u32 %v1798, 4294901760
        %v2340 = vsub.f32 %v1798, %v2339
        %v2341 = vand.u32 %v2340, 4294901760
        %v2342 = vsub.f32 %v2340, %v2341
        %v2343 = vand.u32 %v2342, 4294901760
        %2344 = vmatpush.msra.mxu0 %v2343
        %v2345 = vand.u32 %v1797, 4294901760
        %v2346 = vsub.f32 %v1797, %v2345
        %v2347 = vand.u32 %v2346, 4294901760
        %v2348 = vsub.f32 %v2346, %v2347
        %v2349 = vand.u32 %v2348, 4294901760
        %2350 = vmatpush.msra.mxu0 %v2349
        %v2351 = vand.u32 %v1796, 4294901760
        %v2352 = vsub.f32 %v1796, %v2351
        %v2353 = vand.u32 %v2352, 4294901760
        %v2354 = vsub.f32 %v2352, %v2353
        %v2355 = vand.u32 %v2354, 4294901760
        %2356 = vmatpush.msra.mxu0 %v2355
        %v2357 = vand.u32 %v1795, 4294901760
        %v2358 = vsub.f32 %v1795, %v2357
        %v2359 = vand.u32 %v2358, 4294901760
        %v2360 = vsub.f32 %v2358, %v2359
        %v2361 = vand.u32 %v2360, 4294901760
        %2362 = vmatpush.msra.mxu0 %v2361
        %v2363 = vand.u32 %v177, 4294901760
        %2364 = vmatmul.f32.gmra.mxu0 %v2363
        %v2365 = vpop.f32.mrf.mxu0
        %v2366 = vadd.f32 %v2265, %v2365
        %2367 = vdwg.mxu0
        %v2368 = vand.u32 %v1810, 4294901760
        %v2369 = vsub.f32 %v1810, %v2368
        %2370 = vmatpush.msra.mxu0 %v2369
        %v2371 = vand.u32 %v1809, 4294901760
        %v2372 = vsub.f32 %v1809, %v2371
        %2373 = vmatpush.msra.mxu0 %v2372
        %v2374 = vand.u32 %v1808, 4294901760
        %v2375 = vsub.f32 %v1808, %v2374
        %2376 = vmatpush.msra.mxu0 %v2375
        %v2377 = vand.u32 %v1807, 4294901760
        %v2378 = vsub.f32 %v1807, %v2377
        %2379 = vmatpush.msra.mxu0 %v2378
        %v2380 = vand.u32 %v1806, 4294901760
        %v2381 = vsub.f32 %v1806, %v2380
        %2382 = vmatpush.msra.mxu0 %v2381
        %v2383 = vand.u32 %v1805, 4294901760
        %v2384 = vsub.f32 %v1805, %v2383
        %2385 = vmatpush.msra.mxu0 %v2384
        %v2386 = vand.u32 %v1804, 4294901760
        %v2387 = vsub.f32 %v1804, %v2386
        %2388 = vmatpush.msra.mxu0 %v2387
        %v2389 = vand.u32 %v1803, 4294901760
        %v2390 = vsub.f32 %v1803, %v2389
        %2391 = vmatpush.msra.mxu0 %v2390
        %v2392 = vand.u32 %v1802, 4294901760
        %v2393 = vsub.f32 %v1802, %v2392
        %2394 = vmatpush.msra.mxu0 %v2393
        %v2395 = vand.u32 %v1801, 4294901760
        %v2396 = vsub.f32 %v1801, %v2395
        %2397 = vmatpush.msra.mxu0 %v2396
        %v2398 = vand.u32 %v1800, 4294901760
        %v2399 = vsub.f32 %v1800, %v2398
        %2400 = vmatpush.msra.mxu0 %v2399
        %v2401 = vand.u32 %v1799, 4294901760
        %v2402 = vsub.f32 %v1799, %v2401
        %2403 = vmatpush.msra.mxu0 %v2402
        %v2404 = vand.u32 %v1798, 4294901760
        %v2405 = vsub.f32 %v1798, %v2404
        %2406 = vmatpush.msra.mxu0 %v2405
        %v2407 = vand.u32 %v1797, 4294901760
        %v2408 = vsub.f32 %v1797, %v2407
        %2409 = vmatpush.msra.mxu0 %v2408
        %v2410 = vand.u32 %v1796, 4294901760
        %v2411 = vsub.f32 %v1796, %v2410
        %2412 = vmatpush.msra.mxu0 %v2411
        %v2413 = vand.u32 %v1795, 4294901760
        %v2414 = vsub.f32 %v1795, %v2413
        %2415 = vmatpush.msra.mxu0 %v2414
        %v2416 = vand.u32 %v177, 4294901760
        %v2417 = vsub.f32 %v177, %v2416
        %2418 = vmatmul.f32.gmra.mxu0 %v2417
        %v2419 = vpop.f32.mrf.mxu0
        %v2420 = vadd.f32 %v2366, %v2419
        %2421 = vdwg.mxu0
        %v2422 = vand.u32 %v1810, 4294901760
        %2423 = vmatpush.msra.mxu0 %v2422
        %v2424 = vand.u32 %v1809, 4294901760
        %2425 = vmatpush.msra.mxu0 %v2424
        %v2426 = vand.u32 %v1808, 4294901760
        %2427 = vmatpush.msra.mxu0 %v2426
        %v2428 = vand.u32 %v1807, 4294901760
        %2429 = vmatpush.msra.mxu0 %v2428
        %v2430 = vand.u32 %v1806, 4294901760
        %2431 = vmatpush.msra.mxu0 %v2430
        %v2432 = vand.u32 %v1805, 4294901760
        %2433 = vmatpush.msra.mxu0 %v2432
        %v2434 = vand.u32 %v1804, 4294901760
        %2435 = vmatpush.msra.mxu0 %v2434
        %v2436 = vand.u32 %v1803, 4294901760
        %2437 = vmatpush.msra.mxu0 %v2436
        %v2438 = vand.u32 %v1802, 4294901760
        %2439 = vmatpush.msra.mxu0 %v2438
        %v2440 = vand.u32 %v1801, 4294901760
        %2441 = vmatpush.msra.mxu0 %v2440
        %v2442 = vand.u32 %v1800, 4294901760
        %2443 = vmatpush.msra.mxu0 %v2442
        %v2444 = vand.u32 %v1799, 4294901760
        %2445 = vmatpush.msra.mxu0 %v2444
        %v2446 = vand.u32 %v1798, 4294901760
        %2447 = vmatpush.msra.mxu0 %v2446
        %v2448 = vand.u32 %v1797, 4294901760
        %2449 = vmatpush.msra.mxu0 %v2448
        %v2450 = vand.u32 %v1796, 4294901760
        %2451 = vmatpush.msra.mxu0 %v2450
        %v2452 = vand.u32 %v1795, 4294901760
        %2453 = vmatpush.msra.mxu0 %v2452
        %v2454 = vand.u32 %v177, 4294901760
        %v2455 = vsub.f32 %v177, %v2454
        %v2456 = vand.u32 %v2455, 4294901760
        %2457 = vmatmul.f32.gmra.mxu0 %v2456
        %v2458 = vpop.f32.mrf.mxu0
        %v2459 = vadd.f32 %v2420, %v2458
        %2460 = vdwg.mxu0
        %v2461 = vand.u32 %v1810, 4294901760
        %v2462 = vsub.f32 %v1810, %v2461
        %v2463 = vand.u32 %v2462, 4294901760
        %2464 = vmatpush.msra.mxu0 %v2463
        %v2465 = vand.u32 %v1809, 4294901760
        %v2466 = vsub.f32 %v1809, %v2465
        %v2467 = vand.u32 %v2466, 4294901760
        %2468 = vmatpush.msra.mxu0 %v2467
        %v2469 = vand.u32 %v1808, 4294901760
        %v2470 = vsub.f32 %v1808, %v2469
        %v2471 = vand.u32 %v2470, 4294901760
        %2472 = vmatpush.msra.mxu0 %v2471
        %v2473 = vand.u32 %v1807, 4294901760
        %v2474 = vsub.f32 %v1807, %v2473
        %v2475 = vand.u32 %v2474, 4294901760
        %2476 = vmatpush.msra.mxu0 %v2475
        %v2477 = vand.u32 %v1806, 4294901760
        %v2478 = vsub.f32 %v1806, %v2477
        %v2479 = vand.u32 %v2478, 4294901760
        %2480 = vmatpush.msra.mxu0 %v2479
        %v2481 = vand.u32 %v1805, 4294901760
        %v2482 = vsub.f32 %v1805, %v2481
        %v2483 = vand.u32 %v2482, 4294901760
        %2484 = vmatpush.msra.mxu0 %v2483
        %v2485 = vand.u32 %v1804, 4294901760
        %v2486 = vsub.f32 %v1804, %v2485
        %v2487 = vand.u32 %v2486, 4294901760
        %2488 = vmatpush.msra.mxu0 %v2487
        %v2489 = vand.u32 %v1803, 4294901760
        %v2490 = vsub.f32 %v1803, %v2489
        %v2491 = vand.u32 %v2490, 4294901760
        %2492 = vmatpush.msra.mxu0 %v2491
        %v2493 = vand.u32 %v1802, 4294901760
        %v2494 = vsub.f32 %v1802, %v2493
        %v2495 = vand.u32 %v2494, 4294901760
        %2496 = vmatpush.msra.mxu0 %v2495
        %v2497 = vand.u32 %v1801, 4294901760
        %v2498 = vsub.f32 %v1801, %v2497
        %v2499 = vand.u32 %v2498, 4294901760
        %2500 = vmatpush.msra.mxu0 %v2499
        %v2501 = vand.u32 %v1800, 4294901760
        %v2502 = vsub.f32 %v1800, %v2501
        %v2503 = vand.u32 %v2502, 4294901760
        %2504 = vmatpush.msra.mxu0 %v2503
        %v2505 = vand.u32 %v1799, 4294901760
        %v2506 = vsub.f32 %v1799, %v2505
        %v2507 = vand.u32 %v2506, 4294901760
        %2508 = vmatpush.msra.mxu0 %v2507
        %v2509 = vand.u32 %v1798, 4294901760
        %v2510 = vsub.f32 %v1798, %v2509
        %v2511 = vand.u32 %v2510, 4294901760
        %2512 = vmatpush.msra.mxu0 %v2511
        %v2513 = vand.u32 %v1797, 4294901760
        %v2514 = vsub.f32 %v1797, %v2513
        %v2515 = vand.u32 %v2514, 4294901760
        %2516 = vmatpush.msra.mxu0 %v2515
        %v2517 = vand.u32 %v1796, 4294901760
        %v2518 = vsub.f32 %v1796, %v2517
        %v2519 = vand.u32 %v2518, 4294901760
        %2520 = vmatpush.msra.mxu0 %v2519
        %v2521 = vand.u32 %v1795, 4294901760
        %v2522 = vsub.f32 %v1795, %v2521
        %v2523 = vand.u32 %v2522, 4294901760
        %2524 = vmatpush.msra.mxu0 %v2523
        %v2525 = vand.u32 %v177, 4294901760
        %2526 = vmatmul.f32.gmra.mxu0 %v2525
        %v2527 = vpop.f32.mrf.mxu0
        %v2528 = vadd.f32 %v2459, %v2527
        %2529 = vdwg.mxu0
        %v2530 = vand.u32 %v1810, 4294901760
        %2531 = vmatpush.msra.mxu0 %v2530
        %v2532 = vand.u32 %v1809, 4294901760
        %2533 = vmatpush.msra.mxu0 %v2532
        %v2534 = vand.u32 %v1808, 4294901760
        %2535 = vmatpush.msra.mxu0 %v2534
        %v2536 = vand.u32 %v1807, 4294901760
        %2537 = vmatpush.msra.mxu0 %v2536
        %v2538 = vand.u32 %v1806, 4294901760
        %2539 = vmatpush.msra.mxu0 %v2538
        %v2540 = vand.u32 %v1805, 4294901760
        %2541 = vmatpush.msra.mxu0 %v2540
        %v2542 = vand.u32 %v1804, 4294901760
        %2543 = vmatpush.msra.mxu0 %v2542
        %v2544 = vand.u32 %v1803, 4294901760
        %2545 = vmatpush.msra.mxu0 %v2544
        %v2546 = vand.u32 %v1802, 4294901760
        %2547 = vmatpush.msra.mxu0 %v2546
        %v2548 = vand.u32 %v1801, 4294901760
        %2549 = vmatpush.msra.mxu0 %v2548
        %v2550 = vand.u32 %v1800, 4294901760
        %2551 = vmatpush.msra.mxu0 %v2550
        %v2552 = vand.u32 %v1799, 4294901760
        %2553 = vmatpush.msra.mxu0 %v2552
        %v2554 = vand.u32 %v1798, 4294901760
        %2555 = vmatpush.msra.mxu0 %v2554
        %v2556 = vand.u32 %v1797, 4294901760
        %2557 = vmatpush.msra.mxu0 %v2556
        %v2558 = vand.u32 %v1796, 4294901760
        %2559 = vmatpush.msra.mxu0 %v2558
        %v2560 = vand.u32 %v1795, 4294901760
        %2561 = vmatpush.msra.mxu0 %v2560
        %v2562 = vand.u32 %v177, 4294901760
        %2563 = vmatmul.f32.gmra.mxu0 %v2562
        %v2564 = vpop.f32.mrf.mxu0
        %v2565 = vadd.f32 %v2528, %v2564
        %2566 = vdwg.mxu0
        %v2567 = vadd.s32 %v1734, %v1737
        %vm2568 = vcmp.lt.s32.totalorder %v2567, 0
        %v2569 = vsub.s32 0, %v2567
        %v2570 = vsel %vm2568, %v2569, %v2567
        %v2571 = vand.u32 %v2570, 65535
        %v2572 = vshrl.u32 %v2570, 16
        %v2574 = vmul.u32 %v2571, 52429
        %v2575 = vmul.u32 %v2571, 52428
        %v2576 = vmul.u32 %v2572, 52429
        %v2577 = vmul.u32 %v2572, 52428
        %v2578 = vshll.u32 %v2575, 16
        %v2579 = vshrl.u32 %v2575, 16
        %v2580 = vshll.u32 %v2576, 16
        %v2581 = vshrl.u32 %v2576, 16
        %vm2582 = vc.u32 %v2574, %v2578
        %v2583 = vsel %vm2582, 1, 0
        %v2584 = vadd.s32 %v2574, %v2578
        %v2585 = vadd.s32 %v2577, %v2583
        %vm2586 = vc.u32 %v2584, %v2580
        %v2587 = vsel %vm2586, 1, 0
        %v2588 = vadd.s32 %v2584, %v2580
        %v2589 = vadd.s32 %v2585, %v2587
        %v2590 = vadd.s32 %v2589, %v2579
        %v2591 = vadd.s32 %v2590, %v2581
        %v2592 = vshrl.u32 %v2591, 5
        %v2593 = vmul.u32 %v2592, 40
        %v2594 = vsub.s32 %v2570, %v2593
        %v2595 = vsub.s32 0, %v2594
        %v2596 = vsel %vm2568, %v2595, %v2594
        %vm2597 = vcmp.ne.s32.totalorder %v2596, 0
        %vm2598 = vcmp.lt.s32.totalorder %v2596, 0
        %vm2599 = vmand %vm2598, %vm2597
        %v2600 = vadd.s32 %v2596, 40
        %v2601 = vsel %vm2599, %v2600, %v2596
        %v2602 = vmul.f32 %v1732, %v1774
        %v2603 = vperm.slane %v2601, 0
        %vm2604 = vcmp.eq.s32.totalorder %v2603, %v179
        %vm2605 = vcmp.eq.s32.totalorder %v2603, %v180
        %vm2606 = vcmp.eq.s32.totalorder %v2603, %v181
        %vm2607 = vcmp.eq.s32.totalorder %v2603, %v182
        %vm2608 = vcmp.eq.s32.totalorder %v2603, %v183
        %vm2609 = vcmp.eq.s32.totalorder %v2603, %v184
        %vm2610 = vcmp.eq.s32.totalorder %v2603, %v185
        %vm2611 = vcmp.eq.s32.totalorder %v2603, %v186
        %vm2612 = vcmp.eq.s32.totalorder %v2603, %v187
        %vm2613 = vcmp.eq.s32.totalorder %v2603, %v188
        %vm2614 = vcmp.eq.s32.totalorder %v2603, %v189
        %vm2615 = vcmp.eq.s32.totalorder %v2603, %v190
        %vm2616 = vcmp.eq.s32.totalorder %v2603, %v191
        %vm2617 = vcmp.eq.s32.totalorder %v2603, %v192
        %vm2618 = vcmp.eq.s32.totalorder %v2603, %v193
        %vm2619 = vcmp.eq.s32.totalorder %v2603, %v194
        %v2620 = vperm.slane %v2602, 0
        %v2621 = vsel %vm2604, %v2620, 0.0
        %v2622 = vsel %vm2605, %v2620, 0.0
        %v2623 = vsel %vm2606, %v2620, 0.0
        %v2624 = vsel %vm2607, %v2620, 0.0
        %v2625 = vsel %vm2608, %v2620, 0.0
        %v2626 = vsel %vm2609, %v2620, 0.0
        %v2627 = vsel %vm2610, %v2620, 0.0
        %v2628 = vsel %vm2611, %v2620, 0.0
        %v2629 = vsel %vm2612, %v2620, 0.0
        %v2630 = vsel %vm2613, %v2620, 0.0
        %v2631 = vsel %vm2614, %v2620, 0.0
        %v2632 = vsel %vm2615, %v2620, 0.0
        %v2633 = vsel %vm2616, %v2620, 0.0
        %v2634 = vsel %vm2617, %v2620, 0.0
        %v2635 = vsel %vm2618, %v2620, 0.0
        %v2636 = vsel %vm2619, %v2620, 0.0
        %v2637 = vand.u32 %v2636, 4294901760
        %2638 = vmatpush.msra.mxu0 %v2637
        %v2639 = vand.u32 %v2635, 4294901760
        %2640 = vmatpush.msra.mxu0 %v2639
        %v2641 = vand.u32 %v2634, 4294901760
        %2642 = vmatpush.msra.mxu0 %v2641
        %v2643 = vand.u32 %v2633, 4294901760
        %2644 = vmatpush.msra.mxu0 %v2643
        %v2645 = vand.u32 %v2632, 4294901760
        %2646 = vmatpush.msra.mxu0 %v2645
        %v2647 = vand.u32 %v2631, 4294901760
        %2648 = vmatpush.msra.mxu0 %v2647
        %v2649 = vand.u32 %v2630, 4294901760
        %2650 = vmatpush.msra.mxu0 %v2649
        %v2651 = vand.u32 %v2629, 4294901760
        %2652 = vmatpush.msra.mxu0 %v2651
        %v2653 = vand.u32 %v2628, 4294901760
        %2654 = vmatpush.msra.mxu0 %v2653
        %v2655 = vand.u32 %v2627, 4294901760
        %2656 = vmatpush.msra.mxu0 %v2655
        %v2657 = vand.u32 %v2626, 4294901760
        %2658 = vmatpush.msra.mxu0 %v2657
        %v2659 = vand.u32 %v2625, 4294901760
        %2660 = vmatpush.msra.mxu0 %v2659
        %v2661 = vand.u32 %v2624, 4294901760
        %2662 = vmatpush.msra.mxu0 %v2661
        %v2663 = vand.u32 %v2623, 4294901760
        %2664 = vmatpush.msra.mxu0 %v2663
        %v2665 = vand.u32 %v2622, 4294901760
        %2666 = vmatpush.msra.mxu0 %v2665
        %v2667 = vand.u32 %v2621, 4294901760
        %2668 = vmatpush.msra.mxu0 %v2667
        %v2669 = vand.u32 %v177, 4294901760
        %v2670 = vsub.f32 %v177, %v2669
        %v2671 = vand.u32 %v2670, 4294901760
        %v2672 = vsub.f32 %v2670, %v2671
        %v2673 = vand.u32 %v2672, 4294901760
        %2674 = vmatmul.f32.gmra.mxu0 %v2673
        %v2675 = vpop.f32.mrf.mxu0
        %v2676 = vadd.f32 0.0, %v2675
        %2677 = vdwg.mxu0
        %v2678 = vand.u32 %v2636, 4294901760
        %v2679 = vsub.f32 %v2636, %v2678
        %v2680 = vand.u32 %v2679, 4294901760
        %v2681 = vsub.f32 %v2679, %v2680
        %v2682 = vand.u32 %v2681, 4294901760
        %2683 = vmatpush.msra.mxu0 %v2682
        %v2684 = vand.u32 %v2635, 4294901760
        %v2685 = vsub.f32 %v2635, %v2684
        %v2686 = vand.u32 %v2685, 4294901760
        %v2687 = vsub.f32 %v2685, %v2686
        %v2688 = vand.u32 %v2687, 4294901760
        %2689 = vmatpush.msra.mxu0 %v2688
        %v2690 = vand.u32 %v2634, 4294901760
        %v2691 = vsub.f32 %v2634, %v2690
        %v2692 = vand.u32 %v2691, 4294901760
        %v2693 = vsub.f32 %v2691, %v2692
        %v2694 = vand.u32 %v2693, 4294901760
        %2695 = vmatpush.msra.mxu0 %v2694
        %v2696 = vand.u32 %v2633, 4294901760
        %v2697 = vsub.f32 %v2633, %v2696
        %v2698 = vand.u32 %v2697, 4294901760
        %v2699 = vsub.f32 %v2697, %v2698
        %v2700 = vand.u32 %v2699, 4294901760
        %2701 = vmatpush.msra.mxu0 %v2700
        %v2702 = vand.u32 %v2632, 4294901760
        %v2703 = vsub.f32 %v2632, %v2702
        %v2704 = vand.u32 %v2703, 4294901760
        %v2705 = vsub.f32 %v2703, %v2704
        %v2706 = vand.u32 %v2705, 4294901760
        %2707 = vmatpush.msra.mxu0 %v2706
        %v2708 = vand.u32 %v2631, 4294901760
        %v2709 = vsub.f32 %v2631, %v2708
        %v2710 = vand.u32 %v2709, 4294901760
        %v2711 = vsub.f32 %v2709, %v2710
        %v2712 = vand.u32 %v2711, 4294901760
        %2713 = vmatpush.msra.mxu0 %v2712
        %v2714 = vand.u32 %v2630, 4294901760
        %v2715 = vsub.f32 %v2630, %v2714
        %v2716 = vand.u32 %v2715, 4294901760
        %v2717 = vsub.f32 %v2715, %v2716
        %v2718 = vand.u32 %v2717, 4294901760
        %2719 = vmatpush.msra.mxu0 %v2718
        %v2720 = vand.u32 %v2629, 4294901760
        %v2721 = vsub.f32 %v2629, %v2720
        %v2722 = vand.u32 %v2721, 4294901760
        %v2723 = vsub.f32 %v2721, %v2722
        %v2724 = vand.u32 %v2723, 4294901760
        %2725 = vmatpush.msra.mxu0 %v2724
        %v2726 = vand.u32 %v2628, 4294901760
        %v2727 = vsub.f32 %v2628, %v2726
        %v2728 = vand.u32 %v2727, 4294901760
        %v2729 = vsub.f32 %v2727, %v2728
        %v2730 = vand.u32 %v2729, 4294901760
        %2731 = vmatpush.msra.mxu0 %v2730
        %v2732 = vand.u32 %v2627, 4294901760
        %v2733 = vsub.f32 %v2627, %v2732
        %v2734 = vand.u32 %v2733, 4294901760
        %v2735 = vsub.f32 %v2733, %v2734
        %v2736 = vand.u32 %v2735, 4294901760
        %2737 = vmatpush.msra.mxu0 %v2736
        %v2738 = vand.u32 %v2626, 4294901760
        %v2739 = vsub.f32 %v2626, %v2738
        %v2740 = vand.u32 %v2739, 4294901760
        %v2741 = vsub.f32 %v2739, %v2740
        %v2742 = vand.u32 %v2741, 4294901760
        %2743 = vmatpush.msra.mxu0 %v2742
        %v2744 = vand.u32 %v2625, 4294901760
        %v2745 = vsub.f32 %v2625, %v2744
        %v2746 = vand.u32 %v2745, 4294901760
        %v2747 = vsub.f32 %v2745, %v2746
        %v2748 = vand.u32 %v2747, 4294901760
        %2749 = vmatpush.msra.mxu0 %v2748
        %v2750 = vand.u32 %v2624, 4294901760
        %v2751 = vsub.f32 %v2624, %v2750
        %v2752 = vand.u32 %v2751, 4294901760
        %v2753 = vsub.f32 %v2751, %v2752
        %v2754 = vand.u32 %v2753, 4294901760
        %2755 = vmatpush.msra.mxu0 %v2754
        %v2756 = vand.u32 %v2623, 4294901760
        %v2757 = vsub.f32 %v2623, %v2756
        %v2758 = vand.u32 %v2757, 4294901760
        %v2759 = vsub.f32 %v2757, %v2758
        %v2760 = vand.u32 %v2759, 4294901760
        %2761 = vmatpush.msra.mxu0 %v2760
        %v2762 = vand.u32 %v2622, 4294901760
        %v2763 = vsub.f32 %v2622, %v2762
        %v2764 = vand.u32 %v2763, 4294901760
        %v2765 = vsub.f32 %v2763, %v2764
        %v2766 = vand.u32 %v2765, 4294901760
        %2767 = vmatpush.msra.mxu0 %v2766
        %v2768 = vand.u32 %v2621, 4294901760
        %v2769 = vsub.f32 %v2621, %v2768
        %v2770 = vand.u32 %v2769, 4294901760
        %v2771 = vsub.f32 %v2769, %v2770
        %v2772 = vand.u32 %v2771, 4294901760
        %2773 = vmatpush.msra.mxu0 %v2772
        %v2774 = vand.u32 %v177, 4294901760
        %2775 = vmatmul.f32.gmra.mxu0 %v2774
        %v2776 = vpop.f32.mrf.mxu0
        %v2777 = vadd.f32 %v2676, %v2776
        %2778 = vdwg.mxu0
        %v2779 = vand.u32 %v2636, 4294901760
        %v2780 = vsub.f32 %v2636, %v2779
        %2781 = vmatpush.msra.mxu0 %v2780
        %v2782 = vand.u32 %v2635, 4294901760
        %v2783 = vsub.f32 %v2635, %v2782
        %2784 = vmatpush.msra.mxu0 %v2783
        %v2785 = vand.u32 %v2634, 4294901760
        %v2786 = vsub.f32 %v2634, %v2785
        %2787 = vmatpush.msra.mxu0 %v2786
        %v2788 = vand.u32 %v2633, 4294901760
        %v2789 = vsub.f32 %v2633, %v2788
        %2790 = vmatpush.msra.mxu0 %v2789
        %v2791 = vand.u32 %v2632, 4294901760
        %v2792 = vsub.f32 %v2632, %v2791
        %2793 = vmatpush.msra.mxu0 %v2792
        %v2794 = vand.u32 %v2631, 4294901760
        %v2795 = vsub.f32 %v2631, %v2794
        %2796 = vmatpush.msra.mxu0 %v2795
        %v2797 = vand.u32 %v2630, 4294901760
        %v2798 = vsub.f32 %v2630, %v2797
        %2799 = vmatpush.msra.mxu0 %v2798
        %v2800 = vand.u32 %v2629, 4294901760
        %v2801 = vsub.f32 %v2629, %v2800
        %2802 = vmatpush.msra.mxu0 %v2801
        %v2803 = vand.u32 %v2628, 4294901760
        %v2804 = vsub.f32 %v2628, %v2803
        %2805 = vmatpush.msra.mxu0 %v2804
        %v2806 = vand.u32 %v2627, 4294901760
        %v2807 = vsub.f32 %v2627, %v2806
        %2808 = vmatpush.msra.mxu0 %v2807
        %v2809 = vand.u32 %v2626, 4294901760
        %v2810 = vsub.f32 %v2626, %v2809
        %2811 = vmatpush.msra.mxu0 %v2810
        %v2812 = vand.u32 %v2625, 4294901760
        %v2813 = vsub.f32 %v2625, %v2812
        %2814 = vmatpush.msra.mxu0 %v2813
        %v2815 = vand.u32 %v2624, 4294901760
        %v2816 = vsub.f32 %v2624, %v2815
        %2817 = vmatpush.msra.mxu0 %v2816
        %v2818 = vand.u32 %v2623, 4294901760
        %v2819 = vsub.f32 %v2623, %v2818
        %2820 = vmatpush.msra.mxu0 %v2819
        %v2821 = vand.u32 %v2622, 4294901760
        %v2822 = vsub.f32 %v2622, %v2821
        %2823 = vmatpush.msra.mxu0 %v2822
        %v2824 = vand.u32 %v2621, 4294901760
        %v2825 = vsub.f32 %v2621, %v2824
        %2826 = vmatpush.msra.mxu0 %v2825
        %v2827 = vand.u32 %v177, 4294901760
        %v2828 = vsub.f32 %v177, %v2827
        %2829 = vmatmul.f32.gmra.mxu0 %v2828
        %v2830 = vpop.f32.mrf.mxu0
        %v2831 = vadd.f32 %v2777, %v2830
        %2832 = vdwg.mxu0
        %v2833 = vand.u32 %v2636, 4294901760
        %2834 = vmatpush.msra.mxu0 %v2833
        %v2835 = vand.u32 %v2635, 4294901760
        %2836 = vmatpush.msra.mxu0 %v2835
        %v2837 = vand.u32 %v2634, 4294901760
        %2838 = vmatpush.msra.mxu0 %v2837
        %v2839 = vand.u32 %v2633, 4294901760
        %2840 = vmatpush.msra.mxu0 %v2839
        %v2841 = vand.u32 %v2632, 4294901760
        %2842 = vmatpush.msra.mxu0 %v2841
        %v2843 = vand.u32 %v2631, 4294901760
        %2844 = vmatpush.msra.mxu0 %v2843
        %v2845 = vand.u32 %v2630, 4294901760
        %2846 = vmatpush.msra.mxu0 %v2845
        %v2847 = vand.u32 %v2629, 4294901760
        %2848 = vmatpush.msra.mxu0 %v2847
        %v2849 = vand.u32 %v2628, 4294901760
        %2850 = vmatpush.msra.mxu0 %v2849
        %v2851 = vand.u32 %v2627, 4294901760
        %2852 = vmatpush.msra.mxu0 %v2851
        %v2853 = vand.u32 %v2626, 4294901760
        %2854 = vmatpush.msra.mxu0 %v2853
        %v2855 = vand.u32 %v2625, 4294901760
        %2856 = vmatpush.msra.mxu0 %v2855
        %v2857 = vand.u32 %v2624, 4294901760
        %2858 = vmatpush.msra.mxu0 %v2857
        %v2859 = vand.u32 %v2623, 4294901760
        %2860 = vmatpush.msra.mxu0 %v2859
        %v2861 = vand.u32 %v2622, 4294901760
        %2862 = vmatpush.msra.mxu0 %v2861
        %v2863 = vand.u32 %v2621, 4294901760
        %2864 = vmatpush.msra.mxu0 %v2863
        %v2865 = vand.u32 %v177, 4294901760
        %v2866 = vsub.f32 %v177, %v2865
        %v2867 = vand.u32 %v2866, 4294901760
        %2868 = vmatmul.f32.gmra.mxu0 %v2867
        %v2869 = vpop.f32.mrf.mxu0
        %v2870 = vadd.f32 %v2831, %v2869
        %2871 = vdwg.mxu0
        %v2872 = vand.u32 %v2636, 4294901760
        %v2873 = vsub.f32 %v2636, %v2872
        %v2874 = vand.u32 %v2873, 4294901760
        %2875 = vmatpush.msra.mxu0 %v2874
        %v2876 = vand.u32 %v2635, 4294901760
        %v2877 = vsub.f32 %v2635, %v2876
        %v2878 = vand.u32 %v2877, 4294901760
        %2879 = vmatpush.msra.mxu0 %v2878
        %v2880 = vand.u32 %v2634, 4294901760
        %v2881 = vsub.f32 %v2634, %v2880
        %v2882 = vand.u32 %v2881, 4294901760
        %2883 = vmatpush.msra.mxu0 %v2882
        %v2884 = vand.u32 %v2633, 4294901760
        %v2885 = vsub.f32 %v2633, %v2884
        %v2886 = vand.u32 %v2885, 4294901760
        %2887 = vmatpush.msra.mxu0 %v2886
        %v2888 = vand.u32 %v2632, 4294901760
        %v2889 = vsub.f32 %v2632, %v2888
        %v2890 = vand.u32 %v2889, 4294901760
        %2891 = vmatpush.msra.mxu0 %v2890
        %v2892 = vand.u32 %v2631, 4294901760
        %v2893 = vsub.f32 %v2631, %v2892
        %v2894 = vand.u32 %v2893, 4294901760
        %2895 = vmatpush.msra.mxu0 %v2894
        %v2896 = vand.u32 %v2630, 4294901760
        %v2897 = vsub.f32 %v2630, %v2896
        %v2898 = vand.u32 %v2897, 4294901760
        %2899 = vmatpush.msra.mxu0 %v2898
        %v2900 = vand.u32 %v2629, 4294901760
        %v2901 = vsub.f32 %v2629, %v2900
        %v2902 = vand.u32 %v2901, 4294901760
        %2903 = vmatpush.msra.mxu0 %v2902
        %v2904 = vand.u32 %v2628, 4294901760
        %v2905 = vsub.f32 %v2628, %v2904
        %v2906 = vand.u32 %v2905, 4294901760
        %2907 = vmatpush.msra.mxu0 %v2906
        %v2908 = vand.u32 %v2627, 4294901760
        %v2909 = vsub.f32 %v2627, %v2908
        %v2910 = vand.u32 %v2909, 4294901760
        %2911 = vmatpush.msra.mxu0 %v2910
        %v2912 = vand.u32 %v2626, 4294901760
        %v2913 = vsub.f32 %v2626, %v2912
        %v2914 = vand.u32 %v2913, 4294901760
        %2915 = vmatpush.msra.mxu0 %v2914
        %v2916 = vand.u32 %v2625, 4294901760
        %v2917 = vsub.f32 %v2625, %v2916
        %v2918 = vand.u32 %v2917, 4294901760
        %2919 = vmatpush.msra.mxu0 %v2918
        %v2920 = vand.u32 %v2624, 4294901760
        %v2921 = vsub.f32 %v2624, %v2920
        %v2922 = vand.u32 %v2921, 4294901760
        %2923 = vmatpush.msra.mxu0 %v2922
        %v2924 = vand.u32 %v2623, 4294901760
        %v2925 = vsub.f32 %v2623, %v2924
        %v2926 = vand.u32 %v2925, 4294901760
        %2927 = vmatpush.msra.mxu0 %v2926
        %v2928 = vand.u32 %v2622, 4294901760
        %v2929 = vsub.f32 %v2622, %v2928
        %v2930 = vand.u32 %v2929, 4294901760
        %2931 = vmatpush.msra.mxu0 %v2930
        %v2932 = vand.u32 %v2621, 4294901760
        %v2933 = vsub.f32 %v2621, %v2932
        %v2934 = vand.u32 %v2933, 4294901760
        %2935 = vmatpush.msra.mxu0 %v2934
        %v2936 = vand.u32 %v177, 4294901760
        %2937 = vmatmul.f32.gmra.mxu0 %v2936
        %v2938 = vpop.f32.mrf.mxu0
        %v2939 = vadd.f32 %v2870, %v2938
        %2940 = vdwg.mxu0
        %v2941 = vand.u32 %v2636, 4294901760
        %2942 = vmatpush.msra.mxu0 %v2941
        %v2943 = vand.u32 %v2635, 4294901760
        %2944 = vmatpush.msra.mxu0 %v2943
        %v2945 = vand.u32 %v2634, 4294901760
        %2946 = vmatpush.msra.mxu0 %v2945
        %v2947 = vand.u32 %v2633, 4294901760
        %2948 = vmatpush.msra.mxu0 %v2947
        %v2949 = vand.u32 %v2632, 4294901760
        %2950 = vmatpush.msra.mxu0 %v2949
        %v2951 = vand.u32 %v2631, 4294901760
        %2952 = vmatpush.msra.mxu0 %v2951
        %v2953 = vand.u32 %v2630, 4294901760
        %2954 = vmatpush.msra.mxu0 %v2953
        %v2955 = vand.u32 %v2629, 4294901760
        %2956 = vmatpush.msra.mxu0 %v2955
        %v2957 = vand.u32 %v2628, 4294901760
        %2958 = vmatpush.msra.mxu0 %v2957
        %v2959 = vand.u32 %v2627, 4294901760
        %2960 = vmatpush.msra.mxu0 %v2959
        %v2961 = vand.u32 %v2626, 4294901760
        %2962 = vmatpush.msra.mxu0 %v2961
        %v2963 = vand.u32 %v2625, 4294901760
        %2964 = vmatpush.msra.mxu0 %v2963
        %v2965 = vand.u32 %v2624, 4294901760
        %2966 = vmatpush.msra.mxu0 %v2965
        %v2967 = vand.u32 %v2623, 4294901760
        %2968 = vmatpush.msra.mxu0 %v2967
        %v2969 = vand.u32 %v2622, 4294901760
        %2970 = vmatpush.msra.mxu0 %v2969
        %v2971 = vand.u32 %v2621, 4294901760
        %2972 = vmatpush.msra.mxu0 %v2971
        %v2973 = vand.u32 %v177, 4294901760
        %2974 = vmatmul.f32.gmra.mxu0 %v2973
        %v2975 = vpop.f32.mrf.mxu0
        %v2976 = vadd.f32 %v2939, %v2975
        %2977 = vdwg.mxu0
        %v2978 = vadd.f32 %v2565, %v2976
        %v2979 = vadd.s32 %v1734, %v1811
        %vm2980 = vcmp.lt.s32.totalorder %v2979, 0
        %v2981 = vsub.s32 0, %v2979
        %v2982 = vsel %vm2980, %v2981, %v2979
        %v2983 = vand.u32 %v2982, 65535
        %v2984 = vshrl.u32 %v2982, 16
        %v2986 = vmul.u32 %v2983, 52429
        %v2987 = vmul.u32 %v2983, 52428
        %v2988 = vmul.u32 %v2984, 52429
        %v2989 = vmul.u32 %v2984, 52428
        %v2990 = vshll.u32 %v2987, 16
        %v2991 = vshrl.u32 %v2987, 16
        %v2992 = vshll.u32 %v2988, 16
        %v2993 = vshrl.u32 %v2988, 16
        %vm2994 = vc.u32 %v2986, %v2990
        %v2995 = vsel %vm2994, 1, 0
        %v2996 = vadd.s32 %v2986, %v2990
        %v2997 = vadd.s32 %v2989, %v2995
        %vm2998 = vc.u32 %v2996, %v2992
        %v2999 = vsel %vm2998, 1, 0
        %v3000 = vadd.s32 %v2996, %v2992
        %v3001 = vadd.s32 %v2997, %v2999
        %v3002 = vadd.s32 %v3001, %v2991
        %v3003 = vadd.s32 %v3002, %v2993
        %v3004 = vshrl.u32 %v3003, 5
        %v3005 = vmul.u32 %v3004, 40
        %v3006 = vsub.s32 %v2982, %v3005
        %v3007 = vsub.s32 0, %v3006
        %v3008 = vsel %vm2980, %v3007, %v3006
        %vm3009 = vcmp.ne.s32.totalorder %v3008, 0
        %vm3010 = vcmp.lt.s32.totalorder %v3008, 0
        %vm3011 = vmand %vm3010, %vm3009
        %v3012 = vadd.s32 %v3008, 40
        %v3013 = vsel %vm3011, %v3012, %v3008
        %v3014 = vmul.f32 %v1732, %v1848
        %v3015 = vperm.slane %v3013, 0
        %vm3016 = vcmp.eq.s32.totalorder %v3015, %v179
        %vm3017 = vcmp.eq.s32.totalorder %v3015, %v180
        %vm3018 = vcmp.eq.s32.totalorder %v3015, %v181
        %vm3019 = vcmp.eq.s32.totalorder %v3015, %v182
        %vm3020 = vcmp.eq.s32.totalorder %v3015, %v183
        %vm3021 = vcmp.eq.s32.totalorder %v3015, %v184
        %vm3022 = vcmp.eq.s32.totalorder %v3015, %v185
        %vm3023 = vcmp.eq.s32.totalorder %v3015, %v186
        %vm3024 = vcmp.eq.s32.totalorder %v3015, %v187
        %vm3025 = vcmp.eq.s32.totalorder %v3015, %v188
        %vm3026 = vcmp.eq.s32.totalorder %v3015, %v189
        %vm3027 = vcmp.eq.s32.totalorder %v3015, %v190
        %vm3028 = vcmp.eq.s32.totalorder %v3015, %v191
        %vm3029 = vcmp.eq.s32.totalorder %v3015, %v192
        %vm3030 = vcmp.eq.s32.totalorder %v3015, %v193
        %vm3031 = vcmp.eq.s32.totalorder %v3015, %v194
        %v3032 = vperm.slane %v3014, 0
        %v3033 = vsel %vm3016, %v3032, 0.0
        %v3034 = vsel %vm3017, %v3032, 0.0
        %v3035 = vsel %vm3018, %v3032, 0.0
        %v3036 = vsel %vm3019, %v3032, 0.0
        %v3037 = vsel %vm3020, %v3032, 0.0
        %v3038 = vsel %vm3021, %v3032, 0.0
        %v3039 = vsel %vm3022, %v3032, 0.0
        %v3040 = vsel %vm3023, %v3032, 0.0
        %v3041 = vsel %vm3024, %v3032, 0.0
        %v3042 = vsel %vm3025, %v3032, 0.0
        %v3043 = vsel %vm3026, %v3032, 0.0
        %v3044 = vsel %vm3027, %v3032, 0.0
        %v3045 = vsel %vm3028, %v3032, 0.0
        %v3046 = vsel %vm3029, %v3032, 0.0
        %v3047 = vsel %vm3030, %v3032, 0.0
        %v3048 = vsel %vm3031, %v3032, 0.0
        %v3049 = vand.u32 %v3048, 4294901760
        %3050 = vmatpush.msra.mxu0 %v3049
        %v3051 = vand.u32 %v3047, 4294901760
        %3052 = vmatpush.msra.mxu0 %v3051
        %v3053 = vand.u32 %v3046, 4294901760
        %3054 = vmatpush.msra.mxu0 %v3053
        %v3055 = vand.u32 %v3045, 4294901760
        %3056 = vmatpush.msra.mxu0 %v3055
        %v3057 = vand.u32 %v3044, 4294901760
        %3058 = vmatpush.msra.mxu0 %v3057
        %v3059 = vand.u32 %v3043, 4294901760
        %3060 = vmatpush.msra.mxu0 %v3059
        %v3061 = vand.u32 %v3042, 4294901760
        %3062 = vmatpush.msra.mxu0 %v3061
        %v3063 = vand.u32 %v3041, 4294901760
        %3064 = vmatpush.msra.mxu0 %v3063
        %v3065 = vand.u32 %v3040, 4294901760
        %3066 = vmatpush.msra.mxu0 %v3065
        %v3067 = vand.u32 %v3039, 4294901760
        %3068 = vmatpush.msra.mxu0 %v3067
        %v3069 = vand.u32 %v3038, 4294901760
        %3070 = vmatpush.msra.mxu0 %v3069
        %v3071 = vand.u32 %v3037, 4294901760
        %3072 = vmatpush.msra.mxu0 %v3071
        %v3073 = vand.u32 %v3036, 4294901760
        %3074 = vmatpush.msra.mxu0 %v3073
        %v3075 = vand.u32 %v3035, 4294901760
        %3076 = vmatpush.msra.mxu0 %v3075
        %v3077 = vand.u32 %v3034, 4294901760
        %3078 = vmatpush.msra.mxu0 %v3077
        %v3079 = vand.u32 %v3033, 4294901760
        %3080 = vmatpush.msra.mxu0 %v3079
        %v3081 = vand.u32 %v177, 4294901760
        %v3082 = vsub.f32 %v177, %v3081
        %v3083 = vand.u32 %v3082, 4294901760
        %v3084 = vsub.f32 %v3082, %v3083
        %v3085 = vand.u32 %v3084, 4294901760
        %3086 = vmatmul.f32.gmra.mxu0 %v3085
        %v3087 = vpop.f32.mrf.mxu0
        %v3088 = vadd.f32 0.0, %v3087
        %3089 = vdwg.mxu0
        %v3090 = vand.u32 %v3048, 4294901760
        %v3091 = vsub.f32 %v3048, %v3090
        %v3092 = vand.u32 %v3091, 4294901760
        %v3093 = vsub.f32 %v3091, %v3092
        %v3094 = vand.u32 %v3093, 4294901760
        %3095 = vmatpush.msra.mxu0 %v3094
        %v3096 = vand.u32 %v3047, 4294901760
        %v3097 = vsub.f32 %v3047, %v3096
        %v3098 = vand.u32 %v3097, 4294901760
        %v3099 = vsub.f32 %v3097, %v3098
        %v3100 = vand.u32 %v3099, 4294901760
        %3101 = vmatpush.msra.mxu0 %v3100
        %v3102 = vand.u32 %v3046, 4294901760
        %v3103 = vsub.f32 %v3046, %v3102
        %v3104 = vand.u32 %v3103, 4294901760
        %v3105 = vsub.f32 %v3103, %v3104
        %v3106 = vand.u32 %v3105, 4294901760
        %3107 = vmatpush.msra.mxu0 %v3106
        %v3108 = vand.u32 %v3045, 4294901760
        %v3109 = vsub.f32 %v3045, %v3108
        %v3110 = vand.u32 %v3109, 4294901760
        %v3111 = vsub.f32 %v3109, %v3110
        %v3112 = vand.u32 %v3111, 4294901760
        %3113 = vmatpush.msra.mxu0 %v3112
        %v3114 = vand.u32 %v3044, 4294901760
        %v3115 = vsub.f32 %v3044, %v3114
        %v3116 = vand.u32 %v3115, 4294901760
        %v3117 = vsub.f32 %v3115, %v3116
        %v3118 = vand.u32 %v3117, 4294901760
        %3119 = vmatpush.msra.mxu0 %v3118
        %v3120 = vand.u32 %v3043, 4294901760
        %v3121 = vsub.f32 %v3043, %v3120
        %v3122 = vand.u32 %v3121, 4294901760
        %v3123 = vsub.f32 %v3121, %v3122
        %v3124 = vand.u32 %v3123, 4294901760
        %3125 = vmatpush.msra.mxu0 %v3124
        %v3126 = vand.u32 %v3042, 4294901760
        %v3127 = vsub.f32 %v3042, %v3126
        %v3128 = vand.u32 %v3127, 4294901760
        %v3129 = vsub.f32 %v3127, %v3128
        %v3130 = vand.u32 %v3129, 4294901760
        %3131 = vmatpush.msra.mxu0 %v3130
        %v3132 = vand.u32 %v3041, 4294901760
        %v3133 = vsub.f32 %v3041, %v3132
        %v3134 = vand.u32 %v3133, 4294901760
        %v3135 = vsub.f32 %v3133, %v3134
        %v3136 = vand.u32 %v3135, 4294901760
        %3137 = vmatpush.msra.mxu0 %v3136
        %v3138 = vand.u32 %v3040, 4294901760
        %v3139 = vsub.f32 %v3040, %v3138
        %v3140 = vand.u32 %v3139, 4294901760
        %v3141 = vsub.f32 %v3139, %v3140
        %v3142 = vand.u32 %v3141, 4294901760
        %3143 = vmatpush.msra.mxu0 %v3142
        %v3144 = vand.u32 %v3039, 4294901760
        %v3145 = vsub.f32 %v3039, %v3144
        %v3146 = vand.u32 %v3145, 4294901760
        %v3147 = vsub.f32 %v3145, %v3146
        %v3148 = vand.u32 %v3147, 4294901760
        %3149 = vmatpush.msra.mxu0 %v3148
        %v3150 = vand.u32 %v3038, 4294901760
        %v3151 = vsub.f32 %v3038, %v3150
        %v3152 = vand.u32 %v3151, 4294901760
        %v3153 = vsub.f32 %v3151, %v3152
        %v3154 = vand.u32 %v3153, 4294901760
        %3155 = vmatpush.msra.mxu0 %v3154
        %v3156 = vand.u32 %v3037, 4294901760
        %v3157 = vsub.f32 %v3037, %v3156
        %v3158 = vand.u32 %v3157, 4294901760
        %v3159 = vsub.f32 %v3157, %v3158
        %v3160 = vand.u32 %v3159, 4294901760
        %3161 = vmatpush.msra.mxu0 %v3160
        %v3162 = vand.u32 %v3036, 4294901760
        %v3163 = vsub.f32 %v3036, %v3162
        %v3164 = vand.u32 %v3163, 4294901760
        %v3165 = vsub.f32 %v3163, %v3164
        %v3166 = vand.u32 %v3165, 4294901760
        %3167 = vmatpush.msra.mxu0 %v3166
        %v3168 = vand.u32 %v3035, 4294901760
        %v3169 = vsub.f32 %v3035, %v3168
        %v3170 = vand.u32 %v3169, 4294901760
        %v3171 = vsub.f32 %v3169, %v3170
        %v3172 = vand.u32 %v3171, 4294901760
        %3173 = vmatpush.msra.mxu0 %v3172
        %v3174 = vand.u32 %v3034, 4294901760
        %v3175 = vsub.f32 %v3034, %v3174
        %v3176 = vand.u32 %v3175, 4294901760
        %v3177 = vsub.f32 %v3175, %v3176
        %v3178 = vand.u32 %v3177, 4294901760
        %3179 = vmatpush.msra.mxu0 %v3178
        %v3180 = vand.u32 %v3033, 4294901760
        %v3181 = vsub.f32 %v3033, %v3180
        %v3182 = vand.u32 %v3181, 4294901760
        %v3183 = vsub.f32 %v3181, %v3182
        %v3184 = vand.u32 %v3183, 4294901760
        %3185 = vmatpush.msra.mxu0 %v3184
        %v3186 = vand.u32 %v177, 4294901760
        %3187 = vmatmul.f32.gmra.mxu0 %v3186
        %v3188 = vpop.f32.mrf.mxu0
        %v3189 = vadd.f32 %v3088, %v3188
        %3190 = vdwg.mxu0
        %v3191 = vand.u32 %v3048, 4294901760
        %v3192 = vsub.f32 %v3048, %v3191
        %3193 = vmatpush.msra.mxu0 %v3192
        %v3194 = vand.u32 %v3047, 4294901760
        %v3195 = vsub.f32 %v3047, %v3194
        %3196 = vmatpush.msra.mxu0 %v3195
        %v3197 = vand.u32 %v3046, 4294901760
        %v3198 = vsub.f32 %v3046, %v3197
        %3199 = vmatpush.msra.mxu0 %v3198
        %v3200 = vand.u32 %v3045, 4294901760
        %v3201 = vsub.f32 %v3045, %v3200
        %3202 = vmatpush.msra.mxu0 %v3201
        %v3203 = vand.u32 %v3044, 4294901760
        %v3204 = vsub.f32 %v3044, %v3203
        %3205 = vmatpush.msra.mxu0 %v3204
        %v3206 = vand.u32 %v3043, 4294901760
        %v3207 = vsub.f32 %v3043, %v3206
        %3208 = vmatpush.msra.mxu0 %v3207
        %v3209 = vand.u32 %v3042, 4294901760
        %v3210 = vsub.f32 %v3042, %v3209
        %3211 = vmatpush.msra.mxu0 %v3210
        %v3212 = vand.u32 %v3041, 4294901760
        %v3213 = vsub.f32 %v3041, %v3212
        %3214 = vmatpush.msra.mxu0 %v3213
        %v3215 = vand.u32 %v3040, 4294901760
        %v3216 = vsub.f32 %v3040, %v3215
        %3217 = vmatpush.msra.mxu0 %v3216
        %v3218 = vand.u32 %v3039, 4294901760
        %v3219 = vsub.f32 %v3039, %v3218
        %3220 = vmatpush.msra.mxu0 %v3219
        %v3221 = vand.u32 %v3038, 4294901760
        %v3222 = vsub.f32 %v3038, %v3221
        %3223 = vmatpush.msra.mxu0 %v3222
        %v3224 = vand.u32 %v3037, 4294901760
        %v3225 = vsub.f32 %v3037, %v3224
        %3226 = vmatpush.msra.mxu0 %v3225
        %v3227 = vand.u32 %v3036, 4294901760
        %v3228 = vsub.f32 %v3036, %v3227
        %3229 = vmatpush.msra.mxu0 %v3228
        %v3230 = vand.u32 %v3035, 4294901760
        %v3231 = vsub.f32 %v3035, %v3230
        %3232 = vmatpush.msra.mxu0 %v3231
        %v3233 = vand.u32 %v3034, 4294901760
        %v3234 = vsub.f32 %v3034, %v3233
        %3235 = vmatpush.msra.mxu0 %v3234
        %v3236 = vand.u32 %v3033, 4294901760
        %v3237 = vsub.f32 %v3033, %v3236
        %3238 = vmatpush.msra.mxu0 %v3237
        %v3239 = vand.u32 %v177, 4294901760
        %v3240 = vsub.f32 %v177, %v3239
        %3241 = vmatmul.f32.gmra.mxu0 %v3240
        %v3242 = vpop.f32.mrf.mxu0
        %v3243 = vadd.f32 %v3189, %v3242
        %3244 = vdwg.mxu0
        %v3245 = vand.u32 %v3048, 4294901760
        %3246 = vmatpush.msra.mxu0 %v3245
        %v3247 = vand.u32 %v3047, 4294901760
        %3248 = vmatpush.msra.mxu0 %v3247
        %v3249 = vand.u32 %v3046, 4294901760
        %3250 = vmatpush.msra.mxu0 %v3249
        %v3251 = vand.u32 %v3045, 4294901760
        %3252 = vmatpush.msra.mxu0 %v3251
        %v3253 = vand.u32 %v3044, 4294901760
        %3254 = vmatpush.msra.mxu0 %v3253
        %v3255 = vand.u32 %v3043, 4294901760
        %3256 = vmatpush.msra.mxu0 %v3255
        %v3257 = vand.u32 %v3042, 4294901760
        %3258 = vmatpush.msra.mxu0 %v3257
        %v3259 = vand.u32 %v3041, 4294901760
        %3260 = vmatpush.msra.mxu0 %v3259
        %v3261 = vand.u32 %v3040, 4294901760
        %3262 = vmatpush.msra.mxu0 %v3261
        %v3263 = vand.u32 %v3039, 4294901760
        %3264 = vmatpush.msra.mxu0 %v3263
        %v3265 = vand.u32 %v3038, 4294901760
        %3266 = vmatpush.msra.mxu0 %v3265
        %v3267 = vand.u32 %v3037, 4294901760
        %3268 = vmatpush.msra.mxu0 %v3267
        %v3269 = vand.u32 %v3036, 4294901760
        %3270 = vmatpush.msra.mxu0 %v3269
        %v3271 = vand.u32 %v3035, 4294901760
        %3272 = vmatpush.msra.mxu0 %v3271
        %v3273 = vand.u32 %v3034, 4294901760
        %3274 = vmatpush.msra.mxu0 %v3273
        %v3275 = vand.u32 %v3033, 4294901760
        %3276 = vmatpush.msra.mxu0 %v3275
        %v3277 = vand.u32 %v177, 4294901760
        %v3278 = vsub.f32 %v177, %v3277
        %v3279 = vand.u32 %v3278, 4294901760
        %3280 = vmatmul.f32.gmra.mxu0 %v3279
        %v3281 = vpop.f32.mrf.mxu0
        %v3282 = vadd.f32 %v3243, %v3281
        %3283 = vdwg.mxu0
        %v3284 = vand.u32 %v3048, 4294901760
        %v3285 = vsub.f32 %v3048, %v3284
        %v3286 = vand.u32 %v3285, 4294901760
        %3287 = vmatpush.msra.mxu0 %v3286
        %v3288 = vand.u32 %v3047, 4294901760
        %v3289 = vsub.f32 %v3047, %v3288
        %v3290 = vand.u32 %v3289, 4294901760
        %3291 = vmatpush.msra.mxu0 %v3290
        %v3292 = vand.u32 %v3046, 4294901760
        %v3293 = vsub.f32 %v3046, %v3292
        %v3294 = vand.u32 %v3293, 4294901760
        %3295 = vmatpush.msra.mxu0 %v3294
        %v3296 = vand.u32 %v3045, 4294901760
        %v3297 = vsub.f32 %v3045, %v3296
        %v3298 = vand.u32 %v3297, 4294901760
        %3299 = vmatpush.msra.mxu0 %v3298
        %v3300 = vand.u32 %v3044, 4294901760
        %v3301 = vsub.f32 %v3044, %v3300
        %v3302 = vand.u32 %v3301, 4294901760
        %3303 = vmatpush.msra.mxu0 %v3302
        %v3304 = vand.u32 %v3043, 4294901760
        %v3305 = vsub.f32 %v3043, %v3304
        %v3306 = vand.u32 %v3305, 4294901760
        %3307 = vmatpush.msra.mxu0 %v3306
        %v3308 = vand.u32 %v3042, 4294901760
        %v3309 = vsub.f32 %v3042, %v3308
        %v3310 = vand.u32 %v3309, 4294901760
        %3311 = vmatpush.msra.mxu0 %v3310
        %v3312 = vand.u32 %v3041, 4294901760
        %v3313 = vsub.f32 %v3041, %v3312
        %v3314 = vand.u32 %v3313, 4294901760
        %3315 = vmatpush.msra.mxu0 %v3314
        %v3316 = vand.u32 %v3040, 4294901760
        %v3317 = vsub.f32 %v3040, %v3316
        %v3318 = vand.u32 %v3317, 4294901760
        %3319 = vmatpush.msra.mxu0 %v3318
        %v3320 = vand.u32 %v3039, 4294901760
        %v3321 = vsub.f32 %v3039, %v3320
        %v3322 = vand.u32 %v3321, 4294901760
        %3323 = vmatpush.msra.mxu0 %v3322
        %v3324 = vand.u32 %v3038, 4294901760
        %v3325 = vsub.f32 %v3038, %v3324
        %v3326 = vand.u32 %v3325, 4294901760
        %3327 = vmatpush.msra.mxu0 %v3326
        %v3328 = vand.u32 %v3037, 4294901760
        %v3329 = vsub.f32 %v3037, %v3328
        %v3330 = vand.u32 %v3329, 4294901760
        %3331 = vmatpush.msra.mxu0 %v3330
        %v3332 = vand.u32 %v3036, 4294901760
        %v3333 = vsub.f32 %v3036, %v3332
        %v3334 = vand.u32 %v3333, 4294901760
        %3335 = vmatpush.msra.mxu0 %v3334
        %v3336 = vand.u32 %v3035, 4294901760
        %v3337 = vsub.f32 %v3035, %v3336
        %v3338 = vand.u32 %v3337, 4294901760
        %3339 = vmatpush.msra.mxu0 %v3338
        %v3340 = vand.u32 %v3034, 4294901760
        %v3341 = vsub.f32 %v3034, %v3340
        %v3342 = vand.u32 %v3341, 4294901760
        %3343 = vmatpush.msra.mxu0 %v3342
        %v3344 = vand.u32 %v3033, 4294901760
        %v3345 = vsub.f32 %v3033, %v3344
        %v3346 = vand.u32 %v3345, 4294901760
        %3347 = vmatpush.msra.mxu0 %v3346
        %v3348 = vand.u32 %v177, 4294901760
        %3349 = vmatmul.f32.gmra.mxu0 %v3348
        %v3350 = vpop.f32.mrf.mxu0
        %v3351 = vadd.f32 %v3282, %v3350
        %3352 = vdwg.mxu0
        %v3353 = vand.u32 %v3048, 4294901760
        %3354 = vmatpush.msra.mxu0 %v3353
        %v3355 = vand.u32 %v3047, 4294901760
        %3356 = vmatpush.msra.mxu0 %v3355
        %v3357 = vand.u32 %v3046, 4294901760
        %3358 = vmatpush.msra.mxu0 %v3357
        %v3359 = vand.u32 %v3045, 4294901760
        %3360 = vmatpush.msra.mxu0 %v3359
        %v3361 = vand.u32 %v3044, 4294901760
        %3362 = vmatpush.msra.mxu0 %v3361
        %v3363 = vand.u32 %v3043, 4294901760
        %3364 = vmatpush.msra.mxu0 %v3363
        %v3365 = vand.u32 %v3042, 4294901760
        %3366 = vmatpush.msra.mxu0 %v3365
        %v3367 = vand.u32 %v3041, 4294901760
        %3368 = vmatpush.msra.mxu0 %v3367
        %v3369 = vand.u32 %v3040, 4294901760
        %3370 = vmatpush.msra.mxu0 %v3369
        %v3371 = vand.u32 %v3039, 4294901760
        %3372 = vmatpush.msra.mxu0 %v3371
        %v3373 = vand.u32 %v3038, 4294901760
        %3374 = vmatpush.msra.mxu0 %v3373
        %v3375 = vand.u32 %v3037, 4294901760
        %3376 = vmatpush.msra.mxu0 %v3375
        %v3377 = vand.u32 %v3036, 4294901760
        %3378 = vmatpush.msra.mxu0 %v3377
        %v3379 = vand.u32 %v3035, 4294901760
        %3380 = vmatpush.msra.mxu0 %v3379
        %v3381 = vand.u32 %v3034, 4294901760
        %3382 = vmatpush.msra.mxu0 %v3381
        %v3383 = vand.u32 %v3033, 4294901760
        %3384 = vmatpush.msra.mxu0 %v3383
        %v3385 = vand.u32 %v177, 4294901760
        %3386 = vmatmul.f32.gmra.mxu0 %v3385
        %v3387 = vpop.f32.mrf.mxu0
        %v3388 = vadd.f32 %v3351, %v3387
        %3389 = vdwg.mxu0
        %v3390 = vadd.f32 %v2978, %v3388
        %v3391 = vmul.f32 %v1726, %v3390
        %v3392 = vmul.f32 %v176, 8.0
        %v3393 = vadd.f32 %v3392, 0.5
        %v3394 = vfloor.f32 %v3393
        %v3395 = vcvt.f32.s32.to.zero.pseudo %v3394
        %v3396 = vcvt.s32.f32 %v3395
        %v3397 = vsub.f32 %v3393, %v3396
        %v3398 = vsub.f32 1.0, %v3397
        %v3399 = vadd.s32 %v3395, 1
        %v3400 = vmul.u32 %v3395, 2654435761
        %v3401 = vadd.s32 %v3400, 2654435761
        %v3402 = vrot.slane %v3400, 1
        %v3403 = vxor.u32 %v3395, %v3402
        %v3404 = vand.u32 %v3403, 63
        %v3406 = vrot.slane %v3398, 1
        %v3408 = vmul.f32 %v3398, %v3406
        %v3409 = vperm.slane %v3404, 0
        %vm3410 = vcmp.eq.s32.totalorder %v3409, %v179
        %vm3411 = vcmp.eq.s32.totalorder %v3409, %v180
        %vm3412 = vcmp.eq.s32.totalorder %v3409, %v181
        %vm3413 = vcmp.eq.s32.totalorder %v3409, %v182
        %vm3414 = vcmp.eq.s32.totalorder %v3409, %v183
        %vm3415 = vcmp.eq.s32.totalorder %v3409, %v184
        %vm3416 = vcmp.eq.s32.totalorder %v3409, %v185
        %vm3417 = vcmp.eq.s32.totalorder %v3409, %v186
        %vm3418 = vcmp.eq.s32.totalorder %v3409, %v187
        %vm3419 = vcmp.eq.s32.totalorder %v3409, %v188
        %vm3420 = vcmp.eq.s32.totalorder %v3409, %v189
        %vm3421 = vcmp.eq.s32.totalorder %v3409, %v190
        %vm3422 = vcmp.eq.s32.totalorder %v3409, %v191
        %vm3423 = vcmp.eq.s32.totalorder %v3409, %v192
        %vm3424 = vcmp.eq.s32.totalorder %v3409, %v193
        %vm3425 = vcmp.eq.s32.totalorder %v3409, %v194
        %v3426 = vperm.slane %v3408, 0
        %v3427 = vsel %vm3410, %v3426, 0.0
        %v3428 = vsel %vm3411, %v3426, 0.0
        %v3429 = vsel %vm3412, %v3426, 0.0
        %v3430 = vsel %vm3413, %v3426, 0.0
        %v3431 = vsel %vm3414, %v3426, 0.0
        %v3432 = vsel %vm3415, %v3426, 0.0
        %v3433 = vsel %vm3416, %v3426, 0.0
        %v3434 = vsel %vm3417, %v3426, 0.0
        %v3435 = vsel %vm3418, %v3426, 0.0
        %v3436 = vsel %vm3419, %v3426, 0.0
        %v3437 = vsel %vm3420, %v3426, 0.0
        %v3438 = vsel %vm3421, %v3426, 0.0
        %v3439 = vsel %vm3422, %v3426, 0.0
        %v3440 = vsel %vm3423, %v3426, 0.0
        %v3441 = vsel %vm3424, %v3426, 0.0
        %v3442 = vsel %vm3425, %v3426, 0.0
        %v3443 = vrot.slane %v3401, 1
        %v3444 = vxor.u32 %v3395, %v3443
        %v3445 = vand.u32 %v3444, 63
        %v3447 = vrot.slane %v3397, 1
        %v3449 = vmul.f32 %v3398, %v3447
        %v3450 = vperm.slane %v3445, 0
        %vm3451 = vcmp.eq.s32.totalorder %v3450, %v179
        %vm3452 = vcmp.eq.s32.totalorder %v3450, %v180
        %vm3453 = vcmp.eq.s32.totalorder %v3450, %v181
        %vm3454 = vcmp.eq.s32.totalorder %v3450, %v182
        %vm3455 = vcmp.eq.s32.totalorder %v3450, %v183
        %vm3456 = vcmp.eq.s32.totalorder %v3450, %v184
        %vm3457 = vcmp.eq.s32.totalorder %v3450, %v185
        %vm3458 = vcmp.eq.s32.totalorder %v3450, %v186
        %vm3459 = vcmp.eq.s32.totalorder %v3450, %v187
        %vm3460 = vcmp.eq.s32.totalorder %v3450, %v188
        %vm3461 = vcmp.eq.s32.totalorder %v3450, %v189
        %vm3462 = vcmp.eq.s32.totalorder %v3450, %v190
        %vm3463 = vcmp.eq.s32.totalorder %v3450, %v191
        %vm3464 = vcmp.eq.s32.totalorder %v3450, %v192
        %vm3465 = vcmp.eq.s32.totalorder %v3450, %v193
        %vm3466 = vcmp.eq.s32.totalorder %v3450, %v194
        %v3467 = vperm.slane %v3449, 0
        %v3468 = vsel %vm3451, %v3467, 0.0
        %v3469 = vsel %vm3452, %v3467, 0.0
        %v3470 = vsel %vm3453, %v3467, 0.0
        %v3471 = vsel %vm3454, %v3467, 0.0
        %v3472 = vsel %vm3455, %v3467, 0.0
        %v3473 = vsel %vm3456, %v3467, 0.0
        %v3474 = vsel %vm3457, %v3467, 0.0
        %v3475 = vsel %vm3458, %v3467, 0.0
        %v3476 = vsel %vm3459, %v3467, 0.0
        %v3477 = vsel %vm3460, %v3467, 0.0
        %v3478 = vsel %vm3461, %v3467, 0.0
        %v3479 = vsel %vm3462, %v3467, 0.0
        %v3480 = vsel %vm3463, %v3467, 0.0
        %v3481 = vsel %vm3464, %v3467, 0.0
        %v3482 = vsel %vm3465, %v3467, 0.0
        %v3483 = vsel %vm3466, %v3467, 0.0
        %v3484 = vand.u32 %v3483, 4294901760
        %3485 = vmatpush.msra.mxu0 %v3484
        %v3486 = vand.u32 %v3482, 4294901760
        %3487 = vmatpush.msra.mxu0 %v3486
        %v3488 = vand.u32 %v3481, 4294901760
        %3489 = vmatpush.msra.mxu0 %v3488
        %v3490 = vand.u32 %v3480, 4294901760
        %3491 = vmatpush.msra.mxu0 %v3490
        %v3492 = vand.u32 %v3479, 4294901760
        %3493 = vmatpush.msra.mxu0 %v3492
        %v3494 = vand.u32 %v3478, 4294901760
        %3495 = vmatpush.msra.mxu0 %v3494
        %v3496 = vand.u32 %v3477, 4294901760
        %3497 = vmatpush.msra.mxu0 %v3496
        %v3498 = vand.u32 %v3476, 4294901760
        %3499 = vmatpush.msra.mxu0 %v3498
        %v3500 = vand.u32 %v3475, 4294901760
        %3501 = vmatpush.msra.mxu0 %v3500
        %v3502 = vand.u32 %v3474, 4294901760
        %3503 = vmatpush.msra.mxu0 %v3502
        %v3504 = vand.u32 %v3473, 4294901760
        %3505 = vmatpush.msra.mxu0 %v3504
        %v3506 = vand.u32 %v3472, 4294901760
        %3507 = vmatpush.msra.mxu0 %v3506
        %v3508 = vand.u32 %v3471, 4294901760
        %3509 = vmatpush.msra.mxu0 %v3508
        %v3510 = vand.u32 %v3470, 4294901760
        %3511 = vmatpush.msra.mxu0 %v3510
        %v3512 = vand.u32 %v3469, 4294901760
        %3513 = vmatpush.msra.mxu0 %v3512
        %v3514 = vand.u32 %v3468, 4294901760
        %3515 = vmatpush.msra.mxu0 %v3514
        %v3516 = vand.u32 %v177, 4294901760
        %v3517 = vsub.f32 %v177, %v3516
        %v3518 = vand.u32 %v3517, 4294901760
        %v3519 = vsub.f32 %v3517, %v3518
        %v3520 = vand.u32 %v3519, 4294901760
        %3521 = vmatmul.f32.gmra.mxu0 %v3520
        %v3522 = vpop.f32.mrf.mxu0
        %v3523 = vadd.f32 0.0, %v3522
        %3524 = vdwg.mxu0
        %v3525 = vand.u32 %v3483, 4294901760
        %v3526 = vsub.f32 %v3483, %v3525
        %v3527 = vand.u32 %v3526, 4294901760
        %v3528 = vsub.f32 %v3526, %v3527
        %v3529 = vand.u32 %v3528, 4294901760
        %3530 = vmatpush.msra.mxu0 %v3529
        %v3531 = vand.u32 %v3482, 4294901760
        %v3532 = vsub.f32 %v3482, %v3531
        %v3533 = vand.u32 %v3532, 4294901760
        %v3534 = vsub.f32 %v3532, %v3533
        %v3535 = vand.u32 %v3534, 4294901760
        %3536 = vmatpush.msra.mxu0 %v3535
        %v3537 = vand.u32 %v3481, 4294901760
        %v3538 = vsub.f32 %v3481, %v3537
        %v3539 = vand.u32 %v3538, 4294901760
        %v3540 = vsub.f32 %v3538, %v3539
        %v3541 = vand.u32 %v3540, 4294901760
        %3542 = vmatpush.msra.mxu0 %v3541
        %v3543 = vand.u32 %v3480, 4294901760
        %v3544 = vsub.f32 %v3480, %v3543
        %v3545 = vand.u32 %v3544, 4294901760
        %v3546 = vsub.f32 %v3544, %v3545
        %v3547 = vand.u32 %v3546, 4294901760
        %3548 = vmatpush.msra.mxu0 %v3547
        %v3549 = vand.u32 %v3479, 4294901760
        %v3550 = vsub.f32 %v3479, %v3549
        %v3551 = vand.u32 %v3550, 4294901760
        %v3552 = vsub.f32 %v3550, %v3551
        %v3553 = vand.u32 %v3552, 4294901760
        %3554 = vmatpush.msra.mxu0 %v3553
        %v3555 = vand.u32 %v3478, 4294901760
        %v3556 = vsub.f32 %v3478, %v3555
        %v3557 = vand.u32 %v3556, 4294901760
        %v3558 = vsub.f32 %v3556, %v3557
        %v3559 = vand.u32 %v3558, 4294901760
        %3560 = vmatpush.msra.mxu0 %v3559
        %v3561 = vand.u32 %v3477, 4294901760
        %v3562 = vsub.f32 %v3477, %v3561
        %v3563 = vand.u32 %v3562, 4294901760
        %v3564 = vsub.f32 %v3562, %v3563
        %v3565 = vand.u32 %v3564, 4294901760
        %3566 = vmatpush.msra.mxu0 %v3565
        %v3567 = vand.u32 %v3476, 4294901760
        %v3568 = vsub.f32 %v3476, %v3567
        %v3569 = vand.u32 %v3568, 4294901760
        %v3570 = vsub.f32 %v3568, %v3569
        %v3571 = vand.u32 %v3570, 4294901760
        %3572 = vmatpush.msra.mxu0 %v3571
        %v3573 = vand.u32 %v3475, 4294901760
        %v3574 = vsub.f32 %v3475, %v3573
        %v3575 = vand.u32 %v3574, 4294901760
        %v3576 = vsub.f32 %v3574, %v3575
        %v3577 = vand.u32 %v3576, 4294901760
        %3578 = vmatpush.msra.mxu0 %v3577
        %v3579 = vand.u32 %v3474, 4294901760
        %v3580 = vsub.f32 %v3474, %v3579
        %v3581 = vand.u32 %v3580, 4294901760
        %v3582 = vsub.f32 %v3580, %v3581
        %v3583 = vand.u32 %v3582, 4294901760
        %3584 = vmatpush.msra.mxu0 %v3583
        %v3585 = vand.u32 %v3473, 4294901760
        %v3586 = vsub.f32 %v3473, %v3585
        %v3587 = vand.u32 %v3586, 4294901760
        %v3588 = vsub.f32 %v3586, %v3587
        %v3589 = vand.u32 %v3588, 4294901760
        %3590 = vmatpush.msra.mxu0 %v3589
        %v3591 = vand.u32 %v3472, 4294901760
        %v3592 = vsub.f32 %v3472, %v3591
        %v3593 = vand.u32 %v3592, 4294901760
        %v3594 = vsub.f32 %v3592, %v3593
        %v3595 = vand.u32 %v3594, 4294901760
        %3596 = vmatpush.msra.mxu0 %v3595
        %v3597 = vand.u32 %v3471, 4294901760
        %v3598 = vsub.f32 %v3471, %v3597
        %v3599 = vand.u32 %v3598, 4294901760
        %v3600 = vsub.f32 %v3598, %v3599
        %v3601 = vand.u32 %v3600, 4294901760
        %3602 = vmatpush.msra.mxu0 %v3601
        %v3603 = vand.u32 %v3470, 4294901760
        %v3604 = vsub.f32 %v3470, %v3603
        %v3605 = vand.u32 %v3604, 4294901760
        %v3606 = vsub.f32 %v3604, %v3605
        %v3607 = vand.u32 %v3606, 4294901760
        %3608 = vmatpush.msra.mxu0 %v3607
        %v3609 = vand.u32 %v3469, 4294901760
        %v3610 = vsub.f32 %v3469, %v3609
        %v3611 = vand.u32 %v3610, 4294901760
        %v3612 = vsub.f32 %v3610, %v3611
        %v3613 = vand.u32 %v3612, 4294901760
        %3614 = vmatpush.msra.mxu0 %v3613
        %v3615 = vand.u32 %v3468, 4294901760
        %v3616 = vsub.f32 %v3468, %v3615
        %v3617 = vand.u32 %v3616, 4294901760
        %v3618 = vsub.f32 %v3616, %v3617
        %v3619 = vand.u32 %v3618, 4294901760
        %3620 = vmatpush.msra.mxu0 %v3619
        %v3621 = vand.u32 %v177, 4294901760
        %3622 = vmatmul.f32.gmra.mxu0 %v3621
        %v3623 = vpop.f32.mrf.mxu0
        %v3624 = vadd.f32 %v3523, %v3623
        %3625 = vdwg.mxu0
        %v3626 = vand.u32 %v3483, 4294901760
        %v3627 = vsub.f32 %v3483, %v3626
        %3628 = vmatpush.msra.mxu0 %v3627
        %v3629 = vand.u32 %v3482, 4294901760
        %v3630 = vsub.f32 %v3482, %v3629
        %3631 = vmatpush.msra.mxu0 %v3630
        %v3632 = vand.u32 %v3481, 4294901760
        %v3633 = vsub.f32 %v3481, %v3632
        %3634 = vmatpush.msra.mxu0 %v3633
        %v3635 = vand.u32 %v3480, 4294901760
        %v3636 = vsub.f32 %v3480, %v3635
        %3637 = vmatpush.msra.mxu0 %v3636
        %v3638 = vand.u32 %v3479, 4294901760
        %v3639 = vsub.f32 %v3479, %v3638
        %3640 = vmatpush.msra.mxu0 %v3639
        %v3641 = vand.u32 %v3478, 4294901760
        %v3642 = vsub.f32 %v3478, %v3641
        %3643 = vmatpush.msra.mxu0 %v3642
        %v3644 = vand.u32 %v3477, 4294901760
        %v3645 = vsub.f32 %v3477, %v3644
        %3646 = vmatpush.msra.mxu0 %v3645
        %v3647 = vand.u32 %v3476, 4294901760
        %v3648 = vsub.f32 %v3476, %v3647
        %3649 = vmatpush.msra.mxu0 %v3648
        %v3650 = vand.u32 %v3475, 4294901760
        %v3651 = vsub.f32 %v3475, %v3650
        %3652 = vmatpush.msra.mxu0 %v3651
        %v3653 = vand.u32 %v3474, 4294901760
        %v3654 = vsub.f32 %v3474, %v3653
        %3655 = vmatpush.msra.mxu0 %v3654
        %v3656 = vand.u32 %v3473, 4294901760
        %v3657 = vsub.f32 %v3473, %v3656
        %3658 = vmatpush.msra.mxu0 %v3657
        %v3659 = vand.u32 %v3472, 4294901760
        %v3660 = vsub.f32 %v3472, %v3659
        %3661 = vmatpush.msra.mxu0 %v3660
        %v3662 = vand.u32 %v3471, 4294901760
        %v3663 = vsub.f32 %v3471, %v3662
        %3664 = vmatpush.msra.mxu0 %v3663
        %v3665 = vand.u32 %v3470, 4294901760
        %v3666 = vsub.f32 %v3470, %v3665
        %3667 = vmatpush.msra.mxu0 %v3666
        %v3668 = vand.u32 %v3469, 4294901760
        %v3669 = vsub.f32 %v3469, %v3668
        %3670 = vmatpush.msra.mxu0 %v3669
        %v3671 = vand.u32 %v3468, 4294901760
        %v3672 = vsub.f32 %v3468, %v3671
        %3673 = vmatpush.msra.mxu0 %v3672
        %v3674 = vand.u32 %v177, 4294901760
        %v3675 = vsub.f32 %v177, %v3674
        %3676 = vmatmul.f32.gmra.mxu0 %v3675
        %v3677 = vpop.f32.mrf.mxu0
        %v3678 = vadd.f32 %v3624, %v3677
        %3679 = vdwg.mxu0
        %v3680 = vand.u32 %v3483, 4294901760
        %3681 = vmatpush.msra.mxu0 %v3680
        %v3682 = vand.u32 %v3482, 4294901760
        %3683 = vmatpush.msra.mxu0 %v3682
        %v3684 = vand.u32 %v3481, 4294901760
        %3685 = vmatpush.msra.mxu0 %v3684
        %v3686 = vand.u32 %v3480, 4294901760
        %3687 = vmatpush.msra.mxu0 %v3686
        %v3688 = vand.u32 %v3479, 4294901760
        %3689 = vmatpush.msra.mxu0 %v3688
        %v3690 = vand.u32 %v3478, 4294901760
        %3691 = vmatpush.msra.mxu0 %v3690
        %v3692 = vand.u32 %v3477, 4294901760
        %3693 = vmatpush.msra.mxu0 %v3692
        %v3694 = vand.u32 %v3476, 4294901760
        %3695 = vmatpush.msra.mxu0 %v3694
        %v3696 = vand.u32 %v3475, 4294901760
        %3697 = vmatpush.msra.mxu0 %v3696
        %v3698 = vand.u32 %v3474, 4294901760
        %3699 = vmatpush.msra.mxu0 %v3698
        %v3700 = vand.u32 %v3473, 4294901760
        %3701 = vmatpush.msra.mxu0 %v3700
        %v3702 = vand.u32 %v3472, 4294901760
        %3703 = vmatpush.msra.mxu0 %v3702
        %v3704 = vand.u32 %v3471, 4294901760
        %3705 = vmatpush.msra.mxu0 %v3704
        %v3706 = vand.u32 %v3470, 4294901760
        %3707 = vmatpush.msra.mxu0 %v3706
        %v3708 = vand.u32 %v3469, 4294901760
        %3709 = vmatpush.msra.mxu0 %v3708
        %v3710 = vand.u32 %v3468, 4294901760
        %3711 = vmatpush.msra.mxu0 %v3710
        %v3712 = vand.u32 %v177, 4294901760
        %v3713 = vsub.f32 %v177, %v3712
        %v3714 = vand.u32 %v3713, 4294901760
        %3715 = vmatmul.f32.gmra.mxu0 %v3714
        %v3716 = vpop.f32.mrf.mxu0
        %v3717 = vadd.f32 %v3678, %v3716
        %3718 = vdwg.mxu0
        %v3719 = vand.u32 %v3483, 4294901760
        %v3720 = vsub.f32 %v3483, %v3719
        %v3721 = vand.u32 %v3720, 4294901760
        %3722 = vmatpush.msra.mxu0 %v3721
        %v3723 = vand.u32 %v3482, 4294901760
        %v3724 = vsub.f32 %v3482, %v3723
        %v3725 = vand.u32 %v3724, 4294901760
        %3726 = vmatpush.msra.mxu0 %v3725
        %v3727 = vand.u32 %v3481, 4294901760
        %v3728 = vsub.f32 %v3481, %v3727
        %v3729 = vand.u32 %v3728, 4294901760
        %3730 = vmatpush.msra.mxu0 %v3729
        %v3731 = vand.u32 %v3480, 4294901760
        %v3732 = vsub.f32 %v3480, %v3731
        %v3733 = vand.u32 %v3732, 4294901760
        %3734 = vmatpush.msra.mxu0 %v3733
        %v3735 = vand.u32 %v3479, 4294901760
        %v3736 = vsub.f32 %v3479, %v3735
        %v3737 = vand.u32 %v3736, 4294901760
        %3738 = vmatpush.msra.mxu0 %v3737
        %v3739 = vand.u32 %v3478, 4294901760
        %v3740 = vsub.f32 %v3478, %v3739
        %v3741 = vand.u32 %v3740, 4294901760
        %3742 = vmatpush.msra.mxu0 %v3741
        %v3743 = vand.u32 %v3477, 4294901760
        %v3744 = vsub.f32 %v3477, %v3743
        %v3745 = vand.u32 %v3744, 4294901760
        %3746 = vmatpush.msra.mxu0 %v3745
        %v3747 = vand.u32 %v3476, 4294901760
        %v3748 = vsub.f32 %v3476, %v3747
        %v3749 = vand.u32 %v3748, 4294901760
        %3750 = vmatpush.msra.mxu0 %v3749
        %v3751 = vand.u32 %v3475, 4294901760
        %v3752 = vsub.f32 %v3475, %v3751
        %v3753 = vand.u32 %v3752, 4294901760
        %3754 = vmatpush.msra.mxu0 %v3753
        %v3755 = vand.u32 %v3474, 4294901760
        %v3756 = vsub.f32 %v3474, %v3755
        %v3757 = vand.u32 %v3756, 4294901760
        %3758 = vmatpush.msra.mxu0 %v3757
        %v3759 = vand.u32 %v3473, 4294901760
        %v3760 = vsub.f32 %v3473, %v3759
        %v3761 = vand.u32 %v3760, 4294901760
        %3762 = vmatpush.msra.mxu0 %v3761
        %v3763 = vand.u32 %v3472, 4294901760
        %v3764 = vsub.f32 %v3472, %v3763
        %v3765 = vand.u32 %v3764, 4294901760
        %3766 = vmatpush.msra.mxu0 %v3765
        %v3767 = vand.u32 %v3471, 4294901760
        %v3768 = vsub.f32 %v3471, %v3767
        %v3769 = vand.u32 %v3768, 4294901760
        %3770 = vmatpush.msra.mxu0 %v3769
        %v3771 = vand.u32 %v3470, 4294901760
        %v3772 = vsub.f32 %v3470, %v3771
        %v3773 = vand.u32 %v3772, 4294901760
        %3774 = vmatpush.msra.mxu0 %v3773
        %v3775 = vand.u32 %v3469, 4294901760
        %v3776 = vsub.f32 %v3469, %v3775
        %v3777 = vand.u32 %v3776, 4294901760
        %3778 = vmatpush.msra.mxu0 %v3777
        %v3779 = vand.u32 %v3468, 4294901760
        %v3780 = vsub.f32 %v3468, %v3779
        %v3781 = vand.u32 %v3780, 4294901760
        %3782 = vmatpush.msra.mxu0 %v3781
        %v3783 = vand.u32 %v177, 4294901760
        %3784 = vmatmul.f32.gmra.mxu0 %v3783
        %v3785 = vpop.f32.mrf.mxu0
        %v3786 = vadd.f32 %v3717, %v3785
        %3787 = vdwg.mxu0
        %v3788 = vand.u32 %v3483, 4294901760
        %3789 = vmatpush.msra.mxu0 %v3788
        %v3790 = vand.u32 %v3482, 4294901760
        %3791 = vmatpush.msra.mxu0 %v3790
        %v3792 = vand.u32 %v3481, 4294901760
        %3793 = vmatpush.msra.mxu0 %v3792
        %v3794 = vand.u32 %v3480, 4294901760
        %3795 = vmatpush.msra.mxu0 %v3794
        %v3796 = vand.u32 %v3479, 4294901760
        %3797 = vmatpush.msra.mxu0 %v3796
        %v3798 = vand.u32 %v3478, 4294901760
        %3799 = vmatpush.msra.mxu0 %v3798
        %v3800 = vand.u32 %v3477, 4294901760
        %3801 = vmatpush.msra.mxu0 %v3800
        %v3802 = vand.u32 %v3476, 4294901760
        %3803 = vmatpush.msra.mxu0 %v3802
        %v3804 = vand.u32 %v3475, 4294901760
        %3805 = vmatpush.msra.mxu0 %v3804
        %v3806 = vand.u32 %v3474, 4294901760
        %3807 = vmatpush.msra.mxu0 %v3806
        %v3808 = vand.u32 %v3473, 4294901760
        %3809 = vmatpush.msra.mxu0 %v3808
        %v3810 = vand.u32 %v3472, 4294901760
        %3811 = vmatpush.msra.mxu0 %v3810
        %v3812 = vand.u32 %v3471, 4294901760
        %3813 = vmatpush.msra.mxu0 %v3812
        %v3814 = vand.u32 %v3470, 4294901760
        %3815 = vmatpush.msra.mxu0 %v3814
        %v3816 = vand.u32 %v3469, 4294901760
        %3817 = vmatpush.msra.mxu0 %v3816
        %v3818 = vand.u32 %v3468, 4294901760
        %3819 = vmatpush.msra.mxu0 %v3818
        %v3820 = vand.u32 %v177, 4294901760
        %3821 = vmatmul.f32.gmra.mxu0 %v3820
        %v3822 = vpop.f32.mrf.mxu0
        %v3823 = vadd.f32 %v3786, %v3822
        %3824 = vdwg.mxu0
        %v3825 = vand.u32 %v3442, 4294901760
        %3826 = vmatpush.msra.mxu0 %v3825
        %v3827 = vand.u32 %v3441, 4294901760
        %3828 = vmatpush.msra.mxu0 %v3827
        %v3829 = vand.u32 %v3440, 4294901760
        %3830 = vmatpush.msra.mxu0 %v3829
        %v3831 = vand.u32 %v3439, 4294901760
        %3832 = vmatpush.msra.mxu0 %v3831
        %v3833 = vand.u32 %v3438, 4294901760
        %3834 = vmatpush.msra.mxu0 %v3833
        %v3835 = vand.u32 %v3437, 4294901760
        %3836 = vmatpush.msra.mxu0 %v3835
        %v3837 = vand.u32 %v3436, 4294901760
        %3838 = vmatpush.msra.mxu0 %v3837
        %v3839 = vand.u32 %v3435, 4294901760
        %3840 = vmatpush.msra.mxu0 %v3839
        %v3841 = vand.u32 %v3434, 4294901760
        %3842 = vmatpush.msra.mxu0 %v3841
        %v3843 = vand.u32 %v3433, 4294901760
        %3844 = vmatpush.msra.mxu0 %v3843
        %v3845 = vand.u32 %v3432, 4294901760
        %3846 = vmatpush.msra.mxu0 %v3845
        %v3847 = vand.u32 %v3431, 4294901760
        %3848 = vmatpush.msra.mxu0 %v3847
        %v3849 = vand.u32 %v3430, 4294901760
        %3850 = vmatpush.msra.mxu0 %v3849
        %v3851 = vand.u32 %v3429, 4294901760
        %3852 = vmatpush.msra.mxu0 %v3851
        %v3853 = vand.u32 %v3428, 4294901760
        %3854 = vmatpush.msra.mxu0 %v3853
        %v3855 = vand.u32 %v3427, 4294901760
        %3856 = vmatpush.msra.mxu0 %v3855
        %v3857 = vand.u32 %v177, 4294901760
        %v3858 = vsub.f32 %v177, %v3857
        %v3859 = vand.u32 %v3858, 4294901760
        %v3860 = vsub.f32 %v3858, %v3859
        %v3861 = vand.u32 %v3860, 4294901760
        %3862 = vmatmul.f32.gmra.mxu0 %v3861
        %v3863 = vpop.f32.mrf.mxu0
        %v3864 = vadd.f32 %v3823, %v3863
        %3865 = vdwg.mxu0
        %v3866 = vand.u32 %v3442, 4294901760
        %v3867 = vsub.f32 %v3442, %v3866
        %v3868 = vand.u32 %v3867, 4294901760
        %v3869 = vsub.f32 %v3867, %v3868
        %v3870 = vand.u32 %v3869, 4294901760
        %3871 = vmatpush.msra.mxu0 %v3870
        %v3872 = vand.u32 %v3441, 4294901760
        %v3873 = vsub.f32 %v3441, %v3872
        %v3874 = vand.u32 %v3873, 4294901760
        %v3875 = vsub.f32 %v3873, %v3874
        %v3876 = vand.u32 %v3875, 4294901760
        %3877 = vmatpush.msra.mxu0 %v3876
        %v3878 = vand.u32 %v3440, 4294901760
        %v3879 = vsub.f32 %v3440, %v3878
        %v3880 = vand.u32 %v3879, 4294901760
        %v3881 = vsub.f32 %v3879, %v3880
        %v3882 = vand.u32 %v3881, 4294901760
        %3883 = vmatpush.msra.mxu0 %v3882
        %v3884 = vand.u32 %v3439, 4294901760
        %v3885 = vsub.f32 %v3439, %v3884
        %v3886 = vand.u32 %v3885, 4294901760
        %v3887 = vsub.f32 %v3885, %v3886
        %v3888 = vand.u32 %v3887, 4294901760
        %3889 = vmatpush.msra.mxu0 %v3888
        %v3890 = vand.u32 %v3438, 4294901760
        %v3891 = vsub.f32 %v3438, %v3890
        %v3892 = vand.u32 %v3891, 4294901760
        %v3893 = vsub.f32 %v3891, %v3892
        %v3894 = vand.u32 %v3893, 4294901760
        %3895 = vmatpush.msra.mxu0 %v3894
        %v3896 = vand.u32 %v3437, 4294901760
        %v3897 = vsub.f32 %v3437, %v3896
        %v3898 = vand.u32 %v3897, 4294901760
        %v3899 = vsub.f32 %v3897, %v3898
        %v3900 = vand.u32 %v3899, 4294901760
        %3901 = vmatpush.msra.mxu0 %v3900
        %v3902 = vand.u32 %v3436, 4294901760
        %v3903 = vsub.f32 %v3436, %v3902
        %v3904 = vand.u32 %v3903, 4294901760
        %v3905 = vsub.f32 %v3903, %v3904
        %v3906 = vand.u32 %v3905, 4294901760
        %3907 = vmatpush.msra.mxu0 %v3906
        %v3908 = vand.u32 %v3435, 4294901760
        %v3909 = vsub.f32 %v3435, %v3908
        %v3910 = vand.u32 %v3909, 4294901760
        %v3911 = vsub.f32 %v3909, %v3910
        %v3912 = vand.u32 %v3911, 4294901760
        %3913 = vmatpush.msra.mxu0 %v3912
        %v3914 = vand.u32 %v3434, 4294901760
        %v3915 = vsub.f32 %v3434, %v3914
        %v3916 = vand.u32 %v3915, 4294901760
        %v3917 = vsub.f32 %v3915, %v3916
        %v3918 = vand.u32 %v3917, 4294901760
        %3919 = vmatpush.msra.mxu0 %v3918
        %v3920 = vand.u32 %v3433, 4294901760
        %v3921 = vsub.f32 %v3433, %v3920
        %v3922 = vand.u32 %v3921, 4294901760
        %v3923 = vsub.f32 %v3921, %v3922
        %v3924 = vand.u32 %v3923, 4294901760
        %3925 = vmatpush.msra.mxu0 %v3924
        %v3926 = vand.u32 %v3432, 4294901760
        %v3927 = vsub.f32 %v3432, %v3926
        %v3928 = vand.u32 %v3927, 4294901760
        %v3929 = vsub.f32 %v3927, %v3928
        %v3930 = vand.u32 %v3929, 4294901760
        %3931 = vmatpush.msra.mxu0 %v3930
        %v3932 = vand.u32 %v3431, 4294901760
        %v3933 = vsub.f32 %v3431, %v3932
        %v3934 = vand.u32 %v3933, 4294901760
        %v3935 = vsub.f32 %v3933, %v3934
        %v3936 = vand.u32 %v3935, 4294901760
        %3937 = vmatpush.msra.mxu0 %v3936
        %v3938 = vand.u32 %v3430, 4294901760
        %v3939 = vsub.f32 %v3430, %v3938
        %v3940 = vand.u32 %v3939, 4294901760
        %v3941 = vsub.f32 %v3939, %v3940
        %v3942 = vand.u32 %v3941, 4294901760
        %3943 = vmatpush.msra.mxu0 %v3942
        %v3944 = vand.u32 %v3429, 4294901760
        %v3945 = vsub.f32 %v3429, %v3944
        %v3946 = vand.u32 %v3945, 4294901760
        %v3947 = vsub.f32 %v3945, %v3946
        %v3948 = vand.u32 %v3947, 4294901760
        %3949 = vmatpush.msra.mxu0 %v3948
        %v3950 = vand.u32 %v3428, 4294901760
        %v3951 = vsub.f32 %v3428, %v3950
        %v3952 = vand.u32 %v3951, 4294901760
        %v3953 = vsub.f32 %v3951, %v3952
        %v3954 = vand.u32 %v3953, 4294901760
        %3955 = vmatpush.msra.mxu0 %v3954
        %v3956 = vand.u32 %v3427, 4294901760
        %v3957 = vsub.f32 %v3427, %v3956
        %v3958 = vand.u32 %v3957, 4294901760
        %v3959 = vsub.f32 %v3957, %v3958
        %v3960 = vand.u32 %v3959, 4294901760
        %3961 = vmatpush.msra.mxu0 %v3960
        %v3962 = vand.u32 %v177, 4294901760
        %3963 = vmatmul.f32.gmra.mxu0 %v3962
        %v3964 = vpop.f32.mrf.mxu0
        %v3965 = vadd.f32 %v3864, %v3964
        %3966 = vdwg.mxu0
        %v3967 = vand.u32 %v3442, 4294901760
        %v3968 = vsub.f32 %v3442, %v3967
        %3969 = vmatpush.msra.mxu0 %v3968
        %v3970 = vand.u32 %v3441, 4294901760
        %v3971 = vsub.f32 %v3441, %v3970
        %3972 = vmatpush.msra.mxu0 %v3971
        %v3973 = vand.u32 %v3440, 4294901760
        %v3974 = vsub.f32 %v3440, %v3973
        %3975 = vmatpush.msra.mxu0 %v3974
        %v3976 = vand.u32 %v3439, 4294901760
        %v3977 = vsub.f32 %v3439, %v3976
        %3978 = vmatpush.msra.mxu0 %v3977
        %v3979 = vand.u32 %v3438, 4294901760
        %v3980 = vsub.f32 %v3438, %v3979
        %3981 = vmatpush.msra.mxu0 %v3980
        %v3982 = vand.u32 %v3437, 4294901760
        %v3983 = vsub.f32 %v3437, %v3982
        %3984 = vmatpush.msra.mxu0 %v3983
        %v3985 = vand.u32 %v3436, 4294901760
        %v3986 = vsub.f32 %v3436, %v3985
        %3987 = vmatpush.msra.mxu0 %v3986
        %v3988 = vand.u32 %v3435, 4294901760
        %v3989 = vsub.f32 %v3435, %v3988
        %3990 = vmatpush.msra.mxu0 %v3989
        %v3991 = vand.u32 %v3434, 4294901760
        %v3992 = vsub.f32 %v3434, %v3991
        %3993 = vmatpush.msra.mxu0 %v3992
        %v3994 = vand.u32 %v3433, 4294901760
        %v3995 = vsub.f32 %v3433, %v3994
        %3996 = vmatpush.msra.mxu0 %v3995
        %v3997 = vand.u32 %v3432, 4294901760
        %v3998 = vsub.f32 %v3432, %v3997
        %3999 = vmatpush.msra.mxu0 %v3998
        %v4000 = vand.u32 %v3431, 4294901760
        %v4001 = vsub.f32 %v3431, %v4000
        %4002 = vmatpush.msra.mxu0 %v4001
        %v4003 = vand.u32 %v3430, 4294901760
        %v4004 = vsub.f32 %v3430, %v4003
        %4005 = vmatpush.msra.mxu0 %v4004
        %v4006 = vand.u32 %v3429, 4294901760
        %v4007 = vsub.f32 %v3429, %v4006
        %4008 = vmatpush.msra.mxu0 %v4007
        %v4009 = vand.u32 %v3428, 4294901760
        %v4010 = vsub.f32 %v3428, %v4009
        %4011 = vmatpush.msra.mxu0 %v4010
        %v4012 = vand.u32 %v3427, 4294901760
        %v4013 = vsub.f32 %v3427, %v4012
        %4014 = vmatpush.msra.mxu0 %v4013
        %v4015 = vand.u32 %v177, 4294901760
        %v4016 = vsub.f32 %v177, %v4015
        %4017 = vmatmul.f32.gmra.mxu0 %v4016
        %v4018 = vpop.f32.mrf.mxu0
        %v4019 = vadd.f32 %v3965, %v4018
        %4020 = vdwg.mxu0
        %v4021 = vand.u32 %v3442, 4294901760
        %4022 = vmatpush.msra.mxu0 %v4021
        %v4023 = vand.u32 %v3441, 4294901760
        %4024 = vmatpush.msra.mxu0 %v4023
        %v4025 = vand.u32 %v3440, 4294901760
        %4026 = vmatpush.msra.mxu0 %v4025
        %v4027 = vand.u32 %v3439, 4294901760
        %4028 = vmatpush.msra.mxu0 %v4027
        %v4029 = vand.u32 %v3438, 4294901760
        %4030 = vmatpush.msra.mxu0 %v4029
        %v4031 = vand.u32 %v3437, 4294901760
        %4032 = vmatpush.msra.mxu0 %v4031
        %v4033 = vand.u32 %v3436, 4294901760
        %4034 = vmatpush.msra.mxu0 %v4033
        %v4035 = vand.u32 %v3435, 4294901760
        %4036 = vmatpush.msra.mxu0 %v4035
        %v4037 = vand.u32 %v3434, 4294901760
        %4038 = vmatpush.msra.mxu0 %v4037
        %v4039 = vand.u32 %v3433, 4294901760
        %4040 = vmatpush.msra.mxu0 %v4039
        %v4041 = vand.u32 %v3432, 4294901760
        %4042 = vmatpush.msra.mxu0 %v4041
        %v4043 = vand.u32 %v3431, 4294901760
        %4044 = vmatpush.msra.mxu0 %v4043
        %v4045 = vand.u32 %v3430, 4294901760
        %4046 = vmatpush.msra.mxu0 %v4045
        %v4047 = vand.u32 %v3429, 4294901760
        %4048 = vmatpush.msra.mxu0 %v4047
        %v4049 = vand.u32 %v3428, 4294901760
        %4050 = vmatpush.msra.mxu0 %v4049
        %v4051 = vand.u32 %v3427, 4294901760
        %4052 = vmatpush.msra.mxu0 %v4051
        %v4053 = vand.u32 %v177, 4294901760
        %v4054 = vsub.f32 %v177, %v4053
        %v4055 = vand.u32 %v4054, 4294901760
        %4056 = vmatmul.f32.gmra.mxu0 %v4055
        %v4057 = vpop.f32.mrf.mxu0
        %v4058 = vadd.f32 %v4019, %v4057
        %4059 = vdwg.mxu0
        %v4060 = vand.u32 %v3442, 4294901760
        %v4061 = vsub.f32 %v3442, %v4060
        %v4062 = vand.u32 %v4061, 4294901760
        %4063 = vmatpush.msra.mxu0 %v4062
        %v4064 = vand.u32 %v3441, 4294901760
        %v4065 = vsub.f32 %v3441, %v4064
        %v4066 = vand.u32 %v4065, 4294901760
        %4067 = vmatpush.msra.mxu0 %v4066
        %v4068 = vand.u32 %v3440, 4294901760
        %v4069 = vsub.f32 %v3440, %v4068
        %v4070 = vand.u32 %v4069, 4294901760
        %4071 = vmatpush.msra.mxu0 %v4070
        %v4072 = vand.u32 %v3439, 4294901760
        %v4073 = vsub.f32 %v3439, %v4072
        %v4074 = vand.u32 %v4073, 4294901760
        %4075 = vmatpush.msra.mxu0 %v4074
        %v4076 = vand.u32 %v3438, 4294901760
        %v4077 = vsub.f32 %v3438, %v4076
        %v4078 = vand.u32 %v4077, 4294901760
        %4079 = vmatpush.msra.mxu0 %v4078
        %v4080 = vand.u32 %v3437, 4294901760
        %v4081 = vsub.f32 %v3437, %v4080
        %v4082 = vand.u32 %v4081, 4294901760
        %4083 = vmatpush.msra.mxu0 %v4082
        %v4084 = vand.u32 %v3436, 4294901760
        %v4085 = vsub.f32 %v3436, %v4084
        %v4086 = vand.u32 %v4085, 4294901760
        %4087 = vmatpush.msra.mxu0 %v4086
        %v4088 = vand.u32 %v3435, 4294901760
        %v4089 = vsub.f32 %v3435, %v4088
        %v4090 = vand.u32 %v4089, 4294901760
        %4091 = vmatpush.msra.mxu0 %v4090
        %v4092 = vand.u32 %v3434, 4294901760
        %v4093 = vsub.f32 %v3434, %v4092
        %v4094 = vand.u32 %v4093, 4294901760
        %4095 = vmatpush.msra.mxu0 %v4094
        %v4096 = vand.u32 %v3433, 4294901760
        %v4097 = vsub.f32 %v3433, %v4096
        %v4098 = vand.u32 %v4097, 4294901760
        %4099 = vmatpush.msra.mxu0 %v4098
        %v4100 = vand.u32 %v3432, 4294901760
        %v4101 = vsub.f32 %v3432, %v4100
        %v4102 = vand.u32 %v4101, 4294901760
        %4103 = vmatpush.msra.mxu0 %v4102
        %v4104 = vand.u32 %v3431, 4294901760
        %v4105 = vsub.f32 %v3431, %v4104
        %v4106 = vand.u32 %v4105, 4294901760
        %4107 = vmatpush.msra.mxu0 %v4106
        %v4108 = vand.u32 %v3430, 4294901760
        %v4109 = vsub.f32 %v3430, %v4108
        %v4110 = vand.u32 %v4109, 4294901760
        %4111 = vmatpush.msra.mxu0 %v4110
        %v4112 = vand.u32 %v3429, 4294901760
        %v4113 = vsub.f32 %v3429, %v4112
        %v4114 = vand.u32 %v4113, 4294901760
        %4115 = vmatpush.msra.mxu0 %v4114
        %v4116 = vand.u32 %v3428, 4294901760
        %v4117 = vsub.f32 %v3428, %v4116
        %v4118 = vand.u32 %v4117, 4294901760
        %4119 = vmatpush.msra.mxu0 %v4118
        %v4120 = vand.u32 %v3427, 4294901760
        %v4121 = vsub.f32 %v3427, %v4120
        %v4122 = vand.u32 %v4121, 4294901760
        %4123 = vmatpush.msra.mxu0 %v4122
        %v4124 = vand.u32 %v177, 4294901760
        %4125 = vmatmul.f32.gmra.mxu0 %v4124
        %v4126 = vpop.f32.mrf.mxu0
        %v4127 = vadd.f32 %v4058, %v4126
        %4128 = vdwg.mxu0
        %v4129 = vand.u32 %v3442, 4294901760
        %4130 = vmatpush.msra.mxu0 %v4129
        %v4131 = vand.u32 %v3441, 4294901760
        %4132 = vmatpush.msra.mxu0 %v4131
        %v4133 = vand.u32 %v3440, 4294901760
        %4134 = vmatpush.msra.mxu0 %v4133
        %v4135 = vand.u32 %v3439, 4294901760
        %4136 = vmatpush.msra.mxu0 %v4135
        %v4137 = vand.u32 %v3438, 4294901760
        %4138 = vmatpush.msra.mxu0 %v4137
        %v4139 = vand.u32 %v3437, 4294901760
        %4140 = vmatpush.msra.mxu0 %v4139
        %v4141 = vand.u32 %v3436, 4294901760
        %4142 = vmatpush.msra.mxu0 %v4141
        %v4143 = vand.u32 %v3435, 4294901760
        %4144 = vmatpush.msra.mxu0 %v4143
        %v4145 = vand.u32 %v3434, 4294901760
        %4146 = vmatpush.msra.mxu0 %v4145
        %v4147 = vand.u32 %v3433, 4294901760
        %4148 = vmatpush.msra.mxu0 %v4147
        %v4149 = vand.u32 %v3432, 4294901760
        %4150 = vmatpush.msra.mxu0 %v4149
        %v4151 = vand.u32 %v3431, 4294901760
        %4152 = vmatpush.msra.mxu0 %v4151
        %v4153 = vand.u32 %v3430, 4294901760
        %4154 = vmatpush.msra.mxu0 %v4153
        %v4155 = vand.u32 %v3429, 4294901760
        %4156 = vmatpush.msra.mxu0 %v4155
        %v4157 = vand.u32 %v3428, 4294901760
        %4158 = vmatpush.msra.mxu0 %v4157
        %v4159 = vand.u32 %v3427, 4294901760
        %4160 = vmatpush.msra.mxu0 %v4159
        %v4161 = vand.u32 %v177, 4294901760
        %4162 = vmatmul.f32.gmra.mxu0 %v4161
        %v4163 = vpop.f32.mrf.mxu0
        %v4164 = vadd.f32 %v4127, %v4163
        %4165 = vdwg.mxu0
        %v4166 = vxor.u32 %v3399, %v3402
        %v4167 = vand.u32 %v4166, 63
        %v4168 = vmul.f32 %v3397, %v3406
        %v4169 = vperm.slane %v4167, 0
        %vm4170 = vcmp.eq.s32.totalorder %v4169, %v179
        %vm4171 = vcmp.eq.s32.totalorder %v4169, %v180
        %vm4172 = vcmp.eq.s32.totalorder %v4169, %v181
        %vm4173 = vcmp.eq.s32.totalorder %v4169, %v182
        %vm4174 = vcmp.eq.s32.totalorder %v4169, %v183
        %vm4175 = vcmp.eq.s32.totalorder %v4169, %v184
        %vm4176 = vcmp.eq.s32.totalorder %v4169, %v185
        %vm4177 = vcmp.eq.s32.totalorder %v4169, %v186
        %vm4178 = vcmp.eq.s32.totalorder %v4169, %v187
        %vm4179 = vcmp.eq.s32.totalorder %v4169, %v188
        %vm4180 = vcmp.eq.s32.totalorder %v4169, %v189
        %vm4181 = vcmp.eq.s32.totalorder %v4169, %v190
        %vm4182 = vcmp.eq.s32.totalorder %v4169, %v191
        %vm4183 = vcmp.eq.s32.totalorder %v4169, %v192
        %vm4184 = vcmp.eq.s32.totalorder %v4169, %v193
        %vm4185 = vcmp.eq.s32.totalorder %v4169, %v194
        %v4186 = vperm.slane %v4168, 0
        %v4187 = vsel %vm4170, %v4186, 0.0
        %v4188 = vsel %vm4171, %v4186, 0.0
        %v4189 = vsel %vm4172, %v4186, 0.0
        %v4190 = vsel %vm4173, %v4186, 0.0
        %v4191 = vsel %vm4174, %v4186, 0.0
        %v4192 = vsel %vm4175, %v4186, 0.0
        %v4193 = vsel %vm4176, %v4186, 0.0
        %v4194 = vsel %vm4177, %v4186, 0.0
        %v4195 = vsel %vm4178, %v4186, 0.0
        %v4196 = vsel %vm4179, %v4186, 0.0
        %v4197 = vsel %vm4180, %v4186, 0.0
        %v4198 = vsel %vm4181, %v4186, 0.0
        %v4199 = vsel %vm4182, %v4186, 0.0
        %v4200 = vsel %vm4183, %v4186, 0.0
        %v4201 = vsel %vm4184, %v4186, 0.0
        %v4202 = vsel %vm4185, %v4186, 0.0
        %v4203 = vand.u32 %v4202, 4294901760
        %4204 = vmatpush.msra.mxu0 %v4203
        %v4205 = vand.u32 %v4201, 4294901760
        %4206 = vmatpush.msra.mxu0 %v4205
        %v4207 = vand.u32 %v4200, 4294901760
        %4208 = vmatpush.msra.mxu0 %v4207
        %v4209 = vand.u32 %v4199, 4294901760
        %4210 = vmatpush.msra.mxu0 %v4209
        %v4211 = vand.u32 %v4198, 4294901760
        %4212 = vmatpush.msra.mxu0 %v4211
        %v4213 = vand.u32 %v4197, 4294901760
        %4214 = vmatpush.msra.mxu0 %v4213
        %v4215 = vand.u32 %v4196, 4294901760
        %4216 = vmatpush.msra.mxu0 %v4215
        %v4217 = vand.u32 %v4195, 4294901760
        %4218 = vmatpush.msra.mxu0 %v4217
        %v4219 = vand.u32 %v4194, 4294901760
        %4220 = vmatpush.msra.mxu0 %v4219
        %v4221 = vand.u32 %v4193, 4294901760
        %4222 = vmatpush.msra.mxu0 %v4221
        %v4223 = vand.u32 %v4192, 4294901760
        %4224 = vmatpush.msra.mxu0 %v4223
        %v4225 = vand.u32 %v4191, 4294901760
        %4226 = vmatpush.msra.mxu0 %v4225
        %v4227 = vand.u32 %v4190, 4294901760
        %4228 = vmatpush.msra.mxu0 %v4227
        %v4229 = vand.u32 %v4189, 4294901760
        %4230 = vmatpush.msra.mxu0 %v4229
        %v4231 = vand.u32 %v4188, 4294901760
        %4232 = vmatpush.msra.mxu0 %v4231
        %v4233 = vand.u32 %v4187, 4294901760
        %4234 = vmatpush.msra.mxu0 %v4233
        %v4235 = vand.u32 %v177, 4294901760
        %v4236 = vsub.f32 %v177, %v4235
        %v4237 = vand.u32 %v4236, 4294901760
        %v4238 = vsub.f32 %v4236, %v4237
        %v4239 = vand.u32 %v4238, 4294901760
        %4240 = vmatmul.f32.gmra.mxu0 %v4239
        %v4241 = vpop.f32.mrf.mxu0
        %v4242 = vadd.f32 0.0, %v4241
        %4243 = vdwg.mxu0
        %v4244 = vand.u32 %v4202, 4294901760
        %v4245 = vsub.f32 %v4202, %v4244
        %v4246 = vand.u32 %v4245, 4294901760
        %v4247 = vsub.f32 %v4245, %v4246
        %v4248 = vand.u32 %v4247, 4294901760
        %4249 = vmatpush.msra.mxu0 %v4248
        %v4250 = vand.u32 %v4201, 4294901760
        %v4251 = vsub.f32 %v4201, %v4250
        %v4252 = vand.u32 %v4251, 4294901760
        %v4253 = vsub.f32 %v4251, %v4252
        %v4254 = vand.u32 %v4253, 4294901760
        %4255 = vmatpush.msra.mxu0 %v4254
        %v4256 = vand.u32 %v4200, 4294901760
        %v4257 = vsub.f32 %v4200, %v4256
        %v4258 = vand.u32 %v4257, 4294901760
        %v4259 = vsub.f32 %v4257, %v4258
        %v4260 = vand.u32 %v4259, 4294901760
        %4261 = vmatpush.msra.mxu0 %v4260
        %v4262 = vand.u32 %v4199, 4294901760
        %v4263 = vsub.f32 %v4199, %v4262
        %v4264 = vand.u32 %v4263, 4294901760
        %v4265 = vsub.f32 %v4263, %v4264
        %v4266 = vand.u32 %v4265, 4294901760
        %4267 = vmatpush.msra.mxu0 %v4266
        %v4268 = vand.u32 %v4198, 4294901760
        %v4269 = vsub.f32 %v4198, %v4268
        %v4270 = vand.u32 %v4269, 4294901760
        %v4271 = vsub.f32 %v4269, %v4270
        %v4272 = vand.u32 %v4271, 4294901760
        %4273 = vmatpush.msra.mxu0 %v4272
        %v4274 = vand.u32 %v4197, 4294901760
        %v4275 = vsub.f32 %v4197, %v4274
        %v4276 = vand.u32 %v4275, 4294901760
        %v4277 = vsub.f32 %v4275, %v4276
        %v4278 = vand.u32 %v4277, 4294901760
        %4279 = vmatpush.msra.mxu0 %v4278
        %v4280 = vand.u32 %v4196, 4294901760
        %v4281 = vsub.f32 %v4196, %v4280
        %v4282 = vand.u32 %v4281, 4294901760
        %v4283 = vsub.f32 %v4281, %v4282
        %v4284 = vand.u32 %v4283, 4294901760
        %4285 = vmatpush.msra.mxu0 %v4284
        %v4286 = vand.u32 %v4195, 4294901760
        %v4287 = vsub.f32 %v4195, %v4286
        %v4288 = vand.u32 %v4287, 4294901760
        %v4289 = vsub.f32 %v4287, %v4288
        %v4290 = vand.u32 %v4289, 4294901760
        %4291 = vmatpush.msra.mxu0 %v4290
        %v4292 = vand.u32 %v4194, 4294901760
        %v4293 = vsub.f32 %v4194, %v4292
        %v4294 = vand.u32 %v4293, 4294901760
        %v4295 = vsub.f32 %v4293, %v4294
        %v4296 = vand.u32 %v4295, 4294901760
        %4297 = vmatpush.msra.mxu0 %v4296
        %v4298 = vand.u32 %v4193, 4294901760
        %v4299 = vsub.f32 %v4193, %v4298
        %v4300 = vand.u32 %v4299, 4294901760
        %v4301 = vsub.f32 %v4299, %v4300
        %v4302 = vand.u32 %v4301, 4294901760
        %4303 = vmatpush.msra.mxu0 %v4302
        %v4304 = vand.u32 %v4192, 4294901760
        %v4305 = vsub.f32 %v4192, %v4304
        %v4306 = vand.u32 %v4305, 4294901760
        %v4307 = vsub.f32 %v4305, %v4306
        %v4308 = vand.u32 %v4307, 4294901760
        %4309 = vmatpush.msra.mxu0 %v4308
        %v4310 = vand.u32 %v4191, 4294901760
        %v4311 = vsub.f32 %v4191, %v4310
        %v4312 = vand.u32 %v4311, 4294901760
        %v4313 = vsub.f32 %v4311, %v4312
        %v4314 = vand.u32 %v4313, 4294901760
        %4315 = vmatpush.msra.mxu0 %v4314
        %v4316 = vand.u32 %v4190, 4294901760
        %v4317 = vsub.f32 %v4190, %v4316
        %v4318 = vand.u32 %v4317, 4294901760
        %v4319 = vsub.f32 %v4317, %v4318
        %v4320 = vand.u32 %v4319, 4294901760
        %4321 = vmatpush.msra.mxu0 %v4320
        %v4322 = vand.u32 %v4189, 4294901760
        %v4323 = vsub.f32 %v4189, %v4322
        %v4324 = vand.u32 %v4323, 4294901760
        %v4325 = vsub.f32 %v4323, %v4324
        %v4326 = vand.u32 %v4325, 4294901760
        %4327 = vmatpush.msra.mxu0 %v4326
        %v4328 = vand.u32 %v4188, 4294901760
        %v4329 = vsub.f32 %v4188, %v4328
        %v4330 = vand.u32 %v4329, 4294901760
        %v4331 = vsub.f32 %v4329, %v4330
        %v4332 = vand.u32 %v4331, 4294901760
        %4333 = vmatpush.msra.mxu0 %v4332
        %v4334 = vand.u32 %v4187, 4294901760
        %v4335 = vsub.f32 %v4187, %v4334
        %v4336 = vand.u32 %v4335, 4294901760
        %v4337 = vsub.f32 %v4335, %v4336
        %v4338 = vand.u32 %v4337, 4294901760
        %4339 = vmatpush.msra.mxu0 %v4338
        %v4340 = vand.u32 %v177, 4294901760
        %4341 = vmatmul.f32.gmra.mxu0 %v4340
        %v4342 = vpop.f32.mrf.mxu0
        %v4343 = vadd.f32 %v4242, %v4342
        %4344 = vdwg.mxu0
        %v4345 = vand.u32 %v4202, 4294901760
        %v4346 = vsub.f32 %v4202, %v4345
        %4347 = vmatpush.msra.mxu0 %v4346
        %v4348 = vand.u32 %v4201, 4294901760
        %v4349 = vsub.f32 %v4201, %v4348
        %4350 = vmatpush.msra.mxu0 %v4349
        %v4351 = vand.u32 %v4200, 4294901760
        %v4352 = vsub.f32 %v4200, %v4351
        %4353 = vmatpush.msra.mxu0 %v4352
        %v4354 = vand.u32 %v4199, 4294901760
        %v4355 = vsub.f32 %v4199, %v4354
        %4356 = vmatpush.msra.mxu0 %v4355
        %v4357 = vand.u32 %v4198, 4294901760
        %v4358 = vsub.f32 %v4198, %v4357
        %4359 = vmatpush.msra.mxu0 %v4358
        %v4360 = vand.u32 %v4197, 4294901760
        %v4361 = vsub.f32 %v4197, %v4360
        %4362 = vmatpush.msra.mxu0 %v4361
        %v4363 = vand.u32 %v4196, 4294901760
        %v4364 = vsub.f32 %v4196, %v4363
        %4365 = vmatpush.msra.mxu0 %v4364
        %v4366 = vand.u32 %v4195, 4294901760
        %v4367 = vsub.f32 %v4195, %v4366
        %4368 = vmatpush.msra.mxu0 %v4367
        %v4369 = vand.u32 %v4194, 4294901760
        %v4370 = vsub.f32 %v4194, %v4369
        %4371 = vmatpush.msra.mxu0 %v4370
        %v4372 = vand.u32 %v4193, 4294901760
        %v4373 = vsub.f32 %v4193, %v4372
        %4374 = vmatpush.msra.mxu0 %v4373
        %v4375 = vand.u32 %v4192, 4294901760
        %v4376 = vsub.f32 %v4192, %v4375
        %4377 = vmatpush.msra.mxu0 %v4376
        %v4378 = vand.u32 %v4191, 4294901760
        %v4379 = vsub.f32 %v4191, %v4378
        %4380 = vmatpush.msra.mxu0 %v4379
        %v4381 = vand.u32 %v4190, 4294901760
        %v4382 = vsub.f32 %v4190, %v4381
        %4383 = vmatpush.msra.mxu0 %v4382
        %v4384 = vand.u32 %v4189, 4294901760
        %v4385 = vsub.f32 %v4189, %v4384
        %4386 = vmatpush.msra.mxu0 %v4385
        %v4387 = vand.u32 %v4188, 4294901760
        %v4388 = vsub.f32 %v4188, %v4387
        %4389 = vmatpush.msra.mxu0 %v4388
        %v4390 = vand.u32 %v4187, 4294901760
        %v4391 = vsub.f32 %v4187, %v4390
        %4392 = vmatpush.msra.mxu0 %v4391
        %v4393 = vand.u32 %v177, 4294901760
        %v4394 = vsub.f32 %v177, %v4393
        %4395 = vmatmul.f32.gmra.mxu0 %v4394
        %v4396 = vpop.f32.mrf.mxu0
        %v4397 = vadd.f32 %v4343, %v4396
        %4398 = vdwg.mxu0
        %v4399 = vand.u32 %v4202, 4294901760
        %4400 = vmatpush.msra.mxu0 %v4399
        %v4401 = vand.u32 %v4201, 4294901760
        %4402 = vmatpush.msra.mxu0 %v4401
        %v4403 = vand.u32 %v4200, 4294901760
        %4404 = vmatpush.msra.mxu0 %v4403
        %v4405 = vand.u32 %v4199, 4294901760
        %4406 = vmatpush.msra.mxu0 %v4405
        %v4407 = vand.u32 %v4198, 4294901760
        %4408 = vmatpush.msra.mxu0 %v4407
        %v4409 = vand.u32 %v4197, 4294901760
        %4410 = vmatpush.msra.mxu0 %v4409
        %v4411 = vand.u32 %v4196, 4294901760
        %4412 = vmatpush.msra.mxu0 %v4411
        %v4413 = vand.u32 %v4195, 4294901760
        %4414 = vmatpush.msra.mxu0 %v4413
        %v4415 = vand.u32 %v4194, 4294901760
        %4416 = vmatpush.msra.mxu0 %v4415
        %v4417 = vand.u32 %v4193, 4294901760
        %4418 = vmatpush.msra.mxu0 %v4417
        %v4419 = vand.u32 %v4192, 4294901760
        %4420 = vmatpush.msra.mxu0 %v4419
        %v4421 = vand.u32 %v4191, 4294901760
        %4422 = vmatpush.msra.mxu0 %v4421
        %v4423 = vand.u32 %v4190, 4294901760
        %4424 = vmatpush.msra.mxu0 %v4423
        %v4425 = vand.u32 %v4189, 4294901760
        %4426 = vmatpush.msra.mxu0 %v4425
        %v4427 = vand.u32 %v4188, 4294901760
        %4428 = vmatpush.msra.mxu0 %v4427
        %v4429 = vand.u32 %v4187, 4294901760
        %4430 = vmatpush.msra.mxu0 %v4429
        %v4431 = vand.u32 %v177, 4294901760
        %v4432 = vsub.f32 %v177, %v4431
        %v4433 = vand.u32 %v4432, 4294901760
        %4434 = vmatmul.f32.gmra.mxu0 %v4433
        %v4435 = vpop.f32.mrf.mxu0
        %v4436 = vadd.f32 %v4397, %v4435
        %4437 = vdwg.mxu0
        %v4438 = vand.u32 %v4202, 4294901760
        %v4439 = vsub.f32 %v4202, %v4438
        %v4440 = vand.u32 %v4439, 4294901760
        %4441 = vmatpush.msra.mxu0 %v4440
        %v4442 = vand.u32 %v4201, 4294901760
        %v4443 = vsub.f32 %v4201, %v4442
        %v4444 = vand.u32 %v4443, 4294901760
        %4445 = vmatpush.msra.mxu0 %v4444
        %v4446 = vand.u32 %v4200, 4294901760
        %v4447 = vsub.f32 %v4200, %v4446
        %v4448 = vand.u32 %v4447, 4294901760
        %4449 = vmatpush.msra.mxu0 %v4448
        %v4450 = vand.u32 %v4199, 4294901760
        %v4451 = vsub.f32 %v4199, %v4450
        %v4452 = vand.u32 %v4451, 4294901760
        %4453 = vmatpush.msra.mxu0 %v4452
        %v4454 = vand.u32 %v4198, 4294901760
        %v4455 = vsub.f32 %v4198, %v4454
        %v4456 = vand.u32 %v4455, 4294901760
        %4457 = vmatpush.msra.mxu0 %v4456
        %v4458 = vand.u32 %v4197, 4294901760
        %v4459 = vsub.f32 %v4197, %v4458
        %v4460 = vand.u32 %v4459, 4294901760
        %4461 = vmatpush.msra.mxu0 %v4460
        %v4462 = vand.u32 %v4196, 4294901760
        %v4463 = vsub.f32 %v4196, %v4462
        %v4464 = vand.u32 %v4463, 4294901760
        %4465 = vmatpush.msra.mxu0 %v4464
        %v4466 = vand.u32 %v4195, 4294901760
        %v4467 = vsub.f32 %v4195, %v4466
        %v4468 = vand.u32 %v4467, 4294901760
        %4469 = vmatpush.msra.mxu0 %v4468
        %v4470 = vand.u32 %v4194, 4294901760
        %v4471 = vsub.f32 %v4194, %v4470
        %v4472 = vand.u32 %v4471, 4294901760
        %4473 = vmatpush.msra.mxu0 %v4472
        %v4474 = vand.u32 %v4193, 4294901760
        %v4475 = vsub.f32 %v4193, %v4474
        %v4476 = vand.u32 %v4475, 4294901760
        %4477 = vmatpush.msra.mxu0 %v4476
        %v4478 = vand.u32 %v4192, 4294901760
        %v4479 = vsub.f32 %v4192, %v4478
        %v4480 = vand.u32 %v4479, 4294901760
        %4481 = vmatpush.msra.mxu0 %v4480
        %v4482 = vand.u32 %v4191, 4294901760
        %v4483 = vsub.f32 %v4191, %v4482
        %v4484 = vand.u32 %v4483, 4294901760
        %4485 = vmatpush.msra.mxu0 %v4484
        %v4486 = vand.u32 %v4190, 4294901760
        %v4487 = vsub.f32 %v4190, %v4486
        %v4488 = vand.u32 %v4487, 4294901760
        %4489 = vmatpush.msra.mxu0 %v4488
        %v4490 = vand.u32 %v4189, 4294901760
        %v4491 = vsub.f32 %v4189, %v4490
        %v4492 = vand.u32 %v4491, 4294901760
        %4493 = vmatpush.msra.mxu0 %v4492
        %v4494 = vand.u32 %v4188, 4294901760
        %v4495 = vsub.f32 %v4188, %v4494
        %v4496 = vand.u32 %v4495, 4294901760
        %4497 = vmatpush.msra.mxu0 %v4496
        %v4498 = vand.u32 %v4187, 4294901760
        %v4499 = vsub.f32 %v4187, %v4498
        %v4500 = vand.u32 %v4499, 4294901760
        %4501 = vmatpush.msra.mxu0 %v4500
        %v4502 = vand.u32 %v177, 4294901760
        %4503 = vmatmul.f32.gmra.mxu0 %v4502
        %v4504 = vpop.f32.mrf.mxu0
        %v4505 = vadd.f32 %v4436, %v4504
        %4506 = vdwg.mxu0
        %v4507 = vand.u32 %v4202, 4294901760
        %4508 = vmatpush.msra.mxu0 %v4507
        %v4509 = vand.u32 %v4201, 4294901760
        %4510 = vmatpush.msra.mxu0 %v4509
        %v4511 = vand.u32 %v4200, 4294901760
        %4512 = vmatpush.msra.mxu0 %v4511
        %v4513 = vand.u32 %v4199, 4294901760
        %4514 = vmatpush.msra.mxu0 %v4513
        %v4515 = vand.u32 %v4198, 4294901760
        %4516 = vmatpush.msra.mxu0 %v4515
        %v4517 = vand.u32 %v4197, 4294901760
        %4518 = vmatpush.msra.mxu0 %v4517
        %v4519 = vand.u32 %v4196, 4294901760
        %4520 = vmatpush.msra.mxu0 %v4519
        %v4521 = vand.u32 %v4195, 4294901760
        %4522 = vmatpush.msra.mxu0 %v4521
        %v4523 = vand.u32 %v4194, 4294901760
        %4524 = vmatpush.msra.mxu0 %v4523
        %v4525 = vand.u32 %v4193, 4294901760
        %4526 = vmatpush.msra.mxu0 %v4525
        %v4527 = vand.u32 %v4192, 4294901760
        %4528 = vmatpush.msra.mxu0 %v4527
        %v4529 = vand.u32 %v4191, 4294901760
        %4530 = vmatpush.msra.mxu0 %v4529
        %v4531 = vand.u32 %v4190, 4294901760
        %4532 = vmatpush.msra.mxu0 %v4531
        %v4533 = vand.u32 %v4189, 4294901760
        %4534 = vmatpush.msra.mxu0 %v4533
        %v4535 = vand.u32 %v4188, 4294901760
        %4536 = vmatpush.msra.mxu0 %v4535
        %v4537 = vand.u32 %v4187, 4294901760
        %4538 = vmatpush.msra.mxu0 %v4537
        %v4539 = vand.u32 %v177, 4294901760
        %4540 = vmatmul.f32.gmra.mxu0 %v4539
        %v4541 = vpop.f32.mrf.mxu0
        %v4542 = vadd.f32 %v4505, %v4541
        %4543 = vdwg.mxu0
        %v4544 = vadd.f32 %v4164, %v4542
        %v4545 = vxor.u32 %v3399, %v3443
        %v4546 = vand.u32 %v4545, 63
        %v4547 = vmul.f32 %v3397, %v3447
        %v4548 = vperm.slane %v4546, 0
        %vm4549 = vcmp.eq.s32.totalorder %v4548, %v179
        %vm4550 = vcmp.eq.s32.totalorder %v4548, %v180
        %vm4551 = vcmp.eq.s32.totalorder %v4548, %v181
        %vm4552 = vcmp.eq.s32.totalorder %v4548, %v182
        %vm4553 = vcmp.eq.s32.totalorder %v4548, %v183
        %vm4554 = vcmp.eq.s32.totalorder %v4548, %v184
        %vm4555 = vcmp.eq.s32.totalorder %v4548, %v185
        %vm4556 = vcmp.eq.s32.totalorder %v4548, %v186
        %vm4557 = vcmp.eq.s32.totalorder %v4548, %v187
        %vm4558 = vcmp.eq.s32.totalorder %v4548, %v188
        %vm4559 = vcmp.eq.s32.totalorder %v4548, %v189
        %vm4560 = vcmp.eq.s32.totalorder %v4548, %v190
        %vm4561 = vcmp.eq.s32.totalorder %v4548, %v191
        %vm4562 = vcmp.eq.s32.totalorder %v4548, %v192
        %vm4563 = vcmp.eq.s32.totalorder %v4548, %v193
        %vm4564 = vcmp.eq.s32.totalorder %v4548, %v194
        %v4565 = vperm.slane %v4547, 0
        %v4566 = vsel %vm4549, %v4565, 0.0
        %v4567 = vsel %vm4550, %v4565, 0.0
        %v4568 = vsel %vm4551, %v4565, 0.0
        %v4569 = vsel %vm4552, %v4565, 0.0
        %v4570 = vsel %vm4553, %v4565, 0.0
        %v4571 = vsel %vm4554, %v4565, 0.0
        %v4572 = vsel %vm4555, %v4565, 0.0
        %v4573 = vsel %vm4556, %v4565, 0.0
        %v4574 = vsel %vm4557, %v4565, 0.0
        %v4575 = vsel %vm4558, %v4565, 0.0
        %v4576 = vsel %vm4559, %v4565, 0.0
        %v4577 = vsel %vm4560, %v4565, 0.0
        %v4578 = vsel %vm4561, %v4565, 0.0
        %v4579 = vsel %vm4562, %v4565, 0.0
        %v4580 = vsel %vm4563, %v4565, 0.0
        %v4581 = vsel %vm4564, %v4565, 0.0
        %v4582 = vand.u32 %v4581, 4294901760
        %4583 = vmatpush.msra.mxu0 %v4582
        %v4584 = vand.u32 %v4580, 4294901760
        %4585 = vmatpush.msra.mxu0 %v4584
        %v4586 = vand.u32 %v4579, 4294901760
        %4587 = vmatpush.msra.mxu0 %v4586
        %v4588 = vand.u32 %v4578, 4294901760
        %4589 = vmatpush.msra.mxu0 %v4588
        %v4590 = vand.u32 %v4577, 4294901760
        %4591 = vmatpush.msra.mxu0 %v4590
        %v4592 = vand.u32 %v4576, 4294901760
        %4593 = vmatpush.msra.mxu0 %v4592
        %v4594 = vand.u32 %v4575, 4294901760
        %4595 = vmatpush.msra.mxu0 %v4594
        %v4596 = vand.u32 %v4574, 4294901760
        %4597 = vmatpush.msra.mxu0 %v4596
        %v4598 = vand.u32 %v4573, 4294901760
        %4599 = vmatpush.msra.mxu0 %v4598
        %v4600 = vand.u32 %v4572, 4294901760
        %4601 = vmatpush.msra.mxu0 %v4600
        %v4602 = vand.u32 %v4571, 4294901760
        %4603 = vmatpush.msra.mxu0 %v4602
        %v4604 = vand.u32 %v4570, 4294901760
        %4605 = vmatpush.msra.mxu0 %v4604
        %v4606 = vand.u32 %v4569, 4294901760
        %4607 = vmatpush.msra.mxu0 %v4606
        %v4608 = vand.u32 %v4568, 4294901760
        %4609 = vmatpush.msra.mxu0 %v4608
        %v4610 = vand.u32 %v4567, 4294901760
        %4611 = vmatpush.msra.mxu0 %v4610
        %v4612 = vand.u32 %v4566, 4294901760
        %4613 = vmatpush.msra.mxu0 %v4612
        %v4614 = vand.u32 %v177, 4294901760
        %v4615 = vsub.f32 %v177, %v4614
        %v4616 = vand.u32 %v4615, 4294901760
        %v4617 = vsub.f32 %v4615, %v4616
        %v4618 = vand.u32 %v4617, 4294901760
        %4619 = vmatmul.f32.gmra.mxu0 %v4618
        %v4620 = vpop.f32.mrf.mxu0
        %v4621 = vadd.f32 0.0, %v4620
        %4622 = vdwg.mxu0
        %v4623 = vand.u32 %v4581, 4294901760
        %v4624 = vsub.f32 %v4581, %v4623
        %v4625 = vand.u32 %v4624, 4294901760
        %v4626 = vsub.f32 %v4624, %v4625
        %v4627 = vand.u32 %v4626, 4294901760
        %4628 = vmatpush.msra.mxu0 %v4627
        %v4629 = vand.u32 %v4580, 4294901760
        %v4630 = vsub.f32 %v4580, %v4629
        %v4631 = vand.u32 %v4630, 4294901760
        %v4632 = vsub.f32 %v4630, %v4631
        %v4633 = vand.u32 %v4632, 4294901760
        %4634 = vmatpush.msra.mxu0 %v4633
        %v4635 = vand.u32 %v4579, 4294901760
        %v4636 = vsub.f32 %v4579, %v4635
        %v4637 = vand.u32 %v4636, 4294901760
        %v4638 = vsub.f32 %v4636, %v4637
        %v4639 = vand.u32 %v4638, 4294901760
        %4640 = vmatpush.msra.mxu0 %v4639
        %v4641 = vand.u32 %v4578, 4294901760
        %v4642 = vsub.f32 %v4578, %v4641
        %v4643 = vand.u32 %v4642, 4294901760
        %v4644 = vsub.f32 %v4642, %v4643
        %v4645 = vand.u32 %v4644, 4294901760
        %4646 = vmatpush.msra.mxu0 %v4645
        %v4647 = vand.u32 %v4577, 4294901760
        %v4648 = vsub.f32 %v4577, %v4647
        %v4649 = vand.u32 %v4648, 4294901760
        %v4650 = vsub.f32 %v4648, %v4649
        %v4651 = vand.u32 %v4650, 4294901760
        %4652 = vmatpush.msra.mxu0 %v4651
        %v4653 = vand.u32 %v4576, 4294901760
        %v4654 = vsub.f32 %v4576, %v4653
        %v4655 = vand.u32 %v4654, 4294901760
        %v4656 = vsub.f32 %v4654, %v4655
        %v4657 = vand.u32 %v4656, 4294901760
        %4658 = vmatpush.msra.mxu0 %v4657
        %v4659 = vand.u32 %v4575, 4294901760
        %v4660 = vsub.f32 %v4575, %v4659
        %v4661 = vand.u32 %v4660, 4294901760
        %v4662 = vsub.f32 %v4660, %v4661
        %v4663 = vand.u32 %v4662, 4294901760
        %4664 = vmatpush.msra.mxu0 %v4663
        %v4665 = vand.u32 %v4574, 4294901760
        %v4666 = vsub.f32 %v4574, %v4665
        %v4667 = vand.u32 %v4666, 4294901760
        %v4668 = vsub.f32 %v4666, %v4667
        %v4669 = vand.u32 %v4668, 4294901760
        %4670 = vmatpush.msra.mxu0 %v4669
        %v4671 = vand.u32 %v4573, 4294901760
        %v4672 = vsub.f32 %v4573, %v4671
        %v4673 = vand.u32 %v4672, 4294901760
        %v4674 = vsub.f32 %v4672, %v4673
        %v4675 = vand.u32 %v4674, 4294901760
        %4676 = vmatpush.msra.mxu0 %v4675
        %v4677 = vand.u32 %v4572, 4294901760
        %v4678 = vsub.f32 %v4572, %v4677
        %v4679 = vand.u32 %v4678, 4294901760
        %v4680 = vsub.f32 %v4678, %v4679
        %v4681 = vand.u32 %v4680, 4294901760
        %4682 = vmatpush.msra.mxu0 %v4681
        %v4683 = vand.u32 %v4571, 4294901760
        %v4684 = vsub.f32 %v4571, %v4683
        %v4685 = vand.u32 %v4684, 4294901760
        %v4686 = vsub.f32 %v4684, %v4685
        %v4687 = vand.u32 %v4686, 4294901760
        %4688 = vmatpush.msra.mxu0 %v4687
        %v4689 = vand.u32 %v4570, 4294901760
        %v4690 = vsub.f32 %v4570, %v4689
        %v4691 = vand.u32 %v4690, 4294901760
        %v4692 = vsub.f32 %v4690, %v4691
        %v4693 = vand.u32 %v4692, 4294901760
        %4694 = vmatpush.msra.mxu0 %v4693
        %v4695 = vand.u32 %v4569, 4294901760
        %v4696 = vsub.f32 %v4569, %v4695
        %v4697 = vand.u32 %v4696, 4294901760
        %v4698 = vsub.f32 %v4696, %v4697
        %v4699 = vand.u32 %v4698, 4294901760
        %4700 = vmatpush.msra.mxu0 %v4699
        %v4701 = vand.u32 %v4568, 4294901760
        %v4702 = vsub.f32 %v4568, %v4701
        %v4703 = vand.u32 %v4702, 4294901760
        %v4704 = vsub.f32 %v4702, %v4703
        %v4705 = vand.u32 %v4704, 4294901760
        %4706 = vmatpush.msra.mxu0 %v4705
        %v4707 = vand.u32 %v4567, 4294901760
        %v4708 = vsub.f32 %v4567, %v4707
        %v4709 = vand.u32 %v4708, 4294901760
        %v4710 = vsub.f32 %v4708, %v4709
        %v4711 = vand.u32 %v4710, 4294901760
        %4712 = vmatpush.msra.mxu0 %v4711
        %v4713 = vand.u32 %v4566, 4294901760
        %v4714 = vsub.f32 %v4566, %v4713
        %v4715 = vand.u32 %v4714, 4294901760
        %v4716 = vsub.f32 %v4714, %v4715
        %v4717 = vand.u32 %v4716, 4294901760
        %4718 = vmatpush.msra.mxu0 %v4717
        %v4719 = vand.u32 %v177, 4294901760
        %4720 = vmatmul.f32.gmra.mxu0 %v4719
        %v4721 = vpop.f32.mrf.mxu0
        %v4722 = vadd.f32 %v4621, %v4721
        %4723 = vdwg.mxu0
        %v4724 = vand.u32 %v4581, 4294901760
        %v4725 = vsub.f32 %v4581, %v4724
        %4726 = vmatpush.msra.mxu0 %v4725
        %v4727 = vand.u32 %v4580, 4294901760
        %v4728 = vsub.f32 %v4580, %v4727
        %4729 = vmatpush.msra.mxu0 %v4728
        %v4730 = vand.u32 %v4579, 4294901760
        %v4731 = vsub.f32 %v4579, %v4730
        %4732 = vmatpush.msra.mxu0 %v4731
        %v4733 = vand.u32 %v4578, 4294901760
        %v4734 = vsub.f32 %v4578, %v4733
        %4735 = vmatpush.msra.mxu0 %v4734
        %v4736 = vand.u32 %v4577, 4294901760
        %v4737 = vsub.f32 %v4577, %v4736
        %4738 = vmatpush.msra.mxu0 %v4737
        %v4739 = vand.u32 %v4576, 4294901760
        %v4740 = vsub.f32 %v4576, %v4739
        %4741 = vmatpush.msra.mxu0 %v4740
        %v4742 = vand.u32 %v4575, 4294901760
        %v4743 = vsub.f32 %v4575, %v4742
        %4744 = vmatpush.msra.mxu0 %v4743
        %v4745 = vand.u32 %v4574, 4294901760
        %v4746 = vsub.f32 %v4574, %v4745
        %4747 = vmatpush.msra.mxu0 %v4746
        %v4748 = vand.u32 %v4573, 4294901760
        %v4749 = vsub.f32 %v4573, %v4748
        %4750 = vmatpush.msra.mxu0 %v4749
        %v4751 = vand.u32 %v4572, 4294901760
        %v4752 = vsub.f32 %v4572, %v4751
        %4753 = vmatpush.msra.mxu0 %v4752
        %v4754 = vand.u32 %v4571, 4294901760
        %v4755 = vsub.f32 %v4571, %v4754
        %4756 = vmatpush.msra.mxu0 %v4755
        %v4757 = vand.u32 %v4570, 4294901760
        %v4758 = vsub.f32 %v4570, %v4757
        %4759 = vmatpush.msra.mxu0 %v4758
        %v4760 = vand.u32 %v4569, 4294901760
        %v4761 = vsub.f32 %v4569, %v4760
        %4762 = vmatpush.msra.mxu0 %v4761
        %v4763 = vand.u32 %v4568, 4294901760
        %v4764 = vsub.f32 %v4568, %v4763
        %4765 = vmatpush.msra.mxu0 %v4764
        %v4766 = vand.u32 %v4567, 4294901760
        %v4767 = vsub.f32 %v4567, %v4766
        %4768 = vmatpush.msra.mxu0 %v4767
        %v4769 = vand.u32 %v4566, 4294901760
        %v4770 = vsub.f32 %v4566, %v4769
        %4771 = vmatpush.msra.mxu0 %v4770
        %v4772 = vand.u32 %v177, 4294901760
        %v4773 = vsub.f32 %v177, %v4772
        %4774 = vmatmul.f32.gmra.mxu0 %v4773
        %v4775 = vpop.f32.mrf.mxu0
        %v4776 = vadd.f32 %v4722, %v4775
        %4777 = vdwg.mxu0
        %v4778 = vand.u32 %v4581, 4294901760
        %4779 = vmatpush.msra.mxu0 %v4778
        %v4780 = vand.u32 %v4580, 4294901760
        %4781 = vmatpush.msra.mxu0 %v4780
        %v4782 = vand.u32 %v4579, 4294901760
        %4783 = vmatpush.msra.mxu0 %v4782
        %v4784 = vand.u32 %v4578, 4294901760
        %4785 = vmatpush.msra.mxu0 %v4784
        %v4786 = vand.u32 %v4577, 4294901760
        %4787 = vmatpush.msra.mxu0 %v4786
        %v4788 = vand.u32 %v4576, 4294901760
        %4789 = vmatpush.msra.mxu0 %v4788
        %v4790 = vand.u32 %v4575, 4294901760
        %4791 = vmatpush.msra.mxu0 %v4790
        %v4792 = vand.u32 %v4574, 4294901760
        %4793 = vmatpush.msra.mxu0 %v4792
        %v4794 = vand.u32 %v4573, 4294901760
        %4795 = vmatpush.msra.mxu0 %v4794
        %v4796 = vand.u32 %v4572, 4294901760
        %4797 = vmatpush.msra.mxu0 %v4796
        %v4798 = vand.u32 %v4571, 4294901760
        %4799 = vmatpush.msra.mxu0 %v4798
        %v4800 = vand.u32 %v4570, 4294901760
        %4801 = vmatpush.msra.mxu0 %v4800
        %v4802 = vand.u32 %v4569, 4294901760
        %4803 = vmatpush.msra.mxu0 %v4802
        %v4804 = vand.u32 %v4568, 4294901760
        %4805 = vmatpush.msra.mxu0 %v4804
        %v4806 = vand.u32 %v4567, 4294901760
        %4807 = vmatpush.msra.mxu0 %v4806
        %v4808 = vand.u32 %v4566, 4294901760
        %4809 = vmatpush.msra.mxu0 %v4808
        %v4810 = vand.u32 %v177, 4294901760
        %v4811 = vsub.f32 %v177, %v4810
        %v4812 = vand.u32 %v4811, 4294901760
        %4813 = vmatmul.f32.gmra.mxu0 %v4812
        %v4814 = vpop.f32.mrf.mxu0
        %v4815 = vadd.f32 %v4776, %v4814
        %4816 = vdwg.mxu0
        %v4817 = vand.u32 %v4581, 4294901760
        %v4818 = vsub.f32 %v4581, %v4817
        %v4819 = vand.u32 %v4818, 4294901760
        %4820 = vmatpush.msra.mxu0 %v4819
        %v4821 = vand.u32 %v4580, 4294901760
        %v4822 = vsub.f32 %v4580, %v4821
        %v4823 = vand.u32 %v4822, 4294901760
        %4824 = vmatpush.msra.mxu0 %v4823
        %v4825 = vand.u32 %v4579, 4294901760
        %v4826 = vsub.f32 %v4579, %v4825
        %v4827 = vand.u32 %v4826, 4294901760
        %4828 = vmatpush.msra.mxu0 %v4827
        %v4829 = vand.u32 %v4578, 4294901760
        %v4830 = vsub.f32 %v4578, %v4829
        %v4831 = vand.u32 %v4830, 4294901760
        %4832 = vmatpush.msra.mxu0 %v4831
        %v4833 = vand.u32 %v4577, 4294901760
        %v4834 = vsub.f32 %v4577, %v4833
        %v4835 = vand.u32 %v4834, 4294901760
        %4836 = vmatpush.msra.mxu0 %v4835
        %v4837 = vand.u32 %v4576, 4294901760
        %v4838 = vsub.f32 %v4576, %v4837
        %v4839 = vand.u32 %v4838, 4294901760
        %4840 = vmatpush.msra.mxu0 %v4839
        %v4841 = vand.u32 %v4575, 4294901760
        %v4842 = vsub.f32 %v4575, %v4841
        %v4843 = vand.u32 %v4842, 4294901760
        %4844 = vmatpush.msra.mxu0 %v4843
        %v4845 = vand.u32 %v4574, 4294901760
        %v4846 = vsub.f32 %v4574, %v4845
        %v4847 = vand.u32 %v4846, 4294901760
        %4848 = vmatpush.msra.mxu0 %v4847
        %v4849 = vand.u32 %v4573, 4294901760
        %v4850 = vsub.f32 %v4573, %v4849
        %v4851 = vand.u32 %v4850, 4294901760
        %4852 = vmatpush.msra.mxu0 %v4851
        %v4853 = vand.u32 %v4572, 4294901760
        %v4854 = vsub.f32 %v4572, %v4853
        %v4855 = vand.u32 %v4854, 4294901760
        %4856 = vmatpush.msra.mxu0 %v4855
        %v4857 = vand.u32 %v4571, 4294901760
        %v4858 = vsub.f32 %v4571, %v4857
        %v4859 = vand.u32 %v4858, 4294901760
        %4860 = vmatpush.msra.mxu0 %v4859
        %v4861 = vand.u32 %v4570, 4294901760
        %v4862 = vsub.f32 %v4570, %v4861
        %v4863 = vand.u32 %v4862, 4294901760
        %4864 = vmatpush.msra.mxu0 %v4863
        %v4865 = vand.u32 %v4569, 4294901760
        %v4866 = vsub.f32 %v4569, %v4865
        %v4867 = vand.u32 %v4866, 4294901760
        %4868 = vmatpush.msra.mxu0 %v4867
        %v4869 = vand.u32 %v4568, 4294901760
        %v4870 = vsub.f32 %v4568, %v4869
        %v4871 = vand.u32 %v4870, 4294901760
        %4872 = vmatpush.msra.mxu0 %v4871
        %v4873 = vand.u32 %v4567, 4294901760
        %v4874 = vsub.f32 %v4567, %v4873
        %v4875 = vand.u32 %v4874, 4294901760
        %4876 = vmatpush.msra.mxu0 %v4875
        %v4877 = vand.u32 %v4566, 4294901760
        %v4878 = vsub.f32 %v4566, %v4877
        %v4879 = vand.u32 %v4878, 4294901760
        %4880 = vmatpush.msra.mxu0 %v4879
        %v4881 = vand.u32 %v177, 4294901760
        %4882 = vmatmul.f32.gmra.mxu0 %v4881
        %v4883 = vpop.f32.mrf.mxu0
        %v4884 = vadd.f32 %v4815, %v4883
        %4885 = vdwg.mxu0
        %v4886 = vand.u32 %v4581, 4294901760
        %4887 = vmatpush.msra.mxu0 %v4886
        %v4888 = vand.u32 %v4580, 4294901760
        %4889 = vmatpush.msra.mxu0 %v4888
        %v4890 = vand.u32 %v4579, 4294901760
        %4891 = vmatpush.msra.mxu0 %v4890
        %v4892 = vand.u32 %v4578, 4294901760
        %4893 = vmatpush.msra.mxu0 %v4892
        %v4894 = vand.u32 %v4577, 4294901760
        %4895 = vmatpush.msra.mxu0 %v4894
        %v4896 = vand.u32 %v4576, 4294901760
        %4897 = vmatpush.msra.mxu0 %v4896
        %v4898 = vand.u32 %v4575, 4294901760
        %4899 = vmatpush.msra.mxu0 %v4898
        %v4900 = vand.u32 %v4574, 4294901760
        %4901 = vmatpush.msra.mxu0 %v4900
        %v4902 = vand.u32 %v4573, 4294901760
        %4903 = vmatpush.msra.mxu0 %v4902
        %v4904 = vand.u32 %v4572, 4294901760
        %4905 = vmatpush.msra.mxu0 %v4904
        %v4906 = vand.u32 %v4571, 4294901760
        %4907 = vmatpush.msra.mxu0 %v4906
        %v4908 = vand.u32 %v4570, 4294901760
        %4909 = vmatpush.msra.mxu0 %v4908
        %v4910 = vand.u32 %v4569, 4294901760
        %4911 = vmatpush.msra.mxu0 %v4910
        %v4912 = vand.u32 %v4568, 4294901760
        %4913 = vmatpush.msra.mxu0 %v4912
        %v4914 = vand.u32 %v4567, 4294901760
        %4915 = vmatpush.msra.mxu0 %v4914
        %v4916 = vand.u32 %v4566, 4294901760
        %4917 = vmatpush.msra.mxu0 %v4916
        %v4918 = vand.u32 %v177, 4294901760
        %4919 = vmatmul.f32.gmra.mxu0 %v4918
        %v4920 = vpop.f32.mrf.mxu0
        %v4921 = vadd.f32 %v4884, %v4920
        %4922 = vdwg.mxu0
        %v4923 = vadd.f32 %v4544, %v4921
        %v4924 = vmul.f32 %v3391, %v4923
        %v4925 = vmul.f32 %v176, 12.5
        %v4926 = vadd.f32 %v4925, 0.5
        %v4927 = vfloor.f32 %v4926
        %v4928 = vcvt.f32.s32.to.zero.pseudo %v4927
        %v4929 = vcvt.s32.f32 %v4928
        %v4930 = vsub.f32 %v4926, %v4929
        %v4931 = vsub.f32 1.0, %v4930
        %v4932 = vadd.s32 %v4928, 1
        %v4933 = vmul.u32 %v4928, 2654435761
        %v4934 = vadd.s32 %v4933, 2654435761
        %v4935 = vrot.slane %v4933, 1
        %v4936 = vxor.u32 %v4928, %v4935
        %v4937 = vand.u32 %v4936, 63
        %v4939 = vrot.slane %v4931, 1
        %v4941 = vmul.f32 %v4931, %v4939
        %v4942 = vperm.slane %v4937, 0
        %vm4943 = vcmp.eq.s32.totalorder %v4942, %v179
        %vm4944 = vcmp.eq.s32.totalorder %v4942, %v180
        %vm4945 = vcmp.eq.s32.totalorder %v4942, %v181
        %vm4946 = vcmp.eq.s32.totalorder %v4942, %v182
        %vm4947 = vcmp.eq.s32.totalorder %v4942, %v183
        %vm4948 = vcmp.eq.s32.totalorder %v4942, %v184
        %vm4949 = vcmp.eq.s32.totalorder %v4942, %v185
        %vm4950 = vcmp.eq.s32.totalorder %v4942, %v186
        %vm4951 = vcmp.eq.s32.totalorder %v4942, %v187
        %vm4952 = vcmp.eq.s32.totalorder %v4942, %v188
        %vm4953 = vcmp.eq.s32.totalorder %v4942, %v189
        %vm4954 = vcmp.eq.s32.totalorder %v4942, %v190
        %vm4955 = vcmp.eq.s32.totalorder %v4942, %v191
        %vm4956 = vcmp.eq.s32.totalorder %v4942, %v192
        %vm4957 = vcmp.eq.s32.totalorder %v4942, %v193
        %vm4958 = vcmp.eq.s32.totalorder %v4942, %v194
        %v4959 = vperm.slane %v4941, 0
        %v4960 = vsel %vm4943, %v4959, 0.0
        %v4961 = vsel %vm4944, %v4959, 0.0
        %v4962 = vsel %vm4945, %v4959, 0.0
        %v4963 = vsel %vm4946, %v4959, 0.0
        %v4964 = vsel %vm4947, %v4959, 0.0
        %v4965 = vsel %vm4948, %v4959, 0.0
        %v4966 = vsel %vm4949, %v4959, 0.0
        %v4967 = vsel %vm4950, %v4959, 0.0
        %v4968 = vsel %vm4951, %v4959, 0.0
        %v4969 = vsel %vm4952, %v4959, 0.0
        %v4970 = vsel %vm4953, %v4959, 0.0
        %v4971 = vsel %vm4954, %v4959, 0.0
        %v4972 = vsel %vm4955, %v4959, 0.0
        %v4973 = vsel %vm4956, %v4959, 0.0
        %v4974 = vsel %vm4957, %v4959, 0.0
        %v4975 = vsel %vm4958, %v4959, 0.0
        %v4976 = vrot.slane %v4934, 1
        %v4977 = vxor.u32 %v4928, %v4976
        %v4978 = vand.u32 %v4977, 63
        %v4980 = vrot.slane %v4930, 1
        %v4982 = vmul.f32 %v4931, %v4980
        %v4983 = vperm.slane %v4978, 0
        %vm4984 = vcmp.eq.s32.totalorder %v4983, %v179
        %vm4985 = vcmp.eq.s32.totalorder %v4983, %v180
        %vm4986 = vcmp.eq.s32.totalorder %v4983, %v181
        %vm4987 = vcmp.eq.s32.totalorder %v4983, %v182
        %vm4988 = vcmp.eq.s32.totalorder %v4983, %v183
        %vm4989 = vcmp.eq.s32.totalorder %v4983, %v184
        %vm4990 = vcmp.eq.s32.totalorder %v4983, %v185
        %vm4991 = vcmp.eq.s32.totalorder %v4983, %v186
        %vm4992 = vcmp.eq.s32.totalorder %v4983, %v187
        %vm4993 = vcmp.eq.s32.totalorder %v4983, %v188
        %vm4994 = vcmp.eq.s32.totalorder %v4983, %v189
        %vm4995 = vcmp.eq.s32.totalorder %v4983, %v190
        %vm4996 = vcmp.eq.s32.totalorder %v4983, %v191
        %vm4997 = vcmp.eq.s32.totalorder %v4983, %v192
        %vm4998 = vcmp.eq.s32.totalorder %v4983, %v193
        %vm4999 = vcmp.eq.s32.totalorder %v4983, %v194
        %v5000 = vperm.slane %v4982, 0
        %v5001 = vsel %vm4984, %v5000, 0.0
        %v5002 = vsel %vm4985, %v5000, 0.0
        %v5003 = vsel %vm4986, %v5000, 0.0
        %v5004 = vsel %vm4987, %v5000, 0.0
        %v5005 = vsel %vm4988, %v5000, 0.0
        %v5006 = vsel %vm4989, %v5000, 0.0
        %v5007 = vsel %vm4990, %v5000, 0.0
        %v5008 = vsel %vm4991, %v5000, 0.0
        %v5009 = vsel %vm4992, %v5000, 0.0
        %v5010 = vsel %vm4993, %v5000, 0.0
        %v5011 = vsel %vm4994, %v5000, 0.0
        %v5012 = vsel %vm4995, %v5000, 0.0
        %v5013 = vsel %vm4996, %v5000, 0.0
        %v5014 = vsel %vm4997, %v5000, 0.0
        %v5015 = vsel %vm4998, %v5000, 0.0
        %v5016 = vsel %vm4999, %v5000, 0.0
        %v5017 = vand.u32 %v5016, 4294901760
        %5018 = vmatpush.msra.mxu0 %v5017
        %v5019 = vand.u32 %v5015, 4294901760
        %5020 = vmatpush.msra.mxu0 %v5019
        %v5021 = vand.u32 %v5014, 4294901760
        %5022 = vmatpush.msra.mxu0 %v5021
        %v5023 = vand.u32 %v5013, 4294901760
        %5024 = vmatpush.msra.mxu0 %v5023
        %v5025 = vand.u32 %v5012, 4294901760
        %5026 = vmatpush.msra.mxu0 %v5025
        %v5027 = vand.u32 %v5011, 4294901760
        %5028 = vmatpush.msra.mxu0 %v5027
        %v5029 = vand.u32 %v5010, 4294901760
        %5030 = vmatpush.msra.mxu0 %v5029
        %v5031 = vand.u32 %v5009, 4294901760
        %5032 = vmatpush.msra.mxu0 %v5031
        %v5033 = vand.u32 %v5008, 4294901760
        %5034 = vmatpush.msra.mxu0 %v5033
        %v5035 = vand.u32 %v5007, 4294901760
        %5036 = vmatpush.msra.mxu0 %v5035
        %v5037 = vand.u32 %v5006, 4294901760
        %5038 = vmatpush.msra.mxu0 %v5037
        %v5039 = vand.u32 %v5005, 4294901760
        %5040 = vmatpush.msra.mxu0 %v5039
        %v5041 = vand.u32 %v5004, 4294901760
        %5042 = vmatpush.msra.mxu0 %v5041
        %v5043 = vand.u32 %v5003, 4294901760
        %5044 = vmatpush.msra.mxu0 %v5043
        %v5045 = vand.u32 %v5002, 4294901760
        %5046 = vmatpush.msra.mxu0 %v5045
        %v5047 = vand.u32 %v5001, 4294901760
        %5048 = vmatpush.msra.mxu0 %v5047
        %v5049 = vand.u32 %v177, 4294901760
        %v5050 = vsub.f32 %v177, %v5049
        %v5051 = vand.u32 %v5050, 4294901760
        %v5052 = vsub.f32 %v5050, %v5051
        %v5053 = vand.u32 %v5052, 4294901760
        %5054 = vmatmul.f32.gmra.mxu0 %v5053
        %v5055 = vpop.f32.mrf.mxu0
        %v5056 = vadd.f32 0.0, %v5055
        %5057 = vdwg.mxu0
        %v5058 = vand.u32 %v5016, 4294901760
        %v5059 = vsub.f32 %v5016, %v5058
        %v5060 = vand.u32 %v5059, 4294901760
        %v5061 = vsub.f32 %v5059, %v5060
        %v5062 = vand.u32 %v5061, 4294901760
        %5063 = vmatpush.msra.mxu0 %v5062
        %v5064 = vand.u32 %v5015, 4294901760
        %v5065 = vsub.f32 %v5015, %v5064
        %v5066 = vand.u32 %v5065, 4294901760
        %v5067 = vsub.f32 %v5065, %v5066
        %v5068 = vand.u32 %v5067, 4294901760
        %5069 = vmatpush.msra.mxu0 %v5068
        %v5070 = vand.u32 %v5014, 4294901760
        %v5071 = vsub.f32 %v5014, %v5070
        %v5072 = vand.u32 %v5071, 4294901760
        %v5073 = vsub.f32 %v5071, %v5072
        %v5074 = vand.u32 %v5073, 4294901760
        %5075 = vmatpush.msra.mxu0 %v5074
        %v5076 = vand.u32 %v5013, 4294901760
        %v5077 = vsub.f32 %v5013, %v5076
        %v5078 = vand.u32 %v5077, 4294901760
        %v5079 = vsub.f32 %v5077, %v5078
        %v5080 = vand.u32 %v5079, 4294901760
        %5081 = vmatpush.msra.mxu0 %v5080
        %v5082 = vand.u32 %v5012, 4294901760
        %v5083 = vsub.f32 %v5012, %v5082
        %v5084 = vand.u32 %v5083, 4294901760
        %v5085 = vsub.f32 %v5083, %v5084
        %v5086 = vand.u32 %v5085, 4294901760
        %5087 = vmatpush.msra.mxu0 %v5086
        %v5088 = vand.u32 %v5011, 4294901760
        %v5089 = vsub.f32 %v5011, %v5088
        %v5090 = vand.u32 %v5089, 4294901760
        %v5091 = vsub.f32 %v5089, %v5090
        %v5092 = vand.u32 %v5091, 4294901760
        %5093 = vmatpush.msra.mxu0 %v5092
        %v5094 = vand.u32 %v5010, 4294901760
        %v5095 = vsub.f32 %v5010, %v5094
        %v5096 = vand.u32 %v5095, 4294901760
        %v5097 = vsub.f32 %v5095, %v5096
        %v5098 = vand.u32 %v5097, 4294901760
        %5099 = vmatpush.msra.mxu0 %v5098
        %v5100 = vand.u32 %v5009, 4294901760
        %v5101 = vsub.f32 %v5009, %v5100
        %v5102 = vand.u32 %v5101, 4294901760
        %v5103 = vsub.f32 %v5101, %v5102
        %v5104 = vand.u32 %v5103, 4294901760
        %5105 = vmatpush.msra.mxu0 %v5104
        %v5106 = vand.u32 %v5008, 4294901760
        %v5107 = vsub.f32 %v5008, %v5106
        %v5108 = vand.u32 %v5107, 4294901760
        %v5109 = vsub.f32 %v5107, %v5108
        %v5110 = vand.u32 %v5109, 4294901760
        %5111 = vmatpush.msra.mxu0 %v5110
        %v5112 = vand.u32 %v5007, 4294901760
        %v5113 = vsub.f32 %v5007, %v5112
        %v5114 = vand.u32 %v5113, 4294901760
        %v5115 = vsub.f32 %v5113, %v5114
        %v5116 = vand.u32 %v5115, 4294901760
        %5117 = vmatpush.msra.mxu0 %v5116
        %v5118 = vand.u32 %v5006, 4294901760
        %v5119 = vsub.f32 %v5006, %v5118
        %v5120 = vand.u32 %v5119, 4294901760
        %v5121 = vsub.f32 %v5119, %v5120
        %v5122 = vand.u32 %v5121, 4294901760
        %5123 = vmatpush.msra.mxu0 %v5122
        %v5124 = vand.u32 %v5005, 4294901760
        %v5125 = vsub.f32 %v5005, %v5124
        %v5126 = vand.u32 %v5125, 4294901760
        %v5127 = vsub.f32 %v5125, %v5126
        %v5128 = vand.u32 %v5127, 4294901760
        %5129 = vmatpush.msra.mxu0 %v5128
        %v5130 = vand.u32 %v5004, 4294901760
        %v5131 = vsub.f32 %v5004, %v5130
        %v5132 = vand.u32 %v5131, 4294901760
        %v5133 = vsub.f32 %v5131, %v5132
        %v5134 = vand.u32 %v5133, 4294901760
        %5135 = vmatpush.msra.mxu0 %v5134
        %v5136 = vand.u32 %v5003, 4294901760
        %v5137 = vsub.f32 %v5003, %v5136
        %v5138 = vand.u32 %v5137, 4294901760
        %v5139 = vsub.f32 %v5137, %v5138
        %v5140 = vand.u32 %v5139, 4294901760
        %5141 = vmatpush.msra.mxu0 %v5140
        %v5142 = vand.u32 %v5002, 4294901760
        %v5143 = vsub.f32 %v5002, %v5142
        %v5144 = vand.u32 %v5143, 4294901760
        %v5145 = vsub.f32 %v5143, %v5144
        %v5146 = vand.u32 %v5145, 4294901760
        %5147 = vmatpush.msra.mxu0 %v5146
        %v5148 = vand.u32 %v5001, 4294901760
        %v5149 = vsub.f32 %v5001, %v5148
        %v5150 = vand.u32 %v5149, 4294901760
        %v5151 = vsub.f32 %v5149, %v5150
        %v5152 = vand.u32 %v5151, 4294901760
        %5153 = vmatpush.msra.mxu0 %v5152
        %v5154 = vand.u32 %v177, 4294901760
        %5155 = vmatmul.f32.gmra.mxu0 %v5154
        %v5156 = vpop.f32.mrf.mxu0
        %v5157 = vadd.f32 %v5056, %v5156
        %5158 = vdwg.mxu0
        %v5159 = vand.u32 %v5016, 4294901760
        %v5160 = vsub.f32 %v5016, %v5159
        %5161 = vmatpush.msra.mxu0 %v5160
        %v5162 = vand.u32 %v5015, 4294901760
        %v5163 = vsub.f32 %v5015, %v5162
        %5164 = vmatpush.msra.mxu0 %v5163
        %v5165 = vand.u32 %v5014, 4294901760
        %v5166 = vsub.f32 %v5014, %v5165
        %5167 = vmatpush.msra.mxu0 %v5166
        %v5168 = vand.u32 %v5013, 4294901760
        %v5169 = vsub.f32 %v5013, %v5168
        %5170 = vmatpush.msra.mxu0 %v5169
        %v5171 = vand.u32 %v5012, 4294901760
        %v5172 = vsub.f32 %v5012, %v5171
        %5173 = vmatpush.msra.mxu0 %v5172
        %v5174 = vand.u32 %v5011, 4294901760
        %v5175 = vsub.f32 %v5011, %v5174
        %5176 = vmatpush.msra.mxu0 %v5175
        %v5177 = vand.u32 %v5010, 4294901760
        %v5178 = vsub.f32 %v5010, %v5177
        %5179 = vmatpush.msra.mxu0 %v5178
        %v5180 = vand.u32 %v5009, 4294901760
        %v5181 = vsub.f32 %v5009, %v5180
        %5182 = vmatpush.msra.mxu0 %v5181
        %v5183 = vand.u32 %v5008, 4294901760
        %v5184 = vsub.f32 %v5008, %v5183
        %5185 = vmatpush.msra.mxu0 %v5184
        %v5186 = vand.u32 %v5007, 4294901760
        %v5187 = vsub.f32 %v5007, %v5186
        %5188 = vmatpush.msra.mxu0 %v5187
        %v5189 = vand.u32 %v5006, 4294901760
        %v5190 = vsub.f32 %v5006, %v5189
        %5191 = vmatpush.msra.mxu0 %v5190
        %v5192 = vand.u32 %v5005, 4294901760
        %v5193 = vsub.f32 %v5005, %v5192
        %5194 = vmatpush.msra.mxu0 %v5193
        %v5195 = vand.u32 %v5004, 4294901760
        %v5196 = vsub.f32 %v5004, %v5195
        %5197 = vmatpush.msra.mxu0 %v5196
        %v5198 = vand.u32 %v5003, 4294901760
        %v5199 = vsub.f32 %v5003, %v5198
        %5200 = vmatpush.msra.mxu0 %v5199
        %v5201 = vand.u32 %v5002, 4294901760
        %v5202 = vsub.f32 %v5002, %v5201
        %5203 = vmatpush.msra.mxu0 %v5202
        %v5204 = vand.u32 %v5001, 4294901760
        %v5205 = vsub.f32 %v5001, %v5204
        %5206 = vmatpush.msra.mxu0 %v5205
        %v5207 = vand.u32 %v177, 4294901760
        %v5208 = vsub.f32 %v177, %v5207
        %5209 = vmatmul.f32.gmra.mxu0 %v5208
        %v5210 = vpop.f32.mrf.mxu0
        %v5211 = vadd.f32 %v5157, %v5210
        %5212 = vdwg.mxu0
        %v5213 = vand.u32 %v5016, 4294901760
        %5214 = vmatpush.msra.mxu0 %v5213
        %v5215 = vand.u32 %v5015, 4294901760
        %5216 = vmatpush.msra.mxu0 %v5215
        %v5217 = vand.u32 %v5014, 4294901760
        %5218 = vmatpush.msra.mxu0 %v5217
        %v5219 = vand.u32 %v5013, 4294901760
        %5220 = vmatpush.msra.mxu0 %v5219
        %v5221 = vand.u32 %v5012, 4294901760
        %5222 = vmatpush.msra.mxu0 %v5221
        %v5223 = vand.u32 %v5011, 4294901760
        %5224 = vmatpush.msra.mxu0 %v5223
        %v5225 = vand.u32 %v5010, 4294901760
        %5226 = vmatpush.msra.mxu0 %v5225
        %v5227 = vand.u32 %v5009, 4294901760
        %5228 = vmatpush.msra.mxu0 %v5227
        %v5229 = vand.u32 %v5008, 4294901760
        %5230 = vmatpush.msra.mxu0 %v5229
        %v5231 = vand.u32 %v5007, 4294901760
        %5232 = vmatpush.msra.mxu0 %v5231
        %v5233 = vand.u32 %v5006, 4294901760
        %5234 = vmatpush.msra.mxu0 %v5233
        %v5235 = vand.u32 %v5005, 4294901760
        %5236 = vmatpush.msra.mxu0 %v5235
        %v5237 = vand.u32 %v5004, 4294901760
        %5238 = vmatpush.msra.mxu0 %v5237
        %v5239 = vand.u32 %v5003, 4294901760
        %5240 = vmatpush.msra.mxu0 %v5239
        %v5241 = vand.u32 %v5002, 4294901760
        %5242 = vmatpush.msra.mxu0 %v5241
        %v5243 = vand.u32 %v5001, 4294901760
        %5244 = vmatpush.msra.mxu0 %v5243
        %v5245 = vand.u32 %v177, 4294901760
        %v5246 = vsub.f32 %v177, %v5245
        %v5247 = vand.u32 %v5246, 4294901760
        %5248 = vmatmul.f32.gmra.mxu0 %v5247
        %v5249 = vpop.f32.mrf.mxu0
        %v5250 = vadd.f32 %v5211, %v5249
        %5251 = vdwg.mxu0
        %v5252 = vand.u32 %v5016, 4294901760
        %v5253 = vsub.f32 %v5016, %v5252
        %v5254 = vand.u32 %v5253, 4294901760
        %5255 = vmatpush.msra.mxu0 %v5254
        %v5256 = vand.u32 %v5015, 4294901760
        %v5257 = vsub.f32 %v5015, %v5256
        %v5258 = vand.u32 %v5257, 4294901760
        %5259 = vmatpush.msra.mxu0 %v5258
        %v5260 = vand.u32 %v5014, 4294901760
        %v5261 = vsub.f32 %v5014, %v5260
        %v5262 = vand.u32 %v5261, 4294901760
        %5263 = vmatpush.msra.mxu0 %v5262
        %v5264 = vand.u32 %v5013, 4294901760
        %v5265 = vsub.f32 %v5013, %v5264
        %v5266 = vand.u32 %v5265, 4294901760
        %5267 = vmatpush.msra.mxu0 %v5266
        %v5268 = vand.u32 %v5012, 4294901760
        %v5269 = vsub.f32 %v5012, %v5268
        %v5270 = vand.u32 %v5269, 4294901760
        %5271 = vmatpush.msra.mxu0 %v5270
        %v5272 = vand.u32 %v5011, 4294901760
        %v5273 = vsub.f32 %v5011, %v5272
        %v5274 = vand.u32 %v5273, 4294901760
        %5275 = vmatpush.msra.mxu0 %v5274
        %v5276 = vand.u32 %v5010, 4294901760
        %v5277 = vsub.f32 %v5010, %v5276
        %v5278 = vand.u32 %v5277, 4294901760
        %5279 = vmatpush.msra.mxu0 %v5278
        %v5280 = vand.u32 %v5009, 4294901760
        %v5281 = vsub.f32 %v5009, %v5280
        %v5282 = vand.u32 %v5281, 4294901760
        %5283 = vmatpush.msra.mxu0 %v5282
        %v5284 = vand.u32 %v5008, 4294901760
        %v5285 = vsub.f32 %v5008, %v5284
        %v5286 = vand.u32 %v5285, 4294901760
        %5287 = vmatpush.msra.mxu0 %v5286
        %v5288 = vand.u32 %v5007, 4294901760
        %v5289 = vsub.f32 %v5007, %v5288
        %v5290 = vand.u32 %v5289, 4294901760
        %5291 = vmatpush.msra.mxu0 %v5290
        %v5292 = vand.u32 %v5006, 4294901760
        %v5293 = vsub.f32 %v5006, %v5292
        %v5294 = vand.u32 %v5293, 4294901760
        %5295 = vmatpush.msra.mxu0 %v5294
        %v5296 = vand.u32 %v5005, 4294901760
        %v5297 = vsub.f32 %v5005, %v5296
        %v5298 = vand.u32 %v5297, 4294901760
        %5299 = vmatpush.msra.mxu0 %v5298
        %v5300 = vand.u32 %v5004, 4294901760
        %v5301 = vsub.f32 %v5004, %v5300
        %v5302 = vand.u32 %v5301, 4294901760
        %5303 = vmatpush.msra.mxu0 %v5302
        %v5304 = vand.u32 %v5003, 4294901760
        %v5305 = vsub.f32 %v5003, %v5304
        %v5306 = vand.u32 %v5305, 4294901760
        %5307 = vmatpush.msra.mxu0 %v5306
        %v5308 = vand.u32 %v5002, 4294901760
        %v5309 = vsub.f32 %v5002, %v5308
        %v5310 = vand.u32 %v5309, 4294901760
        %5311 = vmatpush.msra.mxu0 %v5310
        %v5312 = vand.u32 %v5001, 4294901760
        %v5313 = vsub.f32 %v5001, %v5312
        %v5314 = vand.u32 %v5313, 4294901760
        %5315 = vmatpush.msra.mxu0 %v5314
        %v5316 = vand.u32 %v177, 4294901760
        %5317 = vmatmul.f32.gmra.mxu0 %v5316
        %v5318 = vpop.f32.mrf.mxu0
        %v5319 = vadd.f32 %v5250, %v5318
        %5320 = vdwg.mxu0
        %v5321 = vand.u32 %v5016, 4294901760
        %5322 = vmatpush.msra.mxu0 %v5321
        %v5323 = vand.u32 %v5015, 4294901760
        %5324 = vmatpush.msra.mxu0 %v5323
        %v5325 = vand.u32 %v5014, 4294901760
        %5326 = vmatpush.msra.mxu0 %v5325
        %v5327 = vand.u32 %v5013, 4294901760
        %5328 = vmatpush.msra.mxu0 %v5327
        %v5329 = vand.u32 %v5012, 4294901760
        %5330 = vmatpush.msra.mxu0 %v5329
        %v5331 = vand.u32 %v5011, 4294901760
        %5332 = vmatpush.msra.mxu0 %v5331
        %v5333 = vand.u32 %v5010, 4294901760
        %5334 = vmatpush.msra.mxu0 %v5333
        %v5335 = vand.u32 %v5009, 4294901760
        %5336 = vmatpush.msra.mxu0 %v5335
        %v5337 = vand.u32 %v5008, 4294901760
        %5338 = vmatpush.msra.mxu0 %v5337
        %v5339 = vand.u32 %v5007, 4294901760
        %5340 = vmatpush.msra.mxu0 %v5339
        %v5341 = vand.u32 %v5006, 4294901760
        %5342 = vmatpush.msra.mxu0 %v5341
        %v5343 = vand.u32 %v5005, 4294901760
        %5344 = vmatpush.msra.mxu0 %v5343
        %v5345 = vand.u32 %v5004, 4294901760
        %5346 = vmatpush.msra.mxu0 %v5345
        %v5347 = vand.u32 %v5003, 4294901760
        %5348 = vmatpush.msra.mxu0 %v5347
        %v5349 = vand.u32 %v5002, 4294901760
        %5350 = vmatpush.msra.mxu0 %v5349
        %v5351 = vand.u32 %v5001, 4294901760
        %5352 = vmatpush.msra.mxu0 %v5351
        %v5353 = vand.u32 %v177, 4294901760
        %5354 = vmatmul.f32.gmra.mxu0 %v5353
        %v5355 = vpop.f32.mrf.mxu0
        %v5356 = vadd.f32 %v5319, %v5355
        %5357 = vdwg.mxu0
        %v5358 = vand.u32 %v4975, 4294901760
        %5359 = vmatpush.msra.mxu0 %v5358
        %v5360 = vand.u32 %v4974, 4294901760
        %5361 = vmatpush.msra.mxu0 %v5360
        %v5362 = vand.u32 %v4973, 4294901760
        %5363 = vmatpush.msra.mxu0 %v5362
        %v5364 = vand.u32 %v4972, 4294901760
        %5365 = vmatpush.msra.mxu0 %v5364
        %v5366 = vand.u32 %v4971, 4294901760
        %5367 = vmatpush.msra.mxu0 %v5366
        %v5368 = vand.u32 %v4970, 4294901760
        %5369 = vmatpush.msra.mxu0 %v5368
        %v5370 = vand.u32 %v4969, 4294901760
        %5371 = vmatpush.msra.mxu0 %v5370
        %v5372 = vand.u32 %v4968, 4294901760
        %5373 = vmatpush.msra.mxu0 %v5372
        %v5374 = vand.u32 %v4967, 4294901760
        %5375 = vmatpush.msra.mxu0 %v5374
        %v5376 = vand.u32 %v4966, 4294901760
        %5377 = vmatpush.msra.mxu0 %v5376
        %v5378 = vand.u32 %v4965, 4294901760
        %5379 = vmatpush.msra.mxu0 %v5378
        %v5380 = vand.u32 %v4964, 4294901760
        %5381 = vmatpush.msra.mxu0 %v5380
        %v5382 = vand.u32 %v4963, 4294901760
        %5383 = vmatpush.msra.mxu0 %v5382
        %v5384 = vand.u32 %v4962, 4294901760
        %5385 = vmatpush.msra.mxu0 %v5384
        %v5386 = vand.u32 %v4961, 4294901760
        %5387 = vmatpush.msra.mxu0 %v5386
        %v5388 = vand.u32 %v4960, 4294901760
        %5389 = vmatpush.msra.mxu0 %v5388
        %v5390 = vand.u32 %v177, 4294901760
        %v5391 = vsub.f32 %v177, %v5390
        %v5392 = vand.u32 %v5391, 4294901760
        %v5393 = vsub.f32 %v5391, %v5392
        %v5394 = vand.u32 %v5393, 4294901760
        %5395 = vmatmul.f32.gmra.mxu0 %v5394
        %v5396 = vpop.f32.mrf.mxu0
        %v5397 = vadd.f32 %v5356, %v5396
        %5398 = vdwg.mxu0
        %v5399 = vand.u32 %v4975, 4294901760
        %v5400 = vsub.f32 %v4975, %v5399
        %v5401 = vand.u32 %v5400, 4294901760
        %v5402 = vsub.f32 %v5400, %v5401
        %v5403 = vand.u32 %v5402, 4294901760
        %5404 = vmatpush.msra.mxu0 %v5403
        %v5405 = vand.u32 %v4974, 4294901760
        %v5406 = vsub.f32 %v4974, %v5405
        %v5407 = vand.u32 %v5406, 4294901760
        %v5408 = vsub.f32 %v5406, %v5407
        %v5409 = vand.u32 %v5408, 4294901760
        %5410 = vmatpush.msra.mxu0 %v5409
        %v5411 = vand.u32 %v4973, 4294901760
        %v5412 = vsub.f32 %v4973, %v5411
        %v5413 = vand.u32 %v5412, 4294901760
        %v5414 = vsub.f32 %v5412, %v5413
        %v5415 = vand.u32 %v5414, 4294901760
        %5416 = vmatpush.msra.mxu0 %v5415
        %v5417 = vand.u32 %v4972, 4294901760
        %v5418 = vsub.f32 %v4972, %v5417
        %v5419 = vand.u32 %v5418, 4294901760
        %v5420 = vsub.f32 %v5418, %v5419
        %v5421 = vand.u32 %v5420, 4294901760
        %5422 = vmatpush.msra.mxu0 %v5421
        %v5423 = vand.u32 %v4971, 4294901760
        %v5424 = vsub.f32 %v4971, %v5423
        %v5425 = vand.u32 %v5424, 4294901760
        %v5426 = vsub.f32 %v5424, %v5425
        %v5427 = vand.u32 %v5426, 4294901760
        %5428 = vmatpush.msra.mxu0 %v5427
        %v5429 = vand.u32 %v4970, 4294901760
        %v5430 = vsub.f32 %v4970, %v5429
        %v5431 = vand.u32 %v5430, 4294901760
        %v5432 = vsub.f32 %v5430, %v5431
        %v5433 = vand.u32 %v5432, 4294901760
        %5434 = vmatpush.msra.mxu0 %v5433
        %v5435 = vand.u32 %v4969, 4294901760
        %v5436 = vsub.f32 %v4969, %v5435
        %v5437 = vand.u32 %v5436, 4294901760
        %v5438 = vsub.f32 %v5436, %v5437
        %v5439 = vand.u32 %v5438, 4294901760
        %5440 = vmatpush.msra.mxu0 %v5439
        %v5441 = vand.u32 %v4968, 4294901760
        %v5442 = vsub.f32 %v4968, %v5441
        %v5443 = vand.u32 %v5442, 4294901760
        %v5444 = vsub.f32 %v5442, %v5443
        %v5445 = vand.u32 %v5444, 4294901760
        %5446 = vmatpush.msra.mxu0 %v5445
        %v5447 = vand.u32 %v4967, 4294901760
        %v5448 = vsub.f32 %v4967, %v5447
        %v5449 = vand.u32 %v5448, 4294901760
        %v5450 = vsub.f32 %v5448, %v5449
        %v5451 = vand.u32 %v5450, 4294901760
        %5452 = vmatpush.msra.mxu0 %v5451
        %v5453 = vand.u32 %v4966, 4294901760
        %v5454 = vsub.f32 %v4966, %v5453
        %v5455 = vand.u32 %v5454, 4294901760
        %v5456 = vsub.f32 %v5454, %v5455
        %v5457 = vand.u32 %v5456, 4294901760
        %5458 = vmatpush.msra.mxu0 %v5457
        %v5459 = vand.u32 %v4965, 4294901760
        %v5460 = vsub.f32 %v4965, %v5459
        %v5461 = vand.u32 %v5460, 4294901760
        %v5462 = vsub.f32 %v5460, %v5461
        %v5463 = vand.u32 %v5462, 4294901760
        %5464 = vmatpush.msra.mxu0 %v5463
        %v5465 = vand.u32 %v4964, 4294901760
        %v5466 = vsub.f32 %v4964, %v5465
        %v5467 = vand.u32 %v5466, 4294901760
        %v5468 = vsub.f32 %v5466, %v5467
        %v5469 = vand.u32 %v5468, 4294901760
        %5470 = vmatpush.msra.mxu0 %v5469
        %v5471 = vand.u32 %v4963, 4294901760
        %v5472 = vsub.f32 %v4963, %v5471
        %v5473 = vand.u32 %v5472, 4294901760
        %v5474 = vsub.f32 %v5472, %v5473
        %v5475 = vand.u32 %v5474, 4294901760
        %5476 = vmatpush.msra.mxu0 %v5475
        %v5477 = vand.u32 %v4962, 4294901760
        %v5478 = vsub.f32 %v4962, %v5477
        %v5479 = vand.u32 %v5478, 4294901760
        %v5480 = vsub.f32 %v5478, %v5479
        %v5481 = vand.u32 %v5480, 4294901760
        %5482 = vmatpush.msra.mxu0 %v5481
        %v5483 = vand.u32 %v4961, 4294901760
        %v5484 = vsub.f32 %v4961, %v5483
        %v5485 = vand.u32 %v5484, 4294901760
        %v5486 = vsub.f32 %v5484, %v5485
        %v5487 = vand.u32 %v5486, 4294901760
        %5488 = vmatpush.msra.mxu0 %v5487
        %v5489 = vand.u32 %v4960, 4294901760
        %v5490 = vsub.f32 %v4960, %v5489
        %v5491 = vand.u32 %v5490, 4294901760
        %v5492 = vsub.f32 %v5490, %v5491
        %v5493 = vand.u32 %v5492, 4294901760
        %5494 = vmatpush.msra.mxu0 %v5493
        %v5495 = vand.u32 %v177, 4294901760
        %5496 = vmatmul.f32.gmra.mxu0 %v5495
        %v5497 = vpop.f32.mrf.mxu0
        %v5498 = vadd.f32 %v5397, %v5497
        %5499 = vdwg.mxu0
        %v5500 = vand.u32 %v4975, 4294901760
        %v5501 = vsub.f32 %v4975, %v5500
        %5502 = vmatpush.msra.mxu0 %v5501
        %v5503 = vand.u32 %v4974, 4294901760
        %v5504 = vsub.f32 %v4974, %v5503
        %5505 = vmatpush.msra.mxu0 %v5504
        %v5506 = vand.u32 %v4973, 4294901760
        %v5507 = vsub.f32 %v4973, %v5506
        %5508 = vmatpush.msra.mxu0 %v5507
        %v5509 = vand.u32 %v4972, 4294901760
        %v5510 = vsub.f32 %v4972, %v5509
        %5511 = vmatpush.msra.mxu0 %v5510
        %v5512 = vand.u32 %v4971, 4294901760
        %v5513 = vsub.f32 %v4971, %v5512
        %5514 = vmatpush.msra.mxu0 %v5513
        %v5515 = vand.u32 %v4970, 4294901760
        %v5516 = vsub.f32 %v4970, %v5515
        %5517 = vmatpush.msra.mxu0 %v5516
        %v5518 = vand.u32 %v4969, 4294901760
        %v5519 = vsub.f32 %v4969, %v5518
        %5520 = vmatpush.msra.mxu0 %v5519
        %v5521 = vand.u32 %v4968, 4294901760
        %v5522 = vsub.f32 %v4968, %v5521
        %5523 = vmatpush.msra.mxu0 %v5522
        %v5524 = vand.u32 %v4967, 4294901760
        %v5525 = vsub.f32 %v4967, %v5524
        %5526 = vmatpush.msra.mxu0 %v5525
        %v5527 = vand.u32 %v4966, 4294901760
        %v5528 = vsub.f32 %v4966, %v5527
        %5529 = vmatpush.msra.mxu0 %v5528
        %v5530 = vand.u32 %v4965, 4294901760
        %v5531 = vsub.f32 %v4965, %v5530
        %5532 = vmatpush.msra.mxu0 %v5531
        %v5533 = vand.u32 %v4964, 4294901760
        %v5534 = vsub.f32 %v4964, %v5533
        %5535 = vmatpush.msra.mxu0 %v5534
        %v5536 = vand.u32 %v4963, 4294901760
        %v5537 = vsub.f32 %v4963, %v5536
        %5538 = vmatpush.msra.mxu0 %v5537
        %v5539 = vand.u32 %v4962, 4294901760
        %v5540 = vsub.f32 %v4962, %v5539
        %5541 = vmatpush.msra.mxu0 %v5540
        %v5542 = vand.u32 %v4961, 4294901760
        %v5543 = vsub.f32 %v4961, %v5542
        %5544 = vmatpush.msra.mxu0 %v5543
        %v5545 = vand.u32 %v4960, 4294901760
        %v5546 = vsub.f32 %v4960, %v5545
        %5547 = vmatpush.msra.mxu0 %v5546
        %v5548 = vand.u32 %v177, 4294901760
        %v5549 = vsub.f32 %v177, %v5548
        %5550 = vmatmul.f32.gmra.mxu0 %v5549
        %v5551 = vpop.f32.mrf.mxu0
        %v5552 = vadd.f32 %v5498, %v5551
        %5553 = vdwg.mxu0
        %v5554 = vand.u32 %v4975, 4294901760
        %5555 = vmatpush.msra.mxu0 %v5554
        %v5556 = vand.u32 %v4974, 4294901760
        %5557 = vmatpush.msra.mxu0 %v5556
        %v5558 = vand.u32 %v4973, 4294901760
        %5559 = vmatpush.msra.mxu0 %v5558
        %v5560 = vand.u32 %v4972, 4294901760
        %5561 = vmatpush.msra.mxu0 %v5560
        %v5562 = vand.u32 %v4971, 4294901760
        %5563 = vmatpush.msra.mxu0 %v5562
        %v5564 = vand.u32 %v4970, 4294901760
        %5565 = vmatpush.msra.mxu0 %v5564
        %v5566 = vand.u32 %v4969, 4294901760
        %5567 = vmatpush.msra.mxu0 %v5566
        %v5568 = vand.u32 %v4968, 4294901760
        %5569 = vmatpush.msra.mxu0 %v5568
        %v5570 = vand.u32 %v4967, 4294901760
        %5571 = vmatpush.msra.mxu0 %v5570
        %v5572 = vand.u32 %v4966, 4294901760
        %5573 = vmatpush.msra.mxu0 %v5572
        %v5574 = vand.u32 %v4965, 4294901760
        %5575 = vmatpush.msra.mxu0 %v5574
        %v5576 = vand.u32 %v4964, 4294901760
        %5577 = vmatpush.msra.mxu0 %v5576
        %v5578 = vand.u32 %v4963, 4294901760
        %5579 = vmatpush.msra.mxu0 %v5578
        %v5580 = vand.u32 %v4962, 4294901760
        %5581 = vmatpush.msra.mxu0 %v5580
        %v5582 = vand.u32 %v4961, 4294901760
        %5583 = vmatpush.msra.mxu0 %v5582
        %v5584 = vand.u32 %v4960, 4294901760
        %5585 = vmatpush.msra.mxu0 %v5584
        %v5586 = vand.u32 %v177, 4294901760
        %v5587 = vsub.f32 %v177, %v5586
        %v5588 = vand.u32 %v5587, 4294901760
        %5589 = vmatmul.f32.gmra.mxu0 %v5588
        %v5590 = vpop.f32.mrf.mxu0
        %v5591 = vadd.f32 %v5552, %v5590
        %5592 = vdwg.mxu0
        %v5593 = vand.u32 %v4975, 4294901760
        %v5594 = vsub.f32 %v4975, %v5593
        %v5595 = vand.u32 %v5594, 4294901760
        %5596 = vmatpush.msra.mxu0 %v5595
        %v5597 = vand.u32 %v4974, 4294901760
        %v5598 = vsub.f32 %v4974, %v5597
        %v5599 = vand.u32 %v5598, 4294901760
        %5600 = vmatpush.msra.mxu0 %v5599
        %v5601 = vand.u32 %v4973, 4294901760
        %v5602 = vsub.f32 %v4973, %v5601
        %v5603 = vand.u32 %v5602, 4294901760
        %5604 = vmatpush.msra.mxu0 %v5603
        %v5605 = vand.u32 %v4972, 4294901760
        %v5606 = vsub.f32 %v4972, %v5605
        %v5607 = vand.u32 %v5606, 4294901760
        %5608 = vmatpush.msra.mxu0 %v5607
        %v5609 = vand.u32 %v4971, 4294901760
        %v5610 = vsub.f32 %v4971, %v5609
        %v5611 = vand.u32 %v5610, 4294901760
        %5612 = vmatpush.msra.mxu0 %v5611
        %v5613 = vand.u32 %v4970, 4294901760
        %v5614 = vsub.f32 %v4970, %v5613
        %v5615 = vand.u32 %v5614, 4294901760
        %5616 = vmatpush.msra.mxu0 %v5615
        %v5617 = vand.u32 %v4969, 4294901760
        %v5618 = vsub.f32 %v4969, %v5617
        %v5619 = vand.u32 %v5618, 4294901760
        %5620 = vmatpush.msra.mxu0 %v5619
        %v5621 = vand.u32 %v4968, 4294901760
        %v5622 = vsub.f32 %v4968, %v5621
        %v5623 = vand.u32 %v5622, 4294901760
        %5624 = vmatpush.msra.mxu0 %v5623
        %v5625 = vand.u32 %v4967, 4294901760
        %v5626 = vsub.f32 %v4967, %v5625
        %v5627 = vand.u32 %v5626, 4294901760
        %5628 = vmatpush.msra.mxu0 %v5627
        %v5629 = vand.u32 %v4966, 4294901760
        %v5630 = vsub.f32 %v4966, %v5629
        %v5631 = vand.u32 %v5630, 4294901760
        %5632 = vmatpush.msra.mxu0 %v5631
        %v5633 = vand.u32 %v4965, 4294901760
        %v5634 = vsub.f32 %v4965, %v5633
        %v5635 = vand.u32 %v5634, 4294901760
        %5636 = vmatpush.msra.mxu0 %v5635
        %v5637 = vand.u32 %v4964, 4294901760
        %v5638 = vsub.f32 %v4964, %v5637
        %v5639 = vand.u32 %v5638, 4294901760
        %5640 = vmatpush.msra.mxu0 %v5639
        %v5641 = vand.u32 %v4963, 4294901760
        %v5642 = vsub.f32 %v4963, %v5641
        %v5643 = vand.u32 %v5642, 4294901760
        %5644 = vmatpush.msra.mxu0 %v5643
        %v5645 = vand.u32 %v4962, 4294901760
        %v5646 = vsub.f32 %v4962, %v5645
        %v5647 = vand.u32 %v5646, 4294901760
        %5648 = vmatpush.msra.mxu0 %v5647
        %v5649 = vand.u32 %v4961, 4294901760
        %v5650 = vsub.f32 %v4961, %v5649
        %v5651 = vand.u32 %v5650, 4294901760
        %5652 = vmatpush.msra.mxu0 %v5651
        %v5653 = vand.u32 %v4960, 4294901760
        %v5654 = vsub.f32 %v4960, %v5653
        %v5655 = vand.u32 %v5654, 4294901760
        %5656 = vmatpush.msra.mxu0 %v5655
        %v5657 = vand.u32 %v177, 4294901760
        %5658 = vmatmul.f32.gmra.mxu0 %v5657
        %v5659 = vpop.f32.mrf.mxu0
        %v5660 = vadd.f32 %v5591, %v5659
        %5661 = vdwg.mxu0
        %v5662 = vand.u32 %v4975, 4294901760
        %5663 = vmatpush.msra.mxu0 %v5662
        %v5664 = vand.u32 %v4974, 4294901760
        %5665 = vmatpush.msra.mxu0 %v5664
        %v5666 = vand.u32 %v4973, 4294901760
        %5667 = vmatpush.msra.mxu0 %v5666
        %v5668 = vand.u32 %v4972, 4294901760
        %5669 = vmatpush.msra.mxu0 %v5668
        %v5670 = vand.u32 %v4971, 4294901760
        %5671 = vmatpush.msra.mxu0 %v5670
        %v5672 = vand.u32 %v4970, 4294901760
        %5673 = vmatpush.msra.mxu0 %v5672
        %v5674 = vand.u32 %v4969, 4294901760
        %5675 = vmatpush.msra.mxu0 %v5674
        %v5676 = vand.u32 %v4968, 4294901760
        %5677 = vmatpush.msra.mxu0 %v5676
        %v5678 = vand.u32 %v4967, 4294901760
        %5679 = vmatpush.msra.mxu0 %v5678
        %v5680 = vand.u32 %v4966, 4294901760
        %5681 = vmatpush.msra.mxu0 %v5680
        %v5682 = vand.u32 %v4965, 4294901760
        %5683 = vmatpush.msra.mxu0 %v5682
        %v5684 = vand.u32 %v4964, 4294901760
        %5685 = vmatpush.msra.mxu0 %v5684
        %v5686 = vand.u32 %v4963, 4294901760
        %5687 = vmatpush.msra.mxu0 %v5686
        %v5688 = vand.u32 %v4962, 4294901760
        %5689 = vmatpush.msra.mxu0 %v5688
        %v5690 = vand.u32 %v4961, 4294901760
        %5691 = vmatpush.msra.mxu0 %v5690
        %v5692 = vand.u32 %v4960, 4294901760
        %5693 = vmatpush.msra.mxu0 %v5692
        %v5694 = vand.u32 %v177, 4294901760
        %5695 = vmatmul.f32.gmra.mxu0 %v5694
        %v5696 = vpop.f32.mrf.mxu0
        %v5697 = vadd.f32 %v5660, %v5696
        %5698 = vdwg.mxu0
        %v5699 = vxor.u32 %v4932, %v4935
        %v5700 = vand.u32 %v5699, 63
        %v5701 = vmul.f32 %v4930, %v4939
        %v5702 = vperm.slane %v5700, 0
        %vm5703 = vcmp.eq.s32.totalorder %v5702, %v179
        %vm5704 = vcmp.eq.s32.totalorder %v5702, %v180
        %vm5705 = vcmp.eq.s32.totalorder %v5702, %v181
        %vm5706 = vcmp.eq.s32.totalorder %v5702, %v182
        %vm5707 = vcmp.eq.s32.totalorder %v5702, %v183
        %vm5708 = vcmp.eq.s32.totalorder %v5702, %v184
        %vm5709 = vcmp.eq.s32.totalorder %v5702, %v185
        %vm5710 = vcmp.eq.s32.totalorder %v5702, %v186
        %vm5711 = vcmp.eq.s32.totalorder %v5702, %v187
        %vm5712 = vcmp.eq.s32.totalorder %v5702, %v188
        %vm5713 = vcmp.eq.s32.totalorder %v5702, %v189
        %vm5714 = vcmp.eq.s32.totalorder %v5702, %v190
        %vm5715 = vcmp.eq.s32.totalorder %v5702, %v191
        %vm5716 = vcmp.eq.s32.totalorder %v5702, %v192
        %vm5717 = vcmp.eq.s32.totalorder %v5702, %v193
        %vm5718 = vcmp.eq.s32.totalorder %v5702, %v194
        %v5719 = vperm.slane %v5701, 0
        %v5720 = vsel %vm5703, %v5719, 0.0
        %v5721 = vsel %vm5704, %v5719, 0.0
        %v5722 = vsel %vm5705, %v5719, 0.0
        %v5723 = vsel %vm5706, %v5719, 0.0
        %v5724 = vsel %vm5707, %v5719, 0.0
        %v5725 = vsel %vm5708, %v5719, 0.0
        %v5726 = vsel %vm5709, %v5719, 0.0
        %v5727 = vsel %vm5710, %v5719, 0.0
        %v5728 = vsel %vm5711, %v5719, 0.0
        %v5729 = vsel %vm5712, %v5719, 0.0
        %v5730 = vsel %vm5713, %v5719, 0.0
        %v5731 = vsel %vm5714, %v5719, 0.0
        %v5732 = vsel %vm5715, %v5719, 0.0
        %v5733 = vsel %vm5716, %v5719, 0.0
        %v5734 = vsel %vm5717, %v5719, 0.0
        %v5735 = vsel %vm5718, %v5719, 0.0
        %v5736 = vand.u32 %v5735, 4294901760
        %5737 = vmatpush.msra.mxu0 %v5736
        %v5738 = vand.u32 %v5734, 4294901760
        %5739 = vmatpush.msra.mxu0 %v5738
        %v5740 = vand.u32 %v5733, 4294901760
        %5741 = vmatpush.msra.mxu0 %v5740
        %v5742 = vand.u32 %v5732, 4294901760
        %5743 = vmatpush.msra.mxu0 %v5742
        %v5744 = vand.u32 %v5731, 4294901760
        %5745 = vmatpush.msra.mxu0 %v5744
        %v5746 = vand.u32 %v5730, 4294901760
        %5747 = vmatpush.msra.mxu0 %v5746
        %v5748 = vand.u32 %v5729, 4294901760
        %5749 = vmatpush.msra.mxu0 %v5748
        %v5750 = vand.u32 %v5728, 4294901760
        %5751 = vmatpush.msra.mxu0 %v5750
        %v5752 = vand.u32 %v5727, 4294901760
        %5753 = vmatpush.msra.mxu0 %v5752
        %v5754 = vand.u32 %v5726, 4294901760
        %5755 = vmatpush.msra.mxu0 %v5754
        %v5756 = vand.u32 %v5725, 4294901760
        %5757 = vmatpush.msra.mxu0 %v5756
        %v5758 = vand.u32 %v5724, 4294901760
        %5759 = vmatpush.msra.mxu0 %v5758
        %v5760 = vand.u32 %v5723, 4294901760
        %5761 = vmatpush.msra.mxu0 %v5760
        %v5762 = vand.u32 %v5722, 4294901760
        %5763 = vmatpush.msra.mxu0 %v5762
        %v5764 = vand.u32 %v5721, 4294901760
        %5765 = vmatpush.msra.mxu0 %v5764
        %v5766 = vand.u32 %v5720, 4294901760
        %5767 = vmatpush.msra.mxu0 %v5766
        %v5768 = vand.u32 %v177, 4294901760
        %v5769 = vsub.f32 %v177, %v5768
        %v5770 = vand.u32 %v5769, 4294901760
        %v5771 = vsub.f32 %v5769, %v5770
        %v5772 = vand.u32 %v5771, 4294901760
        %5773 = vmatmul.f32.gmra.mxu0 %v5772
        %v5774 = vpop.f32.mrf.mxu0
        %v5775 = vadd.f32 0.0, %v5774
        %5776 = vdwg.mxu0
        %v5777 = vand.u32 %v5735, 4294901760
        %v5778 = vsub.f32 %v5735, %v5777
        %v5779 = vand.u32 %v5778, 4294901760
        %v5780 = vsub.f32 %v5778, %v5779
        %v5781 = vand.u32 %v5780, 4294901760
        %5782 = vmatpush.msra.mxu0 %v5781
        %v5783 = vand.u32 %v5734, 4294901760
        %v5784 = vsub.f32 %v5734, %v5783
        %v5785 = vand.u32 %v5784, 4294901760
        %v5786 = vsub.f32 %v5784, %v5785
        %v5787 = vand.u32 %v5786, 4294901760
        %5788 = vmatpush.msra.mxu0 %v5787
        %v5789 = vand.u32 %v5733, 4294901760
        %v5790 = vsub.f32 %v5733, %v5789
        %v5791 = vand.u32 %v5790, 4294901760
        %v5792 = vsub.f32 %v5790, %v5791
        %v5793 = vand.u32 %v5792, 4294901760
        %5794 = vmatpush.msra.mxu0 %v5793
        %v5795 = vand.u32 %v5732, 4294901760
        %v5796 = vsub.f32 %v5732, %v5795
        %v5797 = vand.u32 %v5796, 4294901760
        %v5798 = vsub.f32 %v5796, %v5797
        %v5799 = vand.u32 %v5798, 4294901760
        %5800 = vmatpush.msra.mxu0 %v5799
        %v5801 = vand.u32 %v5731, 4294901760
        %v5802 = vsub.f32 %v5731, %v5801
        %v5803 = vand.u32 %v5802, 4294901760
        %v5804 = vsub.f32 %v5802, %v5803
        %v5805 = vand.u32 %v5804, 4294901760
        %5806 = vmatpush.msra.mxu0 %v5805
        %v5807 = vand.u32 %v5730, 4294901760
        %v5808 = vsub.f32 %v5730, %v5807
        %v5809 = vand.u32 %v5808, 4294901760
        %v5810 = vsub.f32 %v5808, %v5809
        %v5811 = vand.u32 %v5810, 4294901760
        %5812 = vmatpush.msra.mxu0 %v5811
        %v5813 = vand.u32 %v5729, 4294901760
        %v5814 = vsub.f32 %v5729, %v5813
        %v5815 = vand.u32 %v5814, 4294901760
        %v5816 = vsub.f32 %v5814, %v5815
        %v5817 = vand.u32 %v5816, 4294901760
        %5818 = vmatpush.msra.mxu0 %v5817
        %v5819 = vand.u32 %v5728, 4294901760
        %v5820 = vsub.f32 %v5728, %v5819
        %v5821 = vand.u32 %v5820, 4294901760
        %v5822 = vsub.f32 %v5820, %v5821
        %v5823 = vand.u32 %v5822, 4294901760
        %5824 = vmatpush.msra.mxu0 %v5823
        %v5825 = vand.u32 %v5727, 4294901760
        %v5826 = vsub.f32 %v5727, %v5825
        %v5827 = vand.u32 %v5826, 4294901760
        %v5828 = vsub.f32 %v5826, %v5827
        %v5829 = vand.u32 %v5828, 4294901760
        %5830 = vmatpush.msra.mxu0 %v5829
        %v5831 = vand.u32 %v5726, 4294901760
        %v5832 = vsub.f32 %v5726, %v5831
        %v5833 = vand.u32 %v5832, 4294901760
        %v5834 = vsub.f32 %v5832, %v5833
        %v5835 = vand.u32 %v5834, 4294901760
        %5836 = vmatpush.msra.mxu0 %v5835
        %v5837 = vand.u32 %v5725, 4294901760
        %v5838 = vsub.f32 %v5725, %v5837
        %v5839 = vand.u32 %v5838, 4294901760
        %v5840 = vsub.f32 %v5838, %v5839
        %v5841 = vand.u32 %v5840, 4294901760
        %5842 = vmatpush.msra.mxu0 %v5841
        %v5843 = vand.u32 %v5724, 4294901760
        %v5844 = vsub.f32 %v5724, %v5843
        %v5845 = vand.u32 %v5844, 4294901760
        %v5846 = vsub.f32 %v5844, %v5845
        %v5847 = vand.u32 %v5846, 4294901760
        %5848 = vmatpush.msra.mxu0 %v5847
        %v5849 = vand.u32 %v5723, 4294901760
        %v5850 = vsub.f32 %v5723, %v5849
        %v5851 = vand.u32 %v5850, 4294901760
        %v5852 = vsub.f32 %v5850, %v5851
        %v5853 = vand.u32 %v5852, 4294901760
        %5854 = vmatpush.msra.mxu0 %v5853
        %v5855 = vand.u32 %v5722, 4294901760
        %v5856 = vsub.f32 %v5722, %v5855
        %v5857 = vand.u32 %v5856, 4294901760
        %v5858 = vsub.f32 %v5856, %v5857
        %v5859 = vand.u32 %v5858, 4294901760
        %5860 = vmatpush.msra.mxu0 %v5859
        %v5861 = vand.u32 %v5721, 4294901760
        %v5862 = vsub.f32 %v5721, %v5861
        %v5863 = vand.u32 %v5862, 4294901760
        %v5864 = vsub.f32 %v5862, %v5863
        %v5865 = vand.u32 %v5864, 4294901760
        %5866 = vmatpush.msra.mxu0 %v5865
        %v5867 = vand.u32 %v5720, 4294901760
        %v5868 = vsub.f32 %v5720, %v5867
        %v5869 = vand.u32 %v5868, 4294901760
        %v5870 = vsub.f32 %v5868, %v5869
        %v5871 = vand.u32 %v5870, 4294901760
        %5872 = vmatpush.msra.mxu0 %v5871
        %v5873 = vand.u32 %v177, 4294901760
        %5874 = vmatmul.f32.gmra.mxu0 %v5873
        %v5875 = vpop.f32.mrf.mxu0
        %v5876 = vadd.f32 %v5775, %v5875
        %5877 = vdwg.mxu0
        %v5878 = vand.u32 %v5735, 4294901760
        %v5879 = vsub.f32 %v5735, %v5878
        %5880 = vmatpush.msra.mxu0 %v5879
        %v5881 = vand.u32 %v5734, 4294901760
        %v5882 = vsub.f32 %v5734, %v5881
        %5883 = vmatpush.msra.mxu0 %v5882
        %v5884 = vand.u32 %v5733, 4294901760
        %v5885 = vsub.f32 %v5733, %v5884
        %5886 = vmatpush.msra.mxu0 %v5885
        %v5887 = vand.u32 %v5732, 4294901760
        %v5888 = vsub.f32 %v5732, %v5887
        %5889 = vmatpush.msra.mxu0 %v5888
        %v5890 = vand.u32 %v5731, 4294901760
        %v5891 = vsub.f32 %v5731, %v5890
        %5892 = vmatpush.msra.mxu0 %v5891
        %v5893 = vand.u32 %v5730, 4294901760
        %v5894 = vsub.f32 %v5730, %v5893
        %5895 = vmatpush.msra.mxu0 %v5894
        %v5896 = vand.u32 %v5729, 4294901760
        %v5897 = vsub.f32 %v5729, %v5896
        %5898 = vmatpush.msra.mxu0 %v5897
        %v5899 = vand.u32 %v5728, 4294901760
        %v5900 = vsub.f32 %v5728, %v5899
        %5901 = vmatpush.msra.mxu0 %v5900
        %v5902 = vand.u32 %v5727, 4294901760
        %v5903 = vsub.f32 %v5727, %v5902
        %5904 = vmatpush.msra.mxu0 %v5903
        %v5905 = vand.u32 %v5726, 4294901760
        %v5906 = vsub.f32 %v5726, %v5905
        %5907 = vmatpush.msra.mxu0 %v5906
        %v5908 = vand.u32 %v5725, 4294901760
        %v5909 = vsub.f32 %v5725, %v5908
        %5910 = vmatpush.msra.mxu0 %v5909
        %v5911 = vand.u32 %v5724, 4294901760
        %v5912 = vsub.f32 %v5724, %v5911
        %5913 = vmatpush.msra.mxu0 %v5912
        %v5914 = vand.u32 %v5723, 4294901760
        %v5915 = vsub.f32 %v5723, %v5914
        %5916 = vmatpush.msra.mxu0 %v5915
        %v5917 = vand.u32 %v5722, 4294901760
        %v5918 = vsub.f32 %v5722, %v5917
        %5919 = vmatpush.msra.mxu0 %v5918
        %v5920 = vand.u32 %v5721, 4294901760
        %v5921 = vsub.f32 %v5721, %v5920
        %5922 = vmatpush.msra.mxu0 %v5921
        %v5923 = vand.u32 %v5720, 4294901760
        %v5924 = vsub.f32 %v5720, %v5923
        %5925 = vmatpush.msra.mxu0 %v5924
        %v5926 = vand.u32 %v177, 4294901760
        %v5927 = vsub.f32 %v177, %v5926
        %5928 = vmatmul.f32.gmra.mxu0 %v5927
        %v5929 = vpop.f32.mrf.mxu0
        %v5930 = vadd.f32 %v5876, %v5929
        %5931 = vdwg.mxu0
        %v5932 = vand.u32 %v5735, 4294901760
        %5933 = vmatpush.msra.mxu0 %v5932
        %v5934 = vand.u32 %v5734, 4294901760
        %5935 = vmatpush.msra.mxu0 %v5934
        %v5936 = vand.u32 %v5733, 4294901760
        %5937 = vmatpush.msra.mxu0 %v5936
        %v5938 = vand.u32 %v5732, 4294901760
        %5939 = vmatpush.msra.mxu0 %v5938
        %v5940 = vand.u32 %v5731, 4294901760
        %5941 = vmatpush.msra.mxu0 %v5940
        %v5942 = vand.u32 %v5730, 4294901760
        %5943 = vmatpush.msra.mxu0 %v5942
        %v5944 = vand.u32 %v5729, 4294901760
        %5945 = vmatpush.msra.mxu0 %v5944
        %v5946 = vand.u32 %v5728, 4294901760
        %5947 = vmatpush.msra.mxu0 %v5946
        %v5948 = vand.u32 %v5727, 4294901760
        %5949 = vmatpush.msra.mxu0 %v5948
        %v5950 = vand.u32 %v5726, 4294901760
        %5951 = vmatpush.msra.mxu0 %v5950
        %v5952 = vand.u32 %v5725, 4294901760
        %5953 = vmatpush.msra.mxu0 %v5952
        %v5954 = vand.u32 %v5724, 4294901760
        %5955 = vmatpush.msra.mxu0 %v5954
        %v5956 = vand.u32 %v5723, 4294901760
        %5957 = vmatpush.msra.mxu0 %v5956
        %v5958 = vand.u32 %v5722, 4294901760
        %5959 = vmatpush.msra.mxu0 %v5958
        %v5960 = vand.u32 %v5721, 4294901760
        %5961 = vmatpush.msra.mxu0 %v5960
        %v5962 = vand.u32 %v5720, 4294901760
        %5963 = vmatpush.msra.mxu0 %v5962
        %v5964 = vand.u32 %v177, 4294901760
        %v5965 = vsub.f32 %v177, %v5964
        %v5966 = vand.u32 %v5965, 4294901760
        %5967 = vmatmul.f32.gmra.mxu0 %v5966
        %v5968 = vpop.f32.mrf.mxu0
        %v5969 = vadd.f32 %v5930, %v5968
        %5970 = vdwg.mxu0
        %v5971 = vand.u32 %v5735, 4294901760
        %v5972 = vsub.f32 %v5735, %v5971
        %v5973 = vand.u32 %v5972, 4294901760
        %5974 = vmatpush.msra.mxu0 %v5973
        %v5975 = vand.u32 %v5734, 4294901760
        %v5976 = vsub.f32 %v5734, %v5975
        %v5977 = vand.u32 %v5976, 4294901760
        %5978 = vmatpush.msra.mxu0 %v5977
        %v5979 = vand.u32 %v5733, 4294901760
        %v5980 = vsub.f32 %v5733, %v5979
        %v5981 = vand.u32 %v5980, 4294901760
        %5982 = vmatpush.msra.mxu0 %v5981
        %v5983 = vand.u32 %v5732, 4294901760
        %v5984 = vsub.f32 %v5732, %v5983
        %v5985 = vand.u32 %v5984, 4294901760
        %5986 = vmatpush.msra.mxu0 %v5985
        %v5987 = vand.u32 %v5731, 4294901760
        %v5988 = vsub.f32 %v5731, %v5987
        %v5989 = vand.u32 %v5988, 4294901760
        %5990 = vmatpush.msra.mxu0 %v5989
        %v5991 = vand.u32 %v5730, 4294901760
        %v5992 = vsub.f32 %v5730, %v5991
        %v5993 = vand.u32 %v5992, 4294901760
        %5994 = vmatpush.msra.mxu0 %v5993
        %v5995 = vand.u32 %v5729, 4294901760
        %v5996 = vsub.f32 %v5729, %v5995
        %v5997 = vand.u32 %v5996, 4294901760
        %5998 = vmatpush.msra.mxu0 %v5997
        %v5999 = vand.u32 %v5728, 4294901760
        %v6000 = vsub.f32 %v5728, %v5999
        %v6001 = vand.u32 %v6000, 4294901760
        %6002 = vmatpush.msra.mxu0 %v6001
        %v6003 = vand.u32 %v5727, 4294901760
        %v6004 = vsub.f32 %v5727, %v6003
        %v6005 = vand.u32 %v6004, 4294901760
        %6006 = vmatpush.msra.mxu0 %v6005
        %v6007 = vand.u32 %v5726, 4294901760
        %v6008 = vsub.f32 %v5726, %v6007
        %v6009 = vand.u32 %v6008, 4294901760
        %6010 = vmatpush.msra.mxu0 %v6009
        %v6011 = vand.u32 %v5725, 4294901760
        %v6012 = vsub.f32 %v5725, %v6011
        %v6013 = vand.u32 %v6012, 4294901760
        %6014 = vmatpush.msra.mxu0 %v6013
        %v6015 = vand.u32 %v5724, 4294901760
        %v6016 = vsub.f32 %v5724, %v6015
        %v6017 = vand.u32 %v6016, 4294901760
        %6018 = vmatpush.msra.mxu0 %v6017
        %v6019 = vand.u32 %v5723, 4294901760
        %v6020 = vsub.f32 %v5723, %v6019
        %v6021 = vand.u32 %v6020, 4294901760
        %6022 = vmatpush.msra.mxu0 %v6021
        %v6023 = vand.u32 %v5722, 4294901760
        %v6024 = vsub.f32 %v5722, %v6023
        %v6025 = vand.u32 %v6024, 4294901760
        %6026 = vmatpush.msra.mxu0 %v6025
        %v6027 = vand.u32 %v5721, 4294901760
        %v6028 = vsub.f32 %v5721, %v6027
        %v6029 = vand.u32 %v6028, 4294901760
        %6030 = vmatpush.msra.mxu0 %v6029
        %v6031 = vand.u32 %v5720, 4294901760
        %v6032 = vsub.f32 %v5720, %v6031
        %v6033 = vand.u32 %v6032, 4294901760
        %6034 = vmatpush.msra.mxu0 %v6033
        %v6035 = vand.u32 %v177, 4294901760
        %6036 = vmatmul.f32.gmra.mxu0 %v6035
        %v6037 = vpop.f32.mrf.mxu0
        %v6038 = vadd.f32 %v5969, %v6037
        %6039 = vdwg.mxu0
        %v6040 = vand.u32 %v5735, 4294901760
        %6041 = vmatpush.msra.mxu0 %v6040
        %v6042 = vand.u32 %v5734, 4294901760
        %6043 = vmatpush.msra.mxu0 %v6042
        %v6044 = vand.u32 %v5733, 4294901760
        %6045 = vmatpush.msra.mxu0 %v6044
        %v6046 = vand.u32 %v5732, 4294901760
        %6047 = vmatpush.msra.mxu0 %v6046
        %v6048 = vand.u32 %v5731, 4294901760
        %6049 = vmatpush.msra.mxu0 %v6048
        %v6050 = vand.u32 %v5730, 4294901760
        %6051 = vmatpush.msra.mxu0 %v6050
        %v6052 = vand.u32 %v5729, 4294901760
        %6053 = vmatpush.msra.mxu0 %v6052
        %v6054 = vand.u32 %v5728, 4294901760
        %6055 = vmatpush.msra.mxu0 %v6054
        %v6056 = vand.u32 %v5727, 4294901760
        %6057 = vmatpush.msra.mxu0 %v6056
        %v6058 = vand.u32 %v5726, 4294901760
        %6059 = vmatpush.msra.mxu0 %v6058
        %v6060 = vand.u32 %v5725, 4294901760
        %6061 = vmatpush.msra.mxu0 %v6060
        %v6062 = vand.u32 %v5724, 4294901760
        %6063 = vmatpush.msra.mxu0 %v6062
        %v6064 = vand.u32 %v5723, 4294901760
        %6065 = vmatpush.msra.mxu0 %v6064
        %v6066 = vand.u32 %v5722, 4294901760
        %6067 = vmatpush.msra.mxu0 %v6066
        %v6068 = vand.u32 %v5721, 4294901760
        %6069 = vmatpush.msra.mxu0 %v6068
        %v6070 = vand.u32 %v5720, 4294901760
        %6071 = vmatpush.msra.mxu0 %v6070
        %v6072 = vand.u32 %v177, 4294901760
        %6073 = vmatmul.f32.gmra.mxu0 %v6072
        %v6074 = vpop.f32.mrf.mxu0
        %v6075 = vadd.f32 %v6038, %v6074
        %6076 = vdwg.mxu0
        %v6077 = vadd.f32 %v5697, %v6075
        %v6078 = vxor.u32 %v4932, %v4976
        %v6079 = vand.u32 %v6078, 63
        %v6080 = vmul.f32 %v4930, %v4980
        %v6081 = vperm.slane %v6079, 0
        %vm6082 = vcmp.eq.s32.totalorder %v6081, %v179
        %vm6083 = vcmp.eq.s32.totalorder %v6081, %v180
        %vm6084 = vcmp.eq.s32.totalorder %v6081, %v181
        %vm6085 = vcmp.eq.s32.totalorder %v6081, %v182
        %vm6086 = vcmp.eq.s32.totalorder %v6081, %v183
        %vm6087 = vcmp.eq.s32.totalorder %v6081, %v184
        %vm6088 = vcmp.eq.s32.totalorder %v6081, %v185
        %vm6089 = vcmp.eq.s32.totalorder %v6081, %v186
        %vm6090 = vcmp.eq.s32.totalorder %v6081, %v187
        %vm6091 = vcmp.eq.s32.totalorder %v6081, %v188
        %vm6092 = vcmp.eq.s32.totalorder %v6081, %v189
        %vm6093 = vcmp.eq.s32.totalorder %v6081, %v190
        %vm6094 = vcmp.eq.s32.totalorder %v6081, %v191
        %vm6095 = vcmp.eq.s32.totalorder %v6081, %v192
        %vm6096 = vcmp.eq.s32.totalorder %v6081, %v193
        %vm6097 = vcmp.eq.s32.totalorder %v6081, %v194
        %v6098 = vperm.slane %v6080, 0
        %v6099 = vsel %vm6082, %v6098, 0.0
        %v6100 = vsel %vm6083, %v6098, 0.0
        %v6101 = vsel %vm6084, %v6098, 0.0
        %v6102 = vsel %vm6085, %v6098, 0.0
        %v6103 = vsel %vm6086, %v6098, 0.0
        %v6104 = vsel %vm6087, %v6098, 0.0
        %v6105 = vsel %vm6088, %v6098, 0.0
        %v6106 = vsel %vm6089, %v6098, 0.0
        %v6107 = vsel %vm6090, %v6098, 0.0
        %v6108 = vsel %vm6091, %v6098, 0.0
        %v6109 = vsel %vm6092, %v6098, 0.0
        %v6110 = vsel %vm6093, %v6098, 0.0
        %v6111 = vsel %vm6094, %v6098, 0.0
        %v6112 = vsel %vm6095, %v6098, 0.0
        %v6113 = vsel %vm6096, %v6098, 0.0
        %v6114 = vsel %vm6097, %v6098, 0.0
        %v6115 = vand.u32 %v6114, 4294901760
        %6116 = vmatpush.msra.mxu0 %v6115
        %v6117 = vand.u32 %v6113, 4294901760
        %6118 = vmatpush.msra.mxu0 %v6117
        %v6119 = vand.u32 %v6112, 4294901760
        %6120 = vmatpush.msra.mxu0 %v6119
        %v6121 = vand.u32 %v6111, 4294901760
        %6122 = vmatpush.msra.mxu0 %v6121
        %v6123 = vand.u32 %v6110, 4294901760
        %6124 = vmatpush.msra.mxu0 %v6123
        %v6125 = vand.u32 %v6109, 4294901760
        %6126 = vmatpush.msra.mxu0 %v6125
        %v6127 = vand.u32 %v6108, 4294901760
        %6128 = vmatpush.msra.mxu0 %v6127
        %v6129 = vand.u32 %v6107, 4294901760
        %6130 = vmatpush.msra.mxu0 %v6129
        %v6131 = vand.u32 %v6106, 4294901760
        %6132 = vmatpush.msra.mxu0 %v6131
        %v6133 = vand.u32 %v6105, 4294901760
        %6134 = vmatpush.msra.mxu0 %v6133
        %v6135 = vand.u32 %v6104, 4294901760
        %6136 = vmatpush.msra.mxu0 %v6135
        %v6137 = vand.u32 %v6103, 4294901760
        %6138 = vmatpush.msra.mxu0 %v6137
        %v6139 = vand.u32 %v6102, 4294901760
        %6140 = vmatpush.msra.mxu0 %v6139
        %v6141 = vand.u32 %v6101, 4294901760
        %6142 = vmatpush.msra.mxu0 %v6141
        %v6143 = vand.u32 %v6100, 4294901760
        %6144 = vmatpush.msra.mxu0 %v6143
        %v6145 = vand.u32 %v6099, 4294901760
        %6146 = vmatpush.msra.mxu0 %v6145
        %v6147 = vand.u32 %v177, 4294901760
        %v6148 = vsub.f32 %v177, %v6147
        %v6149 = vand.u32 %v6148, 4294901760
        %v6150 = vsub.f32 %v6148, %v6149
        %v6151 = vand.u32 %v6150, 4294901760
        %6152 = vmatmul.f32.gmra.mxu0 %v6151
        %v6153 = vpop.f32.mrf.mxu0
        %v6154 = vadd.f32 0.0, %v6153
        %6155 = vdwg.mxu0
        %v6156 = vand.u32 %v6114, 4294901760
        %v6157 = vsub.f32 %v6114, %v6156
        %v6158 = vand.u32 %v6157, 4294901760
        %v6159 = vsub.f32 %v6157, %v6158
        %v6160 = vand.u32 %v6159, 4294901760
        %6161 = vmatpush.msra.mxu0 %v6160
        %v6162 = vand.u32 %v6113, 4294901760
        %v6163 = vsub.f32 %v6113, %v6162
        %v6164 = vand.u32 %v6163, 4294901760
        %v6165 = vsub.f32 %v6163, %v6164
        %v6166 = vand.u32 %v6165, 4294901760
        %6167 = vmatpush.msra.mxu0 %v6166
        %v6168 = vand.u32 %v6112, 4294901760
        %v6169 = vsub.f32 %v6112, %v6168
        %v6170 = vand.u32 %v6169, 4294901760
        %v6171 = vsub.f32 %v6169, %v6170
        %v6172 = vand.u32 %v6171, 4294901760
        %6173 = vmatpush.msra.mxu0 %v6172
        %v6174 = vand.u32 %v6111, 4294901760
        %v6175 = vsub.f32 %v6111, %v6174
        %v6176 = vand.u32 %v6175, 4294901760
        %v6177 = vsub.f32 %v6175, %v6176
        %v6178 = vand.u32 %v6177, 4294901760
        %6179 = vmatpush.msra.mxu0 %v6178
        %v6180 = vand.u32 %v6110, 4294901760
        %v6181 = vsub.f32 %v6110, %v6180
        %v6182 = vand.u32 %v6181, 4294901760
        %v6183 = vsub.f32 %v6181, %v6182
        %v6184 = vand.u32 %v6183, 4294901760
        %6185 = vmatpush.msra.mxu0 %v6184
        %v6186 = vand.u32 %v6109, 4294901760
        %v6187 = vsub.f32 %v6109, %v6186
        %v6188 = vand.u32 %v6187, 4294901760
        %v6189 = vsub.f32 %v6187, %v6188
        %v6190 = vand.u32 %v6189, 4294901760
        %6191 = vmatpush.msra.mxu0 %v6190
        %v6192 = vand.u32 %v6108, 4294901760
        %v6193 = vsub.f32 %v6108, %v6192
        %v6194 = vand.u32 %v6193, 4294901760
        %v6195 = vsub.f32 %v6193, %v6194
        %v6196 = vand.u32 %v6195, 4294901760
        %6197 = vmatpush.msra.mxu0 %v6196
        %v6198 = vand.u32 %v6107, 4294901760
        %v6199 = vsub.f32 %v6107, %v6198
        %v6200 = vand.u32 %v6199, 4294901760
        %v6201 = vsub.f32 %v6199, %v6200
        %v6202 = vand.u32 %v6201, 4294901760
        %6203 = vmatpush.msra.mxu0 %v6202
        %v6204 = vand.u32 %v6106, 4294901760
        %v6205 = vsub.f32 %v6106, %v6204
        %v6206 = vand.u32 %v6205, 4294901760
        %v6207 = vsub.f32 %v6205, %v6206
        %v6208 = vand.u32 %v6207, 4294901760
        %6209 = vmatpush.msra.mxu0 %v6208
        %v6210 = vand.u32 %v6105, 4294901760
        %v6211 = vsub.f32 %v6105, %v6210
        %v6212 = vand.u32 %v6211, 4294901760
        %v6213 = vsub.f32 %v6211, %v6212
        %v6214 = vand.u32 %v6213, 4294901760
        %6215 = vmatpush.msra.mxu0 %v6214
        %v6216 = vand.u32 %v6104, 4294901760
        %v6217 = vsub.f32 %v6104, %v6216
        %v6218 = vand.u32 %v6217, 4294901760
        %v6219 = vsub.f32 %v6217, %v6218
        %v6220 = vand.u32 %v6219, 4294901760
        %6221 = vmatpush.msra.mxu0 %v6220
        %v6222 = vand.u32 %v6103, 4294901760
        %v6223 = vsub.f32 %v6103, %v6222
        %v6224 = vand.u32 %v6223, 4294901760
        %v6225 = vsub.f32 %v6223, %v6224
        %v6226 = vand.u32 %v6225, 4294901760
        %6227 = vmatpush.msra.mxu0 %v6226
        %v6228 = vand.u32 %v6102, 4294901760
        %v6229 = vsub.f32 %v6102, %v6228
        %v6230 = vand.u32 %v6229, 4294901760
        %v6231 = vsub.f32 %v6229, %v6230
        %v6232 = vand.u32 %v6231, 4294901760
        %6233 = vmatpush.msra.mxu0 %v6232
        %v6234 = vand.u32 %v6101, 4294901760
        %v6235 = vsub.f32 %v6101, %v6234
        %v6236 = vand.u32 %v6235, 4294901760
        %v6237 = vsub.f32 %v6235, %v6236
        %v6238 = vand.u32 %v6237, 4294901760
        %6239 = vmatpush.msra.mxu0 %v6238
        %v6240 = vand.u32 %v6100, 4294901760
        %v6241 = vsub.f32 %v6100, %v6240
        %v6242 = vand.u32 %v6241, 4294901760
        %v6243 = vsub.f32 %v6241, %v6242
        %v6244 = vand.u32 %v6243, 4294901760
        %6245 = vmatpush.msra.mxu0 %v6244
        %v6246 = vand.u32 %v6099, 4294901760
        %v6247 = vsub.f32 %v6099, %v6246
        %v6248 = vand.u32 %v6247, 4294901760
        %v6249 = vsub.f32 %v6247, %v6248
        %v6250 = vand.u32 %v6249, 4294901760
        %6251 = vmatpush.msra.mxu0 %v6250
        %v6252 = vand.u32 %v177, 4294901760
        %6253 = vmatmul.f32.gmra.mxu0 %v6252
        %v6254 = vpop.f32.mrf.mxu0
        %v6255 = vadd.f32 %v6154, %v6254
        %6256 = vdwg.mxu0
        %v6257 = vand.u32 %v6114, 4294901760
        %v6258 = vsub.f32 %v6114, %v6257
        %6259 = vmatpush.msra.mxu0 %v6258
        %v6260 = vand.u32 %v6113, 4294901760
        %v6261 = vsub.f32 %v6113, %v6260
        %6262 = vmatpush.msra.mxu0 %v6261
        %v6263 = vand.u32 %v6112, 4294901760
        %v6264 = vsub.f32 %v6112, %v6263
        %6265 = vmatpush.msra.mxu0 %v6264
        %v6266 = vand.u32 %v6111, 4294901760
        %v6267 = vsub.f32 %v6111, %v6266
        %6268 = vmatpush.msra.mxu0 %v6267
        %v6269 = vand.u32 %v6110, 4294901760
        %v6270 = vsub.f32 %v6110, %v6269
        %6271 = vmatpush.msra.mxu0 %v6270
        %v6272 = vand.u32 %v6109, 4294901760
        %v6273 = vsub.f32 %v6109, %v6272
        %6274 = vmatpush.msra.mxu0 %v6273
        %v6275 = vand.u32 %v6108, 4294901760
        %v6276 = vsub.f32 %v6108, %v6275
        %6277 = vmatpush.msra.mxu0 %v6276
        %v6278 = vand.u32 %v6107, 4294901760
        %v6279 = vsub.f32 %v6107, %v6278
        %6280 = vmatpush.msra.mxu0 %v6279
        %v6281 = vand.u32 %v6106, 4294901760
        %v6282 = vsub.f32 %v6106, %v6281
        %6283 = vmatpush.msra.mxu0 %v6282
        %v6284 = vand.u32 %v6105, 4294901760
        %v6285 = vsub.f32 %v6105, %v6284
        %6286 = vmatpush.msra.mxu0 %v6285
        %v6287 = vand.u32 %v6104, 4294901760
        %v6288 = vsub.f32 %v6104, %v6287
        %6289 = vmatpush.msra.mxu0 %v6288
        %v6290 = vand.u32 %v6103, 4294901760
        %v6291 = vsub.f32 %v6103, %v6290
        %6292 = vmatpush.msra.mxu0 %v6291
        %v6293 = vand.u32 %v6102, 4294901760
        %v6294 = vsub.f32 %v6102, %v6293
        %6295 = vmatpush.msra.mxu0 %v6294
        %v6296 = vand.u32 %v6101, 4294901760
        %v6297 = vsub.f32 %v6101, %v6296
        %6298 = vmatpush.msra.mxu0 %v6297
        %v6299 = vand.u32 %v6100, 4294901760
        %v6300 = vsub.f32 %v6100, %v6299
        %6301 = vmatpush.msra.mxu0 %v6300
        %v6302 = vand.u32 %v6099, 4294901760
        %v6303 = vsub.f32 %v6099, %v6302
        %6304 = vmatpush.msra.mxu0 %v6303
        %v6305 = vand.u32 %v177, 4294901760
        %v6306 = vsub.f32 %v177, %v6305
        %6307 = vmatmul.f32.gmra.mxu0 %v6306
        %v6308 = vpop.f32.mrf.mxu0
        %v6309 = vadd.f32 %v6255, %v6308
        %6310 = vdwg.mxu0
        %v6311 = vand.u32 %v6114, 4294901760
        %6312 = vmatpush.msra.mxu0 %v6311
        %v6313 = vand.u32 %v6113, 4294901760
        %6314 = vmatpush.msra.mxu0 %v6313
        %v6315 = vand.u32 %v6112, 4294901760
        %6316 = vmatpush.msra.mxu0 %v6315
        %v6317 = vand.u32 %v6111, 4294901760
        %6318 = vmatpush.msra.mxu0 %v6317
        %v6319 = vand.u32 %v6110, 4294901760
        %6320 = vmatpush.msra.mxu0 %v6319
        %v6321 = vand.u32 %v6109, 4294901760
        %6322 = vmatpush.msra.mxu0 %v6321
        %v6323 = vand.u32 %v6108, 4294901760
        %6324 = vmatpush.msra.mxu0 %v6323
        %v6325 = vand.u32 %v6107, 4294901760
        %6326 = vmatpush.msra.mxu0 %v6325
        %v6327 = vand.u32 %v6106, 4294901760
        %6328 = vmatpush.msra.mxu0 %v6327
        %v6329 = vand.u32 %v6105, 4294901760
        %6330 = vmatpush.msra.mxu0 %v6329
        %v6331 = vand.u32 %v6104, 4294901760
        %6332 = vmatpush.msra.mxu0 %v6331
        %v6333 = vand.u32 %v6103, 4294901760
        %6334 = vmatpush.msra.mxu0 %v6333
        %v6335 = vand.u32 %v6102, 4294901760
        %6336 = vmatpush.msra.mxu0 %v6335
        %v6337 = vand.u32 %v6101, 4294901760
        %6338 = vmatpush.msra.mxu0 %v6337
        %v6339 = vand.u32 %v6100, 4294901760
        %6340 = vmatpush.msra.mxu0 %v6339
        %v6341 = vand.u32 %v6099, 4294901760
        %6342 = vmatpush.msra.mxu0 %v6341
        %v6343 = vand.u32 %v177, 4294901760
        %v6344 = vsub.f32 %v177, %v6343
        %v6345 = vand.u32 %v6344, 4294901760
        %6346 = vmatmul.f32.gmra.mxu0 %v6345
        %v6347 = vpop.f32.mrf.mxu0
        %v6348 = vadd.f32 %v6309, %v6347
        %6349 = vdwg.mxu0
        %v6350 = vand.u32 %v6114, 4294901760
        %v6351 = vsub.f32 %v6114, %v6350
        %v6352 = vand.u32 %v6351, 4294901760
        %6353 = vmatpush.msra.mxu0 %v6352
        %v6354 = vand.u32 %v6113, 4294901760
        %v6355 = vsub.f32 %v6113, %v6354
        %v6356 = vand.u32 %v6355, 4294901760
        %6357 = vmatpush.msra.mxu0 %v6356
        %v6358 = vand.u32 %v6112, 4294901760
        %v6359 = vsub.f32 %v6112, %v6358
        %v6360 = vand.u32 %v6359, 4294901760
        %6361 = vmatpush.msra.mxu0 %v6360
        %v6362 = vand.u32 %v6111, 4294901760
        %v6363 = vsub.f32 %v6111, %v6362
        %v6364 = vand.u32 %v6363, 4294901760
        %6365 = vmatpush.msra.mxu0 %v6364
        %v6366 = vand.u32 %v6110, 4294901760
        %v6367 = vsub.f32 %v6110, %v6366
        %v6368 = vand.u32 %v6367, 4294901760
        %6369 = vmatpush.msra.mxu0 %v6368
        %v6370 = vand.u32 %v6109, 4294901760
        %v6371 = vsub.f32 %v6109, %v6370
        %v6372 = vand.u32 %v6371, 4294901760
        %6373 = vmatpush.msra.mxu0 %v6372
        %v6374 = vand.u32 %v6108, 4294901760
        %v6375 = vsub.f32 %v6108, %v6374
        %v6376 = vand.u32 %v6375, 4294901760
        %6377 = vmatpush.msra.mxu0 %v6376
        %v6378 = vand.u32 %v6107, 4294901760
        %v6379 = vsub.f32 %v6107, %v6378
        %v6380 = vand.u32 %v6379, 4294901760
        %6381 = vmatpush.msra.mxu0 %v6380
        %v6382 = vand.u32 %v6106, 4294901760
        %v6383 = vsub.f32 %v6106, %v6382
        %v6384 = vand.u32 %v6383, 4294901760
        %6385 = vmatpush.msra.mxu0 %v6384
        %v6386 = vand.u32 %v6105, 4294901760
        %v6387 = vsub.f32 %v6105, %v6386
        %v6388 = vand.u32 %v6387, 4294901760
        %6389 = vmatpush.msra.mxu0 %v6388
        %v6390 = vand.u32 %v6104, 4294901760
        %v6391 = vsub.f32 %v6104, %v6390
        %v6392 = vand.u32 %v6391, 4294901760
        %6393 = vmatpush.msra.mxu0 %v6392
        %v6394 = vand.u32 %v6103, 4294901760
        %v6395 = vsub.f32 %v6103, %v6394
        %v6396 = vand.u32 %v6395, 4294901760
        %6397 = vmatpush.msra.mxu0 %v6396
        %v6398 = vand.u32 %v6102, 4294901760
        %v6399 = vsub.f32 %v6102, %v6398
        %v6400 = vand.u32 %v6399, 4294901760
        %6401 = vmatpush.msra.mxu0 %v6400
        %v6402 = vand.u32 %v6101, 4294901760
        %v6403 = vsub.f32 %v6101, %v6402
        %v6404 = vand.u32 %v6403, 4294901760
        %6405 = vmatpush.msra.mxu0 %v6404
        %v6406 = vand.u32 %v6100, 4294901760
        %v6407 = vsub.f32 %v6100, %v6406
        %v6408 = vand.u32 %v6407, 4294901760
        %6409 = vmatpush.msra.mxu0 %v6408
        %v6410 = vand.u32 %v6099, 4294901760
        %v6411 = vsub.f32 %v6099, %v6410
        %v6412 = vand.u32 %v6411, 4294901760
        %6413 = vmatpush.msra.mxu0 %v6412
        %v6414 = vand.u32 %v177, 4294901760
        %6415 = vmatmul.f32.gmra.mxu0 %v6414
        %v6416 = vpop.f32.mrf.mxu0
        %v6417 = vadd.f32 %v6348, %v6416
        %6418 = vdwg.mxu0
        %v6419 = vand.u32 %v6114, 4294901760
        %6420 = vmatpush.msra.mxu0 %v6419
        %v6421 = vand.u32 %v6113, 4294901760
        %6422 = vmatpush.msra.mxu0 %v6421
        %v6423 = vand.u32 %v6112, 4294901760
        %6424 = vmatpush.msra.mxu0 %v6423
        %v6425 = vand.u32 %v6111, 4294901760
        %6426 = vmatpush.msra.mxu0 %v6425
        %v6427 = vand.u32 %v6110, 4294901760
        %6428 = vmatpush.msra.mxu0 %v6427
        %v6429 = vand.u32 %v6109, 4294901760
        %6430 = vmatpush.msra.mxu0 %v6429
        %v6431 = vand.u32 %v6108, 4294901760
        %6432 = vmatpush.msra.mxu0 %v6431
        %v6433 = vand.u32 %v6107, 4294901760
        %6434 = vmatpush.msra.mxu0 %v6433
        %v6435 = vand.u32 %v6106, 4294901760
        %6436 = vmatpush.msra.mxu0 %v6435
        %v6437 = vand.u32 %v6105, 4294901760
        %6438 = vmatpush.msra.mxu0 %v6437
        %v6439 = vand.u32 %v6104, 4294901760
        %6440 = vmatpush.msra.mxu0 %v6439
        %v6441 = vand.u32 %v6103, 4294901760
        %6442 = vmatpush.msra.mxu0 %v6441
        %v6443 = vand.u32 %v6102, 4294901760
        %6444 = vmatpush.msra.mxu0 %v6443
        %v6445 = vand.u32 %v6101, 4294901760
        %6446 = vmatpush.msra.mxu0 %v6445
        %v6447 = vand.u32 %v6100, 4294901760
        %6448 = vmatpush.msra.mxu0 %v6447
        %v6449 = vand.u32 %v6099, 4294901760
        %6450 = vmatpush.msra.mxu0 %v6449
        %v6451 = vand.u32 %v177, 4294901760
        %6452 = vmatmul.f32.gmra.mxu0 %v6451
        %v6453 = vpop.f32.mrf.mxu0
        %v6454 = vadd.f32 %v6417, %v6453
        %6455 = vdwg.mxu0
        %v6456 = vadd.f32 %v6077, %v6454
        %v6457 = vmul.f32 %v4924, %v6456
        %6458 = vst [vmem:[%s175] sm:$0xff] %v6457
        %s6459 = sand.u32 %s75, 1
        %s6460 = scalar_lea.sflag [#allocation4], %s6459
        %s6461 = sand.u32 %s75, 1
        %s6462 = smul.addr %s6461, 8
        %s6463 = scalar_lea.vmem [#allocation7], %s6462
        // Predicated region
        $region37: #{tpu_custom_call.1} parent=27 // pred_check
          %p6464 = pneg %p85
        $region38: #{tpu_custom_call.1} parent=27 // pred_check_branch
          %6466 = sbr.rel (%p6464) target = $region40
        $region39: #{tpu_custom_call.1} parent=27 // pred_region
          %6468 = vsyncadd %s6460, 0
          %s6469 = smul.addr %s20, 8
          %s6470 = scalar_lea.hbm %s2, %s6469
          %s6472 = sshll.u32 %s6463, 4
          %s6473 = int_to_ptr.vmem [resolvable:$true] %s6472
          %s6474 = sshll.u32 %s6470, 4
          %s6475 = int_to_ptr.hbm [resolvable:$true] %s6474
          %6477 = dma.vmem_to_hbm [thread:$0]  %s6473, 128, %s6475, %s6460
        $region40: #{tpu_custom_call.1} parent=27 // pred_fallthru
          _
      $region28: #{tpu_custom_call.1} parent=5 // pred_fallthru
        _
      %p6478 = scmp.le.s32.totalorder 2, %s15
      // Predicated region
      $region41: #{tpu_custom_call.1} parent=5 // pred_check
        %p6479 = pneg %p6478
      $region42: #{tpu_custom_call.1} parent=5 // pred_check_branch
        %6481 = sbr.rel (%p6479) target = $region44
      $region43: #{tpu_custom_call.1} parent=5 // pred_region
        %s6482 = ssub.s32 %s15, 2
        // Predicated region
        $region45: #{tpu_custom_call.1} parent=43 // pred_check
          %p6483 = pneg %p91
        $region46: #{tpu_custom_call.1} parent=43 // pred_check_branch
          %6485 = sbr.rel (%p6483) target = $region48
        $region47: #{tpu_custom_call.1} parent=43 // pred_region
          %s6486 = sand.u32 %s76, 1
          %s6487 = scalar_lea.sflag [#allocation4], %s6486
          %s6488 = sand.u32 %s76, 1
          %s6489 = smul.addr %s6488, 8
          %s6490 = scalar_lea.vmem [#allocation7], %s6489
          %6492 = dma.done %s6487, 128
        $region48: #{tpu_custom_call.1} parent=43 // pred_fallthru
          _
      $region44: #{tpu_custom_call.1} parent=5 // pred_fallthru
        _
    $region6: #{tpu_custom_call.1} parent=1 // loop_footer
      %s19 = sadd.s32 1, %s15
    $region7: #{tpu_custom_call.1} parent=1 // loop_footer_branch
      %14 = sbr.rel target = $region3
    $region8: #{tpu_custom_call.1} parent=1 // loop_exit
      _
    %6493 = vsyncpa [#allocation3], 1
    %s6494 = scalar_lea.sflag [#allocation3], 1
    %6495 = vsyncpa %s6494, 1
    %6496 = vsyncpa [#allocation6], 1
    %6497 = vsyncpa [#allocation4], 1
    %s6498 = scalar_lea.sflag [#allocation4], 1
    %6499 = vsyncpa %s6498, 1

</llo_original>
